<compile_context>
chip_gen: v5e
topology: v5e:2x2
jax: 0.10.0
libtpu: 0.0.40
codegen_flags: <defaults>
</compile_context>

<pallas_src>
import functools

import jax
import jax.numpy as jnp
from jax.experimental import pallas as pl
from jax.experimental.pallas import tpu as pltpu

EPS = 1e-5
VMEM_LIMIT = 48 * 1024 * 1024   # v7x-safe scoped VMEM; raise on v5e/v6e if needed

_TAPS = tuple((dy, dx) for dy in range(3) for dx in range(3))


# ----------------------------- kernel helpers --------------------------------

def _conv3x3_taps(src_ref, w_ref, L, Wp):
    """3x3 conv over the row-flattened padded image as 9 contiguous shifted-slice
    matmuls (K = C per tap, 9*C total), accumulated in f32.

    src_ref: ((H+4)*Wp, C) f32 padded image, w_ref: (9, C, Cout) bf16.
    Returns (L, Cout) f32 with L = H*Wp (includes 2 garbage pad columns per row).
    """
    acc = None
    for t, (dy, dx) in enumerate(_TAPS):
        start = (dy + 1) * Wp + (dx - 1)          # static offset, always in-bounds
        tap = src_ref[start:start + L, :].astype(jnp.bfloat16)
        d = jnp.dot(tap, w_ref[t], preferred_element_type=jnp.float32)
        acc = d if acc is None else acc + d
    return acc


def _write_batch_stats(st_ref, acc, mask):
    """Per-batch-element channel sum / sum-of-squares over real pixels only."""
    am = acc * mask                               # mask zeroes the pad-column rows
    st_ref[0:1, :] = jnp.sum(am, axis=0, keepdims=True)
    st_ref[1:2, :] = jnp.sum(am * acc, axis=0, keepdims=True)


# ------------------------------- kernels --------------------------------------

def _conv1_kernel(xp_ref, w_ref, mask_ref, acc_ref, st_ref, *, H, W):
    """conv3x3(x) -> pre-BN activation (bf16) + per-batch BN statistics."""
    Wp = W + 2
    L = H * Wp
    acc = _conv3x3_taps(xp_ref, w_ref, L, Wp)
    _write_batch_stats(st_ref, acc, mask_ref[...])
    acc_ref[...] = acc.astype(acc_ref.dtype)


def _conv2_fused_kernel(a1_ref, w_ref, mask_ref, sc_ref, sh_ref,
                        acc_ref, st_ref, ypad_ref, *, H, W):
    """Fused layer 2: y = relu(BN1(acc1)) is built and re-padded entirely in VMEM
    (never hits HBM), then conv3x3(y) -> pre-BN activation (bf16) + statistics."""
    Wp = W + 2
    L = H * Wp
    mask = mask_ref[...]                                       # (L, 1)
    y = jnp.maximum(a1_ref[...].astype(jnp.float32) * sc_ref[...] + sh_ref[...], 0.0)
    y = y * mask                                               # zero pad columns of y
    zrow = jnp.zeros((2 * Wp, ypad_ref.shape[1]), ypad_ref.dtype)
    ypad_ref[0:2 * Wp, :] = zrow                               # top zero-pad rows
    ypad_ref[(H + 2) * Wp:(H + 4) * Wp, :] = zrow              # bottom zero-pad rows
    ypad_ref[2 * Wp:(H + 2) * Wp, :] = y
    acc = _conv3x3_taps(ypad_ref, w_ref, L, Wp)
    _write_batch_stats(st_ref, acc, mask)
    acc_ref[...] = acc.astype(acc_ref.dtype)


def _bn_add_relu_kernel(a2_ref, xp_ref, sc_ref, sh_ref, o_ref, *, H, W):
    """BN2 scale/shift + residual add (identity sliced from padded x) + ReLU."""
    Wp = W + 2
    ident = xp_ref[2 * Wp:(H + 2) * Wp, :]                     # f32, pad cols are 0
    y = a2_ref[...].astype(jnp.float32) * sc_ref[...] + sh_ref[...]
    o_ref[...] = jnp.maximum(y + ident, 0.0)


# --------------------------- pallas_call wrappers ------------------------------

def _conv1_call(xp, w, mask, N, H, W, C):
    Wp = W + 2
    L = H * Wp
    Rp = (H + 4) * Wp
    return pl.pallas_call(
        functools.partial(_conv1_kernel, H=H, W=W),
        out_shape=(jax.ShapeDtypeStruct((N, L, C), jnp.bfloat16),   # pre-BN activation
                   jax.ShapeDtypeStruct((N, 2, C), jnp.float32)),   # [sum; sumsq] per batch
        grid=(N,),
        in_specs=[pl.BlockSpec((None, Rp, C), lambda n: (n, 0, 0)),
                  pl.BlockSpec((9, C, C), lambda n: (0, 0, 0)),
                  pl.BlockSpec((L, 1), lambda n: (0, 0))],
        out_specs=(pl.BlockSpec((None, L, C), lambda n: (n, 0, 0)),
                   pl.BlockSpec((None, 2, C), lambda n: (n, 0, 0))),
        compiler_params=pltpu.CompilerParams(
            dimension_semantics=("parallel",),       # batches shard across cores (v7x)
            vmem_limit_bytes=VMEM_LIMIT),
    )(xp, w, mask)


def _conv2_call(acc1, w, mask, sc1, sh1, N, H, W, C):
    Wp = W + 2
    L = H * Wp
    return pl.pallas_call(
        functools.partial(_conv2_fused_kernel, H=H, W=W),
        out_shape=(jax.ShapeDtypeStruct((N, L, C), jnp.bfloat16),
                   jax.ShapeDtypeStruct((N, 2, C), jnp.float32)),
        grid=(N,),
        in_specs=[pl.BlockSpec((None, L, C), lambda n: (n, 0, 0)),
                  pl.BlockSpec((9, C, C), lambda n: (0, 0, 0)),
                  pl.BlockSpec((L, 1), lambda n: (0, 0)),
                  pl.BlockSpec((1, C), lambda n: (0, 0)),
                  pl.BlockSpec((1, C), lambda n: (0, 0))],
        out_specs=(pl.BlockSpec((None, L, C), lambda n: (n, 0, 0)),
                   pl.BlockSpec((None, 2, C), lambda n: (n, 0, 0))),
        scratch_shapes=[pltpu.VMEM(((H + 4) * Wp, C), jnp.float32)],   # re-padded y
        compiler_params=pltpu.CompilerParams(
            dimension_semantics=("parallel",),
            vmem_limit_bytes=VMEM_LIMIT),
    )(acc1, w, mask, sc1, sh1)


def _epilogue_call(acc2, xp, sc2, sh2, N, H, W, C):
    Wp = W + 2
    L = H * Wp
    Rp = (H + 4) * Wp
    return pl.pallas_call(
        functools.partial(_bn_add_relu_kernel, H=H, W=W),
        out_shape=jax.ShapeDtypeStruct((N, L, C), jnp.float32),
        grid=(N,),
        in_specs=[pl.BlockSpec((None, L, C), lambda n: (n, 0, 0)),
                  pl.BlockSpec((None, Rp, C), lambda n: (n, 0, 0)),
                  pl.BlockSpec((1, C), lambda n: (0, 0)),
                  pl.BlockSpec((1, C), lambda n: (0, 0))],
        out_specs=pl.BlockSpec((None, L, C), lambda n: (n, 0, 0)),
        compiler_params=pltpu.CompilerParams(
            dimension_semantics=("parallel",),
            vmem_limit_bytes=VMEM_LIMIT),
    )(acc2, xp, sc2, sh2)


# ------------------------------ JAX glue --------------------------------------

def _batch_scale_shift(stats, gamma, beta, count):
    """Reduce per-batch partial (sum, sumsq) to per-channel BN scale/shift."""
    s = jnp.sum(stats[:, 0, :], axis=0)
    ss = jnp.sum(stats[:, 1, :], axis=0)
    mean = s / count
    var = jnp.maximum(ss / count - mean * mean, 0.0)     # guard E[x^2]-E[x]^2 >= 0
    scale = gamma * jax.lax.rsqrt(var + EPS)
    shift = beta - mean * scale
    return scale.reshape(1, -1), shift.reshape(1, -1)


def init_resblock_params(key, in_channels, out_channels):
    """Deterministic synthetic parameters matching the nn.Module shapes."""
    k1, k2 = jax.random.split(key)
    fan_in = in_channels * 3 * 3
    bound = (1.0 / fan_in) ** 0.5
    w1 = jax.random.uniform(k1, (out_channels, in_channels, 3, 3),
                            jnp.float32, -bound, bound)
    w2 = jax.random.uniform(k2, (out_channels, in_channels, 3, 3),
                            jnp.float32, -bound, bound)
    g1 = jnp.ones((out_channels,), jnp.float32)
    b1 = jnp.zeros((out_channels,), jnp.float32)
    g2 = jnp.ones((out_channels,), jnp.float32)
    b2 = jnp.zeros((out_channels,), jnp.float32)
    return (w1, g1, b1, w2, g2, b2)


@jax.jit
def resblock_forward(x_nchw, params):
    w1, g1, b1, w2, g2, b2 = params
    N, C, H, W = x_nchw.shape
    Cout = w1.shape[0]
    # Reference forward is only well-defined for stride == 1, in == out (skip is None).
    assert C == Cout

    Wp = W + 2
    L = H * Wp
    count = float(N * H * W)                 # BN stats over real pixels only

    # NHWC, spatially zero-padded (2 rows / 1 col; the extra row pair keeps every
    # shifted tap slice in-bounds), flattened to 2D "extended rows".
    x = jnp.transpose(x_nchw, (0, 2, 3, 1)).astype(jnp.float32)
    xp = jnp.pad(x, ((0, 0), (2, 2), (1, 1), (0, 0))).reshape(N, (H + 4) * Wp, C)

    # Conv weights -> (9, Cin, Cout) bf16 tap matrices (contraction = 9*C exactly).
    def prep_w(w):
        return jnp.transpose(w, (2, 3, 1, 0)).reshape(9, C, Cout).astype(jnp.bfloat16)
    w1k, w2k = prep_w(w1), prep_w(w2)

    # Validity mask over extended rows (pad columns excluded from BN statistics).
    col = jnp.arange(L, dtype=jnp.int32) % Wp
    mask = ((col >= 1) & (col <= W)).astype(jnp.float32).reshape(L, 1)

    # ---- layer 1: conv3x3 -> stats (BN1 + ReLU fused into layer 2's kernel) ----
    acc1, st1 = _conv1_call(xp, w1k, mask, N, H, W, C)
    sc1, sh1 = _batch_scale_shift(st1, g1, b1, count)

    # ---- layer 2: relu(BN1(acc1)) -> conv3x3 -> stats ---------------------------
    acc2, st2 = _conv2_call(acc1, w2k, mask, sc1, sh1, N, H, W, C)
    sc2, sh2 = _batch_scale_shift(st2, g2, b2, count)

    # ---- epilogue: BN2 -> + identity -> ReLU -----------------------------------
    out_ext = _epilogue_call(acc2, xp, sc2, sh2, N, H, W, C)
    out = out_ext.reshape(N, H, Wp, C)[:, :, 1:W + 1, :]       # drop pad columns
    return jnp.transpose(out, (0, 3, 1, 2))                    # back to NCHW


# ---------------------------- pure-JAX reference -------------------------------

def _resblock_reference(x_nchw, params):
    w1, g1, b1, w2, g2, b2 = params
    x = jnp.transpose(x_nchw, (0, 2, 3, 1)).astype(jnp.float32)

    def conv_bn(h, w, g, b):
        wk = jnp.transpose(w, (2, 3, 1, 0))    # HWIO
        y = jax.lax.conv_general_dilated(
            h, wk, window_strides=(1, 1), padding="SAME",
            dimension_numbers=("NHWC", "HWIO", "NHWC"))
        mean = jnp.mean(y, axis=(0, 1, 2))
        var = jnp.mean((y - mean) ** 2, axis=(0, 1, 2))
        return (y - mean) * jax.lax.rsqrt(var + EPS) * g + b

    h = jax.nn.relu(conv_bn(x, w1, g1, b1))
    h = conv_bn(h, w2, g2, b2) + x
    return jnp.transpose(jax.nn.relu(h), (0, 3, 1, 2))


if __name__ == "__main__":
    key = jax.random.PRNGKey(0)
    kx, kp = jax.random.split(key)

    N, C, H, W = 2, 8, 16, 16          # in_channels == out_channels, stride == 1
    x = jax.random.normal(kx, (N, C, H, W), jnp.float32)
    params = init_resblock_params(kp, C, C)

    out = resblock_forward(x, params)
    jax.block_until_ready(out)

    assert out.shape == (N, C, H, W)
    assert bool(jnp.all(jnp.isfinite(out)))
    assert bool(jnp.all(out >= 0.0))   # final ReLU

    # loose tolerance: bf16 MXU path + bf16 intermediates vs f32 reference
    ref = _resblock_reference(x, params)
    max_err = float(jnp.max(jnp.abs(out - ref)))
    assert max_err < 0.2, f"max abs error vs reference too large: {max_err}"

    print("KERNEL_OK")
</pallas_src>

<mosaic_0001>
module attributes {stable_mosaic.version = 11 : i64} {
  func.func @_conv1_kernel(%arg0: i32, %arg1: memref<1x360x8xf32, #tpu.memory_space<vmem>>, %arg2: memref<9x8x8xbf16, #tpu.memory_space<vmem>>, %arg3: memref<288x1xf32, #tpu.memory_space<vmem>>, %arg4: memref<1x288x8xbf16, #tpu.memory_space<vmem>>, %arg5: memref<1x2x8xf32, #tpu.memory_space<vmem>>) attributes {dimension_semantics = [#tpu.dimension_semantics<parallel>], iteration_bounds = array<i64: 2>, scalar_prefetch = 0 : i64, scratch_operands = 0 : i64, tpu.core_type = #tpu.core_type<tc>, window_params = [{transform_indices = @transform_0, window_bounds = array<i64: 1, 360, 8>}, {pipeline_mode = #tpu.pipeline_mode<synchronous>, transform_indices = @transform_1, window_bounds = array<i64: 9, 8, 8>}, {pipeline_mode = #tpu.pipeline_mode<synchronous>, transform_indices = @transform_2, window_bounds = array<i64: 288, 1>}, {transform_indices = @transform_3, window_bounds = array<i64: 1, 288, 8>}, {transform_indices = @transform_4, window_bounds = array<i64: 1, 2, 8>}]} {
    %c0 = arith.constant 0 : index
    %c17 = arith.constant 17 : index
    %c0_0 = arith.constant 0 : index
    %0 = vector.load %arg1[%c0, %c17, %c0_0] : memref<1x360x8xf32, #tpu.memory_space<vmem>>, vector<1x288x8xf32>
    %1 = vector.shape_cast %0 : vector<1x288x8xf32> to vector<288x8xf32>
    %2 = arith.truncf %1 : vector<288x8xf32> to vector<288x8xbf16>
    %c0_1 = arith.constant 0 : index
    %c0_2 = arith.constant 0 : index
    %c0_3 = arith.constant 0 : index
    %3 = vector.load %arg2[%c0_1, %c0_2, %c0_3] : memref<9x8x8xbf16, #tpu.memory_space<vmem>>, vector<1x8x8xbf16>
    %4 = vector.shape_cast %3 : vector<1x8x8xbf16> to vector<8x8xbf16>
    %cst = arith.constant dense<0.000000e+00> : vector<288x8xf32>
    %5 = tpu.matmul %2, %4, %cst {dimension_numbers = #tpu.dot_dimension_numbers<[1], [0], [0], [1], [0, 0, 1, 1], [], []>} : vector<288x8xbf16>, vector<8x8xbf16>, vector<288x8xf32> -> vector<288x8xf32>
    %c0_4 = arith.constant 0 : index
    %c18 = arith.constant 18 : index
    %c0_5 = arith.constant 0 : index
    %6 = vector.load %arg1[%c0_4, %c18, %c0_5] : memref<1x360x8xf32, #tpu.memory_space<vmem>>, vector<1x288x8xf32>
    %7 = vector.shape_cast %6 : vector<1x288x8xf32> to vector<288x8xf32>
    %8 = arith.truncf %7 : vector<288x8xf32> to vector<288x8xbf16>
    %c1 = arith.constant 1 : index
    %c0_6 = arith.constant 0 : index
    %c0_7 = arith.constant 0 : index
    %9 = vector.load %arg2[%c1, %c0_6, %c0_7] : memref<9x8x8xbf16, #tpu.memory_space<vmem>>, vector<1x8x8xbf16>
    %10 = vector.shape_cast %9 : vector<1x8x8xbf16> to vector<8x8xbf16>
    %cst_8 = arith.constant dense<0.000000e+00> : vector<288x8xf32>
    %11 = tpu.matmul %8, %10, %cst_8 {dimension_numbers = #tpu.dot_dimension_numbers<[1], [0], [0], [1], [0, 0, 1, 1], [], []>} : vector<288x8xbf16>, vector<8x8xbf16>, vector<288x8xf32> -> vector<288x8xf32>
    %12 = arith.addf %5, %11 : vector<288x8xf32>
    %c0_9 = arith.constant 0 : index
    %c19 = arith.constant 19 : index
    %c0_10 = arith.constant 0 : index
    %13 = vector.load %arg1[%c0_9, %c19, %c0_10] : memref<1x360x8xf32, #tpu.memory_space<vmem>>, vector<1x288x8xf32>
    %14 = vector.shape_cast %13 : vector<1x288x8xf32> to vector<288x8xf32>
    %15 = arith.truncf %14 : vector<288x8xf32> to vector<288x8xbf16>
    %c2 = arith.constant 2 : index
    %c0_11 = arith.constant 0 : index
    %c0_12 = arith.constant 0 : index
    %16 = vector.load %arg2[%c2, %c0_11, %c0_12] : memref<9x8x8xbf16, #tpu.memory_space<vmem>>, vector<1x8x8xbf16>
    %17 = vector.shape_cast %16 : vector<1x8x8xbf16> to vector<8x8xbf16>
    %cst_13 = arith.constant dense<0.000000e+00> : vector<288x8xf32>
    %18 = tpu.matmul %15, %17, %cst_13 {dimension_numbers = #tpu.dot_dimension_numbers<[1], [0], [0], [1], [0, 0, 1, 1], [], []>} : vector<288x8xbf16>, vector<8x8xbf16>, vector<288x8xf32> -> vector<288x8xf32>
    %19 = arith.addf %12, %18 : vector<288x8xf32>
    %c0_14 = arith.constant 0 : index
    %c35 = arith.constant 35 : index
    %c0_15 = arith.constant 0 : index
    %20 = vector.load %arg1[%c0_14, %c35, %c0_15] : memref<1x360x8xf32, #tpu.memory_space<vmem>>, vector<1x288x8xf32>
    %21 = vector.shape_cast %20 : vector<1x288x8xf32> to vector<288x8xf32>
    %22 = arith.truncf %21 : vector<288x8xf32> to vector<288x8xbf16>
    %c3 = arith.constant 3 : index
    %c0_16 = arith.constant 0 : index
    %c0_17 = arith.constant 0 : index
    %23 = vector.load %arg2[%c3, %c0_16, %c0_17] : memref<9x8x8xbf16, #tpu.memory_space<vmem>>, vector<1x8x8xbf16>
    %24 = vector.shape_cast %23 : vector<1x8x8xbf16> to vector<8x8xbf16>
    %cst_18 = arith.constant dense<0.000000e+00> : vector<288x8xf32>
    %25 = tpu.matmul %22, %24, %cst_18 {dimension_numbers = #tpu.dot_dimension_numbers<[1], [0], [0], [1], [0, 0, 1, 1], [], []>} : vector<288x8xbf16>, vector<8x8xbf16>, vector<288x8xf32> -> vector<288x8xf32>
    %26 = arith.addf %19, %25 : vector<288x8xf32>
    %c0_19 = arith.constant 0 : index
    %c36 = arith.constant 36 : index
    %c0_20 = arith.constant 0 : index
    %27 = vector.load %arg1[%c0_19, %c36, %c0_20] : memref<1x360x8xf32, #tpu.memory_space<vmem>>, vector<1x288x8xf32>
    %28 = vector.shape_cast %27 : vector<1x288x8xf32> to vector<288x8xf32>
    %29 = arith.truncf %28 : vector<288x8xf32> to vector<288x8xbf16>
    %c4 = arith.constant 4 : index
    %c0_21 = arith.constant 0 : index
    %c0_22 = arith.constant 0 : index
    %30 = vector.load %arg2[%c4, %c0_21, %c0_22] : memref<9x8x8xbf16, #tpu.memory_space<vmem>>, vector<1x8x8xbf16>
    %31 = vector.shape_cast %30 : vector<1x8x8xbf16> to vector<8x8xbf16>
    %cst_23 = arith.constant dense<0.000000e+00> : vector<288x8xf32>
    %32 = tpu.matmul %29, %31, %cst_23 {dimension_numbers = #tpu.dot_dimension_numbers<[1], [0], [0], [1], [0, 0, 1, 1], [], []>} : vector<288x8xbf16>, vector<8x8xbf16>, vector<288x8xf32> -> vector<288x8xf32>
    %33 = arith.addf %26, %32 : vector<288x8xf32>
    %c0_24 = arith.constant 0 : index
    %c37 = arith.constant 37 : index
    %c0_25 = arith.constant 0 : index
    %34 = vector.load %arg1[%c0_24, %c37, %c0_25] : memref<1x360x8xf32, #tpu.memory_space<vmem>>, vector<1x288x8xf32>
    %35 = vector.shape_cast %34 : vector<1x288x8xf32> to vector<288x8xf32>
    %36 = arith.truncf %35 : vector<288x8xf32> to vector<288x8xbf16>
    %c5 = arith.constant 5 : index
    %c0_26 = arith.constant 0 : index
    %c0_27 = arith.constant 0 : index
    %37 = vector.load %arg2[%c5, %c0_26, %c0_27] : memref<9x8x8xbf16, #tpu.memory_space<vmem>>, vector<1x8x8xbf16>
    %38 = vector.shape_cast %37 : vector<1x8x8xbf16> to vector<8x8xbf16>
    %cst_28 = arith.constant dense<0.000000e+00> : vector<288x8xf32>
    %39 = tpu.matmul %36, %38, %cst_28 {dimension_numbers = #tpu.dot_dimension_numbers<[1], [0], [0], [1], [0, 0, 1, 1], [], []>} : vector<288x8xbf16>, vector<8x8xbf16>, vector<288x8xf32> -> vector<288x8xf32>
    %40 = arith.addf %33, %39 : vector<288x8xf32>
    %c0_29 = arith.constant 0 : index
    %c53 = arith.constant 53 : index
    %c0_30 = arith.constant 0 : index
    %41 = vector.load %arg1[%c0_29, %c53, %c0_30] : memref<1x360x8xf32, #tpu.memory_space<vmem>>, vector<1x288x8xf32>
    %42 = vector.shape_cast %41 : vector<1x288x8xf32> to vector<288x8xf32>
    %43 = arith.truncf %42 : vector<288x8xf32> to vector<288x8xbf16>
    %c6 = arith.constant 6 : index
    %c0_31 = arith.constant 0 : index
    %c0_32 = arith.constant 0 : index
    %44 = vector.load %arg2[%c6, %c0_31, %c0_32] : memref<9x8x8xbf16, #tpu.memory_space<vmem>>, vector<1x8x8xbf16>
    %45 = vector.shape_cast %44 : vector<1x8x8xbf16> to vector<8x8xbf16>
    %cst_33 = arith.constant dense<0.000000e+00> : vector<288x8xf32>
    %46 = tpu.matmul %43, %45, %cst_33 {dimension_numbers = #tpu.dot_dimension_numbers<[1], [0], [0], [1], [0, 0, 1, 1], [], []>} : vector<288x8xbf16>, vector<8x8xbf16>, vector<288x8xf32> -> vector<288x8xf32>
    %47 = arith.addf %40, %46 : vector<288x8xf32>
    %c0_34 = arith.constant 0 : index
    %c54 = arith.constant 54 : index
    %c0_35 = arith.constant 0 : index
    %48 = vector.load %arg1[%c0_34, %c54, %c0_35] : memref<1x360x8xf32, #tpu.memory_space<vmem>>, vector<1x288x8xf32>
    %49 = vector.shape_cast %48 : vector<1x288x8xf32> to vector<288x8xf32>
    %50 = arith.truncf %49 : vector<288x8xf32> to vector<288x8xbf16>
    %c7 = arith.constant 7 : index
    %c0_36 = arith.constant 0 : index
    %c0_37 = arith.constant 0 : index
    %51 = vector.load %arg2[%c7, %c0_36, %c0_37] : memref<9x8x8xbf16, #tpu.memory_space<vmem>>, vector<1x8x8xbf16>
    %52 = vector.shape_cast %51 : vector<1x8x8xbf16> to vector<8x8xbf16>
    %cst_38 = arith.constant dense<0.000000e+00> : vector<288x8xf32>
    %53 = tpu.matmul %50, %52, %cst_38 {dimension_numbers = #tpu.dot_dimension_numbers<[1], [0], [0], [1], [0, 0, 1, 1], [], []>} : vector<288x8xbf16>, vector<8x8xbf16>, vector<288x8xf32> -> vector<288x8xf32>
    %54 = arith.addf %47, %53 : vector<288x8xf32>
    %c0_39 = arith.constant 0 : index
    %c55 = arith.constant 55 : index
    %c0_40 = arith.constant 0 : index
    %55 = vector.load %arg1[%c0_39, %c55, %c0_40] : memref<1x360x8xf32, #tpu.memory_space<vmem>>, vector<1x288x8xf32>
    %56 = vector.shape_cast %55 : vector<1x288x8xf32> to vector<288x8xf32>
    %57 = arith.truncf %56 : vector<288x8xf32> to vector<288x8xbf16>
    %c8 = arith.constant 8 : index
    %c0_41 = arith.constant 0 : index
    %c0_42 = arith.constant 0 : index
    %58 = vector.load %arg2[%c8, %c0_41, %c0_42] : memref<9x8x8xbf16, #tpu.memory_space<vmem>>, vector<1x8x8xbf16>
    %59 = vector.shape_cast %58 : vector<1x8x8xbf16> to vector<8x8xbf16>
    %cst_43 = arith.constant dense<0.000000e+00> : vector<288x8xf32>
    %60 = tpu.matmul %57, %59, %cst_43 {dimension_numbers = #tpu.dot_dimension_numbers<[1], [0], [0], [1], [0, 0, 1, 1], [], []>} : vector<288x8xbf16>, vector<8x8xbf16>, vector<288x8xf32> -> vector<288x8xf32>
    %61 = arith.addf %54, %60 : vector<288x8xf32>
    %c0_44 = arith.constant 0 : index
    %c0_45 = arith.constant 0 : index
    %62 = vector.load %arg3[%c0_44, %c0_45] : memref<288x1xf32, #tpu.memory_space<vmem>>, vector<288x1xf32>
    %63 = vector.broadcast %62 : vector<288x1xf32> to vector<288x8xf32>
    %64 = arith.mulf %61, %63 : vector<288x8xf32>
    %cst_46 = arith.constant dense<0.000000e+00> : vector<8xf32>
    %65 = vector.multi_reduction <add>, %64, %cst_46 [0] : vector<288x8xf32> to vector<8xf32>
    %66 = vector.shape_cast %65 : vector<8xf32> to vector<1x8xf32>
    %c0_47 = arith.constant 0 : index
    %c0_48 = arith.constant 0 : index
    %c0_49 = arith.constant 0 : index
    %67 = vector.load %arg5[%c0_47, %c0_48, %c0_49] : memref<1x2x8xf32, #tpu.memory_space<vmem>>, vector<1x1x8xf32>
    %68 = vector.shape_cast %67 : vector<1x1x8xf32> to vector<1x8xf32>
    %69 = vector.shape_cast %66 : vector<1x8xf32> to vector<1x1x8xf32>
    tpu.vector_store %arg5[%c0_47, %c0_48, %c0_49], %69 {strides = array<i32>} : memref<1x2x8xf32, #tpu.memory_space<vmem>>, vector<1x1x8xf32>,
    %70 = arith.mulf %64, %61 : vector<288x8xf32>
    %cst_50 = arith.constant dense<0.000000e+00> : vector<8xf32>
    %71 = vector.multi_reduction <add>, %70, %cst_50 [0] : vector<288x8xf32> to vector<8xf32>
    %72 = vector.shape_cast %71 : vector<8xf32> to vector<1x8xf32>
    %c0_51 = arith.constant 0 : index
    %c1_52 = arith.constant 1 : index
    %c0_53 = arith.constant 0 : index
    %73 = vector.load %arg5[%c0_51, %c1_52, %c0_53] : memref<1x2x8xf32, #tpu.memory_space<vmem>>, vector<1x1x8xf32>
    %74 = vector.shape_cast %73 : vector<1x1x8xf32> to vector<1x8xf32>
    %75 = vector.shape_cast %72 : vector<1x8xf32> to vector<1x1x8xf32>
    tpu.vector_store %arg5[%c0_51, %c1_52, %c0_53], %75 {strides = array<i32>} : memref<1x2x8xf32, #tpu.memory_space<vmem>>, vector<1x1x8xf32>,
    %76 = arith.truncf %61 : vector<288x8xf32> to vector<288x8xbf16>
    %c0_54 = arith.constant 0 : index
    %c0_55 = arith.constant 0 : index
    %c0_56 = arith.constant 0 : index
    %77 = vector.load %arg4[%c0_54, %c0_55, %c0_56] : memref<1x288x8xbf16, #tpu.memory_space<vmem>>, vector<1x288x8xbf16>
    %78 = vector.shape_cast %77 : vector<1x288x8xbf16> to vector<288x8xbf16>
    %79 = vector.shape_cast %76 : vector<288x8xbf16> to vector<1x288x8xbf16>
    tpu.vector_store %arg4[%c0_54, %c0_55, %c0_56], %79 {strides = array<i32>} : memref<1x288x8xbf16, #tpu.memory_space<vmem>>, vector<1x288x8xbf16>,
    return
  }
  func.func @transform_0(%arg0: i32) -> (i32, i32, i32) {
    %c0_i32 = arith.constant 0 : i32
    %c0_i32_0 = arith.constant 0 : i32
    %c0_i32_1 = arith.constant 0 : i32
    return %arg0, %c0_i32, %c0_i32_0 : i32, i32, i32
  }
  func.func @transform_1(%arg0: i32) -> (i32, i32, i32) {
    %c0_i32 = arith.constant 0 : i32
    %c0_i32_0 = arith.constant 0 : i32
    %c0_i32_1 = arith.constant 0 : i32
    %c0_i32_2 = arith.constant 0 : i32
    return %c0_i32, %c0_i32_0, %c0_i32_1 : i32, i32, i32
  }
  func.func @transform_2(%arg0: i32) -> (i32, i32) {
    %c0_i32 = arith.constant 0 : i32
    %c0_i32_0 = arith.constant 0 : i32
    %c0_i32_1 = arith.constant 0 : i32
    return %c0_i32, %c0_i32_0 : i32, i32
  }
  func.func @transform_3(%arg0: i32) -> (i32, i32, i32) {
    %c0_i32 = arith.constant 0 : i32
    %c0_i32_0 = arith.constant 0 : i32
    %c0_i32_1 = arith.constant 0 : i32
    return %arg0, %c0_i32, %c0_i32_0 : i32, i32, i32
  }
  func.func @transform_4(%arg0: i32) -> (i32, i32, i32) {
    %c0_i32 = arith.constant 0 : i32
    %c0_i32_0 = arith.constant 0 : i32
    %c0_i32_1 = arith.constant 0 : i32
    return %arg0, %c0_i32, %c0_i32_0 : i32, i32, i32
  }
}

module attributes {stable_mosaic.version = 11 : i64} {
  func.func @_conv2_fused_kernel(%arg0: i32, %arg1: memref<1x288x8xbf16, #tpu.memory_space<vmem>>, %arg2: memref<9x8x8xbf16, #tpu.memory_space<vmem>>, %arg3: memref<288x1xf32, #tpu.memory_space<vmem>>, %arg4: memref<1x8xf32, #tpu.memory_space<vmem>>, %arg5: memref<1x8xf32, #tpu.memory_space<vmem>>, %arg6: memref<1x288x8xbf16, #tpu.memory_space<vmem>>, %arg7: memref<1x2x8xf32, #tpu.memory_space<vmem>>, %arg8: memref<360x8xf32, #tpu.memory_space<vmem>>) attributes {dimension_semantics = [#tpu.dimension_semantics<parallel>], iteration_bounds = array<i64: 2>, scalar_prefetch = 0 : i64, scratch_operands = 1 : i64, tpu.core_type = #tpu.core_type<tc>, window_params = [{transform_indices = @transform_0, window_bounds = array<i64: 1, 288, 8>}, {pipeline_mode = #tpu.pipeline_mode<synchronous>, transform_indices = @transform_1, window_bounds = array<i64: 9, 8, 8>}, {pipeline_mode = #tpu.pipeline_mode<synchronous>, transform_indices = @transform_2, window_bounds = array<i64: 288, 1>}, {pipeline_mode = #tpu.pipeline_mode<synchronous>, transform_indices = @transform_3, window_bounds = array<i64: 1, 8>}, {pipeline_mode = #tpu.pipeline_mode<synchronous>, transform_indices = @transform_4, window_bounds = array<i64: 1, 8>}, {transform_indices = @transform_5, window_bounds = array<i64: 1, 288, 8>}, {transform_indices = @transform_6, window_bounds = array<i64: 1, 2, 8>}]} {
    %c0 = arith.constant 0 : index
    %c0_0 = arith.constant 0 : index
    %0 = vector.load %arg3[%c0, %c0_0] : memref<288x1xf32, #tpu.memory_space<vmem>>, vector<288x1xf32>
    %c0_1 = arith.constant 0 : index
    %c0_2 = arith.constant 0 : index
    %c0_3 = arith.constant 0 : index
    %1 = vector.load %arg1[%c0_1, %c0_2, %c0_3] : memref<1x288x8xbf16, #tpu.memory_space<vmem>>, vector<1x288x8xbf16>
    %2 = vector.shape_cast %1 : vector<1x288x8xbf16> to vector<288x8xbf16>
    %3 = arith.extf %2 : vector<288x8xbf16> to vector<288x8xf32>
    %c0_4 = arith.constant 0 : index
    %c0_5 = arith.constant 0 : index
    %4 = vector.load %arg4[%c0_4, %c0_5] : memref<1x8xf32, #tpu.memory_space<vmem>>, vector<1x8xf32>
    %5 = vector.broadcast %4 : vector<1x8xf32> to vector<288x8xf32>
    %6 = arith.mulf %3, %5 : vector<288x8xf32>
    %c0_6 = arith.constant 0 : index
    %c0_7 = arith.constant 0 : index
    %7 = vector.load %arg5[%c0_6, %c0_7] : memref<1x8xf32, #tpu.memory_space<vmem>>, vector<1x8xf32>
    %8 = vector.broadcast %7 : vector<1x8xf32> to vector<288x8xf32>
    %9 = arith.addf %6, %8 : vector<288x8xf32>
    %cst = arith.constant 0.000000e+00 : f32
    %10 = vector.broadcast %cst : f32 to vector<288x8xf32>
    %11 = arith.maximumf %9, %10 : vector<288x8xf32>
    %12 = vector.broadcast %0 : vector<288x1xf32> to vector<288x8xf32>
    %13 = arith.mulf %11, %12 : vector<288x8xf32>
    %cst_8 = arith.constant 0.000000e+00 : f32
    %14 = vector.broadcast %cst_8 : f32 to vector<36x8xf32>
    %c0_9 = arith.constant 0 : index
    %c0_10 = arith.constant 0 : index
    %15 = vector.load %arg8[%c0_9, %c0_10] : memref<360x8xf32, #tpu.memory_space<vmem>>, vector<36x8xf32>
    tpu.vector_store %arg8[%c0_9, %c0_10], %14 {strides = array<i32>} : memref<360x8xf32, #tpu.memory_space<vmem>>, vector<36x8xf32>,
    %c324 = arith.constant 324 : index
    %c0_11 = arith.constant 0 : index
    %16 = vector.load %arg8[%c324, %c0_11] : memref<360x8xf32, #tpu.memory_space<vmem>>, vector<36x8xf32>
    tpu.vector_store %arg8[%c324, %c0_11], %14 {strides = array<i32>} : memref<360x8xf32, #tpu.memory_space<vmem>>, vector<36x8xf32>,
    %c36 = arith.constant 36 : index
    %c0_12 = arith.constant 0 : index
    %17 = vector.load %arg8[%c36, %c0_12] : memref<360x8xf32, #tpu.memory_space<vmem>>, vector<288x8xf32>
    tpu.vector_store %arg8[%c36, %c0_12], %13 {strides = array<i32>} : memref<360x8xf32, #tpu.memory_space<vmem>>, vector<288x8xf32>,
    %c17 = arith.constant 17 : index
    %c0_13 = arith.constant 0 : index
    %18 = vector.load %arg8[%c17, %c0_13] : memref<360x8xf32, #tpu.memory_space<vmem>>, vector<288x8xf32>
    %19 = arith.truncf %18 : vector<288x8xf32> to vector<288x8xbf16>
    %c0_14 = arith.constant 0 : index
    %c0_15 = arith.constant 0 : index
    %c0_16 = arith.constant 0 : index
    %20 = vector.load %arg2[%c0_14, %c0_15, %c0_16] : memref<9x8x8xbf16, #tpu.memory_space<vmem>>, vector<1x8x8xbf16>
    %21 = vector.shape_cast %20 : vector<1x8x8xbf16> to vector<8x8xbf16>
    %cst_17 = arith.constant dense<0.000000e+00> : vector<288x8xf32>
    %22 = tpu.matmul %19, %21, %cst_17 {dimension_numbers = #tpu.dot_dimension_numbers<[1], [0], [0], [1], [0, 0, 1, 1], [], []>} : vector<288x8xbf16>, vector<8x8xbf16>, vector<288x8xf32> -> vector<288x8xf32>
    %c18 = arith.constant 18 : index
    %c0_18 = arith.constant 0 : index
    %23 = vector.load %arg8[%c18, %c0_18] : memref<360x8xf32, #tpu.memory_space<vmem>>, vector<288x8xf32>
    %24 = arith.truncf %23 : vector<288x8xf32> to vector<288x8xbf16>
    %c1 = arith.constant 1 : index
    %c0_19 = arith.constant 0 : index
    %c0_20 = arith.constant 0 : index
    %25 = vector.load %arg2[%c1, %c0_19, %c0_20] : memref<9x8x8xbf16, #tpu.memory_space<vmem>>, vector<1x8x8xbf16>
    %26 = vector.shape_cast %25 : vector<1x8x8xbf16> to vector<8x8xbf16>
    %cst_21 = arith.constant dense<0.000000e+00> : vector<288x8xf32>
    %27 = tpu.matmul %24, %26, %cst_21 {dimension_numbers = #tpu.dot_dimension_numbers<[1], [0], [0], [1], [0, 0, 1, 1], [], []>} : vector<288x8xbf16>, vector<8x8xbf16>, vector<288x8xf32> -> vector<288x8xf32>
    %28 = arith.addf %22, %27 : vector<288x8xf32>
    %c19 = arith.constant 19 : index
    %c0_22 = arith.constant 0 : index
    %29 = vector.load %arg8[%c19, %c0_22] : memref<360x8xf32, #tpu.memory_space<vmem>>, vector<288x8xf32>
    %30 = arith.truncf %29 : vector<288x8xf32> to vector<288x8xbf16>
    %c2 = arith.constant 2 : index
    %c0_23 = arith.constant 0 : index
    %c0_24 = arith.constant 0 : index
    %31 = vector.load %arg2[%c2, %c0_23, %c0_24] : memref<9x8x8xbf16, #tpu.memory_space<vmem>>, vector<1x8x8xbf16>
    %32 = vector.shape_cast %31 : vector<1x8x8xbf16> to vector<8x8xbf16>
    %cst_25 = arith.constant dense<0.000000e+00> : vector<288x8xf32>
    %33 = tpu.matmul %30, %32, %cst_25 {dimension_numbers = #tpu.dot_dimension_numbers<[1], [0], [0], [1], [0, 0, 1, 1], [], []>} : vector<288x8xbf16>, vector<8x8xbf16>, vector<288x8xf32> -> vector<288x8xf32>
    %34 = arith.addf %28, %33 : vector<288x8xf32>
    %c35 = arith.constant 35 : index
    %c0_26 = arith.constant 0 : index
    %35 = vector.load %arg8[%c35, %c0_26] : memref<360x8xf32, #tpu.memory_space<vmem>>, vector<288x8xf32>
    %36 = arith.truncf %35 : vector<288x8xf32> to vector<288x8xbf16>
    %c3 = arith.constant 3 : index
    %c0_27 = arith.constant 0 : index
    %c0_28 = arith.constant 0 : index
    %37 = vector.load %arg2[%c3, %c0_27, %c0_28] : memref<9x8x8xbf16, #tpu.memory_space<vmem>>, vector<1x8x8xbf16>
    %38 = vector.shape_cast %37 : vector<1x8x8xbf16> to vector<8x8xbf16>
    %cst_29 = arith.constant dense<0.000000e+00> : vector<288x8xf32>
    %39 = tpu.matmul %36, %38, %cst_29 {dimension_numbers = #tpu.dot_dimension_numbers<[1], [0], [0], [1], [0, 0, 1, 1], [], []>} : vector<288x8xbf16>, vector<8x8xbf16>, vector<288x8xf32> -> vector<288x8xf32>
    %40 = arith.addf %34, %39 : vector<288x8xf32>
    %c36_30 = arith.constant 36 : index
    %c0_31 = arith.constant 0 : index
    %41 = vector.load %arg8[%c36_30, %c0_31] : memref<360x8xf32, #tpu.memory_space<vmem>>, vector<288x8xf32>
    %42 = arith.truncf %41 : vector<288x8xf32> to vector<288x8xbf16>
    %c4 = arith.constant 4 : index
    %c0_32 = arith.constant 0 : index
    %c0_33 = arith.constant 0 : index
    %43 = vector.load %arg2[%c4, %c0_32, %c0_33] : memref<9x8x8xbf16, #tpu.memory_space<vmem>>, vector<1x8x8xbf16>
    %44 = vector.shape_cast %43 : vector<1x8x8xbf16> to vector<8x8xbf16>
    %cst_34 = arith.constant dense<0.000000e+00> : vector<288x8xf32>
    %45 = tpu.matmul %42, %44, %cst_34 {dimension_numbers = #tpu.dot_dimension_numbers<[1], [0], [0], [1], [0, 0, 1, 1], [], []>} : vector<288x8xbf16>, vector<8x8xbf16>, vector<288x8xf32> -> vector<288x8xf32>
    %46 = arith.addf %40, %45 : vector<288x8xf32>
    %c37 = arith.constant 37 : index
    %c0_35 = arith.constant 0 : index
    %47 = vector.load %arg8[%c37, %c0_35] : memref<360x8xf32, #tpu.memory_space<vmem>>, vector<288x8xf32>
    %48 = arith.truncf %47 : vector<288x8xf32> to vector<288x8xbf16>
    %c5 = arith.constant 5 : index
    %c0_36 = arith.constant 0 : index
    %c0_37 = arith.constant 0 : index
    %49 = vector.load %arg2[%c5, %c0_36, %c0_37] : memref<9x8x8xbf16, #tpu.memory_space<vmem>>, vector<1x8x8xbf16>
    %50 = vector.shape_cast %49 : vector<1x8x8xbf16> to vector<8x8xbf16>
    %cst_38 = arith.constant dense<0.000000e+00> : vector<288x8xf32>
    %51 = tpu.matmul %48, %50, %cst_38 {dimension_numbers = #tpu.dot_dimension_numbers<[1], [0], [0], [1], [0, 0, 1, 1], [], []>} : vector<288x8xbf16>, vector<8x8xbf16>, vector<288x8xf32> -> vector<288x8xf32>
    %52 = arith.addf %46, %51 : vector<288x8xf32>
    %c53 = arith.constant 53 : index
    %c0_39 = arith.constant 0 : index
    %53 = vector.load %arg8[%c53, %c0_39] : memref<360x8xf32, #tpu.memory_space<vmem>>, vector<288x8xf32>
    %54 = arith.truncf %53 : vector<288x8xf32> to vector<288x8xbf16>
    %c6 = arith.constant 6 : index
    %c0_40 = arith.constant 0 : index
    %c0_41 = arith.constant 0 : index
    %55 = vector.load %arg2[%c6, %c0_40, %c0_41] : memref<9x8x8xbf16, #tpu.memory_space<vmem>>, vector<1x8x8xbf16>
    %56 = vector.shape_cast %55 : vector<1x8x8xbf16> to vector<8x8xbf16>
    %cst_42 = arith.constant dense<0.000000e+00> : vector<288x8xf32>
    %57 = tpu.matmul %54, %56, %cst_42 {dimension_numbers = #tpu.dot_dimension_numbers<[1], [0], [0], [1], [0, 0, 1, 1], [], []>} : vector<288x8xbf16>, vector<8x8xbf16>, vector<288x8xf32> -> vector<288x8xf32>
    %58 = arith.addf %52, %57 : vector<288x8xf32>
    %c54 = arith.constant 54 : index
    %c0_43 = arith.constant 0 : index
    %59 = vector.load %arg8[%c54, %c0_43] : memref<360x8xf32, #tpu.memory_space<vmem>>, vector<288x8xf32>
    %60 = arith.truncf %59 : vector<288x8xf32> to vector<288x8xbf16>
    %c7 = arith.constant 7 : index
    %c0_44 = arith.constant 0 : index
    %c0_45 = arith.constant 0 : index
    %61 = vector.load %arg2[%c7, %c0_44, %c0_45] : memref<9x8x8xbf16, #tpu.memory_space<vmem>>, vector<1x8x8xbf16>
    %62 = vector.shape_cast %61 : vector<1x8x8xbf16> to vector<8x8xbf16>
    %cst_46 = arith.constant dense<0.000000e+00> : vector<288x8xf32>
    %63 = tpu.matmul %60, %62, %cst_46 {dimension_numbers = #tpu.dot_dimension_numbers<[1], [0], [0], [1], [0, 0, 1, 1], [], []>} : vector<288x8xbf16>, vector<8x8xbf16>, vector<288x8xf32> -> vector<288x8xf32>
    %64 = arith.addf %58, %63 : vector<288x8xf32>
    %c55 = arith.constant 55 : index
    %c0_47 = arith.constant 0 : index
    %65 = vector.load %arg8[%c55, %c0_47] : memref<360x8xf32, #tpu.memory_space<vmem>>, vector<288x8xf32>
    %66 = arith.truncf %65 : vector<288x8xf32> to vector<288x8xbf16>
    %c8 = arith.constant 8 : index
    %c0_48 = arith.constant 0 : index
    %c0_49 = arith.constant 0 : index
    %67 = vector.load %arg2[%c8, %c0_48, %c0_49] : memref<9x8x8xbf16, #tpu.memory_space<vmem>>, vector<1x8x8xbf16>
    %68 = vector.shape_cast %67 : vector<1x8x8xbf16> to vector<8x8xbf16>
    %cst_50 = arith.constant dense<0.000000e+00> : vector<288x8xf32>
    %69 = tpu.matmul %66, %68, %cst_50 {dimension_numbers = #tpu.dot_dimension_numbers<[1], [0], [0], [1], [0, 0, 1, 1], [], []>} : vector<288x8xbf16>, vector<8x8xbf16>, vector<288x8xf32> -> vector<288x8xf32>
    %70 = arith.addf %64, %69 : vector<288x8xf32>
    %71 = vector.broadcast %0 : vector<288x1xf32> to vector<288x8xf32>
    %72 = arith.mulf %70, %71 : vector<288x8xf32>
    %cst_51 = arith.constant dense<0.000000e+00> : vector<8xf32>
    %73 = vector.multi_reduction <add>, %72, %cst_51 [0] : vector<288x8xf32> to vector<8xf32>
    %74 = vector.shape_cast %73 : vector<8xf32> to vector<1x8xf32>
    %c0_52 = arith.constant 0 : index
    %c0_53 = arith.constant 0 : index
    %c0_54 = arith.constant 0 : index
    %75 = vector.load %arg7[%c0_52, %c0_53, %c0_54] : memref<1x2x8xf32, #tpu.memory_space<vmem>>, vector<1x1x8xf32>
    %76 = vector.shape_cast %75 : vector<1x1x8xf32> to vector<1x8xf32>
    %77 = vector.shape_cast %74 : vector<1x8xf32> to vector<1x1x8xf32>
    tpu.vector_store %arg7[%c0_52, %c0_53, %c0_54], %77 {strides = array<i32>} : memref<1x2x8xf32, #tpu.memory_space<vmem>>, vector<1x1x8xf32>,
    %78 = arith.mulf %72, %70 : vector<288x8xf32>
    %cst_55 = arith.constant dense<0.000000e+00> : vector<8xf32>
    %79 = vector.multi_reduction <add>, %78, %cst_55 [0] : vector<288x8xf32> to vector<8xf32>
    %80 = vector.shape_cast %79 : vector<8xf32> to vector<1x8xf32>
    %c0_56 = arith.constant 0 : index
    %c1_57 = arith.constant 1 : index
    %c0_58 = arith.constant 0 : index
    %81 = vector.load %arg7[%c0_56, %c1_57, %c0_58] : memref<1x2x8xf32, #tpu.memory_space<vmem>>, vector<1x1x8xf32>
    %82 = vector.shape_cast %81 : vector<1x1x8xf32> to vector<1x8xf32>
    %83 = vector.shape_cast %80 : vector<1x8xf32> to vector<1x1x8xf32>
    tpu.vector_store %arg7[%c0_56, %c1_57, %c0_58], %83 {strides = array<i32>} : memref<1x2x8xf32, #tpu.memory_space<vmem>>, vector<1x1x8xf32>,
    %84 = arith.truncf %70 : vector<288x8xf32> to vector<288x8xbf16>
    %c0_59 = arith.constant 0 : index
    %c0_60 = arith.constant 0 : index
    %c0_61 = arith.constant 0 : index
    %85 = vector.load %arg6[%c0_59, %c0_60, %c0_61] : memref<1x288x8xbf16, #tpu.memory_space<vmem>>, vector<1x288x8xbf16>
    %86 = vector.shape_cast %85 : vector<1x288x8xbf16> to vector<288x8xbf16>
    %87 = vector.shape_cast %84 : vector<288x8xbf16> to vector<1x288x8xbf16>
    tpu.vector_store %arg6[%c0_59, %c0_60, %c0_61], %87 {strides = array<i32>} : memref<1x288x8xbf16, #tpu.memory_space<vmem>>, vector<1x288x8xbf16>,
    return
  }
  func.func @transform_0(%arg0: i32) -> (i32, i32, i32) {
    %c0_i32 = arith.constant 0 : i32
    %c0_i32_0 = arith.constant 0 : i32
    %c0_i32_1 = arith.constant 0 : i32
    return %arg0, %c0_i32, %c0_i32_0 : i32, i32, i32
  }
  func.func @transform_1(%arg0: i32) -> (i32, i32, i32) {
    %c0_i32 = arith.constant 0 : i32
    %c0_i32_0 = arith.constant 0 : i32
    %c0_i32_1 = arith.constant 0 : i32
    %c0_i32_2 = arith.constant 0 : i32
    return %c0_i32, %c0_i32_0, %c0_i32_1 : i32, i32, i32
  }
  func.func @transform_2(%arg0: i32) -> (i32, i32) {
    %c0_i32 = arith.constant 0 : i32
    %c0_i32_0 = arith.constant 0 : i32
    %c0_i32_1 = arith.constant 0 : i32
    return %c0_i32, %c0_i32_0 : i32, i32
  }
  func.func @transform_3(%arg0: i32) -> (i32, i32) {
    %c0_i32 = arith.constant 0 : i32
    %c0_i32_0 = arith.constant 0 : i32
    %c0_i32_1 = arith.constant 0 : i32
    return %c0_i32, %c0_i32_0 : i32, i32
  }
  func.func @transform_4(%arg0: i32) -> (i32, i32) {
    %c0_i32 = arith.constant 0 : i32
    %c0_i32_0 = arith.constant 0 : i32
    %c0_i32_1 = arith.constant 0 : i32
    return %c0_i32, %c0_i32_0 : i32, i32
  }
  func.func @transform_5(%arg0: i32) -> (i32, i32, i32) {
    %c0_i32 = arith.constant 0 : i32
    %c0_i32_0 = arith.constant 0 : i32
    %c0_i32_1 = arith.constant 0 : i32
    return %arg0, %c0_i32, %c0_i32_0 : i32, i32, i32
  }
  func.func @transform_6(%arg0: i32) -> (i32, i32, i32) {
    %c0_i32 = arith.constant 0 : i32
    %c0_i32_0 = arith.constant 0 : i32
    %c0_i32_1 = arith.constant 0 : i32
    return %arg0, %c0_i32, %c0_i32_0 : i32, i32, i32
  }
}

module attributes {stable_mosaic.version = 11 : i64} {
  func.func @_bn_add_relu_kernel(%arg0: i32, %arg1: memref<1x288x8xbf16, #tpu.memory_space<vmem>>, %arg2: memref<1x360x8xf32, #tpu.memory_space<vmem>>, %arg3: memref<1x8xf32, #tpu.memory_space<vmem>>, %arg4: memref<1x8xf32, #tpu.memory_space<vmem>>, %arg5: memref<1x288x8xf32, #tpu.memory_space<vmem>>) attributes {dimension_semantics = [#tpu.dimension_semantics<parallel>], iteration_bounds = array<i64: 2>, scalar_prefetch = 0 : i64, scratch_operands = 0 : i64, tpu.core_type = #tpu.core_type<tc>, window_params = [{transform_indices = @transform_0, window_bounds = array<i64: 1, 288, 8>}, {transform_indices = @transform_1, window_bounds = array<i64: 1, 360, 8>}, {pipeline_mode = #tpu.pipeline_mode<synchronous>, transform_indices = @transform_2, window_bounds = array<i64: 1, 8>}, {pipeline_mode = #tpu.pipeline_mode<synchronous>, transform_indices = @transform_3, window_bounds = array<i64: 1, 8>}, {transform_indices = @transform_4, window_bounds = array<i64: 1, 288, 8>}]} {
    %c0 = arith.constant 0 : index
    %c36 = arith.constant 36 : index
    %c0_0 = arith.constant 0 : index
    %0 = vector.load %arg2[%c0, %c36, %c0_0] : memref<1x360x8xf32, #tpu.memory_space<vmem>>, vector<1x288x8xf32>
    %1 = vector.shape_cast %0 : vector<1x288x8xf32> to vector<288x8xf32>
    %c0_1 = arith.constant 0 : index
    %c0_2 = arith.constant 0 : index
    %c0_3 = arith.constant 0 : index
    %2 = vector.load %arg1[%c0_1, %c0_2, %c0_3] : memref<1x288x8xbf16, #tpu.memory_space<vmem>>, vector<1x288x8xbf16>
    %3 = vector.shape_cast %2 : vector<1x288x8xbf16> to vector<288x8xbf16>
    %4 = arith.extf %3 : vector<288x8xbf16> to vector<288x8xf32>
    %c0_4 = arith.constant 0 : index
    %c0_5 = arith.constant 0 : index
    %5 = vector.load %arg3[%c0_4, %c0_5] : memref<1x8xf32, #tpu.memory_space<vmem>>, vector<1x8xf32>
    %6 = vector.broadcast %5 : vector<1x8xf32> to vector<288x8xf32>
    %7 = arith.mulf %4, %6 : vector<288x8xf32>
    %c0_6 = arith.constant 0 : index
    %c0_7 = arith.constant 0 : index
    %8 = vector.load %arg4[%c0_6, %c0_7] : memref<1x8xf32, #tpu.memory_space<vmem>>, vector<1x8xf32>
    %9 = vector.broadcast %8 : vector<1x8xf32> to vector<288x8xf32>
    %10 = arith.addf %7, %9 : vector<288x8xf32>
    %11 = arith.addf %10, %1 : vector<288x8xf32>
    %cst = arith.constant 0.000000e+00 : f32
    %12 = vector.broadcast %cst : f32 to vector<288x8xf32>
    %13 = arith.maximumf %11, %12 : vector<288x8xf32>
    %c0_8 = arith.constant 0 : index
    %c0_9 = arith.constant 0 : index
    %c0_10 = arith.constant 0 : index
    %14 = vector.load %arg5[%c0_8, %c0_9, %c0_10] : memref<1x288x8xf32, #tpu.memory_space<vmem>>, vector<1x288x8xf32>
    %15 = vector.shape_cast %14 : vector<1x288x8xf32> to vector<288x8xf32>
    %16 = vector.shape_cast %13 : vector<288x8xf32> to vector<1x288x8xf32>
    tpu.vector_store %arg5[%c0_8, %c0_9, %c0_10], %16 {strides = array<i32>} : memref<1x288x8xf32, #tpu.memory_space<vmem>>, vector<1x288x8xf32>,
    return
  }
  func.func @transform_0(%arg0: i32) -> (i32, i32, i32) {
    %c0_i32 = arith.constant 0 : i32
    %c0_i32_0 = arith.constant 0 : i32
    %c0_i32_1 = arith.constant 0 : i32
    return %arg0, %c0_i32, %c0_i32_0 : i32, i32, i32
  }
  func.func @transform_1(%arg0: i32) -> (i32, i32, i32) {
    %c0_i32 = arith.constant 0 : i32
    %c0_i32_0 = arith.constant 0 : i32
    %c0_i32_1 = arith.constant 0 : i32
    return %arg0, %c0_i32, %c0_i32_0 : i32, i32, i32
  }
  func.func @transform_2(%arg0: i32) -> (i32, i32) {
    %c0_i32 = arith.constant 0 : i32
    %c0_i32_0 = arith.constant 0 : i32
    %c0_i32_1 = arith.constant 0 : i32
    return %c0_i32, %c0_i32_0 : i32, i32
  }
  func.func @transform_3(%arg0: i32) -> (i32, i32) {
    %c0_i32 = arith.constant 0 : i32
    %c0_i32_0 = arith.constant 0 : i32
    %c0_i32_1 = arith.constant 0 : i32
    return %c0_i32, %c0_i32_0 : i32, i32
  }
  func.func @transform_4(%arg0: i32) -> (i32, i32, i32) {
    %c0_i32 = arith.constant 0 : i32
    %c0_i32_0 = arith.constant 0 : i32
    %c0_i32_1 = arith.constant 0 : i32
    return %arg0, %c0_i32, %c0_i32_0 : i32, i32, i32
  }
}

</mosaic_0001>

<llo_original>
// kernel: resblock_forward.5
$region0: #{resblock_forward.5}
  #allocation0 [shape = 'u32[]', space=smem, size = 0x4, offset = 0x4, fixed_abs, tag = 'smem constant byte address 0x4 - core index']
  #allocation1 [shape = 'u32[72,128]{1,0:T(1,128)}', space=vmem, size = 0x9000, scoped, tag = 'internal scratch']
  %s0 = inlined_call_operand.vmem [shape: bf16[2,288,8], index: 0, kind: input, shape index: {}]
  %s1 = inlined_call_operand.vmem [shape: f32[2,360,8], index: 1, kind: input, shape index: {}]
  %s2 = inlined_call_operand.vmem [shape: f32[1,8], index: 2, kind: input, shape index: {}]
  %s3 = inlined_call_operand.vmem [shape: f32[1,8], index: 3, kind: input, shape index: {}]
  %s4 = inlined_call_operand.vmem [shape: f32[2,288,8], index: 4, kind: output, shape index: {}]
  %s5 = sld [smem:[#allocation0]]
  $region49: #{resblock_forward.5} parent=0
    _
  %s7 = ssub.s32 1, %s5
  %s8 = scalar_select 0, %s7, %s5
  loop: start=0, step=1, limit=4
  $region2: #{resblock_forward.5} parent=0 // loop_pre_header
    _
  $region3: #{resblock_forward.5} parent=0 // loop_header
    %s10 = sphi 0, %s14
    %p11 = scmp.ge.s32.totalorder %s10, 4
    %s20 = sphi 0, %s22
    %s23 = sphi 0, %s20
    %s24 = sphi 0, %s23
    %s40 = sphi 0, %s24
    %s46 = sphi 0, %s48
    %s49 = sphi 0, %s46
    %s50 = sphi 0, %s49
    %s66 = sphi 0, %s50
    %s70 = sphi 0, %s70
    %s72 = sphi 0, %s70
    %s73 = sphi 0, %s72
    %s87 = sphi 0, %s73
    %s91 = sphi 0, %s91
    %s93 = sphi 0, %s91
    %s94 = sphi 0, %s93
    %s108 = sphi 0, %s94
    %s114 = sphi 0, %s116
    %s117 = sphi 0, %s114
    %s118 = sphi 0, %s117
    %s134 = sphi 0, %s118
  $region4: #{resblock_forward.5} parent=0 // loop_header_branch
    %13 = sbr.rel (%p11) target = $region8
  $region5: #{resblock_forward.5} parent=0 // loop_body
    %s15 = ssub.s32 %s10, 1
    %s16 = ssub.s32 %s10, 2
    %s17 = sadd.s32 %s10, 1
    %s18 = ssub.s32 %s10, %s17
    %p19 = scmp.eq.s32.totalorder %s18, 0
    %s21 = sadd.s32 %s20, 1
    %s22 = scalar_select %p19, %s20, %s21
    %p25 = pneg %p19
    %p26 = scmp.eq.s32.totalorder %s10, 1
    %p27 = por %p25, %p26
    %p28 = scmp.ne.s32.totalorder %s20, %s23
    %p29 = scmp.eq.s32.totalorder %s10, 0
    %p30 = por %p28, %p29
    %p31 = scmp.ne.s32.totalorder %s20, %s23
    %p32 = scmp.eq.s32.totalorder %s15, 1
    %p33 = por %p31, %p32
    %p34 = scmp.ne.s32.totalorder %s23, %s24
    %p35 = scmp.eq.s32.totalorder %s15, 0
    %p36 = por %p34, %p35
    %p37 = scmp.ne.s32.totalorder %s23, %s24
    %p38 = scmp.eq.s32.totalorder %s16, 1
    %p39 = por %p37, %p38
    %p41 = scmp.ne.s32.totalorder %s24, %s40
    %p42 = scmp.eq.s32.totalorder %s16, 0
    %p43 = por %p41, %p42
    %s44 = ssub.s32 %s10, %s17
    %p45 = scmp.eq.s32.totalorder %s44, 0
    %s47 = sadd.s32 %s46, 1
    %s48 = scalar_select %p45, %s46, %s47
    %p51 = pneg %p45
    %p52 = scmp.eq.s32.totalorder %s10, 1
    %p53 = por %p51, %p52
    %p54 = scmp.ne.s32.totalorder %s46, %s49
    %p55 = scmp.eq.s32.totalorder %s10, 0
    %p56 = por %p54, %p55
    %p57 = scmp.ne.s32.totalorder %s46, %s49
    %p58 = scmp.eq.s32.totalorder %s15, 1
    %p59 = por %p57, %p58
    %p60 = scmp.ne.s32.totalorder %s49, %s50
    %p61 = scmp.eq.s32.totalorder %s15, 0
    %p62 = por %p60, %p61
    %p63 = scmp.ne.s32.totalorder %s49, %s50
    %p64 = scmp.eq.s32.totalorder %s16, 1
    %p65 = por %p63, %p64
    %p67 = scmp.ne.s32.totalorder %s50, %s66
    %p68 = scmp.eq.s32.totalorder %s16, 0
    %p69 = por %p67, %p68
    %s71 = sadd.s32 %s70, 1
    %p74 = scmp.eq.s32.totalorder %s10, 1
    %p75 = scmp.ne.s32.totalorder %s70, %s72
    %p76 = scmp.eq.s32.totalorder %s10, 0
    %p77 = por %p75, %p76
    %p78 = scmp.ne.s32.totalorder %s70, %s72
    %p79 = scmp.eq.s32.totalorder %s15, 1
    %p80 = por %p78, %p79
    %p81 = scmp.ne.s32.totalorder %s72, %s73
    %p82 = scmp.eq.s32.totalorder %s15, 0
    %p83 = por %p81, %p82
    %p84 = scmp.ne.s32.totalorder %s72, %s73
    %p85 = scmp.eq.s32.totalorder %s16, 1
    %p86 = por %p84, %p85
    %p88 = scmp.ne.s32.totalorder %s73, %s87
    %p89 = scmp.eq.s32.totalorder %s16, 0
    %p90 = por %p88, %p89
    %s92 = sadd.s32 %s91, 1
    %p95 = scmp.eq.s32.totalorder %s10, 1
    %p96 = scmp.ne.s32.totalorder %s91, %s93
    %p97 = scmp.eq.s32.totalorder %s10, 0
    %p98 = por %p96, %p97
    %p99 = scmp.ne.s32.totalorder %s91, %s93
    %p100 = scmp.eq.s32.totalorder %s15, 1
    %p101 = por %p99, %p100
    %p102 = scmp.ne.s32.totalorder %s93, %s94
    %p103 = scmp.eq.s32.totalorder %s15, 0
    %p104 = por %p102, %p103
    %p105 = scmp.ne.s32.totalorder %s93, %s94
    %p106 = scmp.eq.s32.totalorder %s16, 1
    %p107 = por %p105, %p106
    %p109 = scmp.ne.s32.totalorder %s94, %s108
    %p110 = scmp.eq.s32.totalorder %s16, 0
    %p111 = por %p109, %p110
    %s112 = ssub.s32 %s10, %s17
    %p113 = scmp.eq.s32.totalorder %s112, 0
    %s115 = sadd.s32 %s114, 1
    %s116 = scalar_select %p113, %s114, %s115
    %p119 = pneg %p113
    %p120 = scmp.eq.s32.totalorder %s10, 1
    %p121 = por %p119, %p120
    %p122 = scmp.ne.s32.totalorder %s114, %s117
    %p123 = scmp.eq.s32.totalorder %s10, 0
    %p124 = por %p122, %p123
    %p125 = scmp.ne.s32.totalorder %s114, %s117
    %p126 = scmp.eq.s32.totalorder %s15, 1
    %p127 = por %p125, %p126
    %p128 = scmp.ne.s32.totalorder %s117, %s118
    %p129 = scmp.eq.s32.totalorder %s15, 0
    %p130 = por %p128, %p129
    %p131 = scmp.ne.s32.totalorder %s117, %s118
    %p132 = scmp.eq.s32.totalorder %s16, 1
    %p133 = por %p131, %p132
    %p135 = scmp.ne.s32.totalorder %s118, %s134
    %p136 = scmp.eq.s32.totalorder %s16, 0
    %p137 = por %p135, %p136
    %p138 = scmp.le.s32.totalorder 1, %s10
    %p139 = scmp.lt.s32.totalorder %s10, 3
    %p140 = pnand %p138, %p139
    %p141 = pneg %p140
    // Predicated region
    $region9: #{resblock_forward.5} parent=5 // pred_check
      _
    $region10: #{resblock_forward.5} parent=5 // pred_check_branch
      %143 = sbr.rel (%p140) target = $region12
    $region11: #{resblock_forward.5} parent=5 // pred_region
      %s144 = ssub.s32 %s10, 1
      // Predicated region
      $region13: #{resblock_forward.5} parent=11 // pred_check
        %p145 = pneg %p83
      $region14: #{resblock_forward.5} parent=11 // pred_check_branch
        %147 = sbr.rel (%p145) target = $region16
      $region15: #{resblock_forward.5} parent=11 // pred_region
        _
      $region16: #{resblock_forward.5} parent=11 // pred_fallthru
        _
      // Predicated region
      $region17: #{resblock_forward.5} parent=11 // pred_check
        %p148 = pneg %p104
      $region18: #{resblock_forward.5} parent=11 // pred_check_branch
        %150 = sbr.rel (%p148) target = $region20
      $region19: #{resblock_forward.5} parent=11 // pred_region
        _
      $region20: #{resblock_forward.5} parent=11 // pred_fallthru
        _
    $region12: #{resblock_forward.5} parent=5 // pred_fallthru
      _
    %p151 = scmp.lt.s32.totalorder %s10, 2
    // Predicated region
    $region21: #{resblock_forward.5} parent=5 // pred_check
      %p152 = pneg %p151
    $region22: #{resblock_forward.5} parent=5 // pred_check_branch
      %154 = sbr.rel (%p152) target = $region24
    $region23: #{resblock_forward.5} parent=5 // pred_region
      // Predicated region
      $region25: #{resblock_forward.5} parent=23 // pred_check
        %p155 = pneg %p30
      $region26: #{resblock_forward.5} parent=23 // pred_check_branch
        %157 = sbr.rel (%p155) target = $region28
      $region27: #{resblock_forward.5} parent=23 // pred_region
        %p158 = scmp.lt.s32.totalorder %s10, 1
        %s159 = scalar_select %p158, %s10, 1
        %s160 = smul.addr %s159, 36
        %s161 = smul.addr %s160, 4
        %s162 = scalar_lea.vmem %s0, %s161
      $region28: #{resblock_forward.5} parent=23 // pred_fallthru
        _
      // Predicated region
      $region29: #{resblock_forward.5} parent=23 // pred_check
        %p163 = pneg %p56
      $region30: #{resblock_forward.5} parent=23 // pred_check_branch
        %165 = sbr.rel (%p163) target = $region32
      $region31: #{resblock_forward.5} parent=23 // pred_region
        %p166 = scmp.lt.s32.totalorder %s10, 1
        %s167 = scalar_select %p166, %s10, 1
        %s168 = smul.addr %s167, 45
        %s169 = smul.addr %s168, 8
        %s170 = scalar_lea.vmem %s1, %s169
      $region32: #{resblock_forward.5} parent=23 // pred_fallthru
        _
    $region24: #{resblock_forward.5} parent=5 // pred_fallthru
      _
    %p171 = scmp.le.s32.totalorder 1, %s10
    %p172 = scmp.lt.s32.totalorder %s10, 3
    %p173 = pnand %p171, %p172
    %p174 = pneg %p173
    // Predicated region
    $region33: #{resblock_forward.5} parent=5 // pred_check
      _
    $region34: #{resblock_forward.5} parent=5 // pred_check_branch
      %176 = sbr.rel (%p173) target = $region36
    $region35: #{resblock_forward.5} parent=5 // pred_region
      %s177 = ssub.s32 %s10, 1
      %p178 = scmp.lt.s32.totalorder %s15, 1
      %s179 = scalar_select %p178, %s15, 1
      %s180 = smul.addr %s179, 36
      %s181 = smul.addr %s180, 4
      %s182 = scalar_lea.vmem %s0, %s181
      %p183 = pneg %p36
      %p184 = pneg %p33
      %p185 = scmp.lt.s32.totalorder %s15, 1
      %s186 = scalar_select %p185, %s15, 1
      %s187 = smul.addr %s186, 45
      %s188 = smul.addr %s187, 8
      %s189 = scalar_lea.vmem %s1, %s188
      %p190 = pneg %p62
      %p191 = pneg %p59
      %p192 = pneg %p83
      %p193 = pneg %p80
      %p194 = pneg %p104
      %p195 = pneg %p101
      %p196 = pneg %p130
      %p197 = pneg %p127
      %p198 = scmp.lt.s32.totalorder %s15, 1
      %s199 = scalar_select %p198, %s15, 1
      %s200 = smul.addr %s199, 36
      %s201 = smul.addr %s200, 8
      %s202 = scalar_lea.vmem %s4, %s201
      %p203 = scmp.lt.s32.totalorder %s15, 1
      %s204 = scalar_select %p203, %s15, 1
      %s205 = smul.addr %s204, 36
      %s206 = smul.addr %s205, 4
      %s207 = scalar_lea.vmem %s0, %s206
      %p208 = scmp.lt.s32.totalorder %s15, 1
      %s209 = scalar_select %p208, %s15, 1
      %s210 = smul.addr %s209, 45
      %s211 = smul.addr %s210, 8
      %s212 = scalar_lea.vmem %s1, %s211
      %p213 = scmp.lt.s32.totalorder %s15, 1
      %s214 = scalar_select %p213, %s15, 1
      %s215 = smul.addr %s214, 36
      %s216 = smul.addr %s215, 8
      %s217 = scalar_lea.vmem %s4, %s216
      %v218 = vld [vmem:[%s212 + $0x24] sm:$0xff]
      %v219 = vld [vmem:[%s212 + $0x2c] sm:$0xff]
      %v220 = vld [vmem:[%s212 + $0x34] sm:$0xff]
      %v221 = vld [vmem:[%s212 + $0x3c] sm:$0xff]
      %v222 = vld [vmem:[%s212 + $0x44] sm:$0xff]
      %v223 = vld [vmem:[%s212 + $0x4c] sm:$0xff]
      %v224 = vld [vmem:[%s212 + $0x54] sm:$0xff]
      %v225 = vld [vmem:[%s212 + $0x5c] sm:$0xff]
      %v226 = vld [vmem:[%s212 + $0x64] sm:$0xff]
      %v227 = vld [vmem:[%s212 + $0x6c] sm:$0xff]
      %v228 = vld [vmem:[%s212 + $0x74] sm:$0xff]
      %v229 = vld [vmem:[%s212 + $0x7c] sm:$0xff]
      %v230 = vld [vmem:[%s212 + $0x84] sm:$0xff]
      %v231 = vld [vmem:[%s212 + $0x8c] sm:$0xff]
      %v232 = vld [vmem:[%s212 + $0x94] sm:$0xff]
      %v233 = vld [vmem:[%s212 + $0x9c] sm:$0xff]
      %v234 = vld [vmem:[%s212 + $0xa4] sm:$0xff]
      %v235 = vld [vmem:[%s212 + $0xac] sm:$0xff]
      %v236 = vld [vmem:[%s212 + $0xb4] sm:$0xff]
      %v237 = vld [vmem:[%s212 + $0xbc] sm:$0xff]
      %v238 = vld [vmem:[%s212 + $0xc4] sm:$0xff]
      %v239 = vld [vmem:[%s212 + $0xcc] sm:$0xff]
      %v240 = vld [vmem:[%s212 + $0xd4] sm:$0xff]
      %v241 = vld [vmem:[%s212 + $0xdc] sm:$0xff]
      %v242 = vld [vmem:[%s212 + $0xe4] sm:$0xff]
      %v243 = vld [vmem:[%s212 + $0xec] sm:$0xff]
      %v244 = vld [vmem:[%s212 + $0xf4] sm:$0xff]
      %v245 = vld [vmem:[%s212 + $0xfc] sm:$0xff]
      %v246 = vld [vmem:[%s212 + $0x104] sm:$0xff]
      %v247 = vld [vmem:[%s212 + $0x10c] sm:$0xff]
      %v248 = vld [vmem:[%s212 + $0x114] sm:$0xff]
      %v249 = vld [vmem:[%s212 + $0x11c] sm:$0xff]
      %v250 = vld [vmem:[%s212 + $0x124] sm:$0xff]
      %v251 = vld [vmem:[%s212 + $0x12c] sm:$0xff]
      %v252 = vld [vmem:[%s212 + $0x134] sm:$0xff]
      %v253 = vld [vmem:[%s212 + $0x13c] sm:$0xff]
      %v254 = vld [vmem:[%s207] sm:$0xf]
      %v255 = vld [vmem:[%s207 + $0x4] sm:$0xf]
      %v256 = vld [vmem:[%s207 + $0x8] sm:$0xf]
      %v257 = vld [vmem:[%s207 + $0xc] sm:$0xf]
      %v258 = vld [vmem:[%s207 + $0x10] sm:$0xf]
      %v259 = vld [vmem:[%s207 + $0x14] sm:$0xf]
      %v260 = vld [vmem:[%s207 + $0x18] sm:$0xf]
      %v261 = vld [vmem:[%s207 + $0x1c] sm:$0xf]
      %v262 = vld [vmem:[%s207 + $0x20] sm:$0xf]
      %v263 = vld [vmem:[%s207 + $0x24] sm:$0xf]
      %v264 = vld [vmem:[%s207 + $0x28] sm:$0xf]
      %v265 = vld [vmem:[%s207 + $0x2c] sm:$0xf]
      %v266 = vld [vmem:[%s207 + $0x30] sm:$0xf]
      %v267 = vld [vmem:[%s207 + $0x34] sm:$0xf]
      %v268 = vld [vmem:[%s207 + $0x38] sm:$0xf]
      %v269 = vld [vmem:[%s207 + $0x3c] sm:$0xf]
      %v270 = vld [vmem:[%s207 + $0x40] sm:$0xf]
      %v271 = vld [vmem:[%s207 + $0x44] sm:$0xf]
      %v272 = vld [vmem:[%s207 + $0x48] sm:$0xf]
      %v273 = vld [vmem:[%s207 + $0x4c] sm:$0xf]
      %v274 = vld [vmem:[%s207 + $0x50] sm:$0xf]
      %v275 = vld [vmem:[%s207 + $0x54] sm:$0xf]
      %v276 = vld [vmem:[%s207 + $0x58] sm:$0xf]
      %v277 = vld [vmem:[%s207 + $0x5c] sm:$0xf]
      %v278 = vld [vmem:[%s207 + $0x60] sm:$0xf]
      %v279 = vld [vmem:[%s207 + $0x64] sm:$0xf]
      %v280 = vld [vmem:[%s207 + $0x68] sm:$0xf]
      %v281 = vld [vmem:[%s207 + $0x6c] sm:$0xf]
      %v282 = vld [vmem:[%s207 + $0x70] sm:$0xf]
      %v283 = vld [vmem:[%s207 + $0x74] sm:$0xf]
      %v284 = vld [vmem:[%s207 + $0x78] sm:$0xf]
      %v285 = vld [vmem:[%s207 + $0x7c] sm:$0xf]
      %v286 = vld [vmem:[%s207 + $0x80] sm:$0xf]
      %v287 = vld [vmem:[%s207 + $0x84] sm:$0xf]
      %v288 = vld [vmem:[%s207 + $0x88] sm:$0xf]
      %v289 = vld [vmem:[%s207 + $0x8c] sm:$0xf]
      %v290 = vunpack.c.l.bf16 %v254
      %v291 = vunpack.c.l.bf16 %v255
      %v292 = vunpack.c.l.bf16 %v256
      %v293 = vunpack.c.l.bf16 %v257
      %v294 = vunpack.c.l.bf16 %v258
      %v295 = vunpack.c.l.bf16 %v259
      %v296 = vunpack.c.l.bf16 %v260
      %v297 = vunpack.c.l.bf16 %v261
      %v298 = vunpack.c.l.bf16 %v262
      %v299 = vunpack.c.l.bf16 %v263
      %v300 = vunpack.c.l.bf16 %v264
      %v301 = vunpack.c.l.bf16 %v265
      %v302 = vunpack.c.l.bf16 %v266
      %v303 = vunpack.c.l.bf16 %v267
      %v304 = vunpack.c.l.bf16 %v268
      %v305 = vunpack.c.l.bf16 %v269
      %v306 = vunpack.c.l.bf16 %v270
      %v307 = vunpack.c.l.bf16 %v271
      %v308 = vunpack.c.l.bf16 %v272
      %v309 = vunpack.c.l.bf16 %v273
      %v310 = vunpack.c.l.bf16 %v274
      %v311 = vunpack.c.l.bf16 %v275
      %v312 = vunpack.c.l.bf16 %v276
      %v313 = vunpack.c.l.bf16 %v277
      %v314 = vunpack.c.l.bf16 %v278
      %v315 = vunpack.c.l.bf16 %v279
      %v316 = vunpack.c.l.bf16 %v280
      %v317 = vunpack.c.l.bf16 %v281
      %v318 = vunpack.c.l.bf16 %v282
      %v319 = vunpack.c.l.bf16 %v283
      %v320 = vunpack.c.l.bf16 %v284
      %v321 = vunpack.c.l.bf16 %v285
      %v322 = vunpack.c.l.bf16 %v286
      %v323 = vunpack.c.l.bf16 %v287
      %v324 = vunpack.c.l.bf16 %v288
      %v325 = vunpack.c.l.bf16 %v289
      %v326 = vld [vmem:[%s2] sm:$0x1]
      %v328 = vperm.slane %v326, 0
      %v330 = vmul.f32 %v290, %v328
      %v331 = vmul.f32 %v291, %v328
      %v332 = vmul.f32 %v292, %v328
      %v333 = vmul.f32 %v293, %v328
      %v334 = vmul.f32 %v294, %v328
      %v335 = vmul.f32 %v295, %v328
      %v336 = vmul.f32 %v296, %v328
      %v337 = vmul.f32 %v297, %v328
      %v338 = vmul.f32 %v298, %v328
      %v339 = vmul.f32 %v299, %v328
      %v340 = vmul.f32 %v300, %v328
      %v341 = vmul.f32 %v301, %v328
      %v342 = vmul.f32 %v302, %v328
      %v343 = vmul.f32 %v303, %v328
      %v344 = vmul.f32 %v304, %v328
      %v345 = vmul.f32 %v305, %v328
      %v346 = vmul.f32 %v306, %v328
      %v347 = vmul.f32 %v307, %v328
      %v348 = vmul.f32 %v308, %v328
      %v349 = vmul.f32 %v309, %v328
      %v350 = vmul.f32 %v310, %v328
      %v351 = vmul.f32 %v311, %v328
      %v352 = vmul.f32 %v312, %v328
      %v353 = vmul.f32 %v313, %v328
      %v354 = vmul.f32 %v314, %v328
      %v355 = vmul.f32 %v315, %v328
      %v356 = vmul.f32 %v316, %v328
      %v357 = vmul.f32 %v317, %v328
      %v358 = vmul.f32 %v318, %v328
      %v359 = vmul.f32 %v319, %v328
      %v360 = vmul.f32 %v320, %v328
      %v361 = vmul.f32 %v321, %v328
      %v362 = vmul.f32 %v322, %v328
      %v363 = vmul.f32 %v323, %v328
      %v364 = vmul.f32 %v324, %v328
      %v365 = vmul.f32 %v325, %v328
      %v366 = vld [vmem:[%s3] sm:$0x1]
      %v368 = vperm.slane %v366, 0
      %v370 = vadd.f32 %v330, %v368
      %v371 = vadd.f32 %v331, %v368
      %v372 = vadd.f32 %v332, %v368
      %v373 = vadd.f32 %v333, %v368
      %v374 = vadd.f32 %v334, %v368
      %v375 = vadd.f32 %v335, %v368
      %v376 = vadd.f32 %v336, %v368
      %v377 = vadd.f32 %v337, %v368
      %v378 = vadd.f32 %v338, %v368
      %v379 = vadd.f32 %v339, %v368
      %v380 = vadd.f32 %v340, %v368
      %v381 = vadd.f32 %v341, %v368
      %v382 = vadd.f32 %v342, %v368
      %v383 = vadd.f32 %v343, %v368
      %v384 = vadd.f32 %v344, %v368
      %v385 = vadd.f32 %v345, %v368
      %v386 = vadd.f32 %v346, %v368
      %v387 = vadd.f32 %v347, %v368
      %v388 = vadd.f32 %v348, %v368
      %v389 = vadd.f32 %v349, %v368
      %v390 = vadd.f32 %v350, %v368
      %v391 = vadd.f32 %v351, %v368
      %v392 = vadd.f32 %v352, %v368
      %v393 = vadd.f32 %v353, %v368
      %v394 = vadd.f32 %v354, %v368
      %v395 = vadd.f32 %v355, %v368
      %v396 = vadd.f32 %v356, %v368
      %v397 = vadd.f32 %v357, %v368
      %v398 = vadd.f32 %v358, %v368
      %v399 = vadd.f32 %v359, %v368
      %v400 = vadd.f32 %v360, %v368
      %v401 = vadd.f32 %v361, %v368
      %v402 = vadd.f32 %v362, %v368
      %v403 = vadd.f32 %v363, %v368
      %v404 = vadd.f32 %v364, %v368
      %v405 = vadd.f32 %v365, %v368
      %v406 = vadd.f32 %v370, %v218
      %v407 = vadd.f32 %v371, %v219
      %v408 = vadd.f32 %v372, %v220
      %v409 = vadd.f32 %v373, %v221
      %v410 = vadd.f32 %v374, %v222
      %v411 = vadd.f32 %v375, %v223
      %v412 = vadd.f32 %v376, %v224
      %v413 = vadd.f32 %v377, %v225
      %v414 = vadd.f32 %v378, %v226
      %v415 = vadd.f32 %v379, %v227
      %v416 = vadd.f32 %v380, %v228
      %v417 = vadd.f32 %v381, %v229
      %v418 = vadd.f32 %v382, %v230
      %v419 = vadd.f32 %v383, %v231
      %v420 = vadd.f32 %v384, %v232
      %v421 = vadd.f32 %v385, %v233
      %v422 = vadd.f32 %v386, %v234
      %v423 = vadd.f32 %v387, %v235
      %v424 = vadd.f32 %v388, %v236
      %v425 = vadd.f32 %v389, %v237
      %v426 = vadd.f32 %v390, %v238
      %v427 = vadd.f32 %v391, %v239
      %v428 = vadd.f32 %v392, %v240
      %v429 = vadd.f32 %v393, %v241
      %v430 = vadd.f32 %v394, %v242
      %v431 = vadd.f32 %v395, %v243
      %v432 = vadd.f32 %v396, %v244
      %v433 = vadd.f32 %v397, %v245
      %v434 = vadd.f32 %v398, %v246
      %v435 = vadd.f32 %v399, %v247
      %v436 = vadd.f32 %v400, %v248
      %v437 = vadd.f32 %v401, %v249
      %v438 = vadd.f32 %v402, %v250
      %v439 = vadd.f32 %v403, %v251
      %v440 = vadd.f32 %v404, %v252
      %v441 = vadd.f32 %v405, %v253
      %v442 = vmax.f32 %v406, 0.0
      %v443 = vmax.f32 %v407, 0.0
      %v444 = vmax.f32 %v408, 0.0
      %v445 = vmax.f32 %v409, 0.0
      %v446 = vmax.f32 %v410, 0.0
      %v447 = vmax.f32 %v411, 0.0
      %v448 = vmax.f32 %v412, 0.0
      %v449 = vmax.f32 %v413, 0.0
      %v450 = vmax.f32 %v414, 0.0
      %v451 = vmax.f32 %v415, 0.0
      %v452 = vmax.f32 %v416, 0.0
      %v453 = vmax.f32 %v417, 0.0
      %v454 = vmax.f32 %v418, 0.0
      %v455 = vmax.f32 %v419, 0.0
      %v456 = vmax.f32 %v420, 0.0
      %v457 = vmax.f32 %v421, 0.0
      %v458 = vmax.f32 %v422, 0.0
      %v459 = vmax.f32 %v423, 0.0
      %v460 = vmax.f32 %v424, 0.0
      %v461 = vmax.f32 %v425, 0.0
      %v462 = vmax.f32 %v426, 0.0
      %v463 = vmax.f32 %v427, 0.0
      %v464 = vmax.f32 %v428, 0.0
      %v465 = vmax.f32 %v429, 0.0
      %v466 = vmax.f32 %v430, 0.0
      %v467 = vmax.f32 %v431, 0.0
      %v468 = vmax.f32 %v432, 0.0
      %v469 = vmax.f32 %v433, 0.0
      %v470 = vmax.f32 %v434, 0.0
      %v471 = vmax.f32 %v435, 0.0
      %v472 = vmax.f32 %v436, 0.0
      %v473 = vmax.f32 %v437, 0.0
      %v474 = vmax.f32 %v438, 0.0
      %v475 = vmax.f32 %v439, 0.0
      %v476 = vmax.f32 %v440, 0.0
      %v477 = vmax.f32 %v441, 0.0
      %vm478 = vcmask 64512
      %479 = vst.msk [vmem:[%s217] sm:$0xff] %vm478, %v442
      %480 = vst.msk [vmem:[%s217 + $0x8] sm:$0xff] %vm478, %v443
      %481 = vst.msk [vmem:[%s217 + $0x10] sm:$0xff] %vm478, %v444
      %482 = vst.msk [vmem:[%s217 + $0x18] sm:$0xff] %vm478, %v445
      %483 = vst.msk [vmem:[%s217 + $0x20] sm:$0xff] %vm478, %v446
      %484 = vst.msk [vmem:[%s217 + $0x28] sm:$0xff] %vm478, %v447
      %485 = vst.msk [vmem:[%s217 + $0x30] sm:$0xff] %vm478, %v448
      %486 = vst.msk [vmem:[%s217 + $0x38] sm:$0xff] %vm478, %v449
      %487 = vst.msk [vmem:[%s217 + $0x40] sm:$0xff] %vm478, %v450
      %488 = vst.msk [vmem:[%s217 + $0x48] sm:$0xff] %vm478, %v451
      %489 = vst.msk [vmem:[%s217 + $0x50] sm:$0xff] %vm478, %v452
      %490 = vst.msk [vmem:[%s217 + $0x58] sm:$0xff] %vm478, %v453
      %491 = vst.msk [vmem:[%s217 + $0x60] sm:$0xff] %vm478, %v454
      %492 = vst.msk [vmem:[%s217 + $0x68] sm:$0xff] %vm478, %v455
      %493 = vst.msk [vmem:[%s217 + $0x70] sm:$0xff] %vm478, %v456
      %494 = vst.msk [vmem:[%s217 + $0x78] sm:$0xff] %vm478, %v457
      %495 = vst.msk [vmem:[%s217 + $0x80] sm:$0xff] %vm478, %v458
      %496 = vst.msk [vmem:[%s217 + $0x88] sm:$0xff] %vm478, %v459
      %497 = vst.msk [vmem:[%s217 + $0x90] sm:$0xff] %vm478, %v460
      %498 = vst.msk [vmem:[%s217 + $0x98] sm:$0xff] %vm478, %v461
      %499 = vst.msk [vmem:[%s217 + $0xa0] sm:$0xff] %vm478, %v462
      %500 = vst.msk [vmem:[%s217 + $0xa8] sm:$0xff] %vm478, %v463
      %501 = vst.msk [vmem:[%s217 + $0xb0] sm:$0xff] %vm478, %v464
      %502 = vst.msk [vmem:[%s217 + $0xb8] sm:$0xff] %vm478, %v465
      %503 = vst.msk [vmem:[%s217 + $0xc0] sm:$0xff] %vm478, %v466
      %504 = vst.msk [vmem:[%s217 + $0xc8] sm:$0xff] %vm478, %v467
      %505 = vst.msk [vmem:[%s217 + $0xd0] sm:$0xff] %vm478, %v468
      %506 = vst.msk [vmem:[%s217 + $0xd8] sm:$0xff] %vm478, %v469
      %507 = vst.msk [vmem:[%s217 + $0xe0] sm:$0xff] %vm478, %v470
      %508 = vst.msk [vmem:[%s217 + $0xe8] sm:$0xff] %vm478, %v471
      %509 = vst.msk [vmem:[%s217 + $0xf0] sm:$0xff] %vm478, %v472
      %510 = vst.msk [vmem:[%s217 + $0xf8] sm:$0xff] %vm478, %v473
      %511 = vst.msk [vmem:[%s217 + $0x100] sm:$0xff] %vm478, %v474
      %512 = vst.msk [vmem:[%s217 + $0x108] sm:$0xff] %vm478, %v475
      %513 = vst.msk [vmem:[%s217 + $0x110] sm:$0xff] %vm478, %v476
      %514 = vst.msk [vmem:[%s217 + $0x118] sm:$0xff] %vm478, %v477
      %p515 = scmp.lt.s32.totalorder %s15, 1
      %s516 = scalar_select %p515, %s15, 1
      %s517 = smul.addr %s516, 36
      %s518 = smul.addr %s517, 8
      %s519 = scalar_lea.vmem %s4, %s518
      // Predicated region
      $region37: #{resblock_forward.5} parent=35 // pred_check
        %p520 = pneg %p127
      $region38: #{resblock_forward.5} parent=35 // pred_check_branch
        %522 = sbr.rel (%p520) target = $region40
      $region39: #{resblock_forward.5} parent=35 // pred_region
        _
      $region40: #{resblock_forward.5} parent=35 // pred_fallthru
        _
    $region36: #{resblock_forward.5} parent=5 // pred_fallthru
      _
    %p523 = scmp.le.s32.totalorder 2, %s10
    // Predicated region
    $region41: #{resblock_forward.5} parent=5 // pred_check
      %p524 = pneg %p523
    $region42: #{resblock_forward.5} parent=5 // pred_check_branch
      %526 = sbr.rel (%p524) target = $region44
    $region43: #{resblock_forward.5} parent=5 // pred_region
      %s527 = ssub.s32 %s10, 2
      // Predicated region
      $region45: #{resblock_forward.5} parent=43 // pred_check
        %p528 = pneg %p133
      $region46: #{resblock_forward.5} parent=43 // pred_check_branch
        %530 = sbr.rel (%p528) target = $region48
      $region47: #{resblock_forward.5} parent=43 // pred_region
        %p531 = scmp.lt.s32.totalorder %s16, 1
        %s532 = scalar_select %p531, %s16, 1
        %s533 = smul.addr %s532, 36
        %s534 = smul.addr %s533, 8
        %s535 = scalar_lea.vmem %s4, %s534
      $region48: #{resblock_forward.5} parent=43 // pred_fallthru
        _
    $region44: #{resblock_forward.5} parent=5 // pred_fallthru
      _
  $region6: #{resblock_forward.5} parent=0 // loop_footer
    %s14 = sadd.s32 1, %s10
  $region7: #{resblock_forward.5} parent=0 // loop_footer_branch
    %9 = sbr.rel target = $region3
  $region8: #{resblock_forward.5} parent=0 // loop_exit
    _

// kernel: resblock_forward.3
$region0: #{resblock_forward.3}
  #allocation0 [shape = 'u32[]', space=smem, size = 0x4, offset = 0x4, fixed_abs, tag = 'smem constant byte address 0x4 - core index']
  #allocation1 [shape = 'u32[72,128]{1,0:T(1,128)}', space=vmem, size = 0x9000, scoped, tag = 'internal scratch']
  %s0 = inlined_call_operand.vmem [shape: f32[2,360,8], index: 0, kind: input, shape index: {}]
  %s1 = inlined_call_operand.vmem [shape: bf16[9,8,8], index: 1, kind: input, shape index: {}]
  %s2 = inlined_call_operand.vmem [shape: f32[288,1], index: 2, kind: input, shape index: {}]
  %s3 = inlined_call_operand.vmem [shape: bf16[2,288,8], index: 3, kind: output, shape index: {0}]
  %s4 = inlined_call_operand.vmem [shape: f32[2,2,8], index: 4, kind: output, shape index: {1}]
  %5 = xla_tuple %s3, %s4
  %s6 = sld [smem:[#allocation0]]
  $region53: #{resblock_forward.3} parent=0
    _
  %s8 = ssub.s32 1, %s6
  %s9 = scalar_select 0, %s8, %s6
  loop: start=0, step=1, limit=4
  $region2: #{resblock_forward.3} parent=0 // loop_pre_header
    _
  $region3: #{resblock_forward.3} parent=0 // loop_header
    %s11 = sphi 0, %s15
    %p12 = scmp.ge.s32.totalorder %s11, 4
    %s21 = sphi 0, %s23
    %s24 = sphi 0, %s21
    %s25 = sphi 0, %s24
    %s41 = sphi 0, %s25
    %s45 = sphi 0, %s45
    %s47 = sphi 0, %s45
    %s48 = sphi 0, %s47
    %s62 = sphi 0, %s48
    %s66 = sphi 0, %s66
    %s68 = sphi 0, %s66
    %s69 = sphi 0, %s68
    %s83 = sphi 0, %s69
    %s89 = sphi 0, %s91
    %s92 = sphi 0, %s89
    %s93 = sphi 0, %s92
    %s109 = sphi 0, %s93
    %s115 = sphi 0, %s117
    %s118 = sphi 0, %s115
    %s119 = sphi 0, %s118
    %s135 = sphi 0, %s119
  $region4: #{resblock_forward.3} parent=0 // loop_header_branch
    %14 = sbr.rel (%p12) target = $region8
  $region5: #{resblock_forward.3} parent=0 // loop_body
    %s16 = ssub.s32 %s11, 1
    %s17 = ssub.s32 %s11, 2
    %s18 = sadd.s32 %s11, 1
    %s19 = ssub.s32 %s11, %s18
    %p20 = scmp.eq.s32.totalorder %s19, 0
    %s22 = sadd.s32 %s21, 1
    %s23 = scalar_select %p20, %s21, %s22
    %p26 = pneg %p20
    %p27 = scmp.eq.s32.totalorder %s11, 1
    %p28 = por %p26, %p27
    %p29 = scmp.ne.s32.totalorder %s21, %s24
    %p30 = scmp.eq.s32.totalorder %s11, 0
    %p31 = por %p29, %p30
    %p32 = scmp.ne.s32.totalorder %s21, %s24
    %p33 = scmp.eq.s32.totalorder %s16, 1
    %p34 = por %p32, %p33
    %p35 = scmp.ne.s32.totalorder %s24, %s25
    %p36 = scmp.eq.s32.totalorder %s16, 0
    %p37 = por %p35, %p36
    %p38 = scmp.ne.s32.totalorder %s24, %s25
    %p39 = scmp.eq.s32.totalorder %s17, 1
    %p40 = por %p38, %p39
    %p42 = scmp.ne.s32.totalorder %s25, %s41
    %p43 = scmp.eq.s32.totalorder %s17, 0
    %p44 = por %p42, %p43
    %s46 = sadd.s32 %s45, 1
    %p49 = scmp.eq.s32.totalorder %s11, 1
    %p50 = scmp.ne.s32.totalorder %s45, %s47
    %p51 = scmp.eq.s32.totalorder %s11, 0
    %p52 = por %p50, %p51
    %p53 = scmp.ne.s32.totalorder %s45, %s47
    %p54 = scmp.eq.s32.totalorder %s16, 1
    %p55 = por %p53, %p54
    %p56 = scmp.ne.s32.totalorder %s47, %s48
    %p57 = scmp.eq.s32.totalorder %s16, 0
    %p58 = por %p56, %p57
    %p59 = scmp.ne.s32.totalorder %s47, %s48
    %p60 = scmp.eq.s32.totalorder %s17, 1
    %p61 = por %p59, %p60
    %p63 = scmp.ne.s32.totalorder %s48, %s62
    %p64 = scmp.eq.s32.totalorder %s17, 0
    %p65 = por %p63, %p64
    %s67 = sadd.s32 %s66, 1
    %p70 = scmp.eq.s32.totalorder %s11, 1
    %p71 = scmp.ne.s32.totalorder %s66, %s68
    %p72 = scmp.eq.s32.totalorder %s11, 0
    %p73 = por %p71, %p72
    %p74 = scmp.ne.s32.totalorder %s66, %s68
    %p75 = scmp.eq.s32.totalorder %s16, 1
    %p76 = por %p74, %p75
    %p77 = scmp.ne.s32.totalorder %s68, %s69
    %p78 = scmp.eq.s32.totalorder %s16, 0
    %p79 = por %p77, %p78
    %p80 = scmp.ne.s32.totalorder %s68, %s69
    %p81 = scmp.eq.s32.totalorder %s17, 1
    %p82 = por %p80, %p81
    %p84 = scmp.ne.s32.totalorder %s69, %s83
    %p85 = scmp.eq.s32.totalorder %s17, 0
    %p86 = por %p84, %p85
    %s87 = ssub.s32 %s11, %s18
    %p88 = scmp.eq.s32.totalorder %s87, 0
    %s90 = sadd.s32 %s89, 1
    %s91 = scalar_select %p88, %s89, %s90
    %p94 = pneg %p88
    %p95 = scmp.eq.s32.totalorder %s11, 1
    %p96 = por %p94, %p95
    %p97 = scmp.ne.s32.totalorder %s89, %s92
    %p98 = scmp.eq.s32.totalorder %s11, 0
    %p99 = por %p97, %p98
    %p100 = scmp.ne.s32.totalorder %s89, %s92
    %p101 = scmp.eq.s32.totalorder %s16, 1
    %p102 = por %p100, %p101
    %p103 = scmp.ne.s32.totalorder %s92, %s93
    %p104 = scmp.eq.s32.totalorder %s16, 0
    %p105 = por %p103, %p104
    %p106 = scmp.ne.s32.totalorder %s92, %s93
    %p107 = scmp.eq.s32.totalorder %s17, 1
    %p108 = por %p106, %p107
    %p110 = scmp.ne.s32.totalorder %s93, %s109
    %p111 = scmp.eq.s32.totalorder %s17, 0
    %p112 = por %p110, %p111
    %s113 = ssub.s32 %s11, %s18
    %p114 = scmp.eq.s32.totalorder %s113, 0
    %s116 = sadd.s32 %s115, 1
    %s117 = scalar_select %p114, %s115, %s116
    %p120 = pneg %p114
    %p121 = scmp.eq.s32.totalorder %s11, 1
    %p122 = por %p120, %p121
    %p123 = scmp.ne.s32.totalorder %s115, %s118
    %p124 = scmp.eq.s32.totalorder %s11, 0
    %p125 = por %p123, %p124
    %p126 = scmp.ne.s32.totalorder %s115, %s118
    %p127 = scmp.eq.s32.totalorder %s16, 1
    %p128 = por %p126, %p127
    %p129 = scmp.ne.s32.totalorder %s118, %s119
    %p130 = scmp.eq.s32.totalorder %s16, 0
    %p131 = por %p129, %p130
    %p132 = scmp.ne.s32.totalorder %s118, %s119
    %p133 = scmp.eq.s32.totalorder %s17, 1
    %p134 = por %p132, %p133
    %p136 = scmp.ne.s32.totalorder %s119, %s135
    %p137 = scmp.eq.s32.totalorder %s17, 0
    %p138 = por %p136, %p137
    %p139 = scmp.le.s32.totalorder 1, %s11
    %p140 = scmp.lt.s32.totalorder %s11, 3
    %p141 = pnand %p139, %p140
    %p142 = pneg %p141
    // Predicated region
    $region9: #{resblock_forward.3} parent=5 // pred_check
      _
    $region10: #{resblock_forward.3} parent=5 // pred_check_branch
      %144 = sbr.rel (%p141) target = $region12
    $region11: #{resblock_forward.3} parent=5 // pred_region
      %s145 = ssub.s32 %s11, 1
      // Predicated region
      $region13: #{resblock_forward.3} parent=11 // pred_check
        %p146 = pneg %p58
      $region14: #{resblock_forward.3} parent=11 // pred_check_branch
        %148 = sbr.rel (%p146) target = $region16
      $region15: #{resblock_forward.3} parent=11 // pred_region
        _
      $region16: #{resblock_forward.3} parent=11 // pred_fallthru
        _
      // Predicated region
      $region17: #{resblock_forward.3} parent=11 // pred_check
        %p149 = pneg %p79
      $region18: #{resblock_forward.3} parent=11 // pred_check_branch
        %151 = sbr.rel (%p149) target = $region20
      $region19: #{resblock_forward.3} parent=11 // pred_region
        _
      $region20: #{resblock_forward.3} parent=11 // pred_fallthru
        _
    $region12: #{resblock_forward.3} parent=5 // pred_fallthru
      _
    %p152 = scmp.lt.s32.totalorder %s11, 2
    // Predicated region
    $region21: #{resblock_forward.3} parent=5 // pred_check
      %p153 = pneg %p152
    $region22: #{resblock_forward.3} parent=5 // pred_check_branch
      %155 = sbr.rel (%p153) target = $region24
    $region23: #{resblock_forward.3} parent=5 // pred_region
      // Predicated region
      $region25: #{resblock_forward.3} parent=23 // pred_check
        %p156 = pneg %p31
      $region26: #{resblock_forward.3} parent=23 // pred_check_branch
        %158 = sbr.rel (%p156) target = $region28
      $region27: #{resblock_forward.3} parent=23 // pred_region
        %p159 = scmp.lt.s32.totalorder %s11, 1
        %s160 = scalar_select %p159, %s11, 1
        %s161 = smul.addr %s160, 45
        %s162 = smul.addr %s161, 8
        %s163 = scalar_lea.vmem %s0, %s162
      $region28: #{resblock_forward.3} parent=23 // pred_fallthru
        _
    $region24: #{resblock_forward.3} parent=5 // pred_fallthru
      _
    %p164 = scmp.le.s32.totalorder 1, %s11
    %p165 = scmp.lt.s32.totalorder %s11, 3
    %p166 = pnand %p164, %p165
    %p167 = pneg %p166
    // Predicated region
    $region29: #{resblock_forward.3} parent=5 // pred_check
      _
    $region30: #{resblock_forward.3} parent=5 // pred_check_branch
      %169 = sbr.rel (%p166) target = $region32
    $region31: #{resblock_forward.3} parent=5 // pred_region
      %s170 = ssub.s32 %s11, 1
      %p171 = scmp.lt.s32.totalorder %s16, 1
      %s172 = scalar_select %p171, %s16, 1
      %s173 = smul.addr %s172, 45
      %s174 = smul.addr %s173, 8
      %s175 = scalar_lea.vmem %s0, %s174
      %p176 = pneg %p37
      %p177 = pneg %p34
      %p178 = pneg %p58
      %p179 = pneg %p55
      %p180 = pneg %p79
      %p181 = pneg %p76
      %p182 = pneg %p105
      %p183 = pneg %p102
      %p184 = scmp.lt.s32.totalorder %s16, 1
      %s185 = scalar_select %p184, %s16, 1
      %s186 = smul.addr %s185, 36
      %s187 = smul.addr %s186, 4
      %s188 = scalar_lea.vmem %s3, %s187
      %p189 = pneg %p131
      %p190 = pneg %p128
      %p191 = scmp.lt.s32.totalorder %s16, 1
      %s192 = scalar_select %p191, %s16, 1
      %s193 = smul.addr %s192, 2
      %s194 = scalar_lea.vmem %s4, %s193
      %p195 = scmp.lt.s32.totalorder %s16, 1
      %s196 = scalar_select %p195, %s16, 1
      %s197 = smul.addr %s196, 45
      %s198 = smul.addr %s197, 8
      %s199 = scalar_lea.vmem %s0, %s198
      %p200 = scmp.lt.s32.totalorder %s16, 1
      %s201 = scalar_select %p200, %s16, 1
      %s202 = smul.addr %s201, 36
      %s203 = smul.addr %s202, 4
      %s204 = scalar_lea.vmem %s3, %s203
      %p205 = scmp.lt.s32.totalorder %s16, 1
      %s206 = scalar_select %p205, %s16, 1
      %s207 = smul.addr %s206, 2
      %s208 = scalar_lea.vmem %s4, %s207
      %v210 = vld [vmem:[%s199 + $0x11] sm:$0xff]
      %v211 = vld [vmem:[%s199 + $0x19] sm:$0xff]
      %v212 = vld [vmem:[%s199 + $0x21] sm:$0xff]
      %v213 = vld [vmem:[%s199 + $0x29] sm:$0xff]
      %v214 = vld [vmem:[%s199 + $0x31] sm:$0xff]
      %v215 = vld [vmem:[%s199 + $0x39] sm:$0xff]
      %v216 = vld [vmem:[%s199 + $0x41] sm:$0xff]
      %v217 = vld [vmem:[%s199 + $0x49] sm:$0xff]
      %v218 = vld [vmem:[%s199 + $0x51] sm:$0xff]
      %v219 = vld [vmem:[%s199 + $0x59] sm:$0xff]
      %v220 = vld [vmem:[%s199 + $0x61] sm:$0xff]
      %v221 = vld [vmem:[%s199 + $0x69] sm:$0xff]
      %v222 = vld [vmem:[%s199 + $0x71] sm:$0xff]
      %v223 = vld [vmem:[%s199 + $0x79] sm:$0xff]
      %v224 = vld [vmem:[%s199 + $0x81] sm:$0xff]
      %v225 = vld [vmem:[%s199 + $0x89] sm:$0xff]
      %v226 = vld [vmem:[%s199 + $0x91] sm:$0xff]
      %v227 = vld [vmem:[%s199 + $0x99] sm:$0xff]
      %v228 = vld [vmem:[%s199 + $0xa1] sm:$0xff]
      %v229 = vld [vmem:[%s199 + $0xa9] sm:$0xff]
      %v230 = vld [vmem:[%s199 + $0xb1] sm:$0xff]
      %v231 = vld [vmem:[%s199 + $0xb9] sm:$0xff]
      %v232 = vld [vmem:[%s199 + $0xc1] sm:$0xff]
      %v233 = vld [vmem:[%s199 + $0xc9] sm:$0xff]
      %v234 = vld [vmem:[%s199 + $0xd1] sm:$0xff]
      %v235 = vld [vmem:[%s199 + $0xd9] sm:$0xff]
      %v236 = vld [vmem:[%s199 + $0xe1] sm:$0xff]
      %v237 = vld [vmem:[%s199 + $0xe9] sm:$0xff]
      %v238 = vld [vmem:[%s199 + $0xf1] sm:$0xff]
      %v239 = vld [vmem:[%s199 + $0xf9] sm:$0xff]
      %v240 = vld [vmem:[%s199 + $0x101] sm:$0xff]
      %v241 = vld [vmem:[%s199 + $0x109] sm:$0xff]
      %v242 = vld [vmem:[%s199 + $0x111] sm:$0xff]
      %v243 = vld [vmem:[%s199 + $0x119] sm:$0xff]
      %v244 = vld [vmem:[%s199 + $0x121] sm:$0xff]
      %v245 = vld [vmem:[%s199 + $0x129] sm:$0xff]
      %v246 = vpack.c.bf16 %v211, %v210
      %v247 = vpack.c.bf16 %v213, %v212
      %v248 = vpack.c.bf16 %v215, %v214
      %v249 = vpack.c.bf16 %v217, %v216
      %v250 = vpack.c.bf16 %v219, %v218
      %v251 = vpack.c.bf16 %v221, %v220
      %v252 = vpack.c.bf16 %v223, %v222
      %v253 = vpack.c.bf16 %v225, %v224
      %v254 = vpack.c.bf16 %v227, %v226
      %v255 = vpack.c.bf16 %v229, %v228
      %v256 = vpack.c.bf16 %v231, %v230
      %v257 = vpack.c.bf16 %v233, %v232
      %v258 = vpack.c.bf16 %v235, %v234
      %v259 = vpack.c.bf16 %v237, %v236
      %v260 = vpack.c.bf16 %v239, %v238
      %v261 = vpack.c.bf16 %v241, %v240
      %v262 = vpack.c.bf16 %v243, %v242
      %v263 = vpack.c.bf16 %v245, %v244
      %v264 = vld [vmem:[%s1] sm:$0xf]
      %v265 = vld [vmem:[%s199 + $0x12] sm:$0xff]
      %v266 = vld [vmem:[%s199 + $0x1a] sm:$0xff]
      %v267 = vld [vmem:[%s199 + $0x22] sm:$0xff]
      %v268 = vld [vmem:[%s199 + $0x2a] sm:$0xff]
      %v269 = vld [vmem:[%s199 + $0x32] sm:$0xff]
      %v270 = vld [vmem:[%s199 + $0x3a] sm:$0xff]
      %v271 = vld [vmem:[%s199 + $0x42] sm:$0xff]
      %v272 = vld [vmem:[%s199 + $0x4a] sm:$0xff]
      %v273 = vld [vmem:[%s199 + $0x52] sm:$0xff]
      %v274 = vld [vmem:[%s199 + $0x5a] sm:$0xff]
      %v275 = vld [vmem:[%s199 + $0x62] sm:$0xff]
      %v276 = vld [vmem:[%s199 + $0x6a] sm:$0xff]
      %v277 = vld [vmem:[%s199 + $0x72] sm:$0xff]
      %v278 = vld [vmem:[%s199 + $0x7a] sm:$0xff]
      %v279 = vld [vmem:[%s199 + $0x82] sm:$0xff]
      %v280 = vld [vmem:[%s199 + $0x8a] sm:$0xff]
      %v281 = vld [vmem:[%s199 + $0x92] sm:$0xff]
      %v282 = vld [vmem:[%s199 + $0x9a] sm:$0xff]
      %v283 = vld [vmem:[%s199 + $0xa2] sm:$0xff]
      %v284 = vld [vmem:[%s199 + $0xaa] sm:$0xff]
      %v285 = vld [vmem:[%s199 + $0xb2] sm:$0xff]
      %v286 = vld [vmem:[%s199 + $0xba] sm:$0xff]
      %v287 = vld [vmem:[%s199 + $0xc2] sm:$0xff]
      %v288 = vld [vmem:[%s199 + $0xca] sm:$0xff]
      %v289 = vld [vmem:[%s199 + $0xd2] sm:$0xff]
      %v290 = vld [vmem:[%s199 + $0xda] sm:$0xff]
      %v291 = vld [vmem:[%s199 + $0xe2] sm:$0xff]
      %v292 = vld [vmem:[%s199 + $0xea] sm:$0xff]
      %v293 = vld [vmem:[%s199 + $0xf2] sm:$0xff]
      %v294 = vld [vmem:[%s199 + $0xfa] sm:$0xff]
      %v295 = vld [vmem:[%s199 + $0x102] sm:$0xff]
      %v296 = vld [vmem:[%s199 + $0x10a] sm:$0xff]
      %v297 = vld [vmem:[%s199 + $0x112] sm:$0xff]
      %v298 = vld [vmem:[%s199 + $0x11a] sm:$0xff]
      %v299 = vld [vmem:[%s199 + $0x122] sm:$0xff]
      %v300 = vld [vmem:[%s199 + $0x12a] sm:$0xff]
      %v301 = vpack.c.bf16 %v266, %v265
      %v302 = vpack.c.bf16 %v268, %v267
      %v303 = vpack.c.bf16 %v270, %v269
      %v304 = vpack.c.bf16 %v272, %v271
      %v305 = vpack.c.bf16 %v274, %v273
      %v306 = vpack.c.bf16 %v276, %v275
      %v307 = vpack.c.bf16 %v278, %v277
      %v308 = vpack.c.bf16 %v280, %v279
      %v309 = vpack.c.bf16 %v282, %v281
      %v310 = vpack.c.bf16 %v284, %v283
      %v311 = vpack.c.bf16 %v286, %v285
      %v312 = vpack.c.bf16 %v288, %v287
      %v313 = vpack.c.bf16 %v290, %v289
      %v314 = vpack.c.bf16 %v292, %v291
      %v315 = vpack.c.bf16 %v294, %v293
      %v316 = vpack.c.bf16 %v296, %v295
      %v317 = vpack.c.bf16 %v298, %v297
      %v318 = vpack.c.bf16 %v300, %v299
      %s319 = scalar_lea.vmem %s1, 4
      %v320 = vld [vmem:[%s319] sm:$0xf]
      %vm321 = vcmask 64512
      %v323 = vsel %vm321, %v301, 0
      %v326 = vsel %vm321, %v302, 0
      %v329 = vsel %vm321, %v303, 0
      %v332 = vsel %vm321, %v304, 0
      %v335 = vsel %vm321, %v305, 0
      %v338 = vsel %vm321, %v306, 0
      %v341 = vsel %vm321, %v307, 0
      %v344 = vsel %vm321, %v308, 0
      %v347 = vsel %vm321, %v309, 0
      %v350 = vsel %vm321, %v310, 0
      %v353 = vsel %vm321, %v311, 0
      %v356 = vsel %vm321, %v312, 0
      %v359 = vsel %vm321, %v313, 0
      %v362 = vsel %vm321, %v314, 0
      %v365 = vsel %vm321, %v315, 0
      %v368 = vsel %vm321, %v316, 0
      %v371 = vsel %vm321, %v317, 0
      %v374 = vsel %vm321, %v318, 0
      %vm376 = vcmask 1043456
      %v378 = vsel %vm376, %v320, 0
      %380 = vmatpush.bf16.msra.mxu0 0
      %381 = vmatpush.bf16.msra.mxu0 0
      %382 = vmatpush.bf16.msra.mxu0 0
      %383 = vmatpush.bf16.msra.mxu0 0
      %384 = vmatpush.bf16.msra.mxu0 0
      %385 = vmatpush.bf16.msra.mxu0 0
      %386 = vmatpush.bf16.msra.mxu0 0
      %387 = vmatpush.bf16.msra.mxu0 %v378
      %388 = vmatmul.bf16.gmra.mxu0 %v323
      %v389 = vpop.f32.mrf.mxu0
      %v390 = vadd.f32 0.0, %v389
      %v391 = vpop.f32.mrf.mxu0
      %v392 = vadd.f32 0.0, %v391
      %393 = vmatmul.bf16.gmra.mxu0 %v326
      %v394 = vpop.f32.mrf.mxu0
      %v395 = vadd.f32 0.0, %v394
      %v396 = vpop.f32.mrf.mxu0
      %v397 = vadd.f32 0.0, %v396
      %398 = vmatmul.bf16.gmra.mxu0 %v329
      %v399 = vpop.f32.mrf.mxu0
      %v400 = vadd.f32 0.0, %v399
      %v401 = vpop.f32.mrf.mxu0
      %v402 = vadd.f32 0.0, %v401
      %403 = vmatmul.bf16.gmra.mxu0 %v332
      %v404 = vpop.f32.mrf.mxu0
      %v405 = vadd.f32 0.0, %v404
      %v406 = vpop.f32.mrf.mxu0
      %v407 = vadd.f32 0.0, %v406
      %408 = vmatmul.bf16.gmra.mxu0 %v335
      %v409 = vpop.f32.mrf.mxu0
      %v410 = vadd.f32 0.0, %v409
      %v411 = vpop.f32.mrf.mxu0
      %v412 = vadd.f32 0.0, %v411
      %413 = vmatmul.bf16.gmra.mxu0 %v338
      %v414 = vpop.f32.mrf.mxu0
      %v415 = vadd.f32 0.0, %v414
      %v416 = vpop.f32.mrf.mxu0
      %v417 = vadd.f32 0.0, %v416
      %418 = vmatmul.bf16.gmra.mxu0 %v341
      %v419 = vpop.f32.mrf.mxu0
      %v420 = vadd.f32 0.0, %v419
      %v421 = vpop.f32.mrf.mxu0
      %v422 = vadd.f32 0.0, %v421
      %423 = vmatmul.bf16.gmra.mxu0 %v344
      %v424 = vpop.f32.mrf.mxu0
      %v425 = vadd.f32 0.0, %v424
      %v426 = vpop.f32.mrf.mxu0
      %v427 = vadd.f32 0.0, %v426
      %428 = vmatmul.bf16.gmra.mxu0 %v347
      %v429 = vpop.f32.mrf.mxu0
      %v430 = vadd.f32 0.0, %v429
      %v431 = vpop.f32.mrf.mxu0
      %v432 = vadd.f32 0.0, %v431
      %433 = vmatmul.bf16.gmra.mxu0 %v350
      %v434 = vpop.f32.mrf.mxu0
      %v435 = vadd.f32 0.0, %v434
      %v436 = vpop.f32.mrf.mxu0
      %v437 = vadd.f32 0.0, %v436
      %438 = vmatmul.bf16.gmra.mxu0 %v353
      %v439 = vpop.f32.mrf.mxu0
      %v440 = vadd.f32 0.0, %v439
      %v441 = vpop.f32.mrf.mxu0
      %v442 = vadd.f32 0.0, %v441
      %443 = vmatmul.bf16.gmra.mxu0 %v356
      %v444 = vpop.f32.mrf.mxu0
      %v445 = vadd.f32 0.0, %v444
      %v446 = vpop.f32.mrf.mxu0
      %v447 = vadd.f32 0.0, %v446
      %448 = vmatmul.bf16.gmra.mxu0 %v359
      %v449 = vpop.f32.mrf.mxu0
      %v450 = vadd.f32 0.0, %v449
      %v451 = vpop.f32.mrf.mxu0
      %v452 = vadd.f32 0.0, %v451
      %453 = vmatmul.bf16.gmra.mxu0 %v362
      %v454 = vpop.f32.mrf.mxu0
      %v455 = vadd.f32 0.0, %v454
      %v456 = vpop.f32.mrf.mxu0
      %v457 = vadd.f32 0.0, %v456
      %458 = vmatmul.bf16.gmra.mxu0 %v365
      %v459 = vpop.f32.mrf.mxu0
      %v460 = vadd.f32 0.0, %v459
      %v461 = vpop.f32.mrf.mxu0
      %v462 = vadd.f32 0.0, %v461
      %463 = vmatmul.bf16.gmra.mxu0 %v368
      %v464 = vpop.f32.mrf.mxu0
      %v465 = vadd.f32 0.0, %v464
      %v466 = vpop.f32.mrf.mxu0
      %v467 = vadd.f32 0.0, %v466
      %468 = vmatmul.bf16.gmra.mxu0 %v371
      %v469 = vpop.f32.mrf.mxu0
      %v470 = vadd.f32 0.0, %v469
      %v471 = vpop.f32.mrf.mxu0
      %v472 = vadd.f32 0.0, %v471
      %473 = vmatmul.bf16.gmra.mxu0 %v374
      %v474 = vpop.f32.mrf.mxu0
      %v475 = vadd.f32 0.0, %v474
      %v476 = vpop.f32.mrf.mxu0
      %v477 = vadd.f32 0.0, %v476
      %478 = vdwg.mxu0
      %v480 = vsel %vm321, %v246, 0
      %v483 = vsel %vm321, %v247, 0
      %v486 = vsel %vm321, %v248, 0
      %v489 = vsel %vm321, %v249, 0
      %v492 = vsel %vm321, %v250, 0
      %v495 = vsel %vm321, %v251, 0
      %v498 = vsel %vm321, %v252, 0
      %v501 = vsel %vm321, %v253, 0
      %v504 = vsel %vm321, %v254, 0
      %v507 = vsel %vm321, %v255, 0
      %v510 = vsel %vm321, %v256, 0
      %v513 = vsel %vm321, %v257, 0
      %v516 = vsel %vm321, %v258, 0
      %v519 = vsel %vm321, %v259, 0
      %v522 = vsel %vm321, %v260, 0
      %v525 = vsel %vm321, %v261, 0
      %v528 = vsel %vm321, %v262, 0
      %v531 = vsel %vm321, %v263, 0
      %v534 = vsel %vm376, %v264, 0
      %536 = vmatpush.bf16.msra.mxu0 0
      %537 = vmatpush.bf16.msra.mxu0 0
      %538 = vmatpush.bf16.msra.mxu0 0
      %539 = vmatpush.bf16.msra.mxu0 0
      %540 = vmatpush.bf16.msra.mxu0 0
      %541 = vmatpush.bf16.msra.mxu0 0
      %542 = vmatpush.bf16.msra.mxu0 0
      %543 = vmatpush.bf16.msra.mxu0 %v534
      %544 = vmatmul.bf16.gmra.mxu0 %v480
      %v545 = vpop.f32.mrf.mxu0
      %v546 = vadd.f32 %v390, %v545
      %v547 = vpop.f32.mrf.mxu0
      %v548 = vadd.f32 %v392, %v547
      %549 = vmatmul.bf16.gmra.mxu0 %v483
      %v550 = vpop.f32.mrf.mxu0
      %v551 = vadd.f32 %v395, %v550
      %v552 = vpop.f32.mrf.mxu0
      %v553 = vadd.f32 %v397, %v552
      %554 = vmatmul.bf16.gmra.mxu0 %v486
      %v555 = vpop.f32.mrf.mxu0
      %v556 = vadd.f32 %v400, %v555
      %v557 = vpop.f32.mrf.mxu0
      %v558 = vadd.f32 %v402, %v557
      %559 = vmatmul.bf16.gmra.mxu0 %v489
      %v560 = vpop.f32.mrf.mxu0
      %v561 = vadd.f32 %v405, %v560
      %v562 = vpop.f32.mrf.mxu0
      %v563 = vadd.f32 %v407, %v562
      %564 = vmatmul.bf16.gmra.mxu0 %v492
      %v565 = vpop.f32.mrf.mxu0
      %v566 = vadd.f32 %v410, %v565
      %v567 = vpop.f32.mrf.mxu0
      %v568 = vadd.f32 %v412, %v567
      %569 = vmatmul.bf16.gmra.mxu0 %v495
      %v570 = vpop.f32.mrf.mxu0
      %v571 = vadd.f32 %v415, %v570
      %v572 = vpop.f32.mrf.mxu0
      %v573 = vadd.f32 %v417, %v572
      %574 = vmatmul.bf16.gmra.mxu0 %v498
      %v575 = vpop.f32.mrf.mxu0
      %v576 = vadd.f32 %v420, %v575
      %v577 = vpop.f32.mrf.mxu0
      %v578 = vadd.f32 %v422, %v577
      %579 = vmatmul.bf16.gmra.mxu0 %v501
      %v580 = vpop.f32.mrf.mxu0
      %v581 = vadd.f32 %v425, %v580
      %v582 = vpop.f32.mrf.mxu0
      %v583 = vadd.f32 %v427, %v582
      %584 = vmatmul.bf16.gmra.mxu0 %v504
      %v585 = vpop.f32.mrf.mxu0
      %v586 = vadd.f32 %v430, %v585
      %v587 = vpop.f32.mrf.mxu0
      %v588 = vadd.f32 %v432, %v587
      %589 = vmatmul.bf16.gmra.mxu0 %v507
      %v590 = vpop.f32.mrf.mxu0
      %v591 = vadd.f32 %v435, %v590
      %v592 = vpop.f32.mrf.mxu0
      %v593 = vadd.f32 %v437, %v592
      %594 = vmatmul.bf16.gmra.mxu0 %v510
      %v595 = vpop.f32.mrf.mxu0
      %v596 = vadd.f32 %v440, %v595
      %v597 = vpop.f32.mrf.mxu0
      %v598 = vadd.f32 %v442, %v597
      %599 = vmatmul.bf16.gmra.mxu0 %v513
      %v600 = vpop.f32.mrf.mxu0
      %v601 = vadd.f32 %v445, %v600
      %v602 = vpop.f32.mrf.mxu0
      %v603 = vadd.f32 %v447, %v602
      %604 = vmatmul.bf16.gmra.mxu0 %v516
      %v605 = vpop.f32.mrf.mxu0
      %v606 = vadd.f32 %v450, %v605
      %v607 = vpop.f32.mrf.mxu0
      %v608 = vadd.f32 %v452, %v607
      %609 = vmatmul.bf16.gmra.mxu0 %v519
      %v610 = vpop.f32.mrf.mxu0
      %v611 = vadd.f32 %v455, %v610
      %v612 = vpop.f32.mrf.mxu0
      %v613 = vadd.f32 %v457, %v612
      %614 = vmatmul.bf16.gmra.mxu0 %v522
      %v615 = vpop.f32.mrf.mxu0
      %v616 = vadd.f32 %v460, %v615
      %v617 = vpop.f32.mrf.mxu0
      %v618 = vadd.f32 %v462, %v617
      %619 = vmatmul.bf16.gmra.mxu0 %v525
      %v620 = vpop.f32.mrf.mxu0
      %v621 = vadd.f32 %v465, %v620
      %v622 = vpop.f32.mrf.mxu0
      %v623 = vadd.f32 %v467, %v622
      %624 = vmatmul.bf16.gmra.mxu0 %v528
      %v625 = vpop.f32.mrf.mxu0
      %v626 = vadd.f32 %v470, %v625
      %v627 = vpop.f32.mrf.mxu0
      %v628 = vadd.f32 %v472, %v627
      %629 = vmatmul.bf16.gmra.mxu0 %v531
      %v630 = vpop.f32.mrf.mxu0
      %v631 = vadd.f32 %v475, %v630
      %v632 = vpop.f32.mrf.mxu0
      %v633 = vadd.f32 %v477, %v632
      %634 = vdwg.mxu0
      %v635 = vld [vmem:[%s199 + $0x13] sm:$0xff]
      %v636 = vld [vmem:[%s199 + $0x1b] sm:$0xff]
      %v637 = vld [vmem:[%s199 + $0x23] sm:$0xff]
      %v638 = vld [vmem:[%s199 + $0x2b] sm:$0xff]
      %v639 = vld [vmem:[%s199 + $0x33] sm:$0xff]
      %v640 = vld [vmem:[%s199 + $0x3b] sm:$0xff]
      %v641 = vld [vmem:[%s199 + $0x43] sm:$0xff]
      %v642 = vld [vmem:[%s199 + $0x4b] sm:$0xff]
      %v643 = vld [vmem:[%s199 + $0x53] sm:$0xff]
      %v644 = vld [vmem:[%s199 + $0x5b] sm:$0xff]
      %v645 = vld [vmem:[%s199 + $0x63] sm:$0xff]
      %v646 = vld [vmem:[%s199 + $0x6b] sm:$0xff]
      %v647 = vld [vmem:[%s199 + $0x73] sm:$0xff]
      %v648 = vld [vmem:[%s199 + $0x7b] sm:$0xff]
      %v649 = vld [vmem:[%s199 + $0x83] sm:$0xff]
      %v650 = vld [vmem:[%s199 + $0x8b] sm:$0xff]
      %v651 = vld [vmem:[%s199 + $0x93] sm:$0xff]
      %v652 = vld [vmem:[%s199 + $0x9b] sm:$0xff]
      %v653 = vld [vmem:[%s199 + $0xa3] sm:$0xff]
      %v654 = vld [vmem:[%s199 + $0xab] sm:$0xff]
      %v655 = vld [vmem:[%s199 + $0xb3] sm:$0xff]
      %v656 = vld [vmem:[%s199 + $0xbb] sm:$0xff]
      %v657 = vld [vmem:[%s199 + $0xc3] sm:$0xff]
      %v658 = vld [vmem:[%s199 + $0xcb] sm:$0xff]
      %v659 = vld [vmem:[%s199 + $0xd3] sm:$0xff]
      %v660 = vld [vmem:[%s199 + $0xdb] sm:$0xff]
      %v661 = vld [vmem:[%s199 + $0xe3] sm:$0xff]
      %v662 = vld [vmem:[%s199 + $0xeb] sm:$0xff]
      %v663 = vld [vmem:[%s199 + $0xf3] sm:$0xff]
      %v664 = vld [vmem:[%s199 + $0xfb] sm:$0xff]
      %v665 = vld [vmem:[%s199 + $0x103] sm:$0xff]
      %v666 = vld [vmem:[%s199 + $0x10b] sm:$0xff]
      %v667 = vld [vmem:[%s199 + $0x113] sm:$0xff]
      %v668 = vld [vmem:[%s199 + $0x11b] sm:$0xff]
      %v669 = vld [vmem:[%s199 + $0x123] sm:$0xff]
      %v670 = vld [vmem:[%s199 + $0x12b] sm:$0xff]
      %v671 = vpack.c.bf16 %v636, %v635
      %v672 = vpack.c.bf16 %v638, %v637
      %v673 = vpack.c.bf16 %v640, %v639
      %v674 = vpack.c.bf16 %v642, %v641
      %v675 = vpack.c.bf16 %v644, %v643
      %v676 = vpack.c.bf16 %v646, %v645
      %v677 = vpack.c.bf16 %v648, %v647
      %v678 = vpack.c.bf16 %v650, %v649
      %v679 = vpack.c.bf16 %v652, %v651
      %v680 = vpack.c.bf16 %v654, %v653
      %v681 = vpack.c.bf16 %v656, %v655
      %v682 = vpack.c.bf16 %v658, %v657
      %v683 = vpack.c.bf16 %v660, %v659
      %v684 = vpack.c.bf16 %v662, %v661
      %v685 = vpack.c.bf16 %v664, %v663
      %v686 = vpack.c.bf16 %v666, %v665
      %v687 = vpack.c.bf16 %v668, %v667
      %v688 = vpack.c.bf16 %v670, %v669
      %s689 = scalar_lea.vmem %s1, 8
      %v690 = vld [vmem:[%s689] sm:$0xf]
      %v692 = vsel %vm321, %v671, 0
      %v695 = vsel %vm321, %v672, 0
      %v698 = vsel %vm321, %v673, 0
      %v701 = vsel %vm321, %v674, 0
      %v704 = vsel %vm321, %v675, 0
      %v707 = vsel %vm321, %v676, 0
      %v710 = vsel %vm321, %v677, 0
      %v713 = vsel %vm321, %v678, 0
      %v716 = vsel %vm321, %v679, 0
      %v719 = vsel %vm321, %v680, 0
      %v722 = vsel %vm321, %v681, 0
      %v725 = vsel %vm321, %v682, 0
      %v728 = vsel %vm321, %v683, 0
      %v731 = vsel %vm321, %v684, 0
      %v734 = vsel %vm321, %v685, 0
      %v737 = vsel %vm321, %v686, 0
      %v740 = vsel %vm321, %v687, 0
      %v743 = vsel %vm321, %v688, 0
      %v746 = vsel %vm376, %v690, 0
      %748 = vmatpush.bf16.msra.mxu0 0
      %749 = vmatpush.bf16.msra.mxu0 0
      %750 = vmatpush.bf16.msra.mxu0 0
      %751 = vmatpush.bf16.msra.mxu0 0
      %752 = vmatpush.bf16.msra.mxu0 0
      %753 = vmatpush.bf16.msra.mxu0 0
      %754 = vmatpush.bf16.msra.mxu0 0
      %755 = vmatpush.bf16.msra.mxu0 %v746
      %756 = vmatmul.bf16.gmra.mxu0 %v692
      %v757 = vpop.f32.mrf.mxu0
      %v758 = vadd.f32 0.0, %v757
      %v759 = vpop.f32.mrf.mxu0
      %v760 = vadd.f32 0.0, %v759
      %761 = vmatmul.bf16.gmra.mxu0 %v695
      %v762 = vpop.f32.mrf.mxu0
      %v763 = vadd.f32 0.0, %v762
      %v764 = vpop.f32.mrf.mxu0
      %v765 = vadd.f32 0.0, %v764
      %766 = vmatmul.bf16.gmra.mxu0 %v698
      %v767 = vpop.f32.mrf.mxu0
      %v768 = vadd.f32 0.0, %v767
      %v769 = vpop.f32.mrf.mxu0
      %v770 = vadd.f32 0.0, %v769
      %771 = vmatmul.bf16.gmra.mxu0 %v701
      %v772 = vpop.f32.mrf.mxu0
      %v773 = vadd.f32 0.0, %v772
      %v774 = vpop.f32.mrf.mxu0
      %v775 = vadd.f32 0.0, %v774
      %776 = vmatmul.bf16.gmra.mxu0 %v704
      %v777 = vpop.f32.mrf.mxu0
      %v778 = vadd.f32 0.0, %v777
      %v779 = vpop.f32.mrf.mxu0
      %v780 = vadd.f32 0.0, %v779
      %781 = vmatmul.bf16.gmra.mxu0 %v707
      %v782 = vpop.f32.mrf.mxu0
      %v783 = vadd.f32 0.0, %v782
      %v784 = vpop.f32.mrf.mxu0
      %v785 = vadd.f32 0.0, %v784
      %786 = vmatmul.bf16.gmra.mxu0 %v710
      %v787 = vpop.f32.mrf.mxu0
      %v788 = vadd.f32 0.0, %v787
      %v789 = vpop.f32.mrf.mxu0
      %v790 = vadd.f32 0.0, %v789
      %791 = vmatmul.bf16.gmra.mxu0 %v713
      %v792 = vpop.f32.mrf.mxu0
      %v793 = vadd.f32 0.0, %v792
      %v794 = vpop.f32.mrf.mxu0
      %v795 = vadd.f32 0.0, %v794
      %796 = vmatmul.bf16.gmra.mxu0 %v716
      %v797 = vpop.f32.mrf.mxu0
      %v798 = vadd.f32 0.0, %v797
      %v799 = vpop.f32.mrf.mxu0
      %v800 = vadd.f32 0.0, %v799
      %801 = vmatmul.bf16.gmra.mxu0 %v719
      %v802 = vpop.f32.mrf.mxu0
      %v803 = vadd.f32 0.0, %v802
      %v804 = vpop.f32.mrf.mxu0
      %v805 = vadd.f32 0.0, %v804
      %806 = vmatmul.bf16.gmra.mxu0 %v722
      %v807 = vpop.f32.mrf.mxu0
      %v808 = vadd.f32 0.0, %v807
      %v809 = vpop.f32.mrf.mxu0
      %v810 = vadd.f32 0.0, %v809
      %811 = vmatmul.bf16.gmra.mxu0 %v725
      %v812 = vpop.f32.mrf.mxu0
      %v813 = vadd.f32 0.0, %v812
      %v814 = vpop.f32.mrf.mxu0
      %v815 = vadd.f32 0.0, %v814
      %816 = vmatmul.bf16.gmra.mxu0 %v728
      %v817 = vpop.f32.mrf.mxu0
      %v818 = vadd.f32 0.0, %v817
      %v819 = vpop.f32.mrf.mxu0
      %v820 = vadd.f32 0.0, %v819
      %821 = vmatmul.bf16.gmra.mxu0 %v731
      %v822 = vpop.f32.mrf.mxu0
      %v823 = vadd.f32 0.0, %v822
      %v824 = vpop.f32.mrf.mxu0
      %v825 = vadd.f32 0.0, %v824
      %826 = vmatmul.bf16.gmra.mxu0 %v734
      %v827 = vpop.f32.mrf.mxu0
      %v828 = vadd.f32 0.0, %v827
      %v829 = vpop.f32.mrf.mxu0
      %v830 = vadd.f32 0.0, %v829
      %831 = vmatmul.bf16.gmra.mxu0 %v737
      %v832 = vpop.f32.mrf.mxu0
      %v833 = vadd.f32 0.0, %v832
      %v834 = vpop.f32.mrf.mxu0
      %v835 = vadd.f32 0.0, %v834
      %836 = vmatmul.bf16.gmra.mxu0 %v740
      %v837 = vpop.f32.mrf.mxu0
      %v838 = vadd.f32 0.0, %v837
      %v839 = vpop.f32.mrf.mxu0
      %v840 = vadd.f32 0.0, %v839
      %841 = vmatmul.bf16.gmra.mxu0 %v743
      %v842 = vpop.f32.mrf.mxu0
      %v843 = vadd.f32 0.0, %v842
      %v844 = vpop.f32.mrf.mxu0
      %v845 = vadd.f32 0.0, %v844
      %846 = vdwg.mxu0
      %v847 = vadd.f32 %v546, %v758
      %v848 = vadd.f32 %v548, %v760
      %v849 = vadd.f32 %v551, %v763
      %v850 = vadd.f32 %v553, %v765
      %v851 = vadd.f32 %v556, %v768
      %v852 = vadd.f32 %v558, %v770
      %v853 = vadd.f32 %v561, %v773
      %v854 = vadd.f32 %v563, %v775
      %v855 = vadd.f32 %v566, %v778
      %v856 = vadd.f32 %v568, %v780
      %v857 = vadd.f32 %v571, %v783
      %v858 = vadd.f32 %v573, %v785
      %v859 = vadd.f32 %v576, %v788
      %v860 = vadd.f32 %v578, %v790
      %v861 = vadd.f32 %v581, %v793
      %v862 = vadd.f32 %v583, %v795
      %v863 = vadd.f32 %v586, %v798
      %v864 = vadd.f32 %v588, %v800
      %v865 = vadd.f32 %v591, %v803
      %v866 = vadd.f32 %v593, %v805
      %v867 = vadd.f32 %v596, %v808
      %v868 = vadd.f32 %v598, %v810
      %v869 = vadd.f32 %v601, %v813
      %v870 = vadd.f32 %v603, %v815
      %v871 = vadd.f32 %v606, %v818
      %v872 = vadd.f32 %v608, %v820
      %v873 = vadd.f32 %v611, %v823
      %v874 = vadd.f32 %v613, %v825
      %v875 = vadd.f32 %v616, %v828
      %v876 = vadd.f32 %v618, %v830
      %v877 = vadd.f32 %v621, %v833
      %v878 = vadd.f32 %v623, %v835
      %v879 = vadd.f32 %v626, %v838
      %v880 = vadd.f32 %v628, %v840
      %v881 = vadd.f32 %v631, %v843
      %v882 = vadd.f32 %v633, %v845
      %v883 = vld [vmem:[%s199 + $0x23] sm:$0xff]
      %v884 = vld [vmem:[%s199 + $0x2b] sm:$0xff]
      %v885 = vld [vmem:[%s199 + $0x33] sm:$0xff]
      %v886 = vld [vmem:[%s199 + $0x3b] sm:$0xff]
      %v887 = vld [vmem:[%s199 + $0x43] sm:$0xff]
      %v888 = vld [vmem:[%s199 + $0x4b] sm:$0xff]
      %v889 = vld [vmem:[%s199 + $0x53] sm:$0xff]
      %v890 = vld [vmem:[%s199 + $0x5b] sm:$0xff]
      %v891 = vld [vmem:[%s199 + $0x63] sm:$0xff]
      %v892 = vld [vmem:[%s199 + $0x6b] sm:$0xff]
      %v893 = vld [vmem:[%s199 + $0x73] sm:$0xff]
      %v894 = vld [vmem:[%s199 + $0x7b] sm:$0xff]
      %v895 = vld [vmem:[%s199 + $0x83] sm:$0xff]
      %v896 = vld [vmem:[%s199 + $0x8b] sm:$0xff]
      %v897 = vld [vmem:[%s199 + $0x93] sm:$0xff]
      %v898 = vld [vmem:[%s199 + $0x9b] sm:$0xff]
      %v899 = vld [vmem:[%s199 + $0xa3] sm:$0xff]
      %v900 = vld [vmem:[%s199 + $0xab] sm:$0xff]
      %v901 = vld [vmem:[%s199 + $0xb3] sm:$0xff]
      %v902 = vld [vmem:[%s199 + $0xbb] sm:$0xff]
      %v903 = vld [vmem:[%s199 + $0xc3] sm:$0xff]
      %v904 = vld [vmem:[%s199 + $0xcb] sm:$0xff]
      %v905 = vld [vmem:[%s199 + $0xd3] sm:$0xff]
      %v906 = vld [vmem:[%s199 + $0xdb] sm:$0xff]
      %v907 = vld [vmem:[%s199 + $0xe3] sm:$0xff]
      %v908 = vld [vmem:[%s199 + $0xeb] sm:$0xff]
      %v909 = vld [vmem:[%s199 + $0xf3] sm:$0xff]
      %v910 = vld [vmem:[%s199 + $0xfb] sm:$0xff]
      %v911 = vld [vmem:[%s199 + $0x103] sm:$0xff]
      %v912 = vld [vmem:[%s199 + $0x10b] sm:$0xff]
      %v913 = vld [vmem:[%s199 + $0x113] sm:$0xff]
      %v914 = vld [vmem:[%s199 + $0x11b] sm:$0xff]
      %v915 = vld [vmem:[%s199 + $0x123] sm:$0xff]
      %v916 = vld [vmem:[%s199 + $0x12b] sm:$0xff]
      %v917 = vld [vmem:[%s199 + $0x133] sm:$0xff]
      %v918 = vld [vmem:[%s199 + $0x13b] sm:$0xff]
      %v919 = vpack.c.bf16 %v884, %v883
      %v920 = vpack.c.bf16 %v886, %v885
      %v921 = vpack.c.bf16 %v888, %v887
      %v922 = vpack.c.bf16 %v890, %v889
      %v923 = vpack.c.bf16 %v892, %v891
      %v924 = vpack.c.bf16 %v894, %v893
      %v925 = vpack.c.bf16 %v896, %v895
      %v926 = vpack.c.bf16 %v898, %v897
      %v927 = vpack.c.bf16 %v900, %v899
      %v928 = vpack.c.bf16 %v902, %v901
      %v929 = vpack.c.bf16 %v904, %v903
      %v930 = vpack.c.bf16 %v906, %v905
      %v931 = vpack.c.bf16 %v908, %v907
      %v932 = vpack.c.bf16 %v910, %v909
      %v933 = vpack.c.bf16 %v912, %v911
      %v934 = vpack.c.bf16 %v914, %v913
      %v935 = vpack.c.bf16 %v916, %v915
      %v936 = vpack.c.bf16 %v918, %v917
      %s937 = scalar_lea.vmem %s1, 12
      %v938 = vld [vmem:[%s937] sm:$0xf]
      %v940 = vsel %vm321, %v919, 0
      %v943 = vsel %vm321, %v920, 0
      %v946 = vsel %vm321, %v921, 0
      %v949 = vsel %vm321, %v922, 0
      %v952 = vsel %vm321, %v923, 0
      %v955 = vsel %vm321, %v924, 0
      %v958 = vsel %vm321, %v925, 0
      %v961 = vsel %vm321, %v926, 0
      %v964 = vsel %vm321, %v927, 0
      %v967 = vsel %vm321, %v928, 0
      %v970 = vsel %vm321, %v929, 0
      %v973 = vsel %vm321, %v930, 0
      %v976 = vsel %vm321, %v931, 0
      %v979 = vsel %vm321, %v932, 0
      %v982 = vsel %vm321, %v933, 0
      %v985 = vsel %vm321, %v934, 0
      %v988 = vsel %vm321, %v935, 0
      %v991 = vsel %vm321, %v936, 0
      %v994 = vsel %vm376, %v938, 0
      %996 = vmatpush.bf16.msra.mxu0 0
      %997 = vmatpush.bf16.msra.mxu0 0
      %998 = vmatpush.bf16.msra.mxu0 0
      %999 = vmatpush.bf16.msra.mxu0 0
      %1000 = vmatpush.bf16.msra.mxu0 0
      %1001 = vmatpush.bf16.msra.mxu0 0
      %1002 = vmatpush.bf16.msra.mxu0 0
      %1003 = vmatpush.bf16.msra.mxu0 %v994
      %1004 = vmatmul.bf16.gmra.mxu0 %v940
      %v1005 = vpop.f32.mrf.mxu0
      %v1006 = vadd.f32 0.0, %v1005
      %v1007 = vpop.f32.mrf.mxu0
      %v1008 = vadd.f32 0.0, %v1007
      %1009 = vmatmul.bf16.gmra.mxu0 %v943
      %v1010 = vpop.f32.mrf.mxu0
      %v1011 = vadd.f32 0.0, %v1010
      %v1012 = vpop.f32.mrf.mxu0
      %v1013 = vadd.f32 0.0, %v1012
      %1014 = vmatmul.bf16.gmra.mxu0 %v946
      %v1015 = vpop.f32.mrf.mxu0
      %v1016 = vadd.f32 0.0, %v1015
      %v1017 = vpop.f32.mrf.mxu0
      %v1018 = vadd.f32 0.0, %v1017
      %1019 = vmatmul.bf16.gmra.mxu0 %v949
      %v1020 = vpop.f32.mrf.mxu0
      %v1021 = vadd.f32 0.0, %v1020
      %v1022 = vpop.f32.mrf.mxu0
      %v1023 = vadd.f32 0.0, %v1022
      %1024 = vmatmul.bf16.gmra.mxu0 %v952
      %v1025 = vpop.f32.mrf.mxu0
      %v1026 = vadd.f32 0.0, %v1025
      %v1027 = vpop.f32.mrf.mxu0
      %v1028 = vadd.f32 0.0, %v1027
      %1029 = vmatmul.bf16.gmra.mxu0 %v955
      %v1030 = vpop.f32.mrf.mxu0
      %v1031 = vadd.f32 0.0, %v1030
      %v1032 = vpop.f32.mrf.mxu0
      %v1033 = vadd.f32 0.0, %v1032
      %1034 = vmatmul.bf16.gmra.mxu0 %v958
      %v1035 = vpop.f32.mrf.mxu0
      %v1036 = vadd.f32 0.0, %v1035
      %v1037 = vpop.f32.mrf.mxu0
      %v1038 = vadd.f32 0.0, %v1037
      %1039 = vmatmul.bf16.gmra.mxu0 %v961
      %v1040 = vpop.f32.mrf.mxu0
      %v1041 = vadd.f32 0.0, %v1040
      %v1042 = vpop.f32.mrf.mxu0
      %v1043 = vadd.f32 0.0, %v1042
      %1044 = vmatmul.bf16.gmra.mxu0 %v964
      %v1045 = vpop.f32.mrf.mxu0
      %v1046 = vadd.f32 0.0, %v1045
      %v1047 = vpop.f32.mrf.mxu0
      %v1048 = vadd.f32 0.0, %v1047
      %1049 = vmatmul.bf16.gmra.mxu0 %v967
      %v1050 = vpop.f32.mrf.mxu0
      %v1051 = vadd.f32 0.0, %v1050
      %v1052 = vpop.f32.mrf.mxu0
      %v1053 = vadd.f32 0.0, %v1052
      %1054 = vmatmul.bf16.gmra.mxu0 %v970
      %v1055 = vpop.f32.mrf.mxu0
      %v1056 = vadd.f32 0.0, %v1055
      %v1057 = vpop.f32.mrf.mxu0
      %v1058 = vadd.f32 0.0, %v1057
      %1059 = vmatmul.bf16.gmra.mxu0 %v973
      %v1060 = vpop.f32.mrf.mxu0
      %v1061 = vadd.f32 0.0, %v1060
      %v1062 = vpop.f32.mrf.mxu0
      %v1063 = vadd.f32 0.0, %v1062
      %1064 = vmatmul.bf16.gmra.mxu0 %v976
      %v1065 = vpop.f32.mrf.mxu0
      %v1066 = vadd.f32 0.0, %v1065
      %v1067 = vpop.f32.mrf.mxu0
      %v1068 = vadd.f32 0.0, %v1067
      %1069 = vmatmul.bf16.gmra.mxu0 %v979
      %v1070 = vpop.f32.mrf.mxu0
      %v1071 = vadd.f32 0.0, %v1070
      %v1072 = vpop.f32.mrf.mxu0
      %v1073 = vadd.f32 0.0, %v1072
      %1074 = vmatmul.bf16.gmra.mxu0 %v982
      %v1075 = vpop.f32.mrf.mxu0
      %v1076 = vadd.f32 0.0, %v1075
      %v1077 = vpop.f32.mrf.mxu0
      %v1078 = vadd.f32 0.0, %v1077
      %1079 = vmatmul.bf16.gmra.mxu0 %v985
      %v1080 = vpop.f32.mrf.mxu0
      %v1081 = vadd.f32 0.0, %v1080
      %v1082 = vpop.f32.mrf.mxu0
      %v1083 = vadd.f32 0.0, %v1082
      %1084 = vmatmul.bf16.gmra.mxu0 %v988
      %v1085 = vpop.f32.mrf.mxu0
      %v1086 = vadd.f32 0.0, %v1085
      %v1087 = vpop.f32.mrf.mxu0
      %v1088 = vadd.f32 0.0, %v1087
      %1089 = vmatmul.bf16.gmra.mxu0 %v991
      %v1090 = vpop.f32.mrf.mxu0
      %v1091 = vadd.f32 0.0, %v1090
      %v1092 = vpop.f32.mrf.mxu0
      %v1093 = vadd.f32 0.0, %v1092
      %1094 = vdwg.mxu0
      %v1095 = vadd.f32 %v847, %v1006
      %v1096 = vadd.f32 %v848, %v1008
      %v1097 = vadd.f32 %v849, %v1011
      %v1098 = vadd.f32 %v850, %v1013
      %v1099 = vadd.f32 %v851, %v1016
      %v1100 = vadd.f32 %v852, %v1018
      %v1101 = vadd.f32 %v853, %v1021
      %v1102 = vadd.f32 %v854, %v1023
      %v1103 = vadd.f32 %v855, %v1026
      %v1104 = vadd.f32 %v856, %v1028
      %v1105 = vadd.f32 %v857, %v1031
      %v1106 = vadd.f32 %v858, %v1033
      %v1107 = vadd.f32 %v859, %v1036
      %v1108 = vadd.f32 %v860, %v1038
      %v1109 = vadd.f32 %v861, %v1041
      %v1110 = vadd.f32 %v862, %v1043
      %v1111 = vadd.f32 %v863, %v1046
      %v1112 = vadd.f32 %v864, %v1048
      %v1113 = vadd.f32 %v865, %v1051
      %v1114 = vadd.f32 %v866, %v1053
      %v1115 = vadd.f32 %v867, %v1056
      %v1116 = vadd.f32 %v868, %v1058
      %v1117 = vadd.f32 %v869, %v1061
      %v1118 = vadd.f32 %v870, %v1063
      %v1119 = vadd.f32 %v871, %v1066
      %v1120 = vadd.f32 %v872, %v1068
      %v1121 = vadd.f32 %v873, %v1071
      %v1122 = vadd.f32 %v874, %v1073
      %v1123 = vadd.f32 %v875, %v1076
      %v1124 = vadd.f32 %v876, %v1078
      %v1125 = vadd.f32 %v877, %v1081
      %v1126 = vadd.f32 %v878, %v1083
      %v1127 = vadd.f32 %v879, %v1086
      %v1128 = vadd.f32 %v880, %v1088
      %v1129 = vadd.f32 %v881, %v1091
      %v1130 = vadd.f32 %v882, %v1093
      %v1131 = vld [vmem:[%s199 + $0x24] sm:$0xff]
      %v1132 = vld [vmem:[%s199 + $0x2c] sm:$0xff]
      %v1133 = vld [vmem:[%s199 + $0x34] sm:$0xff]
      %v1134 = vld [vmem:[%s199 + $0x3c] sm:$0xff]
      %v1135 = vld [vmem:[%s199 + $0x44] sm:$0xff]
      %v1136 = vld [vmem:[%s199 + $0x4c] sm:$0xff]
      %v1137 = vld [vmem:[%s199 + $0x54] sm:$0xff]
      %v1138 = vld [vmem:[%s199 + $0x5c] sm:$0xff]
      %v1139 = vld [vmem:[%s199 + $0x64] sm:$0xff]
      %v1140 = vld [vmem:[%s199 + $0x6c] sm:$0xff]
      %v1141 = vld [vmem:[%s199 + $0x74] sm:$0xff]
      %v1142 = vld [vmem:[%s199 + $0x7c] sm:$0xff]
      %v1143 = vld [vmem:[%s199 + $0x84] sm:$0xff]
      %v1144 = vld [vmem:[%s199 + $0x8c] sm:$0xff]
      %v1145 = vld [vmem:[%s199 + $0x94] sm:$0xff]
      %v1146 = vld [vmem:[%s199 + $0x9c] sm:$0xff]
      %v1147 = vld [vmem:[%s199 + $0xa4] sm:$0xff]
      %v1148 = vld [vmem:[%s199 + $0xac] sm:$0xff]
      %v1149 = vld [vmem:[%s199 + $0xb4] sm:$0xff]
      %v1150 = vld [vmem:[%s199 + $0xbc] sm:$0xff]
      %v1151 = vld [vmem:[%s199 + $0xc4] sm:$0xff]
      %v1152 = vld [vmem:[%s199 + $0xcc] sm:$0xff]
      %v1153 = vld [vmem:[%s199 + $0xd4] sm:$0xff]
      %v1154 = vld [vmem:[%s199 + $0xdc] sm:$0xff]
      %v1155 = vld [vmem:[%s199 + $0xe4] sm:$0xff]
      %v1156 = vld [vmem:[%s199 + $0xec] sm:$0xff]
      %v1157 = vld [vmem:[%s199 + $0xf4] sm:$0xff]
      %v1158 = vld [vmem:[%s199 + $0xfc] sm:$0xff]
      %v1159 = vld [vmem:[%s199 + $0x104] sm:$0xff]
      %v1160 = vld [vmem:[%s199 + $0x10c] sm:$0xff]
      %v1161 = vld [vmem:[%s199 + $0x114] sm:$0xff]
      %v1162 = vld [vmem:[%s199 + $0x11c] sm:$0xff]
      %v1163 = vld [vmem:[%s199 + $0x124] sm:$0xff]
      %v1164 = vld [vmem:[%s199 + $0x12c] sm:$0xff]
      %v1165 = vld [vmem:[%s199 + $0x134] sm:$0xff]
      %v1166 = vld [vmem:[%s199 + $0x13c] sm:$0xff]
      %v1167 = vpack.c.bf16 %v1132, %v1131
      %v1168 = vpack.c.bf16 %v1134, %v1133
      %v1169 = vpack.c.bf16 %v1136, %v1135
      %v1170 = vpack.c.bf16 %v1138, %v1137
      %v1171 = vpack.c.bf16 %v1140, %v1139
      %v1172 = vpack.c.bf16 %v1142, %v1141
      %v1173 = vpack.c.bf16 %v1144, %v1143
      %v1174 = vpack.c.bf16 %v1146, %v1145
      %v1175 = vpack.c.bf16 %v1148, %v1147
      %v1176 = vpack.c.bf16 %v1150, %v1149
      %v1177 = vpack.c.bf16 %v1152, %v1151
      %v1178 = vpack.c.bf16 %v1154, %v1153
      %v1179 = vpack.c.bf16 %v1156, %v1155
      %v1180 = vpack.c.bf16 %v1158, %v1157
      %v1181 = vpack.c.bf16 %v1160, %v1159
      %v1182 = vpack.c.bf16 %v1162, %v1161
      %v1183 = vpack.c.bf16 %v1164, %v1163
      %v1184 = vpack.c.bf16 %v1166, %v1165
      %s1185 = scalar_lea.vmem %s1, 16
      %v1186 = vld [vmem:[%s1185] sm:$0xf]
      %v1188 = vsel %vm321, %v1167, 0
      %v1191 = vsel %vm321, %v1168, 0
      %v1194 = vsel %vm321, %v1169, 0
      %v1197 = vsel %vm321, %v1170, 0
      %v1200 = vsel %vm321, %v1171, 0
      %v1203 = vsel %vm321, %v1172, 0
      %v1206 = vsel %vm321, %v1173, 0
      %v1209 = vsel %vm321, %v1174, 0
      %v1212 = vsel %vm321, %v1175, 0
      %v1215 = vsel %vm321, %v1176, 0
      %v1218 = vsel %vm321, %v1177, 0
      %v1221 = vsel %vm321, %v1178, 0
      %v1224 = vsel %vm321, %v1179, 0
      %v1227 = vsel %vm321, %v1180, 0
      %v1230 = vsel %vm321, %v1181, 0
      %v1233 = vsel %vm321, %v1182, 0
      %v1236 = vsel %vm321, %v1183, 0
      %v1239 = vsel %vm321, %v1184, 0
      %v1242 = vsel %vm376, %v1186, 0
      %1244 = vmatpush.bf16.msra.mxu0 0
      %1245 = vmatpush.bf16.msra.mxu0 0
      %1246 = vmatpush.bf16.msra.mxu0 0
      %1247 = vmatpush.bf16.msra.mxu0 0
      %1248 = vmatpush.bf16.msra.mxu0 0
      %1249 = vmatpush.bf16.msra.mxu0 0
      %1250 = vmatpush.bf16.msra.mxu0 0
      %1251 = vmatpush.bf16.msra.mxu0 %v1242
      %1252 = vmatmul.bf16.gmra.mxu0 %v1188
      %v1253 = vpop.f32.mrf.mxu0
      %v1254 = vadd.f32 0.0, %v1253
      %v1255 = vpop.f32.mrf.mxu0
      %v1256 = vadd.f32 0.0, %v1255
      %1257 = vmatmul.bf16.gmra.mxu0 %v1191
      %v1258 = vpop.f32.mrf.mxu0
      %v1259 = vadd.f32 0.0, %v1258
      %v1260 = vpop.f32.mrf.mxu0
      %v1261 = vadd.f32 0.0, %v1260
      %1262 = vmatmul.bf16.gmra.mxu0 %v1194
      %v1263 = vpop.f32.mrf.mxu0
      %v1264 = vadd.f32 0.0, %v1263
      %v1265 = vpop.f32.mrf.mxu0
      %v1266 = vadd.f32 0.0, %v1265
      %1267 = vmatmul.bf16.gmra.mxu0 %v1197
      %v1268 = vpop.f32.mrf.mxu0
      %v1269 = vadd.f32 0.0, %v1268
      %v1270 = vpop.f32.mrf.mxu0
      %v1271 = vadd.f32 0.0, %v1270
      %1272 = vmatmul.bf16.gmra.mxu0 %v1200
      %v1273 = vpop.f32.mrf.mxu0
      %v1274 = vadd.f32 0.0, %v1273
      %v1275 = vpop.f32.mrf.mxu0
      %v1276 = vadd.f32 0.0, %v1275
      %1277 = vmatmul.bf16.gmra.mxu0 %v1203
      %v1278 = vpop.f32.mrf.mxu0
      %v1279 = vadd.f32 0.0, %v1278
      %v1280 = vpop.f32.mrf.mxu0
      %v1281 = vadd.f32 0.0, %v1280
      %1282 = vmatmul.bf16.gmra.mxu0 %v1206
      %v1283 = vpop.f32.mrf.mxu0
      %v1284 = vadd.f32 0.0, %v1283
      %v1285 = vpop.f32.mrf.mxu0
      %v1286 = vadd.f32 0.0, %v1285
      %1287 = vmatmul.bf16.gmra.mxu0 %v1209
      %v1288 = vpop.f32.mrf.mxu0
      %v1289 = vadd.f32 0.0, %v1288
      %v1290 = vpop.f32.mrf.mxu0
      %v1291 = vadd.f32 0.0, %v1290
      %1292 = vmatmul.bf16.gmra.mxu0 %v1212
      %v1293 = vpop.f32.mrf.mxu0
      %v1294 = vadd.f32 0.0, %v1293
      %v1295 = vpop.f32.mrf.mxu0
      %v1296 = vadd.f32 0.0, %v1295
      %1297 = vmatmul.bf16.gmra.mxu0 %v1215
      %v1298 = vpop.f32.mrf.mxu0
      %v1299 = vadd.f32 0.0, %v1298
      %v1300 = vpop.f32.mrf.mxu0
      %v1301 = vadd.f32 0.0, %v1300
      %1302 = vmatmul.bf16.gmra.mxu0 %v1218
      %v1303 = vpop.f32.mrf.mxu0
      %v1304 = vadd.f32 0.0, %v1303
      %v1305 = vpop.f32.mrf.mxu0
      %v1306 = vadd.f32 0.0, %v1305
      %1307 = vmatmul.bf16.gmra.mxu0 %v1221
      %v1308 = vpop.f32.mrf.mxu0
      %v1309 = vadd.f32 0.0, %v1308
      %v1310 = vpop.f32.mrf.mxu0
      %v1311 = vadd.f32 0.0, %v1310
      %1312 = vmatmul.bf16.gmra.mxu0 %v1224
      %v1313 = vpop.f32.mrf.mxu0
      %v1314 = vadd.f32 0.0, %v1313
      %v1315 = vpop.f32.mrf.mxu0
      %v1316 = vadd.f32 0.0, %v1315
      %1317 = vmatmul.bf16.gmra.mxu0 %v1227
      %v1318 = vpop.f32.mrf.mxu0
      %v1319 = vadd.f32 0.0, %v1318
      %v1320 = vpop.f32.mrf.mxu0
      %v1321 = vadd.f32 0.0, %v1320
      %1322 = vmatmul.bf16.gmra.mxu0 %v1230
      %v1323 = vpop.f32.mrf.mxu0
      %v1324 = vadd.f32 0.0, %v1323
      %v1325 = vpop.f32.mrf.mxu0
      %v1326 = vadd.f32 0.0, %v1325
      %1327 = vmatmul.bf16.gmra.mxu0 %v1233
      %v1328 = vpop.f32.mrf.mxu0
      %v1329 = vadd.f32 0.0, %v1328
      %v1330 = vpop.f32.mrf.mxu0
      %v1331 = vadd.f32 0.0, %v1330
      %1332 = vmatmul.bf16.gmra.mxu0 %v1236
      %v1333 = vpop.f32.mrf.mxu0
      %v1334 = vadd.f32 0.0, %v1333
      %v1335 = vpop.f32.mrf.mxu0
      %v1336 = vadd.f32 0.0, %v1335
      %1337 = vmatmul.bf16.gmra.mxu0 %v1239
      %v1338 = vpop.f32.mrf.mxu0
      %v1339 = vadd.f32 0.0, %v1338
      %v1340 = vpop.f32.mrf.mxu0
      %v1341 = vadd.f32 0.0, %v1340
      %1342 = vdwg.mxu0
      %v1343 = vadd.f32 %v1095, %v1254
      %v1344 = vadd.f32 %v1096, %v1256
      %v1345 = vadd.f32 %v1097, %v1259
      %v1346 = vadd.f32 %v1098, %v1261
      %v1347 = vadd.f32 %v1099, %v1264
      %v1348 = vadd.f32 %v1100, %v1266
      %v1349 = vadd.f32 %v1101, %v1269
      %v1350 = vadd.f32 %v1102, %v1271
      %v1351 = vadd.f32 %v1103, %v1274
      %v1352 = vadd.f32 %v1104, %v1276
      %v1353 = vadd.f32 %v1105, %v1279
      %v1354 = vadd.f32 %v1106, %v1281
      %v1355 = vadd.f32 %v1107, %v1284
      %v1356 = vadd.f32 %v1108, %v1286
      %v1357 = vadd.f32 %v1109, %v1289
      %v1358 = vadd.f32 %v1110, %v1291
      %v1359 = vadd.f32 %v1111, %v1294
      %v1360 = vadd.f32 %v1112, %v1296
      %v1361 = vadd.f32 %v1113, %v1299
      %v1362 = vadd.f32 %v1114, %v1301
      %v1363 = vadd.f32 %v1115, %v1304
      %v1364 = vadd.f32 %v1116, %v1306
      %v1365 = vadd.f32 %v1117, %v1309
      %v1366 = vadd.f32 %v1118, %v1311
      %v1367 = vadd.f32 %v1119, %v1314
      %v1368 = vadd.f32 %v1120, %v1316
      %v1369 = vadd.f32 %v1121, %v1319
      %v1370 = vadd.f32 %v1122, %v1321
      %v1371 = vadd.f32 %v1123, %v1324
      %v1372 = vadd.f32 %v1124, %v1326
      %v1373 = vadd.f32 %v1125, %v1329
      %v1374 = vadd.f32 %v1126, %v1331
      %v1375 = vadd.f32 %v1127, %v1334
      %v1376 = vadd.f32 %v1128, %v1336
      %v1377 = vadd.f32 %v1129, %v1339
      %v1378 = vadd.f32 %v1130, %v1341
      %v1379 = vld [vmem:[%s199 + $0x25] sm:$0xff]
      %v1380 = vld [vmem:[%s199 + $0x2d] sm:$0xff]
      %v1381 = vld [vmem:[%s199 + $0x35] sm:$0xff]
      %v1382 = vld [vmem:[%s199 + $0x3d] sm:$0xff]
      %v1383 = vld [vmem:[%s199 + $0x45] sm:$0xff]
      %v1384 = vld [vmem:[%s199 + $0x4d] sm:$0xff]
      %v1385 = vld [vmem:[%s199 + $0x55] sm:$0xff]
      %v1386 = vld [vmem:[%s199 + $0x5d] sm:$0xff]
      %v1387 = vld [vmem:[%s199 + $0x65] sm:$0xff]
      %v1388 = vld [vmem:[%s199 + $0x6d] sm:$0xff]
      %v1389 = vld [vmem:[%s199 + $0x75] sm:$0xff]
      %v1390 = vld [vmem:[%s199 + $0x7d] sm:$0xff]
      %v1391 = vld [vmem:[%s199 + $0x85] sm:$0xff]
      %v1392 = vld [vmem:[%s199 + $0x8d] sm:$0xff]
      %v1393 = vld [vmem:[%s199 + $0x95] sm:$0xff]
      %v1394 = vld [vmem:[%s199 + $0x9d] sm:$0xff]
      %v1395 = vld [vmem:[%s199 + $0xa5] sm:$0xff]
      %v1396 = vld [vmem:[%s199 + $0xad] sm:$0xff]
      %v1397 = vld [vmem:[%s199 + $0xb5] sm:$0xff]
      %v1398 = vld [vmem:[%s199 + $0xbd] sm:$0xff]
      %v1399 = vld [vmem:[%s199 + $0xc5] sm:$0xff]
      %v1400 = vld [vmem:[%s199 + $0xcd] sm:$0xff]
      %v1401 = vld [vmem:[%s199 + $0xd5] sm:$0xff]
      %v1402 = vld [vmem:[%s199 + $0xdd] sm:$0xff]
      %v1403 = vld [vmem:[%s199 + $0xe5] sm:$0xff]
      %v1404 = vld [vmem:[%s199 + $0xed] sm:$0xff]
      %v1405 = vld [vmem:[%s199 + $0xf5] sm:$0xff]
      %v1406 = vld [vmem:[%s199 + $0xfd] sm:$0xff]
      %v1407 = vld [vmem:[%s199 + $0x105] sm:$0xff]
      %v1408 = vld [vmem:[%s199 + $0x10d] sm:$0xff]
      %v1409 = vld [vmem:[%s199 + $0x115] sm:$0xff]
      %v1410 = vld [vmem:[%s199 + $0x11d] sm:$0xff]
      %v1411 = vld [vmem:[%s199 + $0x125] sm:$0xff]
      %v1412 = vld [vmem:[%s199 + $0x12d] sm:$0xff]
      %v1413 = vld [vmem:[%s199 + $0x135] sm:$0xff]
      %v1414 = vld [vmem:[%s199 + $0x13d] sm:$0xff]
      %v1415 = vpack.c.bf16 %v1380, %v1379
      %v1416 = vpack.c.bf16 %v1382, %v1381
      %v1417 = vpack.c.bf16 %v1384, %v1383
      %v1418 = vpack.c.bf16 %v1386, %v1385
      %v1419 = vpack.c.bf16 %v1388, %v1387
      %v1420 = vpack.c.bf16 %v1390, %v1389
      %v1421 = vpack.c.bf16 %v1392, %v1391
      %v1422 = vpack.c.bf16 %v1394, %v1393
      %v1423 = vpack.c.bf16 %v1396, %v1395
      %v1424 = vpack.c.bf16 %v1398, %v1397
      %v1425 = vpack.c.bf16 %v1400, %v1399
      %v1426 = vpack.c.bf16 %v1402, %v1401
      %v1427 = vpack.c.bf16 %v1404, %v1403
      %v1428 = vpack.c.bf16 %v1406, %v1405
      %v1429 = vpack.c.bf16 %v1408, %v1407
      %v1430 = vpack.c.bf16 %v1410, %v1409
      %v1431 = vpack.c.bf16 %v1412, %v1411
      %v1432 = vpack.c.bf16 %v1414, %v1413
      %s1433 = scalar_lea.vmem %s1, 20
      %v1434 = vld [vmem:[%s1433] sm:$0xf]
      %v1436 = vsel %vm321, %v1415, 0
      %v1439 = vsel %vm321, %v1416, 0
      %v1442 = vsel %vm321, %v1417, 0
      %v1445 = vsel %vm321, %v1418, 0
      %v1448 = vsel %vm321, %v1419, 0
      %v1451 = vsel %vm321, %v1420, 0
      %v1454 = vsel %vm321, %v1421, 0
      %v1457 = vsel %vm321, %v1422, 0
      %v1460 = vsel %vm321, %v1423, 0
      %v1463 = vsel %vm321, %v1424, 0
      %v1466 = vsel %vm321, %v1425, 0
      %v1469 = vsel %vm321, %v1426, 0
      %v1472 = vsel %vm321, %v1427, 0
      %v1475 = vsel %vm321, %v1428, 0
      %v1478 = vsel %vm321, %v1429, 0
      %v1481 = vsel %vm321, %v1430, 0
      %v1484 = vsel %vm321, %v1431, 0
      %v1487 = vsel %vm321, %v1432, 0
      %v1490 = vsel %vm376, %v1434, 0
      %1492 = vmatpush.bf16.msra.mxu0 0
      %1493 = vmatpush.bf16.msra.mxu0 0
      %1494 = vmatpush.bf16.msra.mxu0 0
      %1495 = vmatpush.bf16.msra.mxu0 0
      %1496 = vmatpush.bf16.msra.mxu0 0
      %1497 = vmatpush.bf16.msra.mxu0 0
      %1498 = vmatpush.bf16.msra.mxu0 0
      %1499 = vmatpush.bf16.msra.mxu0 %v1490
      %1500 = vmatmul.bf16.gmra.mxu0 %v1436
      %v1501 = vpop.f32.mrf.mxu0
      %v1502 = vadd.f32 0.0, %v1501
      %v1503 = vpop.f32.mrf.mxu0
      %v1504 = vadd.f32 0.0, %v1503
      %1505 = vmatmul.bf16.gmra.mxu0 %v1439
      %v1506 = vpop.f32.mrf.mxu0
      %v1507 = vadd.f32 0.0, %v1506
      %v1508 = vpop.f32.mrf.mxu0
      %v1509 = vadd.f32 0.0, %v1508
      %1510 = vmatmul.bf16.gmra.mxu0 %v1442
      %v1511 = vpop.f32.mrf.mxu0
      %v1512 = vadd.f32 0.0, %v1511
      %v1513 = vpop.f32.mrf.mxu0
      %v1514 = vadd.f32 0.0, %v1513
      %1515 = vmatmul.bf16.gmra.mxu0 %v1445
      %v1516 = vpop.f32.mrf.mxu0
      %v1517 = vadd.f32 0.0, %v1516
      %v1518 = vpop.f32.mrf.mxu0
      %v1519 = vadd.f32 0.0, %v1518
      %1520 = vmatmul.bf16.gmra.mxu0 %v1448
      %v1521 = vpop.f32.mrf.mxu0
      %v1522 = vadd.f32 0.0, %v1521
      %v1523 = vpop.f32.mrf.mxu0
      %v1524 = vadd.f32 0.0, %v1523
      %1525 = vmatmul.bf16.gmra.mxu0 %v1451
      %v1526 = vpop.f32.mrf.mxu0
      %v1527 = vadd.f32 0.0, %v1526
      %v1528 = vpop.f32.mrf.mxu0
      %v1529 = vadd.f32 0.0, %v1528
      %1530 = vmatmul.bf16.gmra.mxu0 %v1454
      %v1531 = vpop.f32.mrf.mxu0
      %v1532 = vadd.f32 0.0, %v1531
      %v1533 = vpop.f32.mrf.mxu0
      %v1534 = vadd.f32 0.0, %v1533
      %1535 = vmatmul.bf16.gmra.mxu0 %v1457
      %v1536 = vpop.f32.mrf.mxu0
      %v1537 = vadd.f32 0.0, %v1536
      %v1538 = vpop.f32.mrf.mxu0
      %v1539 = vadd.f32 0.0, %v1538
      %1540 = vmatmul.bf16.gmra.mxu0 %v1460
      %v1541 = vpop.f32.mrf.mxu0
      %v1542 = vadd.f32 0.0, %v1541
      %v1543 = vpop.f32.mrf.mxu0
      %v1544 = vadd.f32 0.0, %v1543
      %1545 = vmatmul.bf16.gmra.mxu0 %v1463
      %v1546 = vpop.f32.mrf.mxu0
      %v1547 = vadd.f32 0.0, %v1546
      %v1548 = vpop.f32.mrf.mxu0
      %v1549 = vadd.f32 0.0, %v1548
      %1550 = vmatmul.bf16.gmra.mxu0 %v1466
      %v1551 = vpop.f32.mrf.mxu0
      %v1552 = vadd.f32 0.0, %v1551
      %v1553 = vpop.f32.mrf.mxu0
      %v1554 = vadd.f32 0.0, %v1553
      %1555 = vmatmul.bf16.gmra.mxu0 %v1469
      %v1556 = vpop.f32.mrf.mxu0
      %v1557 = vadd.f32 0.0, %v1556
      %v1558 = vpop.f32.mrf.mxu0
      %v1559 = vadd.f32 0.0, %v1558
      %1560 = vmatmul.bf16.gmra.mxu0 %v1472
      %v1561 = vpop.f32.mrf.mxu0
      %v1562 = vadd.f32 0.0, %v1561
      %v1563 = vpop.f32.mrf.mxu0
      %v1564 = vadd.f32 0.0, %v1563
      %1565 = vmatmul.bf16.gmra.mxu0 %v1475
      %v1566 = vpop.f32.mrf.mxu0
      %v1567 = vadd.f32 0.0, %v1566
      %v1568 = vpop.f32.mrf.mxu0
      %v1569 = vadd.f32 0.0, %v1568
      %1570 = vmatmul.bf16.gmra.mxu0 %v1478
      %v1571 = vpop.f32.mrf.mxu0
      %v1572 = vadd.f32 0.0, %v1571
      %v1573 = vpop.f32.mrf.mxu0
      %v1574 = vadd.f32 0.0, %v1573
      %1575 = vmatmul.bf16.gmra.mxu0 %v1481
      %v1576 = vpop.f32.mrf.mxu0
      %v1577 = vadd.f32 0.0, %v1576
      %v1578 = vpop.f32.mrf.mxu0
      %v1579 = vadd.f32 0.0, %v1578
      %1580 = vmatmul.bf16.gmra.mxu0 %v1484
      %v1581 = vpop.f32.mrf.mxu0
      %v1582 = vadd.f32 0.0, %v1581
      %v1583 = vpop.f32.mrf.mxu0
      %v1584 = vadd.f32 0.0, %v1583
      %1585 = vmatmul.bf16.gmra.mxu0 %v1487
      %v1586 = vpop.f32.mrf.mxu0
      %v1587 = vadd.f32 0.0, %v1586
      %v1588 = vpop.f32.mrf.mxu0
      %v1589 = vadd.f32 0.0, %v1588
      %1590 = vdwg.mxu0
      %v1591 = vadd.f32 %v1343, %v1502
      %v1592 = vadd.f32 %v1344, %v1504
      %v1593 = vadd.f32 %v1345, %v1507
      %v1594 = vadd.f32 %v1346, %v1509
      %v1595 = vadd.f32 %v1347, %v1512
      %v1596 = vadd.f32 %v1348, %v1514
      %v1597 = vadd.f32 %v1349, %v1517
      %v1598 = vadd.f32 %v1350, %v1519
      %v1599 = vadd.f32 %v1351, %v1522
      %v1600 = vadd.f32 %v1352, %v1524
      %v1601 = vadd.f32 %v1353, %v1527
      %v1602 = vadd.f32 %v1354, %v1529
      %v1603 = vadd.f32 %v1355, %v1532
      %v1604 = vadd.f32 %v1356, %v1534
      %v1605 = vadd.f32 %v1357, %v1537
      %v1606 = vadd.f32 %v1358, %v1539
      %v1607 = vadd.f32 %v1359, %v1542
      %v1608 = vadd.f32 %v1360, %v1544
      %v1609 = vadd.f32 %v1361, %v1547
      %v1610 = vadd.f32 %v1362, %v1549
      %v1611 = vadd.f32 %v1363, %v1552
      %v1612 = vadd.f32 %v1364, %v1554
      %v1613 = vadd.f32 %v1365, %v1557
      %v1614 = vadd.f32 %v1366, %v1559
      %v1615 = vadd.f32 %v1367, %v1562
      %v1616 = vadd.f32 %v1368, %v1564
      %v1617 = vadd.f32 %v1369, %v1567
      %v1618 = vadd.f32 %v1370, %v1569
      %v1619 = vadd.f32 %v1371, %v1572
      %v1620 = vadd.f32 %v1372, %v1574
      %v1621 = vadd.f32 %v1373, %v1577
      %v1622 = vadd.f32 %v1374, %v1579
      %v1623 = vadd.f32 %v1375, %v1582
      %v1624 = vadd.f32 %v1376, %v1584
      %v1625 = vadd.f32 %v1377, %v1587
      %v1626 = vadd.f32 %v1378, %v1589
      %v1627 = vld [vmem:[%s199 + $0x35] sm:$0xff]
      %v1628 = vld [vmem:[%s199 + $0x3d] sm:$0xff]
      %v1629 = vld [vmem:[%s199 + $0x45] sm:$0xff]
      %v1630 = vld [vmem:[%s199 + $0x4d] sm:$0xff]
      %v1631 = vld [vmem:[%s199 + $0x55] sm:$0xff]
      %v1632 = vld [vmem:[%s199 + $0x5d] sm:$0xff]
      %v1633 = vld [vmem:[%s199 + $0x65] sm:$0xff]
      %v1634 = vld [vmem:[%s199 + $0x6d] sm:$0xff]
      %v1635 = vld [vmem:[%s199 + $0x75] sm:$0xff]
      %v1636 = vld [vmem:[%s199 + $0x7d] sm:$0xff]
      %v1637 = vld [vmem:[%s199 + $0x85] sm:$0xff]
      %v1638 = vld [vmem:[%s199 + $0x8d] sm:$0xff]
      %v1639 = vld [vmem:[%s199 + $0x95] sm:$0xff]
      %v1640 = vld [vmem:[%s199 + $0x9d] sm:$0xff]
      %v1641 = vld [vmem:[%s199 + $0xa5] sm:$0xff]
      %v1642 = vld [vmem:[%s199 + $0xad] sm:$0xff]
      %v1643 = vld [vmem:[%s199 + $0xb5] sm:$0xff]
      %v1644 = vld [vmem:[%s199 + $0xbd] sm:$0xff]
      %v1645 = vld [vmem:[%s199 + $0xc5] sm:$0xff]
      %v1646 = vld [vmem:[%s199 + $0xcd] sm:$0xff]
      %v1647 = vld [vmem:[%s199 + $0xd5] sm:$0xff]
      %v1648 = vld [vmem:[%s199 + $0xdd] sm:$0xff]
      %v1649 = vld [vmem:[%s199 + $0xe5] sm:$0xff]
      %v1650 = vld [vmem:[%s199 + $0xed] sm:$0xff]
      %v1651 = vld [vmem:[%s199 + $0xf5] sm:$0xff]
      %v1652 = vld [vmem:[%s199 + $0xfd] sm:$0xff]
      %v1653 = vld [vmem:[%s199 + $0x105] sm:$0xff]
      %v1654 = vld [vmem:[%s199 + $0x10d] sm:$0xff]
      %v1655 = vld [vmem:[%s199 + $0x115] sm:$0xff]
      %v1656 = vld [vmem:[%s199 + $0x11d] sm:$0xff]
      %v1657 = vld [vmem:[%s199 + $0x125] sm:$0xff]
      %v1658 = vld [vmem:[%s199 + $0x12d] sm:$0xff]
      %v1659 = vld [vmem:[%s199 + $0x135] sm:$0xff]
      %v1660 = vld [vmem:[%s199 + $0x13d] sm:$0xff]
      %v1661 = vld [vmem:[%s199 + $0x145] sm:$0xff]
      %v1662 = vld [vmem:[%s199 + $0x14d] sm:$0xff]
      %v1663 = vpack.c.bf16 %v1628, %v1627
      %v1664 = vpack.c.bf16 %v1630, %v1629
      %v1665 = vpack.c.bf16 %v1632, %v1631
      %v1666 = vpack.c.bf16 %v1634, %v1633
      %v1667 = vpack.c.bf16 %v1636, %v1635
      %v1668 = vpack.c.bf16 %v1638, %v1637
      %v1669 = vpack.c.bf16 %v1640, %v1639
      %v1670 = vpack.c.bf16 %v1642, %v1641
      %v1671 = vpack.c.bf16 %v1644, %v1643
      %v1672 = vpack.c.bf16 %v1646, %v1645
      %v1673 = vpack.c.bf16 %v1648, %v1647
      %v1674 = vpack.c.bf16 %v1650, %v1649
      %v1675 = vpack.c.bf16 %v1652, %v1651
      %v1676 = vpack.c.bf16 %v1654, %v1653
      %v1677 = vpack.c.bf16 %v1656, %v1655
      %v1678 = vpack.c.bf16 %v1658, %v1657
      %v1679 = vpack.c.bf16 %v1660, %v1659
      %v1680 = vpack.c.bf16 %v1662, %v1661
      %s1681 = scalar_lea.vmem %s1, 24
      %v1682 = vld [vmem:[%s1681] sm:$0xf]
      %v1684 = vsel %vm321, %v1663, 0
      %v1687 = vsel %vm321, %v1664, 0
      %v1690 = vsel %vm321, %v1665, 0
      %v1693 = vsel %vm321, %v1666, 0
      %v1696 = vsel %vm321, %v1667, 0
      %v1699 = vsel %vm321, %v1668, 0
      %v1702 = vsel %vm321, %v1669, 0
      %v1705 = vsel %vm321, %v1670, 0
      %v1708 = vsel %vm321, %v1671, 0
      %v1711 = vsel %vm321, %v1672, 0
      %v1714 = vsel %vm321, %v1673, 0
      %v1717 = vsel %vm321, %v1674, 0
      %v1720 = vsel %vm321, %v1675, 0
      %v1723 = vsel %vm321, %v1676, 0
      %v1726 = vsel %vm321, %v1677, 0
      %v1729 = vsel %vm321, %v1678, 0
      %v1732 = vsel %vm321, %v1679, 0
      %v1735 = vsel %vm321, %v1680, 0
      %v1738 = vsel %vm376, %v1682, 0
      %1740 = vmatpush.bf16.msra.mxu0 0
      %1741 = vmatpush.bf16.msra.mxu0 0
      %1742 = vmatpush.bf16.msra.mxu0 0
      %1743 = vmatpush.bf16.msra.mxu0 0
      %1744 = vmatpush.bf16.msra.mxu0 0
      %1745 = vmatpush.bf16.msra.mxu0 0
      %1746 = vmatpush.bf16.msra.mxu0 0
      %1747 = vmatpush.bf16.msra.mxu0 %v1738
      %1748 = vmatmul.bf16.gmra.mxu0 %v1684
      %v1749 = vpop.f32.mrf.mxu0
      %v1750 = vadd.f32 0.0, %v1749
      %v1751 = vpop.f32.mrf.mxu0
      %v1752 = vadd.f32 0.0, %v1751
      %1753 = vmatmul.bf16.gmra.mxu0 %v1687
      %v1754 = vpop.f32.mrf.mxu0
      %v1755 = vadd.f32 0.0, %v1754
      %v1756 = vpop.f32.mrf.mxu0
      %v1757 = vadd.f32 0.0, %v1756
      %1758 = vmatmul.bf16.gmra.mxu0 %v1690
      %v1759 = vpop.f32.mrf.mxu0
      %v1760 = vadd.f32 0.0, %v1759
      %v1761 = vpop.f32.mrf.mxu0
      %v1762 = vadd.f32 0.0, %v1761
      %1763 = vmatmul.bf16.gmra.mxu0 %v1693
      %v1764 = vpop.f32.mrf.mxu0
      %v1765 = vadd.f32 0.0, %v1764
      %v1766 = vpop.f32.mrf.mxu0
      %v1767 = vadd.f32 0.0, %v1766
      %1768 = vmatmul.bf16.gmra.mxu0 %v1696
      %v1769 = vpop.f32.mrf.mxu0
      %v1770 = vadd.f32 0.0, %v1769
      %v1771 = vpop.f32.mrf.mxu0
      %v1772 = vadd.f32 0.0, %v1771
      %1773 = vmatmul.bf16.gmra.mxu0 %v1699
      %v1774 = vpop.f32.mrf.mxu0
      %v1775 = vadd.f32 0.0, %v1774
      %v1776 = vpop.f32.mrf.mxu0
      %v1777 = vadd.f32 0.0, %v1776
      %1778 = vmatmul.bf16.gmra.mxu0 %v1702
      %v1779 = vpop.f32.mrf.mxu0
      %v1780 = vadd.f32 0.0, %v1779
      %v1781 = vpop.f32.mrf.mxu0
      %v1782 = vadd.f32 0.0, %v1781
      %1783 = vmatmul.bf16.gmra.mxu0 %v1705
      %v1784 = vpop.f32.mrf.mxu0
      %v1785 = vadd.f32 0.0, %v1784
      %v1786 = vpop.f32.mrf.mxu0
      %v1787 = vadd.f32 0.0, %v1786
      %1788 = vmatmul.bf16.gmra.mxu0 %v1708
      %v1789 = vpop.f32.mrf.mxu0
      %v1790 = vadd.f32 0.0, %v1789
      %v1791 = vpop.f32.mrf.mxu0
      %v1792 = vadd.f32 0.0, %v1791
      %1793 = vmatmul.bf16.gmra.mxu0 %v1711
      %v1794 = vpop.f32.mrf.mxu0
      %v1795 = vadd.f32 0.0, %v1794
      %v1796 = vpop.f32.mrf.mxu0
      %v1797 = vadd.f32 0.0, %v1796
      %1798 = vmatmul.bf16.gmra.mxu0 %v1714
      %v1799 = vpop.f32.mrf.mxu0
      %v1800 = vadd.f32 0.0, %v1799
      %v1801 = vpop.f32.mrf.mxu0
      %v1802 = vadd.f32 0.0, %v1801
      %1803 = vmatmul.bf16.gmra.mxu0 %v1717
      %v1804 = vpop.f32.mrf.mxu0
      %v1805 = vadd.f32 0.0, %v1804
      %v1806 = vpop.f32.mrf.mxu0
      %v1807 = vadd.f32 0.0, %v1806
      %1808 = vmatmul.bf16.gmra.mxu0 %v1720
      %v1809 = vpop.f32.mrf.mxu0
      %v1810 = vadd.f32 0.0, %v1809
      %v1811 = vpop.f32.mrf.mxu0
      %v1812 = vadd.f32 0.0, %v1811
      %1813 = vmatmul.bf16.gmra.mxu0 %v1723
      %v1814 = vpop.f32.mrf.mxu0
      %v1815 = vadd.f32 0.0, %v1814
      %v1816 = vpop.f32.mrf.mxu0
      %v1817 = vadd.f32 0.0, %v1816
      %1818 = vmatmul.bf16.gmra.mxu0 %v1726
      %v1819 = vpop.f32.mrf.mxu0
      %v1820 = vadd.f32 0.0, %v1819
      %v1821 = vpop.f32.mrf.mxu0
      %v1822 = vadd.f32 0.0, %v1821
      %1823 = vmatmul.bf16.gmra.mxu0 %v1729
      %v1824 = vpop.f32.mrf.mxu0
      %v1825 = vadd.f32 0.0, %v1824
      %v1826 = vpop.f32.mrf.mxu0
      %v1827 = vadd.f32 0.0, %v1826
      %1828 = vmatmul.bf16.gmra.mxu0 %v1732
      %v1829 = vpop.f32.mrf.mxu0
      %v1830 = vadd.f32 0.0, %v1829
      %v1831 = vpop.f32.mrf.mxu0
      %v1832 = vadd.f32 0.0, %v1831
      %1833 = vmatmul.bf16.gmra.mxu0 %v1735
      %v1834 = vpop.f32.mrf.mxu0
      %v1835 = vadd.f32 0.0, %v1834
      %v1836 = vpop.f32.mrf.mxu0
      %v1837 = vadd.f32 0.0, %v1836
      %1838 = vdwg.mxu0
      %v1839 = vadd.f32 %v1591, %v1750
      %v1840 = vadd.f32 %v1592, %v1752
      %v1841 = vadd.f32 %v1593, %v1755
      %v1842 = vadd.f32 %v1594, %v1757
      %v1843 = vadd.f32 %v1595, %v1760
      %v1844 = vadd.f32 %v1596, %v1762
      %v1845 = vadd.f32 %v1597, %v1765
      %v1846 = vadd.f32 %v1598, %v1767
      %v1847 = vadd.f32 %v1599, %v1770
      %v1848 = vadd.f32 %v1600, %v1772
      %v1849 = vadd.f32 %v1601, %v1775
      %v1850 = vadd.f32 %v1602, %v1777
      %v1851 = vadd.f32 %v1603, %v1780
      %v1852 = vadd.f32 %v1604, %v1782
      %v1853 = vadd.f32 %v1605, %v1785
      %v1854 = vadd.f32 %v1606, %v1787
      %v1855 = vadd.f32 %v1607, %v1790
      %v1856 = vadd.f32 %v1608, %v1792
      %v1857 = vadd.f32 %v1609, %v1795
      %v1858 = vadd.f32 %v1610, %v1797
      %v1859 = vadd.f32 %v1611, %v1800
      %v1860 = vadd.f32 %v1612, %v1802
      %v1861 = vadd.f32 %v1613, %v1805
      %v1862 = vadd.f32 %v1614, %v1807
      %v1863 = vadd.f32 %v1615, %v1810
      %v1864 = vadd.f32 %v1616, %v1812
      %v1865 = vadd.f32 %v1617, %v1815
      %v1866 = vadd.f32 %v1618, %v1817
      %v1867 = vadd.f32 %v1619, %v1820
      %v1868 = vadd.f32 %v1620, %v1822
      %v1869 = vadd.f32 %v1621, %v1825
      %v1870 = vadd.f32 %v1622, %v1827
      %v1871 = vadd.f32 %v1623, %v1830
      %v1872 = vadd.f32 %v1624, %v1832
      %v1873 = vadd.f32 %v1625, %v1835
      %v1874 = vadd.f32 %v1626, %v1837
      %v1875 = vld [vmem:[%s199 + $0x36] sm:$0xff]
      %v1876 = vld [vmem:[%s199 + $0x3e] sm:$0xff]
      %v1877 = vld [vmem:[%s199 + $0x46] sm:$0xff]
      %v1878 = vld [vmem:[%s199 + $0x4e] sm:$0xff]
      %v1879 = vld [vmem:[%s199 + $0x56] sm:$0xff]
      %v1880 = vld [vmem:[%s199 + $0x5e] sm:$0xff]
      %v1881 = vld [vmem:[%s199 + $0x66] sm:$0xff]
      %v1882 = vld [vmem:[%s199 + $0x6e] sm:$0xff]
      %v1883 = vld [vmem:[%s199 + $0x76] sm:$0xff]
      %v1884 = vld [vmem:[%s199 + $0x7e] sm:$0xff]
      %v1885 = vld [vmem:[%s199 + $0x86] sm:$0xff]
      %v1886 = vld [vmem:[%s199 + $0x8e] sm:$0xff]
      %v1887 = vld [vmem:[%s199 + $0x96] sm:$0xff]
      %v1888 = vld [vmem:[%s199 + $0x9e] sm:$0xff]
      %v1889 = vld [vmem:[%s199 + $0xa6] sm:$0xff]
      %v1890 = vld [vmem:[%s199 + $0xae] sm:$0xff]
      %v1891 = vld [vmem:[%s199 + $0xb6] sm:$0xff]
      %v1892 = vld [vmem:[%s199 + $0xbe] sm:$0xff]
      %v1893 = vld [vmem:[%s199 + $0xc6] sm:$0xff]
      %v1894 = vld [vmem:[%s199 + $0xce] sm:$0xff]
      %v1895 = vld [vmem:[%s199 + $0xd6] sm:$0xff]
      %v1896 = vld [vmem:[%s199 + $0xde] sm:$0xff]
      %v1897 = vld [vmem:[%s199 + $0xe6] sm:$0xff]
      %v1898 = vld [vmem:[%s199 + $0xee] sm:$0xff]
      %v1899 = vld [vmem:[%s199 + $0xf6] sm:$0xff]
      %v1900 = vld [vmem:[%s199 + $0xfe] sm:$0xff]
      %v1901 = vld [vmem:[%s199 + $0x106] sm:$0xff]
      %v1902 = vld [vmem:[%s199 + $0x10e] sm:$0xff]
      %v1903 = vld [vmem:[%s199 + $0x116] sm:$0xff]
      %v1904 = vld [vmem:[%s199 + $0x11e] sm:$0xff]
      %v1905 = vld [vmem:[%s199 + $0x126] sm:$0xff]
      %v1906 = vld [vmem:[%s199 + $0x12e] sm:$0xff]
      %v1907 = vld [vmem:[%s199 + $0x136] sm:$0xff]
      %v1908 = vld [vmem:[%s199 + $0x13e] sm:$0xff]
      %v1909 = vld [vmem:[%s199 + $0x146] sm:$0xff]
      %v1910 = vld [vmem:[%s199 + $0x14e] sm:$0xff]
      %v1911 = vpack.c.bf16 %v1876, %v1875
      %v1912 = vpack.c.bf16 %v1878, %v1877
      %v1913 = vpack.c.bf16 %v1880, %v1879
      %v1914 = vpack.c.bf16 %v1882, %v1881
      %v1915 = vpack.c.bf16 %v1884, %v1883
      %v1916 = vpack.c.bf16 %v1886, %v1885
      %v1917 = vpack.c.bf16 %v1888, %v1887
      %v1918 = vpack.c.bf16 %v1890, %v1889
      %v1919 = vpack.c.bf16 %v1892, %v1891
      %v1920 = vpack.c.bf16 %v1894, %v1893
      %v1921 = vpack.c.bf16 %v1896, %v1895
      %v1922 = vpack.c.bf16 %v1898, %v1897
      %v1923 = vpack.c.bf16 %v1900, %v1899
      %v1924 = vpack.c.bf16 %v1902, %v1901
      %v1925 = vpack.c.bf16 %v1904, %v1903
      %v1926 = vpack.c.bf16 %v1906, %v1905
      %v1927 = vpack.c.bf16 %v1908, %v1907
      %v1928 = vpack.c.bf16 %v1910, %v1909
      %s1929 = scalar_lea.vmem %s1, 28
      %v1930 = vld [vmem:[%s1929] sm:$0xf]
      %v1932 = vsel %vm321, %v1911, 0
      %v1935 = vsel %vm321, %v1912, 0
      %v1938 = vsel %vm321, %v1913, 0
      %v1941 = vsel %vm321, %v1914, 0
      %v1944 = vsel %vm321, %v1915, 0
      %v1947 = vsel %vm321, %v1916, 0
      %v1950 = vsel %vm321, %v1917, 0
      %v1953 = vsel %vm321, %v1918, 0
      %v1956 = vsel %vm321, %v1919, 0
      %v1959 = vsel %vm321, %v1920, 0
      %v1962 = vsel %vm321, %v1921, 0
      %v1965 = vsel %vm321, %v1922, 0
      %v1968 = vsel %vm321, %v1923, 0
      %v1971 = vsel %vm321, %v1924, 0
      %v1974 = vsel %vm321, %v1925, 0
      %v1977 = vsel %vm321, %v1926, 0
      %v1980 = vsel %vm321, %v1927, 0
      %v1983 = vsel %vm321, %v1928, 0
      %v1986 = vsel %vm376, %v1930, 0
      %1988 = vmatpush.bf16.msra.mxu0 0
      %1989 = vmatpush.bf16.msra.mxu0 0
      %1990 = vmatpush.bf16.msra.mxu0 0
      %1991 = vmatpush.bf16.msra.mxu0 0
      %1992 = vmatpush.bf16.msra.mxu0 0
      %1993 = vmatpush.bf16.msra.mxu0 0
      %1994 = vmatpush.bf16.msra.mxu0 0
      %1995 = vmatpush.bf16.msra.mxu0 %v1986
      %1996 = vmatmul.bf16.gmra.mxu0 %v1932
      %v1997 = vpop.f32.mrf.mxu0
      %v1998 = vadd.f32 0.0, %v1997
      %v1999 = vpop.f32.mrf.mxu0
      %v2000 = vadd.f32 0.0, %v1999
      %2001 = vmatmul.bf16.gmra.mxu0 %v1935
      %v2002 = vpop.f32.mrf.mxu0
      %v2003 = vadd.f32 0.0, %v2002
      %v2004 = vpop.f32.mrf.mxu0
      %v2005 = vadd.f32 0.0, %v2004
      %2006 = vmatmul.bf16.gmra.mxu0 %v1938
      %v2007 = vpop.f32.mrf.mxu0
      %v2008 = vadd.f32 0.0, %v2007
      %v2009 = vpop.f32.mrf.mxu0
      %v2010 = vadd.f32 0.0, %v2009
      %2011 = vmatmul.bf16.gmra.mxu0 %v1941
      %v2012 = vpop.f32.mrf.mxu0
      %v2013 = vadd.f32 0.0, %v2012
      %v2014 = vpop.f32.mrf.mxu0
      %v2015 = vadd.f32 0.0, %v2014
      %2016 = vmatmul.bf16.gmra.mxu0 %v1944
      %v2017 = vpop.f32.mrf.mxu0
      %v2018 = vadd.f32 0.0, %v2017
      %v2019 = vpop.f32.mrf.mxu0
      %v2020 = vadd.f32 0.0, %v2019
      %2021 = vmatmul.bf16.gmra.mxu0 %v1947
      %v2022 = vpop.f32.mrf.mxu0
      %v2023 = vadd.f32 0.0, %v2022
      %v2024 = vpop.f32.mrf.mxu0
      %v2025 = vadd.f32 0.0, %v2024
      %2026 = vmatmul.bf16.gmra.mxu0 %v1950
      %v2027 = vpop.f32.mrf.mxu0
      %v2028 = vadd.f32 0.0, %v2027
      %v2029 = vpop.f32.mrf.mxu0
      %v2030 = vadd.f32 0.0, %v2029
      %2031 = vmatmul.bf16.gmra.mxu0 %v1953
      %v2032 = vpop.f32.mrf.mxu0
      %v2033 = vadd.f32 0.0, %v2032
      %v2034 = vpop.f32.mrf.mxu0
      %v2035 = vadd.f32 0.0, %v2034
      %2036 = vmatmul.bf16.gmra.mxu0 %v1956
      %v2037 = vpop.f32.mrf.mxu0
      %v2038 = vadd.f32 0.0, %v2037
      %v2039 = vpop.f32.mrf.mxu0
      %v2040 = vadd.f32 0.0, %v2039
      %2041 = vmatmul.bf16.gmra.mxu0 %v1959
      %v2042 = vpop.f32.mrf.mxu0
      %v2043 = vadd.f32 0.0, %v2042
      %v2044 = vpop.f32.mrf.mxu0
      %v2045 = vadd.f32 0.0, %v2044
      %2046 = vmatmul.bf16.gmra.mxu0 %v1962
      %v2047 = vpop.f32.mrf.mxu0
      %v2048 = vadd.f32 0.0, %v2047
      %v2049 = vpop.f32.mrf.mxu0
      %v2050 = vadd.f32 0.0, %v2049
      %2051 = vmatmul.bf16.gmra.mxu0 %v1965
      %v2052 = vpop.f32.mrf.mxu0
      %v2053 = vadd.f32 0.0, %v2052
      %v2054 = vpop.f32.mrf.mxu0
      %v2055 = vadd.f32 0.0, %v2054
      %2056 = vmatmul.bf16.gmra.mxu0 %v1968
      %v2057 = vpop.f32.mrf.mxu0
      %v2058 = vadd.f32 0.0, %v2057
      %v2059 = vpop.f32.mrf.mxu0
      %v2060 = vadd.f32 0.0, %v2059
      %2061 = vmatmul.bf16.gmra.mxu0 %v1971
      %v2062 = vpop.f32.mrf.mxu0
      %v2063 = vadd.f32 0.0, %v2062
      %v2064 = vpop.f32.mrf.mxu0
      %v2065 = vadd.f32 0.0, %v2064
      %2066 = vmatmul.bf16.gmra.mxu0 %v1974
      %v2067 = vpop.f32.mrf.mxu0
      %v2068 = vadd.f32 0.0, %v2067
      %v2069 = vpop.f32.mrf.mxu0
      %v2070 = vadd.f32 0.0, %v2069
      %2071 = vmatmul.bf16.gmra.mxu0 %v1977
      %v2072 = vpop.f32.mrf.mxu0
      %v2073 = vadd.f32 0.0, %v2072
      %v2074 = vpop.f32.mrf.mxu0
      %v2075 = vadd.f32 0.0, %v2074
      %2076 = vmatmul.bf16.gmra.mxu0 %v1980
      %v2077 = vpop.f32.mrf.mxu0
      %v2078 = vadd.f32 0.0, %v2077
      %v2079 = vpop.f32.mrf.mxu0
      %v2080 = vadd.f32 0.0, %v2079
      %2081 = vmatmul.bf16.gmra.mxu0 %v1983
      %v2082 = vpop.f32.mrf.mxu0
      %v2083 = vadd.f32 0.0, %v2082
      %v2084 = vpop.f32.mrf.mxu0
      %v2085 = vadd.f32 0.0, %v2084
      %2086 = vdwg.mxu0
      %v2087 = vadd.f32 %v1839, %v1998
      %v2088 = vadd.f32 %v1840, %v2000
      %v2089 = vadd.f32 %v1841, %v2003
      %v2090 = vadd.f32 %v1842, %v2005
      %v2091 = vadd.f32 %v1843, %v2008
      %v2092 = vadd.f32 %v1844, %v2010
      %v2093 = vadd.f32 %v1845, %v2013
      %v2094 = vadd.f32 %v1846, %v2015
      %v2095 = vadd.f32 %v1847, %v2018
      %v2096 = vadd.f32 %v1848, %v2020
      %v2097 = vadd.f32 %v1849, %v2023
      %v2098 = vadd.f32 %v1850, %v2025
      %v2099 = vadd.f32 %v1851, %v2028
      %v2100 = vadd.f32 %v1852, %v2030
      %v2101 = vadd.f32 %v1853, %v2033
      %v2102 = vadd.f32 %v1854, %v2035
      %v2103 = vadd.f32 %v1855, %v2038
      %v2104 = vadd.f32 %v1856, %v2040
      %v2105 = vadd.f32 %v1857, %v2043
      %v2106 = vadd.f32 %v1858, %v2045
      %v2107 = vadd.f32 %v1859, %v2048
      %v2108 = vadd.f32 %v1860, %v2050
      %v2109 = vadd.f32 %v1861, %v2053
      %v2110 = vadd.f32 %v1862, %v2055
      %v2111 = vadd.f32 %v1863, %v2058
      %v2112 = vadd.f32 %v1864, %v2060
      %v2113 = vadd.f32 %v1865, %v2063
      %v2114 = vadd.f32 %v1866, %v2065
      %v2115 = vadd.f32 %v1867, %v2068
      %v2116 = vadd.f32 %v1868, %v2070
      %v2117 = vadd.f32 %v1869, %v2073
      %v2118 = vadd.f32 %v1870, %v2075
      %v2119 = vadd.f32 %v1871, %v2078
      %v2120 = vadd.f32 %v1872, %v2080
      %v2121 = vadd.f32 %v1873, %v2083
      %v2122 = vadd.f32 %v1874, %v2085
      %v2123 = vld [vmem:[%s199 + $0x37] sm:$0xff]
      %v2124 = vld [vmem:[%s199 + $0x3f] sm:$0xff]
      %v2125 = vld [vmem:[%s199 + $0x47] sm:$0xff]
      %v2126 = vld [vmem:[%s199 + $0x4f] sm:$0xff]
      %v2127 = vld [vmem:[%s199 + $0x57] sm:$0xff]
      %v2128 = vld [vmem:[%s199 + $0x5f] sm:$0xff]
      %v2129 = vld [vmem:[%s199 + $0x67] sm:$0xff]
      %v2130 = vld [vmem:[%s199 + $0x6f] sm:$0xff]
      %v2131 = vld [vmem:[%s199 + $0x77] sm:$0xff]
      %v2132 = vld [vmem:[%s199 + $0x7f] sm:$0xff]
      %v2133 = vld [vmem:[%s199 + $0x87] sm:$0xff]
      %v2134 = vld [vmem:[%s199 + $0x8f] sm:$0xff]
      %v2135 = vld [vmem:[%s199 + $0x97] sm:$0xff]
      %v2136 = vld [vmem:[%s199 + $0x9f] sm:$0xff]
      %v2137 = vld [vmem:[%s199 + $0xa7] sm:$0xff]
      %v2138 = vld [vmem:[%s199 + $0xaf] sm:$0xff]
      %v2139 = vld [vmem:[%s199 + $0xb7] sm:$0xff]
      %v2140 = vld [vmem:[%s199 + $0xbf] sm:$0xff]
      %v2141 = vld [vmem:[%s199 + $0xc7] sm:$0xff]
      %v2142 = vld [vmem:[%s199 + $0xcf] sm:$0xff]
      %v2143 = vld [vmem:[%s199 + $0xd7] sm:$0xff]
      %v2144 = vld [vmem:[%s199 + $0xdf] sm:$0xff]
      %v2145 = vld [vmem:[%s199 + $0xe7] sm:$0xff]
      %v2146 = vld [vmem:[%s199 + $0xef] sm:$0xff]
      %v2147 = vld [vmem:[%s199 + $0xf7] sm:$0xff]
      %v2148 = vld [vmem:[%s199 + $0xff] sm:$0xff]
      %v2149 = vld [vmem:[%s199 + $0x107] sm:$0xff]
      %v2150 = vld [vmem:[%s199 + $0x10f] sm:$0xff]
      %v2151 = vld [vmem:[%s199 + $0x117] sm:$0xff]
      %v2152 = vld [vmem:[%s199 + $0x11f] sm:$0xff]
      %v2153 = vld [vmem:[%s199 + $0x127] sm:$0xff]
      %v2154 = vld [vmem:[%s199 + $0x12f] sm:$0xff]
      %v2155 = vld [vmem:[%s199 + $0x137] sm:$0xff]
      %v2156 = vld [vmem:[%s199 + $0x13f] sm:$0xff]
      %v2157 = vld [vmem:[%s199 + $0x147] sm:$0xff]
      %v2158 = vld [vmem:[%s199 + $0x14f] sm:$0xff]
      %v2159 = vpack.c.bf16 %v2124, %v2123
      %v2160 = vpack.c.bf16 %v2126, %v2125
      %v2161 = vpack.c.bf16 %v2128, %v2127
      %v2162 = vpack.c.bf16 %v2130, %v2129
      %v2163 = vpack.c.bf16 %v2132, %v2131
      %v2164 = vpack.c.bf16 %v2134, %v2133
      %v2165 = vpack.c.bf16 %v2136, %v2135
      %v2166 = vpack.c.bf16 %v2138, %v2137
      %v2167 = vpack.c.bf16 %v2140, %v2139
      %v2168 = vpack.c.bf16 %v2142, %v2141
      %v2169 = vpack.c.bf16 %v2144, %v2143
      %v2170 = vpack.c.bf16 %v2146, %v2145
      %v2171 = vpack.c.bf16 %v2148, %v2147
      %v2172 = vpack.c.bf16 %v2150, %v2149
      %v2173 = vpack.c.bf16 %v2152, %v2151
      %v2174 = vpack.c.bf16 %v2154, %v2153
      %v2175 = vpack.c.bf16 %v2156, %v2155
      %v2176 = vpack.c.bf16 %v2158, %v2157
      %s2177 = scalar_lea.vmem %s1, 32
      %v2178 = vld [vmem:[%s2177] sm:$0xf]
      %v2180 = vsel %vm321, %v2159, 0
      %v2183 = vsel %vm321, %v2160, 0
      %v2186 = vsel %vm321, %v2161, 0
      %v2189 = vsel %vm321, %v2162, 0
      %v2192 = vsel %vm321, %v2163, 0
      %v2195 = vsel %vm321, %v2164, 0
      %v2198 = vsel %vm321, %v2165, 0
      %v2201 = vsel %vm321, %v2166, 0
      %v2204 = vsel %vm321, %v2167, 0
      %v2207 = vsel %vm321, %v2168, 0
      %v2210 = vsel %vm321, %v2169, 0
      %v2213 = vsel %vm321, %v2170, 0
      %v2216 = vsel %vm321, %v2171, 0
      %v2219 = vsel %vm321, %v2172, 0
      %v2222 = vsel %vm321, %v2173, 0
      %v2225 = vsel %vm321, %v2174, 0
      %v2228 = vsel %vm321, %v2175, 0
      %v2231 = vsel %vm321, %v2176, 0
      %v2234 = vsel %vm376, %v2178, 0
      %2236 = vmatpush.bf16.msra.mxu0 0
      %2237 = vmatpush.bf16.msra.mxu0 0
      %2238 = vmatpush.bf16.msra.mxu0 0
      %2239 = vmatpush.bf16.msra.mxu0 0
      %2240 = vmatpush.bf16.msra.mxu0 0
      %2241 = vmatpush.bf16.msra.mxu0 0
      %2242 = vmatpush.bf16.msra.mxu0 0
      %2243 = vmatpush.bf16.msra.mxu0 %v2234
      %2244 = vmatmul.bf16.gmra.mxu0 %v2180
      %v2245 = vpop.f32.mrf.mxu0
      %v2246 = vadd.f32 0.0, %v2245
      %v2247 = vpop.f32.mrf.mxu0
      %v2248 = vadd.f32 0.0, %v2247
      %2249 = vmatmul.bf16.gmra.mxu0 %v2183
      %v2250 = vpop.f32.mrf.mxu0
      %v2251 = vadd.f32 0.0, %v2250
      %v2252 = vpop.f32.mrf.mxu0
      %v2253 = vadd.f32 0.0, %v2252
      %2254 = vmatmul.bf16.gmra.mxu0 %v2186
      %v2255 = vpop.f32.mrf.mxu0
      %v2256 = vadd.f32 0.0, %v2255
      %v2257 = vpop.f32.mrf.mxu0
      %v2258 = vadd.f32 0.0, %v2257
      %2259 = vmatmul.bf16.gmra.mxu0 %v2189
      %v2260 = vpop.f32.mrf.mxu0
      %v2261 = vadd.f32 0.0, %v2260
      %v2262 = vpop.f32.mrf.mxu0
      %v2263 = vadd.f32 0.0, %v2262
      %2264 = vmatmul.bf16.gmra.mxu0 %v2192
      %v2265 = vpop.f32.mrf.mxu0
      %v2266 = vadd.f32 0.0, %v2265
      %v2267 = vpop.f32.mrf.mxu0
      %v2268 = vadd.f32 0.0, %v2267
      %2269 = vmatmul.bf16.gmra.mxu0 %v2195
      %v2270 = vpop.f32.mrf.mxu0
      %v2271 = vadd.f32 0.0, %v2270
      %v2272 = vpop.f32.mrf.mxu0
      %v2273 = vadd.f32 0.0, %v2272
      %2274 = vmatmul.bf16.gmra.mxu0 %v2198
      %v2275 = vpop.f32.mrf.mxu0
      %v2276 = vadd.f32 0.0, %v2275
      %v2277 = vpop.f32.mrf.mxu0
      %v2278 = vadd.f32 0.0, %v2277
      %2279 = vmatmul.bf16.gmra.mxu0 %v2201
      %v2280 = vpop.f32.mrf.mxu0
      %v2281 = vadd.f32 0.0, %v2280
      %v2282 = vpop.f32.mrf.mxu0
      %v2283 = vadd.f32 0.0, %v2282
      %2284 = vmatmul.bf16.gmra.mxu0 %v2204
      %v2285 = vpop.f32.mrf.mxu0
      %v2286 = vadd.f32 0.0, %v2285
      %v2287 = vpop.f32.mrf.mxu0
      %v2288 = vadd.f32 0.0, %v2287
      %2289 = vmatmul.bf16.gmra.mxu0 %v2207
      %v2290 = vpop.f32.mrf.mxu0
      %v2291 = vadd.f32 0.0, %v2290
      %v2292 = vpop.f32.mrf.mxu0
      %v2293 = vadd.f32 0.0, %v2292
      %2294 = vmatmul.bf16.gmra.mxu0 %v2210
      %v2295 = vpop.f32.mrf.mxu0
      %v2296 = vadd.f32 0.0, %v2295
      %v2297 = vpop.f32.mrf.mxu0
      %v2298 = vadd.f32 0.0, %v2297
      %2299 = vmatmul.bf16.gmra.mxu0 %v2213
      %v2300 = vpop.f32.mrf.mxu0
      %v2301 = vadd.f32 0.0, %v2300
      %v2302 = vpop.f32.mrf.mxu0
      %v2303 = vadd.f32 0.0, %v2302
      %2304 = vmatmul.bf16.gmra.mxu0 %v2216
      %v2305 = vpop.f32.mrf.mxu0
      %v2306 = vadd.f32 0.0, %v2305
      %v2307 = vpop.f32.mrf.mxu0
      %v2308 = vadd.f32 0.0, %v2307
      %2309 = vmatmul.bf16.gmra.mxu0 %v2219
      %v2310 = vpop.f32.mrf.mxu0
      %v2311 = vadd.f32 0.0, %v2310
      %v2312 = vpop.f32.mrf.mxu0
      %v2313 = vadd.f32 0.0, %v2312
      %2314 = vmatmul.bf16.gmra.mxu0 %v2222
      %v2315 = vpop.f32.mrf.mxu0
      %v2316 = vadd.f32 0.0, %v2315
      %v2317 = vpop.f32.mrf.mxu0
      %v2318 = vadd.f32 0.0, %v2317
      %2319 = vmatmul.bf16.gmra.mxu0 %v2225
      %v2320 = vpop.f32.mrf.mxu0
      %v2321 = vadd.f32 0.0, %v2320
      %v2322 = vpop.f32.mrf.mxu0
      %v2323 = vadd.f32 0.0, %v2322
      %2324 = vmatmul.bf16.gmra.mxu0 %v2228
      %v2325 = vpop.f32.mrf.mxu0
      %v2326 = vadd.f32 0.0, %v2325
      %v2327 = vpop.f32.mrf.mxu0
      %v2328 = vadd.f32 0.0, %v2327
      %2329 = vmatmul.bf16.gmra.mxu0 %v2231
      %v2330 = vpop.f32.mrf.mxu0
      %v2331 = vadd.f32 0.0, %v2330
      %v2332 = vpop.f32.mrf.mxu0
      %v2333 = vadd.f32 0.0, %v2332
      %2334 = vdwg.mxu0
      %v2335 = vadd.f32 %v2087, %v2246
      %v2336 = vadd.f32 %v2088, %v2248
      %v2337 = vadd.f32 %v2089, %v2251
      %v2338 = vadd.f32 %v2090, %v2253
      %v2339 = vadd.f32 %v2091, %v2256
      %v2340 = vadd.f32 %v2092, %v2258
      %v2341 = vadd.f32 %v2093, %v2261
      %v2342 = vadd.f32 %v2094, %v2263
      %v2343 = vadd.f32 %v2095, %v2266
      %v2344 = vadd.f32 %v2096, %v2268
      %v2345 = vadd.f32 %v2097, %v2271
      %v2346 = vadd.f32 %v2098, %v2273
      %v2347 = vadd.f32 %v2099, %v2276
      %v2348 = vadd.f32 %v2100, %v2278
      %v2349 = vadd.f32 %v2101, %v2281
      %v2350 = vadd.f32 %v2102, %v2283
      %v2351 = vadd.f32 %v2103, %v2286
      %v2352 = vadd.f32 %v2104, %v2288
      %v2353 = vadd.f32 %v2105, %v2291
      %v2354 = vadd.f32 %v2106, %v2293
      %v2355 = vadd.f32 %v2107, %v2296
      %v2356 = vadd.f32 %v2108, %v2298
      %v2357 = vadd.f32 %v2109, %v2301
      %v2358 = vadd.f32 %v2110, %v2303
      %v2359 = vadd.f32 %v2111, %v2306
      %v2360 = vadd.f32 %v2112, %v2308
      %v2361 = vadd.f32 %v2113, %v2311
      %v2362 = vadd.f32 %v2114, %v2313
      %v2363 = vadd.f32 %v2115, %v2316
      %v2364 = vadd.f32 %v2116, %v2318
      %v2365 = vadd.f32 %v2117, %v2321
      %v2366 = vadd.f32 %v2118, %v2323
      %v2367 = vadd.f32 %v2119, %v2326
      %v2368 = vadd.f32 %v2120, %v2328
      %v2369 = vadd.f32 %v2121, %v2331
      %v2370 = vadd.f32 %v2122, %v2333
      %v2371 = vld [vmem:[%s2] sm:$0xff]
      %v2372 = vld [vmem:[%s2 + $0x8] sm:$0xff]
      %v2373 = vld [vmem:[%s2 + $0x10] sm:$0xff]
      %v2374 = vld [vmem:[%s2 + $0x18] sm:$0xff]
      %v2375 = vld [vmem:[%s2 + $0x20] sm:$0xff]
      %v2376 = vld [vmem:[%s2 + $0x28] sm:$0xff]
      %v2377 = vld [vmem:[%s2 + $0x30] sm:$0xff]
      %v2378 = vld [vmem:[%s2 + $0x38] sm:$0xff]
      %v2379 = vld [vmem:[%s2 + $0x40] sm:$0xff]
      %v2380 = vld [vmem:[%s2 + $0x48] sm:$0xff]
      %v2381 = vld [vmem:[%s2 + $0x50] sm:$0xff]
      %v2382 = vld [vmem:[%s2 + $0x58] sm:$0xff]
      %v2383 = vld [vmem:[%s2 + $0x60] sm:$0xff]
      %v2384 = vld [vmem:[%s2 + $0x68] sm:$0xff]
      %v2385 = vld [vmem:[%s2 + $0x70] sm:$0xff]
      %v2386 = vld [vmem:[%s2 + $0x78] sm:$0xff]
      %v2387 = vld [vmem:[%s2 + $0x80] sm:$0xff]
      %v2388 = vld [vmem:[%s2 + $0x88] sm:$0xff]
      %v2389 = vld [vmem:[%s2 + $0x90] sm:$0xff]
      %v2390 = vld [vmem:[%s2 + $0x98] sm:$0xff]
      %v2391 = vld [vmem:[%s2 + $0xa0] sm:$0xff]
      %v2392 = vld [vmem:[%s2 + $0xa8] sm:$0xff]
      %v2393 = vld [vmem:[%s2 + $0xb0] sm:$0xff]
      %v2394 = vld [vmem:[%s2 + $0xb8] sm:$0xff]
      %v2395 = vld [vmem:[%s2 + $0xc0] sm:$0xff]
      %v2396 = vld [vmem:[%s2 + $0xc8] sm:$0xff]
      %v2397 = vld [vmem:[%s2 + $0xd0] sm:$0xff]
      %v2398 = vld [vmem:[%s2 + $0xd8] sm:$0xff]
      %v2399 = vld [vmem:[%s2 + $0xe0] sm:$0xff]
      %v2400 = vld [vmem:[%s2 + $0xe8] sm:$0xff]
      %v2401 = vld [vmem:[%s2 + $0xf0] sm:$0xff]
      %v2402 = vld [vmem:[%s2 + $0xf8] sm:$0xff]
      %v2403 = vld [vmem:[%s2 + $0x100] sm:$0xff]
      %v2404 = vld [vmem:[%s2 + $0x108] sm:$0xff]
      %v2405 = vld [vmem:[%s2 + $0x110] sm:$0xff]
      %v2406 = vld [vmem:[%s2 + $0x118] sm:$0xff]
      %2408 = vset.pattern.permute.xlu0 0
      %2409 = vperm.xlu0 %2408, %v2371
      %v2410 = vpop.permute.xlu0 %2409
      %2413 = vset.pattern.permute.xlu0 0
      %2414 = vperm.xlu0 %2413, %v2372
      %v2415 = vpop.permute.xlu0 %2414
      %2418 = vset.pattern.permute.xlu0 0
      %2419 = vperm.xlu0 %2418, %v2373
      %v2420 = vpop.permute.xlu0 %2419
      %2423 = vset.pattern.permute.xlu0 0
      %2424 = vperm.xlu0 %2423, %v2374
      %v2425 = vpop.permute.xlu0 %2424
      %2428 = vset.pattern.permute.xlu0 0
      %2429 = vperm.xlu0 %2428, %v2375
      %v2430 = vpop.permute.xlu0 %2429
      %2433 = vset.pattern.permute.xlu0 0
      %2434 = vperm.xlu0 %2433, %v2376
      %v2435 = vpop.permute.xlu0 %2434
      %2438 = vset.pattern.permute.xlu0 0
      %2439 = vperm.xlu0 %2438, %v2377
      %v2440 = vpop.permute.xlu0 %2439
      %2443 = vset.pattern.permute.xlu0 0
      %2444 = vperm.xlu0 %2443, %v2378
      %v2445 = vpop.permute.xlu0 %2444
      %2448 = vset.pattern.permute.xlu0 0
      %2449 = vperm.xlu0 %2448, %v2379
      %v2450 = vpop.permute.xlu0 %2449
      %2453 = vset.pattern.permute.xlu0 0
      %2454 = vperm.xlu0 %2453, %v2380
      %v2455 = vpop.permute.xlu0 %2454
      %2458 = vset.pattern.permute.xlu0 0
      %2459 = vperm.xlu0 %2458, %v2381
      %v2460 = vpop.permute.xlu0 %2459
      %2463 = vset.pattern.permute.xlu0 0
      %2464 = vperm.xlu0 %2463, %v2382
      %v2465 = vpop.permute.xlu0 %2464
      %2468 = vset.pattern.permute.xlu0 0
      %2469 = vperm.xlu0 %2468, %v2383
      %v2470 = vpop.permute.xlu0 %2469
      %2473 = vset.pattern.permute.xlu0 0
      %2474 = vperm.xlu0 %2473, %v2384
      %v2475 = vpop.permute.xlu0 %2474
      %2478 = vset.pattern.permute.xlu0 0
      %2479 = vperm.xlu0 %2478, %v2385
      %v2480 = vpop.permute.xlu0 %2479
      %2483 = vset.pattern.permute.xlu0 0
      %2484 = vperm.xlu0 %2483, %v2386
      %v2485 = vpop.permute.xlu0 %2484
      %2488 = vset.pattern.permute.xlu0 0
      %2489 = vperm.xlu0 %2488, %v2387
      %v2490 = vpop.permute.xlu0 %2489
      %2493 = vset.pattern.permute.xlu0 0
      %2494 = vperm.xlu0 %2493, %v2388
      %v2495 = vpop.permute.xlu0 %2494
      %2498 = vset.pattern.permute.xlu0 0
      %2499 = vperm.xlu0 %2498, %v2389
      %v2500 = vpop.permute.xlu0 %2499
      %2503 = vset.pattern.permute.xlu0 0
      %2504 = vperm.xlu0 %2503, %v2390
      %v2505 = vpop.permute.xlu0 %2504
      %2508 = vset.pattern.permute.xlu0 0
      %2509 = vperm.xlu0 %2508, %v2391
      %v2510 = vpop.permute.xlu0 %2509
      %2513 = vset.pattern.permute.xlu0 0
      %2514 = vperm.xlu0 %2513, %v2392
      %v2515 = vpop.permute.xlu0 %2514
      %2518 = vset.pattern.permute.xlu0 0
      %2519 = vperm.xlu0 %2518, %v2393
      %v2520 = vpop.permute.xlu0 %2519
      %2523 = vset.pattern.permute.xlu0 0
      %2524 = vperm.xlu0 %2523, %v2394
      %v2525 = vpop.permute.xlu0 %2524
      %2528 = vset.pattern.permute.xlu0 0
      %2529 = vperm.xlu0 %2528, %v2395
      %v2530 = vpop.permute.xlu0 %2529
      %2533 = vset.pattern.permute.xlu0 0
      %2534 = vperm.xlu0 %2533, %v2396
      %v2535 = vpop.permute.xlu0 %2534
      %2538 = vset.pattern.permute.xlu0 0
      %2539 = vperm.xlu0 %2538, %v2397
      %v2540 = vpop.permute.xlu0 %2539
      %2543 = vset.pattern.permute.xlu0 0
      %2544 = vperm.xlu0 %2543, %v2398
      %v2545 = vpop.permute.xlu0 %2544
      %2548 = vset.pattern.permute.xlu0 0
      %2549 = vperm.xlu0 %2548, %v2399
      %v2550 = vpop.permute.xlu0 %2549
      %2553 = vset.pattern.permute.xlu0 0
      %2554 = vperm.xlu0 %2553, %v2400
      %v2555 = vpop.permute.xlu0 %2554
      %2558 = vset.pattern.permute.xlu0 0
      %2559 = vperm.xlu0 %2558, %v2401
      %v2560 = vpop.permute.xlu0 %2559
      %2563 = vset.pattern.permute.xlu0 0
      %2564 = vperm.xlu0 %2563, %v2402
      %v2565 = vpop.permute.xlu0 %2564
      %2568 = vset.pattern.permute.xlu0 0
      %2569 = vperm.xlu0 %2568, %v2403
      %v2570 = vpop.permute.xlu0 %2569
      %2573 = vset.pattern.permute.xlu0 0
      %2574 = vperm.xlu0 %2573, %v2404
      %v2575 = vpop.permute.xlu0 %2574
      %2578 = vset.pattern.permute.xlu0 0
      %2579 = vperm.xlu0 %2578, %v2405
      %v2580 = vpop.permute.xlu0 %2579
      %2583 = vset.pattern.permute.xlu0 0
      %2584 = vperm.xlu0 %2583, %v2406
      %v2585 = vpop.permute.xlu0 %2584
      %v2587 = vmul.f32 %v2335, %v2410
      %v2588 = vmul.f32 %v2336, %v2415
      %v2589 = vmul.f32 %v2337, %v2420
      %v2590 = vmul.f32 %v2338, %v2425
      %v2591 = vmul.f32 %v2339, %v2430
      %v2592 = vmul.f32 %v2340, %v2435
      %v2593 = vmul.f32 %v2341, %v2440
      %v2594 = vmul.f32 %v2342, %v2445
      %v2595 = vmul.f32 %v2343, %v2450
      %v2596 = vmul.f32 %v2344, %v2455
      %v2597 = vmul.f32 %v2345, %v2460
      %v2598 = vmul.f32 %v2346, %v2465
      %v2599 = vmul.f32 %v2347, %v2470
      %v2600 = vmul.f32 %v2348, %v2475
      %v2601 = vmul.f32 %v2349, %v2480
      %v2602 = vmul.f32 %v2350, %v2485
      %v2603 = vmul.f32 %v2351, %v2490
      %v2604 = vmul.f32 %v2352, %v2495
      %v2605 = vmul.f32 %v2353, %v2500
      %v2606 = vmul.f32 %v2354, %v2505
      %v2607 = vmul.f32 %v2355, %v2510
      %v2608 = vmul.f32 %v2356, %v2515
      %v2609 = vmul.f32 %v2357, %v2520
      %v2610 = vmul.f32 %v2358, %v2525
      %v2611 = vmul.f32 %v2359, %v2530
      %v2612 = vmul.f32 %v2360, %v2535
      %v2613 = vmul.f32 %v2361, %v2540
      %v2614 = vmul.f32 %v2362, %v2545
      %v2615 = vmul.f32 %v2363, %v2550
      %v2616 = vmul.f32 %v2364, %v2555
      %v2617 = vmul.f32 %v2365, %v2560
      %v2618 = vmul.f32 %v2366, %v2565
      %v2619 = vmul.f32 %v2367, %v2570
      %v2620 = vmul.f32 %v2368, %v2575
      %v2621 = vmul.f32 %v2369, %v2580
      %v2622 = vmul.f32 %v2370, %v2585
      %v2623 = vsel %vm321, %v2587, 0.0
      %v2624 = vsel %vm321, %v2588, 0.0
      %v2625 = vadd.f32 %v2623, %v2624
      %v2626 = vsel %vm321, %v2589, 0.0
      %v2627 = vadd.f32 %v2625, %v2626
      %v2628 = vsel %vm321, %v2590, 0.0
      %v2629 = vadd.f32 %v2627, %v2628
      %v2630 = vsel %vm321, %v2591, 0.0
      %v2631 = vadd.f32 %v2629, %v2630
      %v2632 = vsel %vm321, %v2592, 0.0
      %v2633 = vadd.f32 %v2631, %v2632
      %v2634 = vsel %vm321, %v2593, 0.0
      %v2635 = vadd.f32 %v2633, %v2634
      %v2636 = vsel %vm321, %v2594, 0.0
      %v2637 = vadd.f32 %v2635, %v2636
      %v2638 = vsel %vm321, %v2595, 0.0
      %v2639 = vadd.f32 %v2637, %v2638
      %v2640 = vsel %vm321, %v2596, 0.0
      %v2641 = vadd.f32 %v2639, %v2640
      %v2642 = vsel %vm321, %v2597, 0.0
      %v2643 = vadd.f32 %v2641, %v2642
      %v2644 = vsel %vm321, %v2598, 0.0
      %v2645 = vadd.f32 %v2643, %v2644
      %v2646 = vsel %vm321, %v2599, 0.0
      %v2647 = vadd.f32 %v2645, %v2646
      %v2648 = vsel %vm321, %v2600, 0.0
      %v2649 = vadd.f32 %v2647, %v2648
      %v2650 = vsel %vm321, %v2601, 0.0
      %v2651 = vadd.f32 %v2649, %v2650
      %v2652 = vsel %vm321, %v2602, 0.0
      %v2653 = vadd.f32 %v2651, %v2652
      %v2654 = vsel %vm321, %v2603, 0.0
      %v2655 = vadd.f32 %v2653, %v2654
      %v2656 = vsel %vm321, %v2604, 0.0
      %v2657 = vadd.f32 %v2655, %v2656
      %v2658 = vsel %vm321, %v2605, 0.0
      %v2659 = vadd.f32 %v2657, %v2658
      %v2660 = vsel %vm321, %v2606, 0.0
      %v2661 = vadd.f32 %v2659, %v2660
      %v2662 = vsel %vm321, %v2607, 0.0
      %v2663 = vadd.f32 %v2661, %v2662
      %v2664 = vsel %vm321, %v2608, 0.0
      %v2665 = vadd.f32 %v2663, %v2664
      %v2666 = vsel %vm321, %v2609, 0.0
      %v2667 = vadd.f32 %v2665, %v2666
      %v2668 = vsel %vm321, %v2610, 0.0
      %v2669 = vadd.f32 %v2667, %v2668
      %v2670 = vsel %vm321, %v2611, 0.0
      %v2671 = vadd.f32 %v2669, %v2670
      %v2672 = vsel %vm321, %v2612, 0.0
      %v2673 = vadd.f32 %v2671, %v2672
      %v2674 = vsel %vm321, %v2613, 0.0
      %v2675 = vadd.f32 %v2673, %v2674
      %v2676 = vsel %vm321, %v2614, 0.0
      %v2677 = vadd.f32 %v2675, %v2676
      %v2678 = vsel %vm321, %v2615, 0.0
      %v2679 = vadd.f32 %v2677, %v2678
      %v2680 = vsel %vm321, %v2616, 0.0
      %v2681 = vadd.f32 %v2679, %v2680
      %v2682 = vsel %vm321, %v2617, 0.0
      %v2683 = vadd.f32 %v2681, %v2682
      %v2684 = vsel %vm321, %v2618, 0.0
      %v2685 = vadd.f32 %v2683, %v2684
      %v2686 = vsel %vm321, %v2619, 0.0
      %v2687 = vadd.f32 %v2685, %v2686
      %v2688 = vsel %vm321, %v2620, 0.0
      %v2689 = vadd.f32 %v2687, %v2688
      %v2690 = vsel %vm321, %v2621, 0.0
      %v2691 = vadd.f32 %v2689, %v2690
      %v2692 = vsel %vm321, %v2622, 0.0
      %v2693 = vadd.f32 %v2691, %v2692
      %v2694 = vrot.slane %v2693, 4
      %v2695 = vadd.f32 %v2693, %v2694
      %v2696 = vrot.slane %v2695, 2
      %v2697 = vadd.f32 %v2695, %v2696
      %v2698 = vrot.slane %v2697, 1
      %v2699 = vadd.f32 %v2697, %v2698
      %vm2700 = vcmask 57344
      %2701 = vst.msk [vmem:[%s208] sm:$0x1] %vm2700, %v2699
      %v2702 = vmul.f32 %v2587, %v2335
      %v2703 = vmul.f32 %v2588, %v2336
      %v2704 = vmul.f32 %v2589, %v2337
      %v2705 = vmul.f32 %v2590, %v2338
      %v2706 = vmul.f32 %v2591, %v2339
      %v2707 = vmul.f32 %v2592, %v2340
      %v2708 = vmul.f32 %v2593, %v2341
      %v2709 = vmul.f32 %v2594, %v2342
      %v2710 = vmul.f32 %v2595, %v2343
      %v2711 = vmul.f32 %v2596, %v2344
      %v2712 = vmul.f32 %v2597, %v2345
      %v2713 = vmul.f32 %v2598, %v2346
      %v2714 = vmul.f32 %v2599, %v2347
      %v2715 = vmul.f32 %v2600, %v2348
      %v2716 = vmul.f32 %v2601, %v2349
      %v2717 = vmul.f32 %v2602, %v2350
      %v2718 = vmul.f32 %v2603, %v2351
      %v2719 = vmul.f32 %v2604, %v2352
      %v2720 = vmul.f32 %v2605, %v2353
      %v2721 = vmul.f32 %v2606, %v2354
      %v2722 = vmul.f32 %v2607, %v2355
      %v2723 = vmul.f32 %v2608, %v2356
      %v2724 = vmul.f32 %v2609, %v2357
      %v2725 = vmul.f32 %v2610, %v2358
      %v2726 = vmul.f32 %v2611, %v2359
      %v2727 = vmul.f32 %v2612, %v2360
      %v2728 = vmul.f32 %v2613, %v2361
      %v2729 = vmul.f32 %v2614, %v2362
      %v2730 = vmul.f32 %v2615, %v2363
      %v2731 = vmul.f32 %v2616, %v2364
      %v2732 = vmul.f32 %v2617, %v2365
      %v2733 = vmul.f32 %v2618, %v2366
      %v2734 = vmul.f32 %v2619, %v2367
      %v2735 = vmul.f32 %v2620, %v2368
      %v2736 = vmul.f32 %v2621, %v2369
      %v2737 = vmul.f32 %v2622, %v2370
      %v2738 = vsel %vm321, %v2702, 0.0
      %v2739 = vsel %vm321, %v2703, 0.0
      %v2740 = vadd.f32 %v2738, %v2739
      %v2741 = vsel %vm321, %v2704, 0.0
      %v2742 = vadd.f32 %v2740, %v2741
      %v2743 = vsel %vm321, %v2705, 0.0
      %v2744 = vadd.f32 %v2742, %v2743
      %v2745 = vsel %vm321, %v2706, 0.0
      %v2746 = vadd.f32 %v2744, %v2745
      %v2747 = vsel %vm321, %v2707, 0.0
      %v2748 = vadd.f32 %v2746, %v2747
      %v2749 = vsel %vm321, %v2708, 0.0
      %v2750 = vadd.f32 %v2748, %v2749
      %v2751 = vsel %vm321, %v2709, 0.0
      %v2752 = vadd.f32 %v2750, %v2751
      %v2753 = vsel %vm321, %v2710, 0.0
      %v2754 = vadd.f32 %v2752, %v2753
      %v2755 = vsel %vm321, %v2711, 0.0
      %v2756 = vadd.f32 %v2754, %v2755
      %v2757 = vsel %vm321, %v2712, 0.0
      %v2758 = vadd.f32 %v2756, %v2757
      %v2759 = vsel %vm321, %v2713, 0.0
      %v2760 = vadd.f32 %v2758, %v2759
      %v2761 = vsel %vm321, %v2714, 0.0
      %v2762 = vadd.f32 %v2760, %v2761
      %v2763 = vsel %vm321, %v2715, 0.0
      %v2764 = vadd.f32 %v2762, %v2763
      %v2765 = vsel %vm321, %v2716, 0.0
      %v2766 = vadd.f32 %v2764, %v2765
      %v2767 = vsel %vm321, %v2717, 0.0
      %v2768 = vadd.f32 %v2766, %v2767
      %v2769 = vsel %vm321, %v2718, 0.0
      %v2770 = vadd.f32 %v2768, %v2769
      %v2771 = vsel %vm321, %v2719, 0.0
      %v2772 = vadd.f32 %v2770, %v2771
      %v2773 = vsel %vm321, %v2720, 0.0
      %v2774 = vadd.f32 %v2772, %v2773
      %v2775 = vsel %vm321, %v2721, 0.0
      %v2776 = vadd.f32 %v2774, %v2775
      %v2777 = vsel %vm321, %v2722, 0.0
      %v2778 = vadd.f32 %v2776, %v2777
      %v2779 = vsel %vm321, %v2723, 0.0
      %v2780 = vadd.f32 %v2778, %v2779
      %v2781 = vsel %vm321, %v2724, 0.0
      %v2782 = vadd.f32 %v2780, %v2781
      %v2783 = vsel %vm321, %v2725, 0.0
      %v2784 = vadd.f32 %v2782, %v2783
      %v2785 = vsel %vm321, %v2726, 0.0
      %v2786 = vadd.f32 %v2784, %v2785
      %v2787 = vsel %vm321, %v2727, 0.0
      %v2788 = vadd.f32 %v2786, %v2787
      %v2789 = vsel %vm321, %v2728, 0.0
      %v2790 = vadd.f32 %v2788, %v2789
      %v2791 = vsel %vm321, %v2729, 0.0
      %v2792 = vadd.f32 %v2790, %v2791
      %v2793 = vsel %vm321, %v2730, 0.0
      %v2794 = vadd.f32 %v2792, %v2793
      %v2795 = vsel %vm321, %v2731, 0.0
      %v2796 = vadd.f32 %v2794, %v2795
      %v2797 = vsel %vm321, %v2732, 0.0
      %v2798 = vadd.f32 %v2796, %v2797
      %v2799 = vsel %vm321, %v2733, 0.0
      %v2800 = vadd.f32 %v2798, %v2799
      %v2801 = vsel %vm321, %v2734, 0.0
      %v2802 = vadd.f32 %v2800, %v2801
      %v2803 = vsel %vm321, %v2735, 0.0
      %v2804 = vadd.f32 %v2802, %v2803
      %v2805 = vsel %vm321, %v2736, 0.0
      %v2806 = vadd.f32 %v2804, %v2805
      %v2807 = vsel %vm321, %v2737, 0.0
      %v2808 = vadd.f32 %v2806, %v2807
      %v2809 = vrot.slane %v2808, 4
      %v2810 = vadd.f32 %v2808, %v2809
      %v2811 = vrot.slane %v2810, 2
      %v2812 = vadd.f32 %v2810, %v2811
      %v2813 = vrot.slane %v2812, 1
      %v2814 = vadd.f32 %v2812, %v2813
      %2815 = vst.msk [vmem:[%s208 + $0x1] sm:$0x1] %vm2700, %v2814
      %v2816 = vpack.c.bf16 %v2335, %v2335
      %v2817 = vpack.c.bf16 %v2336, %v2336
      %v2818 = vpack.c.bf16 %v2337, %v2337
      %v2819 = vpack.c.bf16 %v2338, %v2338
      %v2820 = vpack.c.bf16 %v2339, %v2339
      %v2821 = vpack.c.bf16 %v2340, %v2340
      %v2822 = vpack.c.bf16 %v2341, %v2341
      %v2823 = vpack.c.bf16 %v2342, %v2342
      %v2824 = vpack.c.bf16 %v2343, %v2343
      %v2825 = vpack.c.bf16 %v2344, %v2344
      %v2826 = vpack.c.bf16 %v2345, %v2345
      %v2827 = vpack.c.bf16 %v2346, %v2346
      %v2828 = vpack.c.bf16 %v2347, %v2347
      %v2829 = vpack.c.bf16 %v2348, %v2348
      %v2830 = vpack.c.bf16 %v2349, %v2349
      %v2831 = vpack.c.bf16 %v2350, %v2350
      %v2832 = vpack.c.bf16 %v2351, %v2351
      %v2833 = vpack.c.bf16 %v2352, %v2352
      %v2834 = vpack.c.bf16 %v2353, %v2353
      %v2835 = vpack.c.bf16 %v2354, %v2354
      %v2836 = vpack.c.bf16 %v2355, %v2355
      %v2837 = vpack.c.bf16 %v2356, %v2356
      %v2838 = vpack.c.bf16 %v2357, %v2357
      %v2839 = vpack.c.bf16 %v2358, %v2358
      %v2840 = vpack.c.bf16 %v2359, %v2359
      %v2841 = vpack.c.bf16 %v2360, %v2360
      %v2842 = vpack.c.bf16 %v2361, %v2361
      %v2843 = vpack.c.bf16 %v2362, %v2362
      %v2844 = vpack.c.bf16 %v2363, %v2363
      %v2845 = vpack.c.bf16 %v2364, %v2364
      %v2846 = vpack.c.bf16 %v2365, %v2365
      %v2847 = vpack.c.bf16 %v2366, %v2366
      %v2848 = vpack.c.bf16 %v2367, %v2367
      %v2849 = vpack.c.bf16 %v2368, %v2368
      %v2850 = vpack.c.bf16 %v2369, %v2369
      %v2851 = vpack.c.bf16 %v2370, %v2370
      %vm2852 = vcmask 60416
      %2853 = vst.msk [vmem:[%s204] sm:$0xf] %vm2852, %v2816
      %2854 = vst.msk [vmem:[%s204 + $0x4] sm:$0xf] %vm2852, %v2817
      %2855 = vst.msk [vmem:[%s204 + $0x8] sm:$0xf] %vm2852, %v2818
      %2856 = vst.msk [vmem:[%s204 + $0xc] sm:$0xf] %vm2852, %v2819
      %2857 = vst.msk [vmem:[%s204 + $0x10] sm:$0xf] %vm2852, %v2820
      %2858 = vst.msk [vmem:[%s204 + $0x14] sm:$0xf] %vm2852, %v2821
      %2859 = vst.msk [vmem:[%s204 + $0x18] sm:$0xf] %vm2852, %v2822
      %2860 = vst.msk [vmem:[%s204 + $0x1c] sm:$0xf] %vm2852, %v2823
      %2861 = vst.msk [vmem:[%s204 + $0x20] sm:$0xf] %vm2852, %v2824
      %2862 = vst.msk [vmem:[%s204 + $0x24] sm:$0xf] %vm2852, %v2825
      %2863 = vst.msk [vmem:[%s204 + $0x28] sm:$0xf] %vm2852, %v2826
      %2864 = vst.msk [vmem:[%s204 + $0x2c] sm:$0xf] %vm2852, %v2827
      %2865 = vst.msk [vmem:[%s204 + $0x30] sm:$0xf] %vm2852, %v2828
      %2866 = vst.msk [vmem:[%s204 + $0x34] sm:$0xf] %vm2852, %v2829
      %2867 = vst.msk [vmem:[%s204 + $0x38] sm:$0xf] %vm2852, %v2830
      %2868 = vst.msk [vmem:[%s204 + $0x3c] sm:$0xf] %vm2852, %v2831
      %2869 = vst.msk [vmem:[%s204 + $0x40] sm:$0xf] %vm2852, %v2832
      %2870 = vst.msk [vmem:[%s204 + $0x44] sm:$0xf] %vm2852, %v2833
      %2871 = vst.msk [vmem:[%s204 + $0x48] sm:$0xf] %vm2852, %v2834
      %2872 = vst.msk [vmem:[%s204 + $0x4c] sm:$0xf] %vm2852, %v2835
      %2873 = vst.msk [vmem:[%s204 + $0x50] sm:$0xf] %vm2852, %v2836
      %2874 = vst.msk [vmem:[%s204 + $0x54] sm:$0xf] %vm2852, %v2837
      %2875 = vst.msk [vmem:[%s204 + $0x58] sm:$0xf] %vm2852, %v2838
      %2876 = vst.msk [vmem:[%s204 + $0x5c] sm:$0xf] %vm2852, %v2839
      %2877 = vst.msk [vmem:[%s204 + $0x60] sm:$0xf] %vm2852, %v2840
      %2878 = vst.msk [vmem:[%s204 + $0x64] sm:$0xf] %vm2852, %v2841
      %2879 = vst.msk [vmem:[%s204 + $0x68] sm:$0xf] %vm2852, %v2842
      %2880 = vst.msk [vmem:[%s204 + $0x6c] sm:$0xf] %vm2852, %v2843
      %2881 = vst.msk [vmem:[%s204 + $0x70] sm:$0xf] %vm2852, %v2844
      %2882 = vst.msk [vmem:[%s204 + $0x74] sm:$0xf] %vm2852, %v2845
      %2883 = vst.msk [vmem:[%s204 + $0x78] sm:$0xf] %vm2852, %v2846
      %2884 = vst.msk [vmem:[%s204 + $0x7c] sm:$0xf] %vm2852, %v2847
      %2885 = vst.msk [vmem:[%s204 + $0x80] sm:$0xf] %vm2852, %v2848
      %2886 = vst.msk [vmem:[%s204 + $0x84] sm:$0xf] %vm2852, %v2849
      %2887 = vst.msk [vmem:[%s204 + $0x88] sm:$0xf] %vm2852, %v2850
      %2888 = vst.msk [vmem:[%s204 + $0x8c] sm:$0xf] %vm2852, %v2851
      %p2889 = scmp.lt.s32.totalorder %s16, 1
      %s2890 = scalar_select %p2889, %s16, 1
      %s2891 = smul.addr %s2890, 36
      %s2892 = smul.addr %s2891, 4
      %s2893 = scalar_lea.vmem %s3, %s2892
      %p2894 = scmp.lt.s32.totalorder %s16, 1
      %s2895 = scalar_select %p2894, %s16, 1
      %s2896 = smul.addr %s2895, 2
      %s2897 = scalar_lea.vmem %s4, %s2896
      // Predicated region
      $region33: #{resblock_forward.3} parent=31 // pred_check
        %p2898 = pneg %p102
      $region34: #{resblock_forward.3} parent=31 // pred_check_branch
        %2900 = sbr.rel (%p2898) target = $region36
      $region35: #{resblock_forward.3} parent=31 // pred_region
        _
      $region36: #{resblock_forward.3} parent=31 // pred_fallthru
        _
      // Predicated region
      $region37: #{resblock_forward.3} parent=31 // pred_check
        %p2901 = pneg %p128
      $region38: #{resblock_forward.3} parent=31 // pred_check_branch
        %2903 = sbr.rel (%p2901) target = $region40
      $region39: #{resblock_forward.3} parent=31 // pred_region
        _
      $region40: #{resblock_forward.3} parent=31 // pred_fallthru
        _
    $region32: #{resblock_forward.3} parent=5 // pred_fallthru
      _
    %p2904 = scmp.le.s32.totalorder 2, %s11
    // Predicated region
    $region41: #{resblock_forward.3} parent=5 // pred_check
      %p2905 = pneg %p2904
    $region42: #{resblock_forward.3} parent=5 // pred_check_branch
      %2907 = sbr.rel (%p2905) target = $region44
    $region43: #{resblock_forward.3} parent=5 // pred_region
      %s2908 = ssub.s32 %s11, 2
      // Predicated region
      $region45: #{resblock_forward.3} parent=43 // pred_check
        %p2909 = pneg %p108
      $region46: #{resblock_forward.3} parent=43 // pred_check_branch
        %2911 = sbr.rel (%p2909) target = $region48
      $region47: #{resblock_forward.3} parent=43 // pred_region
        %p2912 = scmp.lt.s32.totalorder %s17, 1
        %s2913 = scalar_select %p2912, %s17, 1
        %s2914 = smul.addr %s2913, 36
        %s2915 = smul.addr %s2914, 4
        %s2916 = scalar_lea.vmem %s3, %s2915
      $region48: #{resblock_forward.3} parent=43 // pred_fallthru
        _
      // Predicated region
      $region49: #{resblock_forward.3} parent=43 // pred_check
        %p2917 = pneg %p134
      $region50: #{resblock_forward.3} parent=43 // pred_check_branch
        %2919 = sbr.rel (%p2917) target = $region52
      $region51: #{resblock_forward.3} parent=43 // pred_region
        %p2920 = scmp.lt.s32.totalorder %s17, 1
        %s2921 = scalar_select %p2920, %s17, 1
        %s2922 = smul.addr %s2921, 2
        %s2923 = scalar_lea.vmem %s4, %s2922
      $region52: #{resblock_forward.3} parent=43 // pred_fallthru
        _
    $region44: #{resblock_forward.3} parent=5 // pred_fallthru
      _
  $region6: #{resblock_forward.3} parent=0 // loop_footer
    %s15 = sadd.s32 1, %s11
  $region7: #{resblock_forward.3} parent=0 // loop_footer_branch
    %10 = sbr.rel target = $region3
  $region8: #{resblock_forward.3} parent=0 // loop_exit
    _

// kernel: resblock_forward.4
$region0: #{resblock_forward.4}
  #allocation0 [shape = 'u32[]', space=smem, size = 0x4, offset = 0x4, fixed_abs, tag = 'smem constant byte address 0x4 - core index']
  #allocation1 [shape = 'u32[72,128]{1,0:T(1,128)}', space=vmem, size = 0x9000, scoped, tag = 'internal scratch']
  #allocation2 [shape = 'f32[360,8]{1,0:T(8,128)}', space=vmem, size = 0x2d000, scoped, tag = 'scratch operand']
  %s0 = inlined_call_operand.vmem [shape: bf16[2,288,8], index: 0, kind: input, shape index: {}]
  %s1 = inlined_call_operand.vmem [shape: bf16[9,8,8], index: 1, kind: input, shape index: {}]
  %s2 = inlined_call_operand.vmem [shape: f32[288,1], index: 2, kind: input, shape index: {}]
  %s3 = inlined_call_operand.vmem [shape: f32[1,8], index: 3, kind: input, shape index: {}]
  %s4 = inlined_call_operand.vmem [shape: f32[1,8], index: 4, kind: input, shape index: {}]
  %s5 = inlined_call_operand.vmem [shape: bf16[2,288,8], index: 5, kind: output, shape index: {0}]
  %s6 = inlined_call_operand.vmem [shape: f32[2,2,8], index: 6, kind: output, shape index: {1}]
  %7 = xla_tuple %s5, %s6
  %s8 = sld [smem:[#allocation0]]
  $region61: #{resblock_forward.4} parent=0
    _
  %s10 = ssub.s32 1, %s8
  %s11 = scalar_select 0, %s10, %s8
  loop: start=0, step=1, limit=4
  $region2: #{resblock_forward.4} parent=0 // loop_pre_header
    _
  $region3: #{resblock_forward.4} parent=0 // loop_header
    %s13 = sphi 0, %s17
    %p14 = scmp.ge.s32.totalorder %s13, 4
    %s23 = sphi 0, %s25
    %s26 = sphi 0, %s23
    %s27 = sphi 0, %s26
    %s43 = sphi 0, %s27
    %s47 = sphi 0, %s47
    %s49 = sphi 0, %s47
    %s50 = sphi 0, %s49
    %s64 = sphi 0, %s50
    %s68 = sphi 0, %s68
    %s70 = sphi 0, %s68
    %s71 = sphi 0, %s70
    %s85 = sphi 0, %s71
    %s89 = sphi 0, %s89
    %s91 = sphi 0, %s89
    %s92 = sphi 0, %s91
    %s106 = sphi 0, %s92
    %s110 = sphi 0, %s110
    %s112 = sphi 0, %s110
    %s113 = sphi 0, %s112
    %s127 = sphi 0, %s113
    %s133 = sphi 0, %s135
    %s136 = sphi 0, %s133
    %s137 = sphi 0, %s136
    %s153 = sphi 0, %s137
    %s159 = sphi 0, %s161
    %s162 = sphi 0, %s159
    %s163 = sphi 0, %s162
    %s179 = sphi 0, %s163
  $region4: #{resblock_forward.4} parent=0 // loop_header_branch
    %16 = sbr.rel (%p14) target = $region8
  $region5: #{resblock_forward.4} parent=0 // loop_body
    %s18 = ssub.s32 %s13, 1
    %s19 = ssub.s32 %s13, 2
    %s20 = sadd.s32 %s13, 1
    %s21 = ssub.s32 %s13, %s20
    %p22 = scmp.eq.s32.totalorder %s21, 0
    %s24 = sadd.s32 %s23, 1
    %s25 = scalar_select %p22, %s23, %s24
    %p28 = pneg %p22
    %p29 = scmp.eq.s32.totalorder %s13, 1
    %p30 = por %p28, %p29
    %p31 = scmp.ne.s32.totalorder %s23, %s26
    %p32 = scmp.eq.s32.totalorder %s13, 0
    %p33 = por %p31, %p32
    %p34 = scmp.ne.s32.totalorder %s23, %s26
    %p35 = scmp.eq.s32.totalorder %s18, 1
    %p36 = por %p34, %p35
    %p37 = scmp.ne.s32.totalorder %s26, %s27
    %p38 = scmp.eq.s32.totalorder %s18, 0
    %p39 = por %p37, %p38
    %p40 = scmp.ne.s32.totalorder %s26, %s27
    %p41 = scmp.eq.s32.totalorder %s19, 1
    %p42 = por %p40, %p41
    %p44 = scmp.ne.s32.totalorder %s27, %s43
    %p45 = scmp.eq.s32.totalorder %s19, 0
    %p46 = por %p44, %p45
    %s48 = sadd.s32 %s47, 1
    %p51 = scmp.eq.s32.totalorder %s13, 1
    %p52 = scmp.ne.s32.totalorder %s47, %s49
    %p53 = scmp.eq.s32.totalorder %s13, 0
    %p54 = por %p52, %p53
    %p55 = scmp.ne.s32.totalorder %s47, %s49
    %p56 = scmp.eq.s32.totalorder %s18, 1
    %p57 = por %p55, %p56
    %p58 = scmp.ne.s32.totalorder %s49, %s50
    %p59 = scmp.eq.s32.totalorder %s18, 0
    %p60 = por %p58, %p59
    %p61 = scmp.ne.s32.totalorder %s49, %s50
    %p62 = scmp.eq.s32.totalorder %s19, 1
    %p63 = por %p61, %p62
    %p65 = scmp.ne.s32.totalorder %s50, %s64
    %p66 = scmp.eq.s32.totalorder %s19, 0
    %p67 = por %p65, %p66
    %s69 = sadd.s32 %s68, 1
    %p72 = scmp.eq.s32.totalorder %s13, 1
    %p73 = scmp.ne.s32.totalorder %s68, %s70
    %p74 = scmp.eq.s32.totalorder %s13, 0
    %p75 = por %p73, %p74
    %p76 = scmp.ne.s32.totalorder %s68, %s70
    %p77 = scmp.eq.s32.totalorder %s18, 1
    %p78 = por %p76, %p77
    %p79 = scmp.ne.s32.totalorder %s70, %s71
    %p80 = scmp.eq.s32.totalorder %s18, 0
    %p81 = por %p79, %p80
    %p82 = scmp.ne.s32.totalorder %s70, %s71
    %p83 = scmp.eq.s32.totalorder %s19, 1
    %p84 = por %p82, %p83
    %p86 = scmp.ne.s32.totalorder %s71, %s85
    %p87 = scmp.eq.s32.totalorder %s19, 0
    %p88 = por %p86, %p87
    %s90 = sadd.s32 %s89, 1
    %p93 = scmp.eq.s32.totalorder %s13, 1
    %p94 = scmp.ne.s32.totalorder %s89, %s91
    %p95 = scmp.eq.s32.totalorder %s13, 0
    %p96 = por %p94, %p95
    %p97 = scmp.ne.s32.totalorder %s89, %s91
    %p98 = scmp.eq.s32.totalorder %s18, 1
    %p99 = por %p97, %p98
    %p100 = scmp.ne.s32.totalorder %s91, %s92
    %p101 = scmp.eq.s32.totalorder %s18, 0
    %p102 = por %p100, %p101
    %p103 = scmp.ne.s32.totalorder %s91, %s92
    %p104 = scmp.eq.s32.totalorder %s19, 1
    %p105 = por %p103, %p104
    %p107 = scmp.ne.s32.totalorder %s92, %s106
    %p108 = scmp.eq.s32.totalorder %s19, 0
    %p109 = por %p107, %p108
    %s111 = sadd.s32 %s110, 1
    %p114 = scmp.eq.s32.totalorder %s13, 1
    %p115 = scmp.ne.s32.totalorder %s110, %s112
    %p116 = scmp.eq.s32.totalorder %s13, 0
    %p117 = por %p115, %p116
    %p118 = scmp.ne.s32.totalorder %s110, %s112
    %p119 = scmp.eq.s32.totalorder %s18, 1
    %p120 = por %p118, %p119
    %p121 = scmp.ne.s32.totalorder %s112, %s113
    %p122 = scmp.eq.s32.totalorder %s18, 0
    %p123 = por %p121, %p122
    %p124 = scmp.ne.s32.totalorder %s112, %s113
    %p125 = scmp.eq.s32.totalorder %s19, 1
    %p126 = por %p124, %p125
    %p128 = scmp.ne.s32.totalorder %s113, %s127
    %p129 = scmp.eq.s32.totalorder %s19, 0
    %p130 = por %p128, %p129
    %s131 = ssub.s32 %s13, %s20
    %p132 = scmp.eq.s32.totalorder %s131, 0
    %s134 = sadd.s32 %s133, 1
    %s135 = scalar_select %p132, %s133, %s134
    %p138 = pneg %p132
    %p139 = scmp.eq.s32.totalorder %s13, 1
    %p140 = por %p138, %p139
    %p141 = scmp.ne.s32.totalorder %s133, %s136
    %p142 = scmp.eq.s32.totalorder %s13, 0
    %p143 = por %p141, %p142
    %p144 = scmp.ne.s32.totalorder %s133, %s136
    %p145 = scmp.eq.s32.totalorder %s18, 1
    %p146 = por %p144, %p145
    %p147 = scmp.ne.s32.totalorder %s136, %s137
    %p148 = scmp.eq.s32.totalorder %s18, 0
    %p149 = por %p147, %p148
    %p150 = scmp.ne.s32.totalorder %s136, %s137
    %p151 = scmp.eq.s32.totalorder %s19, 1
    %p152 = por %p150, %p151
    %p154 = scmp.ne.s32.totalorder %s137, %s153
    %p155 = scmp.eq.s32.totalorder %s19, 0
    %p156 = por %p154, %p155
    %s157 = ssub.s32 %s13, %s20
    %p158 = scmp.eq.s32.totalorder %s157, 0
    %s160 = sadd.s32 %s159, 1
    %s161 = scalar_select %p158, %s159, %s160
    %p164 = pneg %p158
    %p165 = scmp.eq.s32.totalorder %s13, 1
    %p166 = por %p164, %p165
    %p167 = scmp.ne.s32.totalorder %s159, %s162
    %p168 = scmp.eq.s32.totalorder %s13, 0
    %p169 = por %p167, %p168
    %p170 = scmp.ne.s32.totalorder %s159, %s162
    %p171 = scmp.eq.s32.totalorder %s18, 1
    %p172 = por %p170, %p171
    %p173 = scmp.ne.s32.totalorder %s162, %s163
    %p174 = scmp.eq.s32.totalorder %s18, 0
    %p175 = por %p173, %p174
    %p176 = scmp.ne.s32.totalorder %s162, %s163
    %p177 = scmp.eq.s32.totalorder %s19, 1
    %p178 = por %p176, %p177
    %p180 = scmp.ne.s32.totalorder %s163, %s179
    %p181 = scmp.eq.s32.totalorder %s19, 0
    %p182 = por %p180, %p181
    %p183 = scmp.le.s32.totalorder 1, %s13
    %p184 = scmp.lt.s32.totalorder %s13, 3
    %p185 = pnand %p183, %p184
    %p186 = pneg %p185
    // Predicated region
    $region9: #{resblock_forward.4} parent=5 // pred_check
      _
    $region10: #{resblock_forward.4} parent=5 // pred_check_branch
      %188 = sbr.rel (%p185) target = $region12
    $region11: #{resblock_forward.4} parent=5 // pred_region
      %s189 = ssub.s32 %s13, 1
      // Predicated region
      $region13: #{resblock_forward.4} parent=11 // pred_check
        %p190 = pneg %p60
      $region14: #{resblock_forward.4} parent=11 // pred_check_branch
        %192 = sbr.rel (%p190) target = $region16
      $region15: #{resblock_forward.4} parent=11 // pred_region
        _
      $region16: #{resblock_forward.4} parent=11 // pred_fallthru
        _
      // Predicated region
      $region17: #{resblock_forward.4} parent=11 // pred_check
        %p193 = pneg %p81
      $region18: #{resblock_forward.4} parent=11 // pred_check_branch
        %195 = sbr.rel (%p193) target = $region20
      $region19: #{resblock_forward.4} parent=11 // pred_region
        _
      $region20: #{resblock_forward.4} parent=11 // pred_fallthru
        _
      // Predicated region
      $region21: #{resblock_forward.4} parent=11 // pred_check
        %p196 = pneg %p102
      $region22: #{resblock_forward.4} parent=11 // pred_check_branch
        %198 = sbr.rel (%p196) target = $region24
      $region23: #{resblock_forward.4} parent=11 // pred_region
        _
      $region24: #{resblock_forward.4} parent=11 // pred_fallthru
        _
      // Predicated region
      $region25: #{resblock_forward.4} parent=11 // pred_check
        %p199 = pneg %p123
      $region26: #{resblock_forward.4} parent=11 // pred_check_branch
        %201 = sbr.rel (%p199) target = $region28
      $region27: #{resblock_forward.4} parent=11 // pred_region
        _
      $region28: #{resblock_forward.4} parent=11 // pred_fallthru
        _
    $region12: #{resblock_forward.4} parent=5 // pred_fallthru
      _
    %p202 = scmp.lt.s32.totalorder %s13, 2
    // Predicated region
    $region29: #{resblock_forward.4} parent=5 // pred_check
      %p203 = pneg %p202
    $region30: #{resblock_forward.4} parent=5 // pred_check_branch
      %205 = sbr.rel (%p203) target = $region32
    $region31: #{resblock_forward.4} parent=5 // pred_region
      // Predicated region
      $region33: #{resblock_forward.4} parent=31 // pred_check
        %p206 = pneg %p33
      $region34: #{resblock_forward.4} parent=31 // pred_check_branch
        %208 = sbr.rel (%p206) target = $region36
      $region35: #{resblock_forward.4} parent=31 // pred_region
        %p209 = scmp.lt.s32.totalorder %s13, 1
        %s210 = scalar_select %p209, %s13, 1
        %s211 = smul.addr %s210, 36
        %s212 = smul.addr %s211, 4
        %s213 = scalar_lea.vmem %s0, %s212
      $region36: #{resblock_forward.4} parent=31 // pred_fallthru
        _
    $region32: #{resblock_forward.4} parent=5 // pred_fallthru
      _
    %p214 = scmp.le.s32.totalorder 1, %s13
    %p215 = scmp.lt.s32.totalorder %s13, 3
    %p216 = pnand %p214, %p215
    %p217 = pneg %p216
    // Predicated region
    $region37: #{resblock_forward.4} parent=5 // pred_check
      _
    $region38: #{resblock_forward.4} parent=5 // pred_check_branch
      %219 = sbr.rel (%p216) target = $region40
    $region39: #{resblock_forward.4} parent=5 // pred_region
      %s220 = ssub.s32 %s13, 1
      %p221 = scmp.lt.s32.totalorder %s18, 1
      %s222 = scalar_select %p221, %s18, 1
      %s223 = smul.addr %s222, 36
      %s224 = smul.addr %s223, 4
      %s225 = scalar_lea.vmem %s0, %s224
      %p226 = pneg %p39
      %p227 = pneg %p36
      %p228 = pneg %p60
      %p229 = pneg %p57
      %p230 = pneg %p81
      %p231 = pneg %p78
      %p232 = pneg %p102
      %p233 = pneg %p99
      %p234 = pneg %p123
      %p235 = pneg %p120
      %p236 = pneg %p149
      %p237 = pneg %p146
      %p238 = scmp.lt.s32.totalorder %s18, 1
      %s239 = scalar_select %p238, %s18, 1
      %s240 = smul.addr %s239, 36
      %s241 = smul.addr %s240, 4
      %s242 = scalar_lea.vmem %s5, %s241
      %p243 = pneg %p175
      %p244 = pneg %p172
      %p245 = scmp.lt.s32.totalorder %s18, 1
      %s246 = scalar_select %p245, %s18, 1
      %s247 = smul.addr %s246, 2
      %s248 = scalar_lea.vmem %s6, %s247
      %p249 = scmp.lt.s32.totalorder %s18, 1
      %s250 = scalar_select %p249, %s18, 1
      %s251 = smul.addr %s250, 36
      %s252 = smul.addr %s251, 4
      %s253 = scalar_lea.vmem %s0, %s252
      %p254 = scmp.lt.s32.totalorder %s18, 1
      %s255 = scalar_select %p254, %s18, 1
      %s256 = smul.addr %s255, 36
      %s257 = smul.addr %s256, 4
      %s258 = scalar_lea.vmem %s5, %s257
      %p259 = scmp.lt.s32.totalorder %s18, 1
      %s260 = scalar_select %p259, %s18, 1
      %s261 = smul.addr %s260, 2
      %s262 = scalar_lea.vmem %s6, %s261
      %v264 = vld [vmem:[%s2] sm:$0xff]
      %v265 = vld [vmem:[%s2 + $0x8] sm:$0xff]
      %v266 = vld [vmem:[%s2 + $0x10] sm:$0xff]
      %v267 = vld [vmem:[%s2 + $0x18] sm:$0xff]
      %v268 = vld [vmem:[%s2 + $0x20] sm:$0xff]
      %v269 = vld [vmem:[%s2 + $0x28] sm:$0xff]
      %v270 = vld [vmem:[%s2 + $0x30] sm:$0xff]
      %v271 = vld [vmem:[%s2 + $0x38] sm:$0xff]
      %v272 = vld [vmem:[%s2 + $0x40] sm:$0xff]
      %v273 = vld [vmem:[%s2 + $0x48] sm:$0xff]
      %v274 = vld [vmem:[%s2 + $0x50] sm:$0xff]
      %v275 = vld [vmem:[%s2 + $0x58] sm:$0xff]
      %v276 = vld [vmem:[%s2 + $0x60] sm:$0xff]
      %v277 = vld [vmem:[%s2 + $0x68] sm:$0xff]
      %v278 = vld [vmem:[%s2 + $0x70] sm:$0xff]
      %v279 = vld [vmem:[%s2 + $0x78] sm:$0xff]
      %v280 = vld [vmem:[%s2 + $0x80] sm:$0xff]
      %v281 = vld [vmem:[%s2 + $0x88] sm:$0xff]
      %v282 = vld [vmem:[%s2 + $0x90] sm:$0xff]
      %v283 = vld [vmem:[%s2 + $0x98] sm:$0xff]
      %v284 = vld [vmem:[%s2 + $0xa0] sm:$0xff]
      %v285 = vld [vmem:[%s2 + $0xa8] sm:$0xff]
      %v286 = vld [vmem:[%s2 + $0xb0] sm:$0xff]
      %v287 = vld [vmem:[%s2 + $0xb8] sm:$0xff]
      %v288 = vld [vmem:[%s2 + $0xc0] sm:$0xff]
      %v289 = vld [vmem:[%s2 + $0xc8] sm:$0xff]
      %v290 = vld [vmem:[%s2 + $0xd0] sm:$0xff]
      %v291 = vld [vmem:[%s2 + $0xd8] sm:$0xff]
      %v292 = vld [vmem:[%s2 + $0xe0] sm:$0xff]
      %v293 = vld [vmem:[%s2 + $0xe8] sm:$0xff]
      %v294 = vld [vmem:[%s2 + $0xf0] sm:$0xff]
      %v295 = vld [vmem:[%s2 + $0xf8] sm:$0xff]
      %v296 = vld [vmem:[%s2 + $0x100] sm:$0xff]
      %v297 = vld [vmem:[%s2 + $0x108] sm:$0xff]
      %v298 = vld [vmem:[%s2 + $0x110] sm:$0xff]
      %v299 = vld [vmem:[%s2 + $0x118] sm:$0xff]
      %v300 = vld [vmem:[%s253] sm:$0xf]
      %v301 = vld [vmem:[%s253 + $0x4] sm:$0xf]
      %v302 = vld [vmem:[%s253 + $0x8] sm:$0xf]
      %v303 = vld [vmem:[%s253 + $0xc] sm:$0xf]
      %v304 = vld [vmem:[%s253 + $0x10] sm:$0xf]
      %v305 = vld [vmem:[%s253 + $0x14] sm:$0xf]
      %v306 = vld [vmem:[%s253 + $0x18] sm:$0xf]
      %v307 = vld [vmem:[%s253 + $0x1c] sm:$0xf]
      %v308 = vld [vmem:[%s253 + $0x20] sm:$0xf]
      %v309 = vld [vmem:[%s253 + $0x24] sm:$0xf]
      %v310 = vld [vmem:[%s253 + $0x28] sm:$0xf]
      %v311 = vld [vmem:[%s253 + $0x2c] sm:$0xf]
      %v312 = vld [vmem:[%s253 + $0x30] sm:$0xf]
      %v313 = vld [vmem:[%s253 + $0x34] sm:$0xf]
      %v314 = vld [vmem:[%s253 + $0x38] sm:$0xf]
      %v315 = vld [vmem:[%s253 + $0x3c] sm:$0xf]
      %v316 = vld [vmem:[%s253 + $0x40] sm:$0xf]
      %v317 = vld [vmem:[%s253 + $0x44] sm:$0xf]
      %v318 = vld [vmem:[%s253 + $0x48] sm:$0xf]
      %v319 = vld [vmem:[%s253 + $0x4c] sm:$0xf]
      %v320 = vld [vmem:[%s253 + $0x50] sm:$0xf]
      %v321 = vld [vmem:[%s253 + $0x54] sm:$0xf]
      %v322 = vld [vmem:[%s253 + $0x58] sm:$0xf]
      %v323 = vld [vmem:[%s253 + $0x5c] sm:$0xf]
      %v324 = vld [vmem:[%s253 + $0x60] sm:$0xf]
      %v325 = vld [vmem:[%s253 + $0x64] sm:$0xf]
      %v326 = vld [vmem:[%s253 + $0x68] sm:$0xf]
      %v327 = vld [vmem:[%s253 + $0x6c] sm:$0xf]
      %v328 = vld [vmem:[%s253 + $0x70] sm:$0xf]
      %v329 = vld [vmem:[%s253 + $0x74] sm:$0xf]
      %v330 = vld [vmem:[%s253 + $0x78] sm:$0xf]
      %v331 = vld [vmem:[%s253 + $0x7c] sm:$0xf]
      %v332 = vld [vmem:[%s253 + $0x80] sm:$0xf]
      %v333 = vld [vmem:[%s253 + $0x84] sm:$0xf]
      %v334 = vld [vmem:[%s253 + $0x88] sm:$0xf]
      %v335 = vld [vmem:[%s253 + $0x8c] sm:$0xf]
      %v336 = vunpack.c.l.bf16 %v300
      %v337 = vunpack.c.l.bf16 %v301
      %v338 = vunpack.c.l.bf16 %v302
      %v339 = vunpack.c.l.bf16 %v303
      %v340 = vunpack.c.l.bf16 %v304
      %v341 = vunpack.c.l.bf16 %v305
      %v342 = vunpack.c.l.bf16 %v306
      %v343 = vunpack.c.l.bf16 %v307
      %v344 = vunpack.c.l.bf16 %v308
      %v345 = vunpack.c.l.bf16 %v309
      %v346 = vunpack.c.l.bf16 %v310
      %v347 = vunpack.c.l.bf16 %v311
      %v348 = vunpack.c.l.bf16 %v312
      %v349 = vunpack.c.l.bf16 %v313
      %v350 = vunpack.c.l.bf16 %v314
      %v351 = vunpack.c.l.bf16 %v315
      %v352 = vunpack.c.l.bf16 %v316
      %v353 = vunpack.c.l.bf16 %v317
      %v354 = vunpack.c.l.bf16 %v318
      %v355 = vunpack.c.l.bf16 %v319
      %v356 = vunpack.c.l.bf16 %v320
      %v357 = vunpack.c.l.bf16 %v321
      %v358 = vunpack.c.l.bf16 %v322
      %v359 = vunpack.c.l.bf16 %v323
      %v360 = vunpack.c.l.bf16 %v324
      %v361 = vunpack.c.l.bf16 %v325
      %v362 = vunpack.c.l.bf16 %v326
      %v363 = vunpack.c.l.bf16 %v327
      %v364 = vunpack.c.l.bf16 %v328
      %v365 = vunpack.c.l.bf16 %v329
      %v366 = vunpack.c.l.bf16 %v330
      %v367 = vunpack.c.l.bf16 %v331
      %v368 = vunpack.c.l.bf16 %v332
      %v369 = vunpack.c.l.bf16 %v333
      %v370 = vunpack.c.l.bf16 %v334
      %v371 = vunpack.c.l.bf16 %v335
      %v372 = vld [vmem:[%s3] sm:$0x1]
      %v374 = vperm.slane %v372, 0
      %v376 = vmul.f32 %v336, %v374
      %v377 = vmul.f32 %v337, %v374
      %v378 = vmul.f32 %v338, %v374
      %v379 = vmul.f32 %v339, %v374
      %v380 = vmul.f32 %v340, %v374
      %v381 = vmul.f32 %v341, %v374
      %v382 = vmul.f32 %v342, %v374
      %v383 = vmul.f32 %v343, %v374
      %v384 = vmul.f32 %v344, %v374
      %v385 = vmul.f32 %v345, %v374
      %v386 = vmul.f32 %v346, %v374
      %v387 = vmul.f32 %v347, %v374
      %v388 = vmul.f32 %v348, %v374
      %v389 = vmul.f32 %v349, %v374
      %v390 = vmul.f32 %v350, %v374
      %v391 = vmul.f32 %v351, %v374
      %v392 = vmul.f32 %v352, %v374
      %v393 = vmul.f32 %v353, %v374
      %v394 = vmul.f32 %v354, %v374
      %v395 = vmul.f32 %v355, %v374
      %v396 = vmul.f32 %v356, %v374
      %v397 = vmul.f32 %v357, %v374
      %v398 = vmul.f32 %v358, %v374
      %v399 = vmul.f32 %v359, %v374
      %v400 = vmul.f32 %v360, %v374
      %v401 = vmul.f32 %v361, %v374
      %v402 = vmul.f32 %v362, %v374
      %v403 = vmul.f32 %v363, %v374
      %v404 = vmul.f32 %v364, %v374
      %v405 = vmul.f32 %v365, %v374
      %v406 = vmul.f32 %v366, %v374
      %v407 = vmul.f32 %v367, %v374
      %v408 = vmul.f32 %v368, %v374
      %v409 = vmul.f32 %v369, %v374
      %v410 = vmul.f32 %v370, %v374
      %v411 = vmul.f32 %v371, %v374
      %v412 = vld [vmem:[%s4] sm:$0x1]
      %v414 = vperm.slane %v412, 0
      %v416 = vadd.f32 %v376, %v414
      %v417 = vadd.f32 %v377, %v414
      %v418 = vadd.f32 %v378, %v414
      %v419 = vadd.f32 %v379, %v414
      %v420 = vadd.f32 %v380, %v414
      %v421 = vadd.f32 %v381, %v414
      %v422 = vadd.f32 %v382, %v414
      %v423 = vadd.f32 %v383, %v414
      %v424 = vadd.f32 %v384, %v414
      %v425 = vadd.f32 %v385, %v414
      %v426 = vadd.f32 %v386, %v414
      %v427 = vadd.f32 %v387, %v414
      %v428 = vadd.f32 %v388, %v414
      %v429 = vadd.f32 %v389, %v414
      %v430 = vadd.f32 %v390, %v414
      %v431 = vadd.f32 %v391, %v414
      %v432 = vadd.f32 %v392, %v414
      %v433 = vadd.f32 %v393, %v414
      %v434 = vadd.f32 %v394, %v414
      %v435 = vadd.f32 %v395, %v414
      %v436 = vadd.f32 %v396, %v414
      %v437 = vadd.f32 %v397, %v414
      %v438 = vadd.f32 %v398, %v414
      %v439 = vadd.f32 %v399, %v414
      %v440 = vadd.f32 %v400, %v414
      %v441 = vadd.f32 %v401, %v414
      %v442 = vadd.f32 %v402, %v414
      %v443 = vadd.f32 %v403, %v414
      %v444 = vadd.f32 %v404, %v414
      %v445 = vadd.f32 %v405, %v414
      %v446 = vadd.f32 %v406, %v414
      %v447 = vadd.f32 %v407, %v414
      %v448 = vadd.f32 %v408, %v414
      %v449 = vadd.f32 %v409, %v414
      %v450 = vadd.f32 %v410, %v414
      %v451 = vadd.f32 %v411, %v414
      %v452 = vmax.f32 %v416, 0.0
      %v453 = vmax.f32 %v417, 0.0
      %v454 = vmax.f32 %v418, 0.0
      %v455 = vmax.f32 %v419, 0.0
      %v456 = vmax.f32 %v420, 0.0
      %v457 = vmax.f32 %v421, 0.0
      %v458 = vmax.f32 %v422, 0.0
      %v459 = vmax.f32 %v423, 0.0
      %v460 = vmax.f32 %v424, 0.0
      %v461 = vmax.f32 %v425, 0.0
      %v462 = vmax.f32 %v426, 0.0
      %v463 = vmax.f32 %v427, 0.0
      %v464 = vmax.f32 %v428, 0.0
      %v465 = vmax.f32 %v429, 0.0
      %v466 = vmax.f32 %v430, 0.0
      %v467 = vmax.f32 %v431, 0.0
      %v468 = vmax.f32 %v432, 0.0
      %v469 = vmax.f32 %v433, 0.0
      %v470 = vmax.f32 %v434, 0.0
      %v471 = vmax.f32 %v435, 0.0
      %v472 = vmax.f32 %v436, 0.0
      %v473 = vmax.f32 %v437, 0.0
      %v474 = vmax.f32 %v438, 0.0
      %v475 = vmax.f32 %v439, 0.0
      %v476 = vmax.f32 %v440, 0.0
      %v477 = vmax.f32 %v441, 0.0
      %v478 = vmax.f32 %v442, 0.0
      %v479 = vmax.f32 %v443, 0.0
      %v480 = vmax.f32 %v444, 0.0
      %v481 = vmax.f32 %v445, 0.0
      %v482 = vmax.f32 %v446, 0.0
      %v483 = vmax.f32 %v447, 0.0
      %v484 = vmax.f32 %v448, 0.0
      %v485 = vmax.f32 %v449, 0.0
      %v486 = vmax.f32 %v450, 0.0
      %v487 = vmax.f32 %v451, 0.0
      %489 = vset.pattern.permute.xlu0 0
      %490 = vperm.xlu0 %489, %v264
      %v491 = vpop.permute.xlu0 %490
      %494 = vset.pattern.permute.xlu0 0
      %495 = vperm.xlu0 %494, %v265
      %v496 = vpop.permute.xlu0 %495
      %499 = vset.pattern.permute.xlu0 0
      %500 = vperm.xlu0 %499, %v266
      %v501 = vpop.permute.xlu0 %500
      %504 = vset.pattern.permute.xlu0 0
      %505 = vperm.xlu0 %504, %v267
      %v506 = vpop.permute.xlu0 %505
      %509 = vset.pattern.permute.xlu0 0
      %510 = vperm.xlu0 %509, %v268
      %v511 = vpop.permute.xlu0 %510
      %514 = vset.pattern.permute.xlu0 0
      %515 = vperm.xlu0 %514, %v269
      %v516 = vpop.permute.xlu0 %515
      %519 = vset.pattern.permute.xlu0 0
      %520 = vperm.xlu0 %519, %v270
      %v521 = vpop.permute.xlu0 %520
      %524 = vset.pattern.permute.xlu0 0
      %525 = vperm.xlu0 %524, %v271
      %v526 = vpop.permute.xlu0 %525
      %529 = vset.pattern.permute.xlu0 0
      %530 = vperm.xlu0 %529, %v272
      %v531 = vpop.permute.xlu0 %530
      %534 = vset.pattern.permute.xlu0 0
      %535 = vperm.xlu0 %534, %v273
      %v536 = vpop.permute.xlu0 %535
      %539 = vset.pattern.permute.xlu0 0
      %540 = vperm.xlu0 %539, %v274
      %v541 = vpop.permute.xlu0 %540
      %544 = vset.pattern.permute.xlu0 0
      %545 = vperm.xlu0 %544, %v275
      %v546 = vpop.permute.xlu0 %545
      %549 = vset.pattern.permute.xlu0 0
      %550 = vperm.xlu0 %549, %v276
      %v551 = vpop.permute.xlu0 %550
      %554 = vset.pattern.permute.xlu0 0
      %555 = vperm.xlu0 %554, %v277
      %v556 = vpop.permute.xlu0 %555
      %559 = vset.pattern.permute.xlu0 0
      %560 = vperm.xlu0 %559, %v278
      %v561 = vpop.permute.xlu0 %560
      %564 = vset.pattern.permute.xlu0 0
      %565 = vperm.xlu0 %564, %v279
      %v566 = vpop.permute.xlu0 %565
      %569 = vset.pattern.permute.xlu0 0
      %570 = vperm.xlu0 %569, %v280
      %v571 = vpop.permute.xlu0 %570
      %574 = vset.pattern.permute.xlu0 0
      %575 = vperm.xlu0 %574, %v281
      %v576 = vpop.permute.xlu0 %575
      %579 = vset.pattern.permute.xlu0 0
      %580 = vperm.xlu0 %579, %v282
      %v581 = vpop.permute.xlu0 %580
      %584 = vset.pattern.permute.xlu0 0
      %585 = vperm.xlu0 %584, %v283
      %v586 = vpop.permute.xlu0 %585
      %589 = vset.pattern.permute.xlu0 0
      %590 = vperm.xlu0 %589, %v284
      %v591 = vpop.permute.xlu0 %590
      %594 = vset.pattern.permute.xlu0 0
      %595 = vperm.xlu0 %594, %v285
      %v596 = vpop.permute.xlu0 %595
      %599 = vset.pattern.permute.xlu0 0
      %600 = vperm.xlu0 %599, %v286
      %v601 = vpop.permute.xlu0 %600
      %604 = vset.pattern.permute.xlu0 0
      %605 = vperm.xlu0 %604, %v287
      %v606 = vpop.permute.xlu0 %605
      %609 = vset.pattern.permute.xlu0 0
      %610 = vperm.xlu0 %609, %v288
      %v611 = vpop.permute.xlu0 %610
      %614 = vset.pattern.permute.xlu0 0
      %615 = vperm.xlu0 %614, %v289
      %v616 = vpop.permute.xlu0 %615
      %619 = vset.pattern.permute.xlu0 0
      %620 = vperm.xlu0 %619, %v290
      %v621 = vpop.permute.xlu0 %620
      %624 = vset.pattern.permute.xlu0 0
      %625 = vperm.xlu0 %624, %v291
      %v626 = vpop.permute.xlu0 %625
      %629 = vset.pattern.permute.xlu0 0
      %630 = vperm.xlu0 %629, %v292
      %v631 = vpop.permute.xlu0 %630
      %634 = vset.pattern.permute.xlu0 0
      %635 = vperm.xlu0 %634, %v293
      %v636 = vpop.permute.xlu0 %635
      %639 = vset.pattern.permute.xlu0 0
      %640 = vperm.xlu0 %639, %v294
      %v641 = vpop.permute.xlu0 %640
      %644 = vset.pattern.permute.xlu0 0
      %645 = vperm.xlu0 %644, %v295
      %v646 = vpop.permute.xlu0 %645
      %649 = vset.pattern.permute.xlu0 0
      %650 = vperm.xlu0 %649, %v296
      %v651 = vpop.permute.xlu0 %650
      %654 = vset.pattern.permute.xlu0 0
      %655 = vperm.xlu0 %654, %v297
      %v656 = vpop.permute.xlu0 %655
      %659 = vset.pattern.permute.xlu0 0
      %660 = vperm.xlu0 %659, %v298
      %v661 = vpop.permute.xlu0 %660
      %664 = vset.pattern.permute.xlu0 0
      %665 = vperm.xlu0 %664, %v299
      %v666 = vpop.permute.xlu0 %665
      %v668 = vmul.f32 %v452, %v491
      %v669 = vmul.f32 %v453, %v496
      %v670 = vmul.f32 %v454, %v501
      %v671 = vmul.f32 %v455, %v506
      %v672 = vmul.f32 %v456, %v511
      %v673 = vmul.f32 %v457, %v516
      %v674 = vmul.f32 %v458, %v521
      %v675 = vmul.f32 %v459, %v526
      %v676 = vmul.f32 %v460, %v531
      %v677 = vmul.f32 %v461, %v536
      %v678 = vmul.f32 %v462, %v541
      %v679 = vmul.f32 %v463, %v546
      %v680 = vmul.f32 %v464, %v551
      %v681 = vmul.f32 %v465, %v556
      %v682 = vmul.f32 %v466, %v561
      %v683 = vmul.f32 %v467, %v566
      %v684 = vmul.f32 %v468, %v571
      %v685 = vmul.f32 %v469, %v576
      %v686 = vmul.f32 %v470, %v581
      %v687 = vmul.f32 %v471, %v586
      %v688 = vmul.f32 %v472, %v591
      %v689 = vmul.f32 %v473, %v596
      %v690 = vmul.f32 %v474, %v601
      %v691 = vmul.f32 %v475, %v606
      %v692 = vmul.f32 %v476, %v611
      %v693 = vmul.f32 %v477, %v616
      %v694 = vmul.f32 %v478, %v621
      %v695 = vmul.f32 %v479, %v626
      %v696 = vmul.f32 %v480, %v631
      %v697 = vmul.f32 %v481, %v636
      %v698 = vmul.f32 %v482, %v641
      %v699 = vmul.f32 %v483, %v646
      %v700 = vmul.f32 %v484, %v651
      %v701 = vmul.f32 %v485, %v656
      %v702 = vmul.f32 %v486, %v661
      %v703 = vmul.f32 %v487, %v666
      %vm704 = vcmask 64512
      %705 = vst.msk [vmem:[#allocation2] sm:$0xff] %vm704, 0.0
      %706 = vst.msk [vmem:[#allocation2 + $0x8] sm:$0xff] %vm704, 0.0
      %707 = vst.msk [vmem:[#allocation2 + $0x10] sm:$0xff] %vm704, 0.0
      %708 = vst.msk [vmem:[#allocation2 + $0x18] sm:$0xff] %vm704, 0.0
      %vm709 = vcmask 60416
      %710 = vst.msk [vmem:[#allocation2 + $0x20] sm:$0xf] %vm709, 0.0
      %711 = vst.msk [vmem:[#allocation2 + $0x144] sm:$0xff] %vm704, 0.0
      %712 = vst.msk [vmem:[#allocation2 + $0x14c] sm:$0xff] %vm704, 0.0
      %713 = vst.msk [vmem:[#allocation2 + $0x154] sm:$0xff] %vm704, 0.0
      %714 = vst.msk [vmem:[#allocation2 + $0x15c] sm:$0xff] %vm704, 0.0
      %715 = vst.msk [vmem:[#allocation2 + $0x164] sm:$0xf] %vm709, 0.0
      %716 = vst.msk [vmem:[#allocation2 + $0x24] sm:$0xff] %vm704, %v668
      %717 = vst.msk [vmem:[#allocation2 + $0x2c] sm:$0xff] %vm704, %v669
      %718 = vst.msk [vmem:[#allocation2 + $0x34] sm:$0xff] %vm704, %v670
      %719 = vst.msk [vmem:[#allocation2 + $0x3c] sm:$0xff] %vm704, %v671
      %720 = vst.msk [vmem:[#allocation2 + $0x44] sm:$0xff] %vm704, %v672
      %721 = vst.msk [vmem:[#allocation2 + $0x4c] sm:$0xff] %vm704, %v673
      %722 = vst.msk [vmem:[#allocation2 + $0x54] sm:$0xff] %vm704, %v674
      %723 = vst.msk [vmem:[#allocation2 + $0x5c] sm:$0xff] %vm704, %v675
      %724 = vst.msk [vmem:[#allocation2 + $0x64] sm:$0xff] %vm704, %v676
      %725 = vst.msk [vmem:[#allocation2 + $0x6c] sm:$0xff] %vm704, %v677
      %726 = vst.msk [vmem:[#allocation2 + $0x74] sm:$0xff] %vm704, %v678
      %727 = vst.msk [vmem:[#allocation2 + $0x7c] sm:$0xff] %vm704, %v679
      %728 = vst.msk [vmem:[#allocation2 + $0x84] sm:$0xff] %vm704, %v680
      %729 = vst.msk [vmem:[#allocation2 + $0x8c] sm:$0xff] %vm704, %v681
      %730 = vst.msk [vmem:[#allocation2 + $0x94] sm:$0xff] %vm704, %v682
      %731 = vst.msk [vmem:[#allocation2 + $0x9c] sm:$0xff] %vm704, %v683
      %732 = vst.msk [vmem:[#allocation2 + $0xa4] sm:$0xff] %vm704, %v684
      %733 = vst.msk [vmem:[#allocation2 + $0xac] sm:$0xff] %vm704, %v685
      %734 = vst.msk [vmem:[#allocation2 + $0xb4] sm:$0xff] %vm704, %v686
      %735 = vst.msk [vmem:[#allocation2 + $0xbc] sm:$0xff] %vm704, %v687
      %736 = vst.msk [vmem:[#allocation2 + $0xc4] sm:$0xff] %vm704, %v688
      %737 = vst.msk [vmem:[#allocation2 + $0xcc] sm:$0xff] %vm704, %v689
      %738 = vst.msk [vmem:[#allocation2 + $0xd4] sm:$0xff] %vm704, %v690
      %739 = vst.msk [vmem:[#allocation2 + $0xdc] sm:$0xff] %vm704, %v691
      %740 = vst.msk [vmem:[#allocation2 + $0xe4] sm:$0xff] %vm704, %v692
      %741 = vst.msk [vmem:[#allocation2 + $0xec] sm:$0xff] %vm704, %v693
      %742 = vst.msk [vmem:[#allocation2 + $0xf4] sm:$0xff] %vm704, %v694
      %743 = vst.msk [vmem:[#allocation2 + $0xfc] sm:$0xff] %vm704, %v695
      %744 = vst.msk [vmem:[#allocation2 + $0x104] sm:$0xff] %vm704, %v696
      %745 = vst.msk [vmem:[#allocation2 + $0x10c] sm:$0xff] %vm704, %v697
      %746 = vst.msk [vmem:[#allocation2 + $0x114] sm:$0xff] %vm704, %v698
      %747 = vst.msk [vmem:[#allocation2 + $0x11c] sm:$0xff] %vm704, %v699
      %748 = vst.msk [vmem:[#allocation2 + $0x124] sm:$0xff] %vm704, %v700
      %749 = vst.msk [vmem:[#allocation2 + $0x12c] sm:$0xff] %vm704, %v701
      %750 = vst.msk [vmem:[#allocation2 + $0x134] sm:$0xff] %vm704, %v702
      %751 = vst.msk [vmem:[#allocation2 + $0x13c] sm:$0xff] %vm704, %v703
      %v752 = vld [vmem:[#allocation2 + $0x11] sm:$0xff]
      %v753 = vld [vmem:[#allocation2 + $0x19] sm:$0xff]
      %v754 = vld [vmem:[#allocation2 + $0x21] sm:$0xff]
      %v755 = vld [vmem:[#allocation2 + $0x29] sm:$0xff]
      %v756 = vld [vmem:[#allocation2 + $0x31] sm:$0xff]
      %v757 = vld [vmem:[#allocation2 + $0x39] sm:$0xff]
      %v758 = vld [vmem:[#allocation2 + $0x41] sm:$0xff]
      %v759 = vld [vmem:[#allocation2 + $0x49] sm:$0xff]
      %v760 = vld [vmem:[#allocation2 + $0x51] sm:$0xff]
      %v761 = vld [vmem:[#allocation2 + $0x59] sm:$0xff]
      %v762 = vld [vmem:[#allocation2 + $0x61] sm:$0xff]
      %v763 = vld [vmem:[#allocation2 + $0x69] sm:$0xff]
      %v764 = vld [vmem:[#allocation2 + $0x71] sm:$0xff]
      %v765 = vld [vmem:[#allocation2 + $0x79] sm:$0xff]
      %v766 = vld [vmem:[#allocation2 + $0x81] sm:$0xff]
      %v767 = vld [vmem:[#allocation2 + $0x89] sm:$0xff]
      %v768 = vld [vmem:[#allocation2 + $0x91] sm:$0xff]
      %v769 = vld [vmem:[#allocation2 + $0x99] sm:$0xff]
      %v770 = vld [vmem:[#allocation2 + $0xa1] sm:$0xff]
      %v771 = vld [vmem:[#allocation2 + $0xa9] sm:$0xff]
      %v772 = vld [vmem:[#allocation2 + $0xb1] sm:$0xff]
      %v773 = vld [vmem:[#allocation2 + $0xb9] sm:$0xff]
      %v774 = vld [vmem:[#allocation2 + $0xc1] sm:$0xff]
      %v775 = vld [vmem:[#allocation2 + $0xc9] sm:$0xff]
      %v776 = vld [vmem:[#allocation2 + $0xd1] sm:$0xff]
      %v777 = vld [vmem:[#allocation2 + $0xd9] sm:$0xff]
      %v778 = vld [vmem:[#allocation2 + $0xe1] sm:$0xff]
      %v779 = vld [vmem:[#allocation2 + $0xe9] sm:$0xff]
      %v780 = vld [vmem:[#allocation2 + $0xf1] sm:$0xff]
      %v781 = vld [vmem:[#allocation2 + $0xf9] sm:$0xff]
      %v782 = vld [vmem:[#allocation2 + $0x101] sm:$0xff]
      %v783 = vld [vmem:[#allocation2 + $0x109] sm:$0xff]
      %v784 = vld [vmem:[#allocation2 + $0x111] sm:$0xff]
      %v785 = vld [vmem:[#allocation2 + $0x119] sm:$0xff]
      %v786 = vld [vmem:[#allocation2 + $0x121] sm:$0xff]
      %v787 = vld [vmem:[#allocation2 + $0x129] sm:$0xff]
      %v788 = vpack.c.bf16 %v753, %v752
      %v789 = vpack.c.bf16 %v755, %v754
      %v790 = vpack.c.bf16 %v757, %v756
      %v791 = vpack.c.bf16 %v759, %v758
      %v792 = vpack.c.bf16 %v761, %v760
      %v793 = vpack.c.bf16 %v763, %v762
      %v794 = vpack.c.bf16 %v765, %v764
      %v795 = vpack.c.bf16 %v767, %v766
      %v796 = vpack.c.bf16 %v769, %v768
      %v797 = vpack.c.bf16 %v771, %v770
      %v798 = vpack.c.bf16 %v773, %v772
      %v799 = vpack.c.bf16 %v775, %v774
      %v800 = vpack.c.bf16 %v777, %v776
      %v801 = vpack.c.bf16 %v779, %v778
      %v802 = vpack.c.bf16 %v781, %v780
      %v803 = vpack.c.bf16 %v783, %v782
      %v804 = vpack.c.bf16 %v785, %v784
      %v805 = vpack.c.bf16 %v787, %v786
      %v806 = vld [vmem:[%s1] sm:$0xf]
      %v807 = vld [vmem:[#allocation2 + $0x12] sm:$0xff]
      %v808 = vld [vmem:[#allocation2 + $0x1a] sm:$0xff]
      %v809 = vld [vmem:[#allocation2 + $0x22] sm:$0xff]
      %v810 = vld [vmem:[#allocation2 + $0x2a] sm:$0xff]
      %v811 = vld [vmem:[#allocation2 + $0x32] sm:$0xff]
      %v812 = vld [vmem:[#allocation2 + $0x3a] sm:$0xff]
      %v813 = vld [vmem:[#allocation2 + $0x42] sm:$0xff]
      %v814 = vld [vmem:[#allocation2 + $0x4a] sm:$0xff]
      %v815 = vld [vmem:[#allocation2 + $0x52] sm:$0xff]
      %v816 = vld [vmem:[#allocation2 + $0x5a] sm:$0xff]
      %v817 = vld [vmem:[#allocation2 + $0x62] sm:$0xff]
      %v818 = vld [vmem:[#allocation2 + $0x6a] sm:$0xff]
      %v819 = vld [vmem:[#allocation2 + $0x72] sm:$0xff]
      %v820 = vld [vmem:[#allocation2 + $0x7a] sm:$0xff]
      %v821 = vld [vmem:[#allocation2 + $0x82] sm:$0xff]
      %v822 = vld [vmem:[#allocation2 + $0x8a] sm:$0xff]
      %v823 = vld [vmem:[#allocation2 + $0x92] sm:$0xff]
      %v824 = vld [vmem:[#allocation2 + $0x9a] sm:$0xff]
      %v825 = vld [vmem:[#allocation2 + $0xa2] sm:$0xff]
      %v826 = vld [vmem:[#allocation2 + $0xaa] sm:$0xff]
      %v827 = vld [vmem:[#allocation2 + $0xb2] sm:$0xff]
      %v828 = vld [vmem:[#allocation2 + $0xba] sm:$0xff]
      %v829 = vld [vmem:[#allocation2 + $0xc2] sm:$0xff]
      %v830 = vld [vmem:[#allocation2 + $0xca] sm:$0xff]
      %v831 = vld [vmem:[#allocation2 + $0xd2] sm:$0xff]
      %v832 = vld [vmem:[#allocation2 + $0xda] sm:$0xff]
      %v833 = vld [vmem:[#allocation2 + $0xe2] sm:$0xff]
      %v834 = vld [vmem:[#allocation2 + $0xea] sm:$0xff]
      %v835 = vld [vmem:[#allocation2 + $0xf2] sm:$0xff]
      %v836 = vld [vmem:[#allocation2 + $0xfa] sm:$0xff]
      %v837 = vld [vmem:[#allocation2 + $0x102] sm:$0xff]
      %v838 = vld [vmem:[#allocation2 + $0x10a] sm:$0xff]
      %v839 = vld [vmem:[#allocation2 + $0x112] sm:$0xff]
      %v840 = vld [vmem:[#allocation2 + $0x11a] sm:$0xff]
      %v841 = vld [vmem:[#allocation2 + $0x122] sm:$0xff]
      %v842 = vld [vmem:[#allocation2 + $0x12a] sm:$0xff]
      %v843 = vpack.c.bf16 %v808, %v807
      %v844 = vpack.c.bf16 %v810, %v809
      %v845 = vpack.c.bf16 %v812, %v811
      %v846 = vpack.c.bf16 %v814, %v813
      %v847 = vpack.c.bf16 %v816, %v815
      %v848 = vpack.c.bf16 %v818, %v817
      %v849 = vpack.c.bf16 %v820, %v819
      %v850 = vpack.c.bf16 %v822, %v821
      %v851 = vpack.c.bf16 %v824, %v823
      %v852 = vpack.c.bf16 %v826, %v825
      %v853 = vpack.c.bf16 %v828, %v827
      %v854 = vpack.c.bf16 %v830, %v829
      %v855 = vpack.c.bf16 %v832, %v831
      %v856 = vpack.c.bf16 %v834, %v833
      %v857 = vpack.c.bf16 %v836, %v835
      %v858 = vpack.c.bf16 %v838, %v837
      %v859 = vpack.c.bf16 %v840, %v839
      %v860 = vpack.c.bf16 %v842, %v841
      %s861 = scalar_lea.vmem %s1, 4
      %v862 = vld [vmem:[%s861] sm:$0xf]
      %v864 = vsel %vm704, %v843, 0
      %v867 = vsel %vm704, %v844, 0
      %v870 = vsel %vm704, %v845, 0
      %v873 = vsel %vm704, %v846, 0
      %v876 = vsel %vm704, %v847, 0
      %v879 = vsel %vm704, %v848, 0
      %v882 = vsel %vm704, %v849, 0
      %v885 = vsel %vm704, %v850, 0
      %v888 = vsel %vm704, %v851, 0
      %v891 = vsel %vm704, %v852, 0
      %v894 = vsel %vm704, %v853, 0
      %v897 = vsel %vm704, %v854, 0
      %v900 = vsel %vm704, %v855, 0
      %v903 = vsel %vm704, %v856, 0
      %v906 = vsel %vm704, %v857, 0
      %v909 = vsel %vm704, %v858, 0
      %v912 = vsel %vm704, %v859, 0
      %v915 = vsel %vm704, %v860, 0
      %vm917 = vcmask 1043456
      %v919 = vsel %vm917, %v862, 0
      %921 = vmatpush.bf16.msra.mxu0 0
      %922 = vmatpush.bf16.msra.mxu0 0
      %923 = vmatpush.bf16.msra.mxu0 0
      %924 = vmatpush.bf16.msra.mxu0 0
      %925 = vmatpush.bf16.msra.mxu0 0
      %926 = vmatpush.bf16.msra.mxu0 0
      %927 = vmatpush.bf16.msra.mxu0 0
      %928 = vmatpush.bf16.msra.mxu0 %v919
      %929 = vmatmul.bf16.gmra.mxu0 %v864
      %v930 = vpop.f32.mrf.mxu0
      %v931 = vadd.f32 0.0, %v930
      %v932 = vpop.f32.mrf.mxu0
      %v933 = vadd.f32 0.0, %v932
      %934 = vmatmul.bf16.gmra.mxu0 %v867
      %v935 = vpop.f32.mrf.mxu0
      %v936 = vadd.f32 0.0, %v935
      %v937 = vpop.f32.mrf.mxu0
      %v938 = vadd.f32 0.0, %v937
      %939 = vmatmul.bf16.gmra.mxu0 %v870
      %v940 = vpop.f32.mrf.mxu0
      %v941 = vadd.f32 0.0, %v940
      %v942 = vpop.f32.mrf.mxu0
      %v943 = vadd.f32 0.0, %v942
      %944 = vmatmul.bf16.gmra.mxu0 %v873
      %v945 = vpop.f32.mrf.mxu0
      %v946 = vadd.f32 0.0, %v945
      %v947 = vpop.f32.mrf.mxu0
      %v948 = vadd.f32 0.0, %v947
      %949 = vmatmul.bf16.gmra.mxu0 %v876
      %v950 = vpop.f32.mrf.mxu0
      %v951 = vadd.f32 0.0, %v950
      %v952 = vpop.f32.mrf.mxu0
      %v953 = vadd.f32 0.0, %v952
      %954 = vmatmul.bf16.gmra.mxu0 %v879
      %v955 = vpop.f32.mrf.mxu0
      %v956 = vadd.f32 0.0, %v955
      %v957 = vpop.f32.mrf.mxu0
      %v958 = vadd.f32 0.0, %v957
      %959 = vmatmul.bf16.gmra.mxu0 %v882
      %v960 = vpop.f32.mrf.mxu0
      %v961 = vadd.f32 0.0, %v960
      %v962 = vpop.f32.mrf.mxu0
      %v963 = vadd.f32 0.0, %v962
      %964 = vmatmul.bf16.gmra.mxu0 %v885
      %v965 = vpop.f32.mrf.mxu0
      %v966 = vadd.f32 0.0, %v965
      %v967 = vpop.f32.mrf.mxu0
      %v968 = vadd.f32 0.0, %v967
      %969 = vmatmul.bf16.gmra.mxu0 %v888
      %v970 = vpop.f32.mrf.mxu0
      %v971 = vadd.f32 0.0, %v970
      %v972 = vpop.f32.mrf.mxu0
      %v973 = vadd.f32 0.0, %v972
      %974 = vmatmul.bf16.gmra.mxu0 %v891
      %v975 = vpop.f32.mrf.mxu0
      %v976 = vadd.f32 0.0, %v975
      %v977 = vpop.f32.mrf.mxu0
      %v978 = vadd.f32 0.0, %v977
      %979 = vmatmul.bf16.gmra.mxu0 %v894
      %v980 = vpop.f32.mrf.mxu0
      %v981 = vadd.f32 0.0, %v980
      %v982 = vpop.f32.mrf.mxu0
      %v983 = vadd.f32 0.0, %v982
      %984 = vmatmul.bf16.gmra.mxu0 %v897
      %v985 = vpop.f32.mrf.mxu0
      %v986 = vadd.f32 0.0, %v985
      %v987 = vpop.f32.mrf.mxu0
      %v988 = vadd.f32 0.0, %v987
      %989 = vmatmul.bf16.gmra.mxu0 %v900
      %v990 = vpop.f32.mrf.mxu0
      %v991 = vadd.f32 0.0, %v990
      %v992 = vpop.f32.mrf.mxu0
      %v993 = vadd.f32 0.0, %v992
      %994 = vmatmul.bf16.gmra.mxu0 %v903
      %v995 = vpop.f32.mrf.mxu0
      %v996 = vadd.f32 0.0, %v995
      %v997 = vpop.f32.mrf.mxu0
      %v998 = vadd.f32 0.0, %v997
      %999 = vmatmul.bf16.gmra.mxu0 %v906
      %v1000 = vpop.f32.mrf.mxu0
      %v1001 = vadd.f32 0.0, %v1000
      %v1002 = vpop.f32.mrf.mxu0
      %v1003 = vadd.f32 0.0, %v1002
      %1004 = vmatmul.bf16.gmra.mxu0 %v909
      %v1005 = vpop.f32.mrf.mxu0
      %v1006 = vadd.f32 0.0, %v1005
      %v1007 = vpop.f32.mrf.mxu0
      %v1008 = vadd.f32 0.0, %v1007
      %1009 = vmatmul.bf16.gmra.mxu0 %v912
      %v1010 = vpop.f32.mrf.mxu0
      %v1011 = vadd.f32 0.0, %v1010
      %v1012 = vpop.f32.mrf.mxu0
      %v1013 = vadd.f32 0.0, %v1012
      %1014 = vmatmul.bf16.gmra.mxu0 %v915
      %v1015 = vpop.f32.mrf.mxu0
      %v1016 = vadd.f32 0.0, %v1015
      %v1017 = vpop.f32.mrf.mxu0
      %v1018 = vadd.f32 0.0, %v1017
      %1019 = vdwg.mxu0
      %v1021 = vsel %vm704, %v788, 0
      %v1024 = vsel %vm704, %v789, 0
      %v1027 = vsel %vm704, %v790, 0
      %v1030 = vsel %vm704, %v791, 0
      %v1033 = vsel %vm704, %v792, 0
      %v1036 = vsel %vm704, %v793, 0
      %v1039 = vsel %vm704, %v794, 0
      %v1042 = vsel %vm704, %v795, 0
      %v1045 = vsel %vm704, %v796, 0
      %v1048 = vsel %vm704, %v797, 0
      %v1051 = vsel %vm704, %v798, 0
      %v1054 = vsel %vm704, %v799, 0
      %v1057 = vsel %vm704, %v800, 0
      %v1060 = vsel %vm704, %v801, 0
      %v1063 = vsel %vm704, %v802, 0
      %v1066 = vsel %vm704, %v803, 0
      %v1069 = vsel %vm704, %v804, 0
      %v1072 = vsel %vm704, %v805, 0
      %v1075 = vsel %vm917, %v806, 0
      %1077 = vmatpush.bf16.msra.mxu0 0
      %1078 = vmatpush.bf16.msra.mxu0 0
      %1079 = vmatpush.bf16.msra.mxu0 0
      %1080 = vmatpush.bf16.msra.mxu0 0
      %1081 = vmatpush.bf16.msra.mxu0 0
      %1082 = vmatpush.bf16.msra.mxu0 0
      %1083 = vmatpush.bf16.msra.mxu0 0
      %1084 = vmatpush.bf16.msra.mxu0 %v1075
      %1085 = vmatmul.bf16.gmra.mxu0 %v1021
      %v1086 = vpop.f32.mrf.mxu0
      %v1087 = vadd.f32 %v931, %v1086
      %v1088 = vpop.f32.mrf.mxu0
      %v1089 = vadd.f32 %v933, %v1088
      %1090 = vmatmul.bf16.gmra.mxu0 %v1024
      %v1091 = vpop.f32.mrf.mxu0
      %v1092 = vadd.f32 %v936, %v1091
      %v1093 = vpop.f32.mrf.mxu0
      %v1094 = vadd.f32 %v938, %v1093
      %1095 = vmatmul.bf16.gmra.mxu0 %v1027
      %v1096 = vpop.f32.mrf.mxu0
      %v1097 = vadd.f32 %v941, %v1096
      %v1098 = vpop.f32.mrf.mxu0
      %v1099 = vadd.f32 %v943, %v1098
      %1100 = vmatmul.bf16.gmra.mxu0 %v1030
      %v1101 = vpop.f32.mrf.mxu0
      %v1102 = vadd.f32 %v946, %v1101
      %v1103 = vpop.f32.mrf.mxu0
      %v1104 = vadd.f32 %v948, %v1103
      %1105 = vmatmul.bf16.gmra.mxu0 %v1033
      %v1106 = vpop.f32.mrf.mxu0
      %v1107 = vadd.f32 %v951, %v1106
      %v1108 = vpop.f32.mrf.mxu0
      %v1109 = vadd.f32 %v953, %v1108
      %1110 = vmatmul.bf16.gmra.mxu0 %v1036
      %v1111 = vpop.f32.mrf.mxu0
      %v1112 = vadd.f32 %v956, %v1111
      %v1113 = vpop.f32.mrf.mxu0
      %v1114 = vadd.f32 %v958, %v1113
      %1115 = vmatmul.bf16.gmra.mxu0 %v1039
      %v1116 = vpop.f32.mrf.mxu0
      %v1117 = vadd.f32 %v961, %v1116
      %v1118 = vpop.f32.mrf.mxu0
      %v1119 = vadd.f32 %v963, %v1118
      %1120 = vmatmul.bf16.gmra.mxu0 %v1042
      %v1121 = vpop.f32.mrf.mxu0
      %v1122 = vadd.f32 %v966, %v1121
      %v1123 = vpop.f32.mrf.mxu0
      %v1124 = vadd.f32 %v968, %v1123
      %1125 = vmatmul.bf16.gmra.mxu0 %v1045
      %v1126 = vpop.f32.mrf.mxu0
      %v1127 = vadd.f32 %v971, %v1126
      %v1128 = vpop.f32.mrf.mxu0
      %v1129 = vadd.f32 %v973, %v1128
      %1130 = vmatmul.bf16.gmra.mxu0 %v1048
      %v1131 = vpop.f32.mrf.mxu0
      %v1132 = vadd.f32 %v976, %v1131
      %v1133 = vpop.f32.mrf.mxu0
      %v1134 = vadd.f32 %v978, %v1133
      %1135 = vmatmul.bf16.gmra.mxu0 %v1051
      %v1136 = vpop.f32.mrf.mxu0
      %v1137 = vadd.f32 %v981, %v1136
      %v1138 = vpop.f32.mrf.mxu0
      %v1139 = vadd.f32 %v983, %v1138
      %1140 = vmatmul.bf16.gmra.mxu0 %v1054
      %v1141 = vpop.f32.mrf.mxu0
      %v1142 = vadd.f32 %v986, %v1141
      %v1143 = vpop.f32.mrf.mxu0
      %v1144 = vadd.f32 %v988, %v1143
      %1145 = vmatmul.bf16.gmra.mxu0 %v1057
      %v1146 = vpop.f32.mrf.mxu0
      %v1147 = vadd.f32 %v991, %v1146
      %v1148 = vpop.f32.mrf.mxu0
      %v1149 = vadd.f32 %v993, %v1148
      %1150 = vmatmul.bf16.gmra.mxu0 %v1060
      %v1151 = vpop.f32.mrf.mxu0
      %v1152 = vadd.f32 %v996, %v1151
      %v1153 = vpop.f32.mrf.mxu0
      %v1154 = vadd.f32 %v998, %v1153
      %1155 = vmatmul.bf16.gmra.mxu0 %v1063
      %v1156 = vpop.f32.mrf.mxu0
      %v1157 = vadd.f32 %v1001, %v1156
      %v1158 = vpop.f32.mrf.mxu0
      %v1159 = vadd.f32 %v1003, %v1158
      %1160 = vmatmul.bf16.gmra.mxu0 %v1066
      %v1161 = vpop.f32.mrf.mxu0
      %v1162 = vadd.f32 %v1006, %v1161
      %v1163 = vpop.f32.mrf.mxu0
      %v1164 = vadd.f32 %v1008, %v1163
      %1165 = vmatmul.bf16.gmra.mxu0 %v1069
      %v1166 = vpop.f32.mrf.mxu0
      %v1167 = vadd.f32 %v1011, %v1166
      %v1168 = vpop.f32.mrf.mxu0
      %v1169 = vadd.f32 %v1013, %v1168
      %1170 = vmatmul.bf16.gmra.mxu0 %v1072
      %v1171 = vpop.f32.mrf.mxu0
      %v1172 = vadd.f32 %v1016, %v1171
      %v1173 = vpop.f32.mrf.mxu0
      %v1174 = vadd.f32 %v1018, %v1173
      %1175 = vdwg.mxu0
      %v1176 = vld [vmem:[#allocation2 + $0x13] sm:$0xff]
      %v1177 = vld [vmem:[#allocation2 + $0x1b] sm:$0xff]
      %v1178 = vld [vmem:[#allocation2 + $0x23] sm:$0xff]
      %v1179 = vld [vmem:[#allocation2 + $0x2b] sm:$0xff]
      %v1180 = vld [vmem:[#allocation2 + $0x33] sm:$0xff]
      %v1181 = vld [vmem:[#allocation2 + $0x3b] sm:$0xff]
      %v1182 = vld [vmem:[#allocation2 + $0x43] sm:$0xff]
      %v1183 = vld [vmem:[#allocation2 + $0x4b] sm:$0xff]
      %v1184 = vld [vmem:[#allocation2 + $0x53] sm:$0xff]
      %v1185 = vld [vmem:[#allocation2 + $0x5b] sm:$0xff]
      %v1186 = vld [vmem:[#allocation2 + $0x63] sm:$0xff]
      %v1187 = vld [vmem:[#allocation2 + $0x6b] sm:$0xff]
      %v1188 = vld [vmem:[#allocation2 + $0x73] sm:$0xff]
      %v1189 = vld [vmem:[#allocation2 + $0x7b] sm:$0xff]
      %v1190 = vld [vmem:[#allocation2 + $0x83] sm:$0xff]
      %v1191 = vld [vmem:[#allocation2 + $0x8b] sm:$0xff]
      %v1192 = vld [vmem:[#allocation2 + $0x93] sm:$0xff]
      %v1193 = vld [vmem:[#allocation2 + $0x9b] sm:$0xff]
      %v1194 = vld [vmem:[#allocation2 + $0xa3] sm:$0xff]
      %v1195 = vld [vmem:[#allocation2 + $0xab] sm:$0xff]
      %v1196 = vld [vmem:[#allocation2 + $0xb3] sm:$0xff]
      %v1197 = vld [vmem:[#allocation2 + $0xbb] sm:$0xff]
      %v1198 = vld [vmem:[#allocation2 + $0xc3] sm:$0xff]
      %v1199 = vld [vmem:[#allocation2 + $0xcb] sm:$0xff]
      %v1200 = vld [vmem:[#allocation2 + $0xd3] sm:$0xff]
      %v1201 = vld [vmem:[#allocation2 + $0xdb] sm:$0xff]
      %v1202 = vld [vmem:[#allocation2 + $0xe3] sm:$0xff]
      %v1203 = vld [vmem:[#allocation2 + $0xeb] sm:$0xff]
      %v1204 = vld [vmem:[#allocation2 + $0xf3] sm:$0xff]
      %v1205 = vld [vmem:[#allocation2 + $0xfb] sm:$0xff]
      %v1206 = vld [vmem:[#allocation2 + $0x103] sm:$0xff]
      %v1207 = vld [vmem:[#allocation2 + $0x10b] sm:$0xff]
      %v1208 = vld [vmem:[#allocation2 + $0x113] sm:$0xff]
      %v1209 = vld [vmem:[#allocation2 + $0x11b] sm:$0xff]
      %v1210 = vld [vmem:[#allocation2 + $0x123] sm:$0xff]
      %v1211 = vld [vmem:[#allocation2 + $0x12b] sm:$0xff]
      %v1212 = vpack.c.bf16 %v1177, %v1176
      %v1213 = vpack.c.bf16 %v1179, %v1178
      %v1214 = vpack.c.bf16 %v1181, %v1180
      %v1215 = vpack.c.bf16 %v1183, %v1182
      %v1216 = vpack.c.bf16 %v1185, %v1184
      %v1217 = vpack.c.bf16 %v1187, %v1186
      %v1218 = vpack.c.bf16 %v1189, %v1188
      %v1219 = vpack.c.bf16 %v1191, %v1190
      %v1220 = vpack.c.bf16 %v1193, %v1192
      %v1221 = vpack.c.bf16 %v1195, %v1194
      %v1222 = vpack.c.bf16 %v1197, %v1196
      %v1223 = vpack.c.bf16 %v1199, %v1198
      %v1224 = vpack.c.bf16 %v1201, %v1200
      %v1225 = vpack.c.bf16 %v1203, %v1202
      %v1226 = vpack.c.bf16 %v1205, %v1204
      %v1227 = vpack.c.bf16 %v1207, %v1206
      %v1228 = vpack.c.bf16 %v1209, %v1208
      %v1229 = vpack.c.bf16 %v1211, %v1210
      %s1230 = scalar_lea.vmem %s1, 8
      %v1231 = vld [vmem:[%s1230] sm:$0xf]
      %v1233 = vsel %vm704, %v1212, 0
      %v1236 = vsel %vm704, %v1213, 0
      %v1239 = vsel %vm704, %v1214, 0
      %v1242 = vsel %vm704, %v1215, 0
      %v1245 = vsel %vm704, %v1216, 0
      %v1248 = vsel %vm704, %v1217, 0
      %v1251 = vsel %vm704, %v1218, 0
      %v1254 = vsel %vm704, %v1219, 0
      %v1257 = vsel %vm704, %v1220, 0
      %v1260 = vsel %vm704, %v1221, 0
      %v1263 = vsel %vm704, %v1222, 0
      %v1266 = vsel %vm704, %v1223, 0
      %v1269 = vsel %vm704, %v1224, 0
      %v1272 = vsel %vm704, %v1225, 0
      %v1275 = vsel %vm704, %v1226, 0
      %v1278 = vsel %vm704, %v1227, 0
      %v1281 = vsel %vm704, %v1228, 0
      %v1284 = vsel %vm704, %v1229, 0
      %v1287 = vsel %vm917, %v1231, 0
      %1289 = vmatpush.bf16.msra.mxu0 0
      %1290 = vmatpush.bf16.msra.mxu0 0
      %1291 = vmatpush.bf16.msra.mxu0 0
      %1292 = vmatpush.bf16.msra.mxu0 0
      %1293 = vmatpush.bf16.msra.mxu0 0
      %1294 = vmatpush.bf16.msra.mxu0 0
      %1295 = vmatpush.bf16.msra.mxu0 0
      %1296 = vmatpush.bf16.msra.mxu0 %v1287
      %1297 = vmatmul.bf16.gmra.mxu0 %v1233
      %v1298 = vpop.f32.mrf.mxu0
      %v1299 = vadd.f32 0.0, %v1298
      %v1300 = vpop.f32.mrf.mxu0
      %v1301 = vadd.f32 0.0, %v1300
      %1302 = vmatmul.bf16.gmra.mxu0 %v1236
      %v1303 = vpop.f32.mrf.mxu0
      %v1304 = vadd.f32 0.0, %v1303
      %v1305 = vpop.f32.mrf.mxu0
      %v1306 = vadd.f32 0.0, %v1305
      %1307 = vmatmul.bf16.gmra.mxu0 %v1239
      %v1308 = vpop.f32.mrf.mxu0
      %v1309 = vadd.f32 0.0, %v1308
      %v1310 = vpop.f32.mrf.mxu0
      %v1311 = vadd.f32 0.0, %v1310
      %1312 = vmatmul.bf16.gmra.mxu0 %v1242
      %v1313 = vpop.f32.mrf.mxu0
      %v1314 = vadd.f32 0.0, %v1313
      %v1315 = vpop.f32.mrf.mxu0
      %v1316 = vadd.f32 0.0, %v1315
      %1317 = vmatmul.bf16.gmra.mxu0 %v1245
      %v1318 = vpop.f32.mrf.mxu0
      %v1319 = vadd.f32 0.0, %v1318
      %v1320 = vpop.f32.mrf.mxu0
      %v1321 = vadd.f32 0.0, %v1320
      %1322 = vmatmul.bf16.gmra.mxu0 %v1248
      %v1323 = vpop.f32.mrf.mxu0
      %v1324 = vadd.f32 0.0, %v1323
      %v1325 = vpop.f32.mrf.mxu0
      %v1326 = vadd.f32 0.0, %v1325
      %1327 = vmatmul.bf16.gmra.mxu0 %v1251
      %v1328 = vpop.f32.mrf.mxu0
      %v1329 = vadd.f32 0.0, %v1328
      %v1330 = vpop.f32.mrf.mxu0
      %v1331 = vadd.f32 0.0, %v1330
      %1332 = vmatmul.bf16.gmra.mxu0 %v1254
      %v1333 = vpop.f32.mrf.mxu0
      %v1334 = vadd.f32 0.0, %v1333
      %v1335 = vpop.f32.mrf.mxu0
      %v1336 = vadd.f32 0.0, %v1335
      %1337 = vmatmul.bf16.gmra.mxu0 %v1257
      %v1338 = vpop.f32.mrf.mxu0
      %v1339 = vadd.f32 0.0, %v1338
      %v1340 = vpop.f32.mrf.mxu0
      %v1341 = vadd.f32 0.0, %v1340
      %1342 = vmatmul.bf16.gmra.mxu0 %v1260
      %v1343 = vpop.f32.mrf.mxu0
      %v1344 = vadd.f32 0.0, %v1343
      %v1345 = vpop.f32.mrf.mxu0
      %v1346 = vadd.f32 0.0, %v1345
      %1347 = vmatmul.bf16.gmra.mxu0 %v1263
      %v1348 = vpop.f32.mrf.mxu0
      %v1349 = vadd.f32 0.0, %v1348
      %v1350 = vpop.f32.mrf.mxu0
      %v1351 = vadd.f32 0.0, %v1350
      %1352 = vmatmul.bf16.gmra.mxu0 %v1266
      %v1353 = vpop.f32.mrf.mxu0
      %v1354 = vadd.f32 0.0, %v1353
      %v1355 = vpop.f32.mrf.mxu0
      %v1356 = vadd.f32 0.0, %v1355
      %1357 = vmatmul.bf16.gmra.mxu0 %v1269
      %v1358 = vpop.f32.mrf.mxu0
      %v1359 = vadd.f32 0.0, %v1358
      %v1360 = vpop.f32.mrf.mxu0
      %v1361 = vadd.f32 0.0, %v1360
      %1362 = vmatmul.bf16.gmra.mxu0 %v1272
      %v1363 = vpop.f32.mrf.mxu0
      %v1364 = vadd.f32 0.0, %v1363
      %v1365 = vpop.f32.mrf.mxu0
      %v1366 = vadd.f32 0.0, %v1365
      %1367 = vmatmul.bf16.gmra.mxu0 %v1275
      %v1368 = vpop.f32.mrf.mxu0
      %v1369 = vadd.f32 0.0, %v1368
      %v1370 = vpop.f32.mrf.mxu0
      %v1371 = vadd.f32 0.0, %v1370
      %1372 = vmatmul.bf16.gmra.mxu0 %v1278
      %v1373 = vpop.f32.mrf.mxu0
      %v1374 = vadd.f32 0.0, %v1373
      %v1375 = vpop.f32.mrf.mxu0
      %v1376 = vadd.f32 0.0, %v1375
      %1377 = vmatmul.bf16.gmra.mxu0 %v1281
      %v1378 = vpop.f32.mrf.mxu0
      %v1379 = vadd.f32 0.0, %v1378
      %v1380 = vpop.f32.mrf.mxu0
      %v1381 = vadd.f32 0.0, %v1380
      %1382 = vmatmul.bf16.gmra.mxu0 %v1284
      %v1383 = vpop.f32.mrf.mxu0
      %v1384 = vadd.f32 0.0, %v1383
      %v1385 = vpop.f32.mrf.mxu0
      %v1386 = vadd.f32 0.0, %v1385
      %1387 = vdwg.mxu0
      %v1388 = vadd.f32 %v1087, %v1299
      %v1389 = vadd.f32 %v1089, %v1301
      %v1390 = vadd.f32 %v1092, %v1304
      %v1391 = vadd.f32 %v1094, %v1306
      %v1392 = vadd.f32 %v1097, %v1309
      %v1393 = vadd.f32 %v1099, %v1311
      %v1394 = vadd.f32 %v1102, %v1314
      %v1395 = vadd.f32 %v1104, %v1316
      %v1396 = vadd.f32 %v1107, %v1319
      %v1397 = vadd.f32 %v1109, %v1321
      %v1398 = vadd.f32 %v1112, %v1324
      %v1399 = vadd.f32 %v1114, %v1326
      %v1400 = vadd.f32 %v1117, %v1329
      %v1401 = vadd.f32 %v1119, %v1331
      %v1402 = vadd.f32 %v1122, %v1334
      %v1403 = vadd.f32 %v1124, %v1336
      %v1404 = vadd.f32 %v1127, %v1339
      %v1405 = vadd.f32 %v1129, %v1341
      %v1406 = vadd.f32 %v1132, %v1344
      %v1407 = vadd.f32 %v1134, %v1346
      %v1408 = vadd.f32 %v1137, %v1349
      %v1409 = vadd.f32 %v1139, %v1351
      %v1410 = vadd.f32 %v1142, %v1354
      %v1411 = vadd.f32 %v1144, %v1356
      %v1412 = vadd.f32 %v1147, %v1359
      %v1413 = vadd.f32 %v1149, %v1361
      %v1414 = vadd.f32 %v1152, %v1364
      %v1415 = vadd.f32 %v1154, %v1366
      %v1416 = vadd.f32 %v1157, %v1369
      %v1417 = vadd.f32 %v1159, %v1371
      %v1418 = vadd.f32 %v1162, %v1374
      %v1419 = vadd.f32 %v1164, %v1376
      %v1420 = vadd.f32 %v1167, %v1379
      %v1421 = vadd.f32 %v1169, %v1381
      %v1422 = vadd.f32 %v1172, %v1384
      %v1423 = vadd.f32 %v1174, %v1386
      %v1424 = vld [vmem:[#allocation2 + $0x23] sm:$0xff]
      %v1425 = vld [vmem:[#allocation2 + $0x2b] sm:$0xff]
      %v1426 = vld [vmem:[#allocation2 + $0x33] sm:$0xff]
      %v1427 = vld [vmem:[#allocation2 + $0x3b] sm:$0xff]
      %v1428 = vld [vmem:[#allocation2 + $0x43] sm:$0xff]
      %v1429 = vld [vmem:[#allocation2 + $0x4b] sm:$0xff]
      %v1430 = vld [vmem:[#allocation2 + $0x53] sm:$0xff]
      %v1431 = vld [vmem:[#allocation2 + $0x5b] sm:$0xff]
      %v1432 = vld [vmem:[#allocation2 + $0x63] sm:$0xff]
      %v1433 = vld [vmem:[#allocation2 + $0x6b] sm:$0xff]
      %v1434 = vld [vmem:[#allocation2 + $0x73] sm:$0xff]
      %v1435 = vld [vmem:[#allocation2 + $0x7b] sm:$0xff]
      %v1436 = vld [vmem:[#allocation2 + $0x83] sm:$0xff]
      %v1437 = vld [vmem:[#allocation2 + $0x8b] sm:$0xff]
      %v1438 = vld [vmem:[#allocation2 + $0x93] sm:$0xff]
      %v1439 = vld [vmem:[#allocation2 + $0x9b] sm:$0xff]
      %v1440 = vld [vmem:[#allocation2 + $0xa3] sm:$0xff]
      %v1441 = vld [vmem:[#allocation2 + $0xab] sm:$0xff]
      %v1442 = vld [vmem:[#allocation2 + $0xb3] sm:$0xff]
      %v1443 = vld [vmem:[#allocation2 + $0xbb] sm:$0xff]
      %v1444 = vld [vmem:[#allocation2 + $0xc3] sm:$0xff]
      %v1445 = vld [vmem:[#allocation2 + $0xcb] sm:$0xff]
      %v1446 = vld [vmem:[#allocation2 + $0xd3] sm:$0xff]
      %v1447 = vld [vmem:[#allocation2 + $0xdb] sm:$0xff]
      %v1448 = vld [vmem:[#allocation2 + $0xe3] sm:$0xff]
      %v1449 = vld [vmem:[#allocation2 + $0xeb] sm:$0xff]
      %v1450 = vld [vmem:[#allocation2 + $0xf3] sm:$0xff]
      %v1451 = vld [vmem:[#allocation2 + $0xfb] sm:$0xff]
      %v1452 = vld [vmem:[#allocation2 + $0x103] sm:$0xff]
      %v1453 = vld [vmem:[#allocation2 + $0x10b] sm:$0xff]
      %v1454 = vld [vmem:[#allocation2 + $0x113] sm:$0xff]
      %v1455 = vld [vmem:[#allocation2 + $0x11b] sm:$0xff]
      %v1456 = vld [vmem:[#allocation2 + $0x123] sm:$0xff]
      %v1457 = vld [vmem:[#allocation2 + $0x12b] sm:$0xff]
      %v1458 = vld [vmem:[#allocation2 + $0x133] sm:$0xff]
      %v1459 = vld [vmem:[#allocation2 + $0x13b] sm:$0xff]
      %v1460 = vpack.c.bf16 %v1425, %v1424
      %v1461 = vpack.c.bf16 %v1427, %v1426
      %v1462 = vpack.c.bf16 %v1429, %v1428
      %v1463 = vpack.c.bf16 %v1431, %v1430
      %v1464 = vpack.c.bf16 %v1433, %v1432
      %v1465 = vpack.c.bf16 %v1435, %v1434
      %v1466 = vpack.c.bf16 %v1437, %v1436
      %v1467 = vpack.c.bf16 %v1439, %v1438
      %v1468 = vpack.c.bf16 %v1441, %v1440
      %v1469 = vpack.c.bf16 %v1443, %v1442
      %v1470 = vpack.c.bf16 %v1445, %v1444
      %v1471 = vpack.c.bf16 %v1447, %v1446
      %v1472 = vpack.c.bf16 %v1449, %v1448
      %v1473 = vpack.c.bf16 %v1451, %v1450
      %v1474 = vpack.c.bf16 %v1453, %v1452
      %v1475 = vpack.c.bf16 %v1455, %v1454
      %v1476 = vpack.c.bf16 %v1457, %v1456
      %v1477 = vpack.c.bf16 %v1459, %v1458
      %s1478 = scalar_lea.vmem %s1, 12
      %v1479 = vld [vmem:[%s1478] sm:$0xf]
      %v1481 = vsel %vm704, %v1460, 0
      %v1484 = vsel %vm704, %v1461, 0
      %v1487 = vsel %vm704, %v1462, 0
      %v1490 = vsel %vm704, %v1463, 0
      %v1493 = vsel %vm704, %v1464, 0
      %v1496 = vsel %vm704, %v1465, 0
      %v1499 = vsel %vm704, %v1466, 0
      %v1502 = vsel %vm704, %v1467, 0
      %v1505 = vsel %vm704, %v1468, 0
      %v1508 = vsel %vm704, %v1469, 0
      %v1511 = vsel %vm704, %v1470, 0
      %v1514 = vsel %vm704, %v1471, 0
      %v1517 = vsel %vm704, %v1472, 0
      %v1520 = vsel %vm704, %v1473, 0
      %v1523 = vsel %vm704, %v1474, 0
      %v1526 = vsel %vm704, %v1475, 0
      %v1529 = vsel %vm704, %v1476, 0
      %v1532 = vsel %vm704, %v1477, 0
      %v1535 = vsel %vm917, %v1479, 0
      %1537 = vmatpush.bf16.msra.mxu0 0
      %1538 = vmatpush.bf16.msra.mxu0 0
      %1539 = vmatpush.bf16.msra.mxu0 0
      %1540 = vmatpush.bf16.msra.mxu0 0
      %1541 = vmatpush.bf16.msra.mxu0 0
      %1542 = vmatpush.bf16.msra.mxu0 0
      %1543 = vmatpush.bf16.msra.mxu0 0
      %1544 = vmatpush.bf16.msra.mxu0 %v1535
      %1545 = vmatmul.bf16.gmra.mxu0 %v1481
      %v1546 = vpop.f32.mrf.mxu0
      %v1547 = vadd.f32 0.0, %v1546
      %v1548 = vpop.f32.mrf.mxu0
      %v1549 = vadd.f32 0.0, %v1548
      %1550 = vmatmul.bf16.gmra.mxu0 %v1484
      %v1551 = vpop.f32.mrf.mxu0
      %v1552 = vadd.f32 0.0, %v1551
      %v1553 = vpop.f32.mrf.mxu0
      %v1554 = vadd.f32 0.0, %v1553
      %1555 = vmatmul.bf16.gmra.mxu0 %v1487
      %v1556 = vpop.f32.mrf.mxu0
      %v1557 = vadd.f32 0.0, %v1556
      %v1558 = vpop.f32.mrf.mxu0
      %v1559 = vadd.f32 0.0, %v1558
      %1560 = vmatmul.bf16.gmra.mxu0 %v1490
      %v1561 = vpop.f32.mrf.mxu0
      %v1562 = vadd.f32 0.0, %v1561
      %v1563 = vpop.f32.mrf.mxu0
      %v1564 = vadd.f32 0.0, %v1563
      %1565 = vmatmul.bf16.gmra.mxu0 %v1493
      %v1566 = vpop.f32.mrf.mxu0
      %v1567 = vadd.f32 0.0, %v1566
      %v1568 = vpop.f32.mrf.mxu0
      %v1569 = vadd.f32 0.0, %v1568
      %1570 = vmatmul.bf16.gmra.mxu0 %v1496
      %v1571 = vpop.f32.mrf.mxu0
      %v1572 = vadd.f32 0.0, %v1571
      %v1573 = vpop.f32.mrf.mxu0
      %v1574 = vadd.f32 0.0, %v1573
      %1575 = vmatmul.bf16.gmra.mxu0 %v1499
      %v1576 = vpop.f32.mrf.mxu0
      %v1577 = vadd.f32 0.0, %v1576
      %v1578 = vpop.f32.mrf.mxu0
      %v1579 = vadd.f32 0.0, %v1578
      %1580 = vmatmul.bf16.gmra.mxu0 %v1502
      %v1581 = vpop.f32.mrf.mxu0
      %v1582 = vadd.f32 0.0, %v1581
      %v1583 = vpop.f32.mrf.mxu0
      %v1584 = vadd.f32 0.0, %v1583
      %1585 = vmatmul.bf16.gmra.mxu0 %v1505
      %v1586 = vpop.f32.mrf.mxu0
      %v1587 = vadd.f32 0.0, %v1586
      %v1588 = vpop.f32.mrf.mxu0
      %v1589 = vadd.f32 0.0, %v1588
      %1590 = vmatmul.bf16.gmra.mxu0 %v1508
      %v1591 = vpop.f32.mrf.mxu0
      %v1592 = vadd.f32 0.0, %v1591
      %v1593 = vpop.f32.mrf.mxu0
      %v1594 = vadd.f32 0.0, %v1593
      %1595 = vmatmul.bf16.gmra.mxu0 %v1511
      %v1596 = vpop.f32.mrf.mxu0
      %v1597 = vadd.f32 0.0, %v1596
      %v1598 = vpop.f32.mrf.mxu0
      %v1599 = vadd.f32 0.0, %v1598
      %1600 = vmatmul.bf16.gmra.mxu0 %v1514
      %v1601 = vpop.f32.mrf.mxu0
      %v1602 = vadd.f32 0.0, %v1601
      %v1603 = vpop.f32.mrf.mxu0
      %v1604 = vadd.f32 0.0, %v1603
      %1605 = vmatmul.bf16.gmra.mxu0 %v1517
      %v1606 = vpop.f32.mrf.mxu0
      %v1607 = vadd.f32 0.0, %v1606
      %v1608 = vpop.f32.mrf.mxu0
      %v1609 = vadd.f32 0.0, %v1608
      %1610 = vmatmul.bf16.gmra.mxu0 %v1520
      %v1611 = vpop.f32.mrf.mxu0
      %v1612 = vadd.f32 0.0, %v1611
      %v1613 = vpop.f32.mrf.mxu0
      %v1614 = vadd.f32 0.0, %v1613
      %1615 = vmatmul.bf16.gmra.mxu0 %v1523
      %v1616 = vpop.f32.mrf.mxu0
      %v1617 = vadd.f32 0.0, %v1616
      %v1618 = vpop.f32.mrf.mxu0
      %v1619 = vadd.f32 0.0, %v1618
      %1620 = vmatmul.bf16.gmra.mxu0 %v1526
      %v1621 = vpop.f32.mrf.mxu0
      %v1622 = vadd.f32 0.0, %v1621
      %v1623 = vpop.f32.mrf.mxu0
      %v1624 = vadd.f32 0.0, %v1623
      %1625 = vmatmul.bf16.gmra.mxu0 %v1529
      %v1626 = vpop.f32.mrf.mxu0
      %v1627 = vadd.f32 0.0, %v1626
      %v1628 = vpop.f32.mrf.mxu0
      %v1629 = vadd.f32 0.0, %v1628
      %1630 = vmatmul.bf16.gmra.mxu0 %v1532
      %v1631 = vpop.f32.mrf.mxu0
      %v1632 = vadd.f32 0.0, %v1631
      %v1633 = vpop.f32.mrf.mxu0
      %v1634 = vadd.f32 0.0, %v1633
      %1635 = vdwg.mxu0
      %v1636 = vadd.f32 %v1388, %v1547
      %v1637 = vadd.f32 %v1389, %v1549
      %v1638 = vadd.f32 %v1390, %v1552
      %v1639 = vadd.f32 %v1391, %v1554
      %v1640 = vadd.f32 %v1392, %v1557
      %v1641 = vadd.f32 %v1393, %v1559
      %v1642 = vadd.f32 %v1394, %v1562
      %v1643 = vadd.f32 %v1395, %v1564
      %v1644 = vadd.f32 %v1396, %v1567
      %v1645 = vadd.f32 %v1397, %v1569
      %v1646 = vadd.f32 %v1398, %v1572
      %v1647 = vadd.f32 %v1399, %v1574
      %v1648 = vadd.f32 %v1400, %v1577
      %v1649 = vadd.f32 %v1401, %v1579
      %v1650 = vadd.f32 %v1402, %v1582
      %v1651 = vadd.f32 %v1403, %v1584
      %v1652 = vadd.f32 %v1404, %v1587
      %v1653 = vadd.f32 %v1405, %v1589
      %v1654 = vadd.f32 %v1406, %v1592
      %v1655 = vadd.f32 %v1407, %v1594
      %v1656 = vadd.f32 %v1408, %v1597
      %v1657 = vadd.f32 %v1409, %v1599
      %v1658 = vadd.f32 %v1410, %v1602
      %v1659 = vadd.f32 %v1411, %v1604
      %v1660 = vadd.f32 %v1412, %v1607
      %v1661 = vadd.f32 %v1413, %v1609
      %v1662 = vadd.f32 %v1414, %v1612
      %v1663 = vadd.f32 %v1415, %v1614
      %v1664 = vadd.f32 %v1416, %v1617
      %v1665 = vadd.f32 %v1417, %v1619
      %v1666 = vadd.f32 %v1418, %v1622
      %v1667 = vadd.f32 %v1419, %v1624
      %v1668 = vadd.f32 %v1420, %v1627
      %v1669 = vadd.f32 %v1421, %v1629
      %v1670 = vadd.f32 %v1422, %v1632
      %v1671 = vadd.f32 %v1423, %v1634
      %v1672 = vld [vmem:[#allocation2 + $0x24] sm:$0xff]
      %v1673 = vld [vmem:[#allocation2 + $0x2c] sm:$0xff]
      %v1674 = vld [vmem:[#allocation2 + $0x34] sm:$0xff]
      %v1675 = vld [vmem:[#allocation2 + $0x3c] sm:$0xff]
      %v1676 = vld [vmem:[#allocation2 + $0x44] sm:$0xff]
      %v1677 = vld [vmem:[#allocation2 + $0x4c] sm:$0xff]
      %v1678 = vld [vmem:[#allocation2 + $0x54] sm:$0xff]
      %v1679 = vld [vmem:[#allocation2 + $0x5c] sm:$0xff]
      %v1680 = vld [vmem:[#allocation2 + $0x64] sm:$0xff]
      %v1681 = vld [vmem:[#allocation2 + $0x6c] sm:$0xff]
      %v1682 = vld [vmem:[#allocation2 + $0x74] sm:$0xff]
      %v1683 = vld [vmem:[#allocation2 + $0x7c] sm:$0xff]
      %v1684 = vld [vmem:[#allocation2 + $0x84] sm:$0xff]
      %v1685 = vld [vmem:[#allocation2 + $0x8c] sm:$0xff]
      %v1686 = vld [vmem:[#allocation2 + $0x94] sm:$0xff]
      %v1687 = vld [vmem:[#allocation2 + $0x9c] sm:$0xff]
      %v1688 = vld [vmem:[#allocation2 + $0xa4] sm:$0xff]
      %v1689 = vld [vmem:[#allocation2 + $0xac] sm:$0xff]
      %v1690 = vld [vmem:[#allocation2 + $0xb4] sm:$0xff]
      %v1691 = vld [vmem:[#allocation2 + $0xbc] sm:$0xff]
      %v1692 = vld [vmem:[#allocation2 + $0xc4] sm:$0xff]
      %v1693 = vld [vmem:[#allocation2 + $0xcc] sm:$0xff]
      %v1694 = vld [vmem:[#allocation2 + $0xd4] sm:$0xff]
      %v1695 = vld [vmem:[#allocation2 + $0xdc] sm:$0xff]
      %v1696 = vld [vmem:[#allocation2 + $0xe4] sm:$0xff]
      %v1697 = vld [vmem:[#allocation2 + $0xec] sm:$0xff]
      %v1698 = vld [vmem:[#allocation2 + $0xf4] sm:$0xff]
      %v1699 = vld [vmem:[#allocation2 + $0xfc] sm:$0xff]
      %v1700 = vld [vmem:[#allocation2 + $0x104] sm:$0xff]
      %v1701 = vld [vmem:[#allocation2 + $0x10c] sm:$0xff]
      %v1702 = vld [vmem:[#allocation2 + $0x114] sm:$0xff]
      %v1703 = vld [vmem:[#allocation2 + $0x11c] sm:$0xff]
      %v1704 = vld [vmem:[#allocation2 + $0x124] sm:$0xff]
      %v1705 = vld [vmem:[#allocation2 + $0x12c] sm:$0xff]
      %v1706 = vld [vmem:[#allocation2 + $0x134] sm:$0xff]
      %v1707 = vld [vmem:[#allocation2 + $0x13c] sm:$0xff]
      %v1708 = vpack.c.bf16 %v1673, %v1672
      %v1709 = vpack.c.bf16 %v1675, %v1674
      %v1710 = vpack.c.bf16 %v1677, %v1676
      %v1711 = vpack.c.bf16 %v1679, %v1678
      %v1712 = vpack.c.bf16 %v1681, %v1680
      %v1713 = vpack.c.bf16 %v1683, %v1682
      %v1714 = vpack.c.bf16 %v1685, %v1684
      %v1715 = vpack.c.bf16 %v1687, %v1686
      %v1716 = vpack.c.bf16 %v1689, %v1688
      %v1717 = vpack.c.bf16 %v1691, %v1690
      %v1718 = vpack.c.bf16 %v1693, %v1692
      %v1719 = vpack.c.bf16 %v1695, %v1694
      %v1720 = vpack.c.bf16 %v1697, %v1696
      %v1721 = vpack.c.bf16 %v1699, %v1698
      %v1722 = vpack.c.bf16 %v1701, %v1700
      %v1723 = vpack.c.bf16 %v1703, %v1702
      %v1724 = vpack.c.bf16 %v1705, %v1704
      %v1725 = vpack.c.bf16 %v1707, %v1706
      %s1726 = scalar_lea.vmem %s1, 16
      %v1727 = vld [vmem:[%s1726] sm:$0xf]
      %v1729 = vsel %vm704, %v1708, 0
      %v1732 = vsel %vm704, %v1709, 0
      %v1735 = vsel %vm704, %v1710, 0
      %v1738 = vsel %vm704, %v1711, 0
      %v1741 = vsel %vm704, %v1712, 0
      %v1744 = vsel %vm704, %v1713, 0
      %v1747 = vsel %vm704, %v1714, 0
      %v1750 = vsel %vm704, %v1715, 0
      %v1753 = vsel %vm704, %v1716, 0
      %v1756 = vsel %vm704, %v1717, 0
      %v1759 = vsel %vm704, %v1718, 0
      %v1762 = vsel %vm704, %v1719, 0
      %v1765 = vsel %vm704, %v1720, 0
      %v1768 = vsel %vm704, %v1721, 0
      %v1771 = vsel %vm704, %v1722, 0
      %v1774 = vsel %vm704, %v1723, 0
      %v1777 = vsel %vm704, %v1724, 0
      %v1780 = vsel %vm704, %v1725, 0
      %v1783 = vsel %vm917, %v1727, 0
      %1785 = vmatpush.bf16.msra.mxu0 0
      %1786 = vmatpush.bf16.msra.mxu0 0
      %1787 = vmatpush.bf16.msra.mxu0 0
      %1788 = vmatpush.bf16.msra.mxu0 0
      %1789 = vmatpush.bf16.msra.mxu0 0
      %1790 = vmatpush.bf16.msra.mxu0 0
      %1791 = vmatpush.bf16.msra.mxu0 0
      %1792 = vmatpush.bf16.msra.mxu0 %v1783
      %1793 = vmatmul.bf16.gmra.mxu0 %v1729
      %v1794 = vpop.f32.mrf.mxu0
      %v1795 = vadd.f32 0.0, %v1794
      %v1796 = vpop.f32.mrf.mxu0
      %v1797 = vadd.f32 0.0, %v1796
      %1798 = vmatmul.bf16.gmra.mxu0 %v1732
      %v1799 = vpop.f32.mrf.mxu0
      %v1800 = vadd.f32 0.0, %v1799
      %v1801 = vpop.f32.mrf.mxu0
      %v1802 = vadd.f32 0.0, %v1801
      %1803 = vmatmul.bf16.gmra.mxu0 %v1735
      %v1804 = vpop.f32.mrf.mxu0
      %v1805 = vadd.f32 0.0, %v1804
      %v1806 = vpop.f32.mrf.mxu0
      %v1807 = vadd.f32 0.0, %v1806
      %1808 = vmatmul.bf16.gmra.mxu0 %v1738
      %v1809 = vpop.f32.mrf.mxu0
      %v1810 = vadd.f32 0.0, %v1809
      %v1811 = vpop.f32.mrf.mxu0
      %v1812 = vadd.f32 0.0, %v1811
      %1813 = vmatmul.bf16.gmra.mxu0 %v1741
      %v1814 = vpop.f32.mrf.mxu0
      %v1815 = vadd.f32 0.0, %v1814
      %v1816 = vpop.f32.mrf.mxu0
      %v1817 = vadd.f32 0.0, %v1816
      %1818 = vmatmul.bf16.gmra.mxu0 %v1744
      %v1819 = vpop.f32.mrf.mxu0
      %v1820 = vadd.f32 0.0, %v1819
      %v1821 = vpop.f32.mrf.mxu0
      %v1822 = vadd.f32 0.0, %v1821
      %1823 = vmatmul.bf16.gmra.mxu0 %v1747
      %v1824 = vpop.f32.mrf.mxu0
      %v1825 = vadd.f32 0.0, %v1824
      %v1826 = vpop.f32.mrf.mxu0
      %v1827 = vadd.f32 0.0, %v1826
      %1828 = vmatmul.bf16.gmra.mxu0 %v1750
      %v1829 = vpop.f32.mrf.mxu0
      %v1830 = vadd.f32 0.0, %v1829
      %v1831 = vpop.f32.mrf.mxu0
      %v1832 = vadd.f32 0.0, %v1831
      %1833 = vmatmul.bf16.gmra.mxu0 %v1753
      %v1834 = vpop.f32.mrf.mxu0
      %v1835 = vadd.f32 0.0, %v1834
      %v1836 = vpop.f32.mrf.mxu0
      %v1837 = vadd.f32 0.0, %v1836
      %1838 = vmatmul.bf16.gmra.mxu0 %v1756
      %v1839 = vpop.f32.mrf.mxu0
      %v1840 = vadd.f32 0.0, %v1839
      %v1841 = vpop.f32.mrf.mxu0
      %v1842 = vadd.f32 0.0, %v1841
      %1843 = vmatmul.bf16.gmra.mxu0 %v1759
      %v1844 = vpop.f32.mrf.mxu0
      %v1845 = vadd.f32 0.0, %v1844
      %v1846 = vpop.f32.mrf.mxu0
      %v1847 = vadd.f32 0.0, %v1846
      %1848 = vmatmul.bf16.gmra.mxu0 %v1762
      %v1849 = vpop.f32.mrf.mxu0
      %v1850 = vadd.f32 0.0, %v1849
      %v1851 = vpop.f32.mrf.mxu0
      %v1852 = vadd.f32 0.0, %v1851
      %1853 = vmatmul.bf16.gmra.mxu0 %v1765
      %v1854 = vpop.f32.mrf.mxu0
      %v1855 = vadd.f32 0.0, %v1854
      %v1856 = vpop.f32.mrf.mxu0
      %v1857 = vadd.f32 0.0, %v1856
      %1858 = vmatmul.bf16.gmra.mxu0 %v1768
      %v1859 = vpop.f32.mrf.mxu0
      %v1860 = vadd.f32 0.0, %v1859
      %v1861 = vpop.f32.mrf.mxu0
      %v1862 = vadd.f32 0.0, %v1861
      %1863 = vmatmul.bf16.gmra.mxu0 %v1771
      %v1864 = vpop.f32.mrf.mxu0
      %v1865 = vadd.f32 0.0, %v1864
      %v1866 = vpop.f32.mrf.mxu0
      %v1867 = vadd.f32 0.0, %v1866
      %1868 = vmatmul.bf16.gmra.mxu0 %v1774
      %v1869 = vpop.f32.mrf.mxu0
      %v1870 = vadd.f32 0.0, %v1869
      %v1871 = vpop.f32.mrf.mxu0
      %v1872 = vadd.f32 0.0, %v1871
      %1873 = vmatmul.bf16.gmra.mxu0 %v1777
      %v1874 = vpop.f32.mrf.mxu0
      %v1875 = vadd.f32 0.0, %v1874
      %v1876 = vpop.f32.mrf.mxu0
      %v1877 = vadd.f32 0.0, %v1876
      %1878 = vmatmul.bf16.gmra.mxu0 %v1780
      %v1879 = vpop.f32.mrf.mxu0
      %v1880 = vadd.f32 0.0, %v1879
      %v1881 = vpop.f32.mrf.mxu0
      %v1882 = vadd.f32 0.0, %v1881
      %1883 = vdwg.mxu0
      %v1884 = vadd.f32 %v1636, %v1795
      %v1885 = vadd.f32 %v1637, %v1797
      %v1886 = vadd.f32 %v1638, %v1800
      %v1887 = vadd.f32 %v1639, %v1802
      %v1888 = vadd.f32 %v1640, %v1805
      %v1889 = vadd.f32 %v1641, %v1807
      %v1890 = vadd.f32 %v1642, %v1810
      %v1891 = vadd.f32 %v1643, %v1812
      %v1892 = vadd.f32 %v1644, %v1815
      %v1893 = vadd.f32 %v1645, %v1817
      %v1894 = vadd.f32 %v1646, %v1820
      %v1895 = vadd.f32 %v1647, %v1822
      %v1896 = vadd.f32 %v1648, %v1825
      %v1897 = vadd.f32 %v1649, %v1827
      %v1898 = vadd.f32 %v1650, %v1830
      %v1899 = vadd.f32 %v1651, %v1832
      %v1900 = vadd.f32 %v1652, %v1835
      %v1901 = vadd.f32 %v1653, %v1837
      %v1902 = vadd.f32 %v1654, %v1840
      %v1903 = vadd.f32 %v1655, %v1842
      %v1904 = vadd.f32 %v1656, %v1845
      %v1905 = vadd.f32 %v1657, %v1847
      %v1906 = vadd.f32 %v1658, %v1850
      %v1907 = vadd.f32 %v1659, %v1852
      %v1908 = vadd.f32 %v1660, %v1855
      %v1909 = vadd.f32 %v1661, %v1857
      %v1910 = vadd.f32 %v1662, %v1860
      %v1911 = vadd.f32 %v1663, %v1862
      %v1912 = vadd.f32 %v1664, %v1865
      %v1913 = vadd.f32 %v1665, %v1867
      %v1914 = vadd.f32 %v1666, %v1870
      %v1915 = vadd.f32 %v1667, %v1872
      %v1916 = vadd.f32 %v1668, %v1875
      %v1917 = vadd.f32 %v1669, %v1877
      %v1918 = vadd.f32 %v1670, %v1880
      %v1919 = vadd.f32 %v1671, %v1882
      %v1920 = vld [vmem:[#allocation2 + $0x25] sm:$0xff]
      %v1921 = vld [vmem:[#allocation2 + $0x2d] sm:$0xff]
      %v1922 = vld [vmem:[#allocation2 + $0x35] sm:$0xff]
      %v1923 = vld [vmem:[#allocation2 + $0x3d] sm:$0xff]
      %v1924 = vld [vmem:[#allocation2 + $0x45] sm:$0xff]
      %v1925 = vld [vmem:[#allocation2 + $0x4d] sm:$0xff]
      %v1926 = vld [vmem:[#allocation2 + $0x55] sm:$0xff]
      %v1927 = vld [vmem:[#allocation2 + $0x5d] sm:$0xff]
      %v1928 = vld [vmem:[#allocation2 + $0x65] sm:$0xff]
      %v1929 = vld [vmem:[#allocation2 + $0x6d] sm:$0xff]
      %v1930 = vld [vmem:[#allocation2 + $0x75] sm:$0xff]
      %v1931 = vld [vmem:[#allocation2 + $0x7d] sm:$0xff]
      %v1932 = vld [vmem:[#allocation2 + $0x85] sm:$0xff]
      %v1933 = vld [vmem:[#allocation2 + $0x8d] sm:$0xff]
      %v1934 = vld [vmem:[#allocation2 + $0x95] sm:$0xff]
      %v1935 = vld [vmem:[#allocation2 + $0x9d] sm:$0xff]
      %v1936 = vld [vmem:[#allocation2 + $0xa5] sm:$0xff]
      %v1937 = vld [vmem:[#allocation2 + $0xad] sm:$0xff]
      %v1938 = vld [vmem:[#allocation2 + $0xb5] sm:$0xff]
      %v1939 = vld [vmem:[#allocation2 + $0xbd] sm:$0xff]
      %v1940 = vld [vmem:[#allocation2 + $0xc5] sm:$0xff]
      %v1941 = vld [vmem:[#allocation2 + $0xcd] sm:$0xff]
      %v1942 = vld [vmem:[#allocation2 + $0xd5] sm:$0xff]
      %v1943 = vld [vmem:[#allocation2 + $0xdd] sm:$0xff]
      %v1944 = vld [vmem:[#allocation2 + $0xe5] sm:$0xff]
      %v1945 = vld [vmem:[#allocation2 + $0xed] sm:$0xff]
      %v1946 = vld [vmem:[#allocation2 + $0xf5] sm:$0xff]
      %v1947 = vld [vmem:[#allocation2 + $0xfd] sm:$0xff]
      %v1948 = vld [vmem:[#allocation2 + $0x105] sm:$0xff]
      %v1949 = vld [vmem:[#allocation2 + $0x10d] sm:$0xff]
      %v1950 = vld [vmem:[#allocation2 + $0x115] sm:$0xff]
      %v1951 = vld [vmem:[#allocation2 + $0x11d] sm:$0xff]
      %v1952 = vld [vmem:[#allocation2 + $0x125] sm:$0xff]
      %v1953 = vld [vmem:[#allocation2 + $0x12d] sm:$0xff]
      %v1954 = vld [vmem:[#allocation2 + $0x135] sm:$0xff]
      %v1955 = vld [vmem:[#allocation2 + $0x13d] sm:$0xff]
      %v1956 = vpack.c.bf16 %v1921, %v1920
      %v1957 = vpack.c.bf16 %v1923, %v1922
      %v1958 = vpack.c.bf16 %v1925, %v1924
      %v1959 = vpack.c.bf16 %v1927, %v1926
      %v1960 = vpack.c.bf16 %v1929, %v1928
      %v1961 = vpack.c.bf16 %v1931, %v1930
      %v1962 = vpack.c.bf16 %v1933, %v1932
      %v1963 = vpack.c.bf16 %v1935, %v1934
      %v1964 = vpack.c.bf16 %v1937, %v1936
      %v1965 = vpack.c.bf16 %v1939, %v1938
      %v1966 = vpack.c.bf16 %v1941, %v1940
      %v1967 = vpack.c.bf16 %v1943, %v1942
      %v1968 = vpack.c.bf16 %v1945, %v1944
      %v1969 = vpack.c.bf16 %v1947, %v1946
      %v1970 = vpack.c.bf16 %v1949, %v1948
      %v1971 = vpack.c.bf16 %v1951, %v1950
      %v1972 = vpack.c.bf16 %v1953, %v1952
      %v1973 = vpack.c.bf16 %v1955, %v1954
      %s1974 = scalar_lea.vmem %s1, 20
      %v1975 = vld [vmem:[%s1974] sm:$0xf]
      %v1977 = vsel %vm704, %v1956, 0
      %v1980 = vsel %vm704, %v1957, 0
      %v1983 = vsel %vm704, %v1958, 0
      %v1986 = vsel %vm704, %v1959, 0
      %v1989 = vsel %vm704, %v1960, 0
      %v1992 = vsel %vm704, %v1961, 0
      %v1995 = vsel %vm704, %v1962, 0
      %v1998 = vsel %vm704, %v1963, 0
      %v2001 = vsel %vm704, %v1964, 0
      %v2004 = vsel %vm704, %v1965, 0
      %v2007 = vsel %vm704, %v1966, 0
      %v2010 = vsel %vm704, %v1967, 0
      %v2013 = vsel %vm704, %v1968, 0
      %v2016 = vsel %vm704, %v1969, 0
      %v2019 = vsel %vm704, %v1970, 0
      %v2022 = vsel %vm704, %v1971, 0
      %v2025 = vsel %vm704, %v1972, 0
      %v2028 = vsel %vm704, %v1973, 0
      %v2031 = vsel %vm917, %v1975, 0
      %2033 = vmatpush.bf16.msra.mxu0 0
      %2034 = vmatpush.bf16.msra.mxu0 0
      %2035 = vmatpush.bf16.msra.mxu0 0
      %2036 = vmatpush.bf16.msra.mxu0 0
      %2037 = vmatpush.bf16.msra.mxu0 0
      %2038 = vmatpush.bf16.msra.mxu0 0
      %2039 = vmatpush.bf16.msra.mxu0 0
      %2040 = vmatpush.bf16.msra.mxu0 %v2031
      %2041 = vmatmul.bf16.gmra.mxu0 %v1977
      %v2042 = vpop.f32.mrf.mxu0
      %v2043 = vadd.f32 0.0, %v2042
      %v2044 = vpop.f32.mrf.mxu0
      %v2045 = vadd.f32 0.0, %v2044
      %2046 = vmatmul.bf16.gmra.mxu0 %v1980
      %v2047 = vpop.f32.mrf.mxu0
      %v2048 = vadd.f32 0.0, %v2047
      %v2049 = vpop.f32.mrf.mxu0
      %v2050 = vadd.f32 0.0, %v2049
      %2051 = vmatmul.bf16.gmra.mxu0 %v1983
      %v2052 = vpop.f32.mrf.mxu0
      %v2053 = vadd.f32 0.0, %v2052
      %v2054 = vpop.f32.mrf.mxu0
      %v2055 = vadd.f32 0.0, %v2054
      %2056 = vmatmul.bf16.gmra.mxu0 %v1986
      %v2057 = vpop.f32.mrf.mxu0
      %v2058 = vadd.f32 0.0, %v2057
      %v2059 = vpop.f32.mrf.mxu0
      %v2060 = vadd.f32 0.0, %v2059
      %2061 = vmatmul.bf16.gmra.mxu0 %v1989
      %v2062 = vpop.f32.mrf.mxu0
      %v2063 = vadd.f32 0.0, %v2062
      %v2064 = vpop.f32.mrf.mxu0
      %v2065 = vadd.f32 0.0, %v2064
      %2066 = vmatmul.bf16.gmra.mxu0 %v1992
      %v2067 = vpop.f32.mrf.mxu0
      %v2068 = vadd.f32 0.0, %v2067
      %v2069 = vpop.f32.mrf.mxu0
      %v2070 = vadd.f32 0.0, %v2069
      %2071 = vmatmul.bf16.gmra.mxu0 %v1995
      %v2072 = vpop.f32.mrf.mxu0
      %v2073 = vadd.f32 0.0, %v2072
      %v2074 = vpop.f32.mrf.mxu0
      %v2075 = vadd.f32 0.0, %v2074
      %2076 = vmatmul.bf16.gmra.mxu0 %v1998
      %v2077 = vpop.f32.mrf.mxu0
      %v2078 = vadd.f32 0.0, %v2077
      %v2079 = vpop.f32.mrf.mxu0
      %v2080 = vadd.f32 0.0, %v2079
      %2081 = vmatmul.bf16.gmra.mxu0 %v2001
      %v2082 = vpop.f32.mrf.mxu0
      %v2083 = vadd.f32 0.0, %v2082
      %v2084 = vpop.f32.mrf.mxu0
      %v2085 = vadd.f32 0.0, %v2084
      %2086 = vmatmul.bf16.gmra.mxu0 %v2004
      %v2087 = vpop.f32.mrf.mxu0
      %v2088 = vadd.f32 0.0, %v2087
      %v2089 = vpop.f32.mrf.mxu0
      %v2090 = vadd.f32 0.0, %v2089
      %2091 = vmatmul.bf16.gmra.mxu0 %v2007
      %v2092 = vpop.f32.mrf.mxu0
      %v2093 = vadd.f32 0.0, %v2092
      %v2094 = vpop.f32.mrf.mxu0
      %v2095 = vadd.f32 0.0, %v2094
      %2096 = vmatmul.bf16.gmra.mxu0 %v2010
      %v2097 = vpop.f32.mrf.mxu0
      %v2098 = vadd.f32 0.0, %v2097
      %v2099 = vpop.f32.mrf.mxu0
      %v2100 = vadd.f32 0.0, %v2099
      %2101 = vmatmul.bf16.gmra.mxu0 %v2013
      %v2102 = vpop.f32.mrf.mxu0
      %v2103 = vadd.f32 0.0, %v2102
      %v2104 = vpop.f32.mrf.mxu0
      %v2105 = vadd.f32 0.0, %v2104
      %2106 = vmatmul.bf16.gmra.mxu0 %v2016
      %v2107 = vpop.f32.mrf.mxu0
      %v2108 = vadd.f32 0.0, %v2107
      %v2109 = vpop.f32.mrf.mxu0
      %v2110 = vadd.f32 0.0, %v2109
      %2111 = vmatmul.bf16.gmra.mxu0 %v2019
      %v2112 = vpop.f32.mrf.mxu0
      %v2113 = vadd.f32 0.0, %v2112
      %v2114 = vpop.f32.mrf.mxu0
      %v2115 = vadd.f32 0.0, %v2114
      %2116 = vmatmul.bf16.gmra.mxu0 %v2022
      %v2117 = vpop.f32.mrf.mxu0
      %v2118 = vadd.f32 0.0, %v2117
      %v2119 = vpop.f32.mrf.mxu0
      %v2120 = vadd.f32 0.0, %v2119
      %2121 = vmatmul.bf16.gmra.mxu0 %v2025
      %v2122 = vpop.f32.mrf.mxu0
      %v2123 = vadd.f32 0.0, %v2122
      %v2124 = vpop.f32.mrf.mxu0
      %v2125 = vadd.f32 0.0, %v2124
      %2126 = vmatmul.bf16.gmra.mxu0 %v2028
      %v2127 = vpop.f32.mrf.mxu0
      %v2128 = vadd.f32 0.0, %v2127
      %v2129 = vpop.f32.mrf.mxu0
      %v2130 = vadd.f32 0.0, %v2129
      %2131 = vdwg.mxu0
      %v2132 = vadd.f32 %v1884, %v2043
      %v2133 = vadd.f32 %v1885, %v2045
      %v2134 = vadd.f32 %v1886, %v2048
      %v2135 = vadd.f32 %v1887, %v2050
      %v2136 = vadd.f32 %v1888, %v2053
      %v2137 = vadd.f32 %v1889, %v2055
      %v2138 = vadd.f32 %v1890, %v2058
      %v2139 = vadd.f32 %v1891, %v2060
      %v2140 = vadd.f32 %v1892, %v2063
      %v2141 = vadd.f32 %v1893, %v2065
      %v2142 = vadd.f32 %v1894, %v2068
      %v2143 = vadd.f32 %v1895, %v2070
      %v2144 = vadd.f32 %v1896, %v2073
      %v2145 = vadd.f32 %v1897, %v2075
      %v2146 = vadd.f32 %v1898, %v2078
      %v2147 = vadd.f32 %v1899, %v2080
      %v2148 = vadd.f32 %v1900, %v2083
      %v2149 = vadd.f32 %v1901, %v2085
      %v2150 = vadd.f32 %v1902, %v2088
      %v2151 = vadd.f32 %v1903, %v2090
      %v2152 = vadd.f32 %v1904, %v2093
      %v2153 = vadd.f32 %v1905, %v2095
      %v2154 = vadd.f32 %v1906, %v2098
      %v2155 = vadd.f32 %v1907, %v2100
      %v2156 = vadd.f32 %v1908, %v2103
      %v2157 = vadd.f32 %v1909, %v2105
      %v2158 = vadd.f32 %v1910, %v2108
      %v2159 = vadd.f32 %v1911, %v2110
      %v2160 = vadd.f32 %v1912, %v2113
      %v2161 = vadd.f32 %v1913, %v2115
      %v2162 = vadd.f32 %v1914, %v2118
      %v2163 = vadd.f32 %v1915, %v2120
      %v2164 = vadd.f32 %v1916, %v2123
      %v2165 = vadd.f32 %v1917, %v2125
      %v2166 = vadd.f32 %v1918, %v2128
      %v2167 = vadd.f32 %v1919, %v2130
      %v2168 = vld [vmem:[#allocation2 + $0x35] sm:$0xff]
      %v2169 = vld [vmem:[#allocation2 + $0x3d] sm:$0xff]
      %v2170 = vld [vmem:[#allocation2 + $0x45] sm:$0xff]
      %v2171 = vld [vmem:[#allocation2 + $0x4d] sm:$0xff]
      %v2172 = vld [vmem:[#allocation2 + $0x55] sm:$0xff]
      %v2173 = vld [vmem:[#allocation2 + $0x5d] sm:$0xff]
      %v2174 = vld [vmem:[#allocation2 + $0x65] sm:$0xff]
      %v2175 = vld [vmem:[#allocation2 + $0x6d] sm:$0xff]
      %v2176 = vld [vmem:[#allocation2 + $0x75] sm:$0xff]
      %v2177 = vld [vmem:[#allocation2 + $0x7d] sm:$0xff]
      %v2178 = vld [vmem:[#allocation2 + $0x85] sm:$0xff]
      %v2179 = vld [vmem:[#allocation2 + $0x8d] sm:$0xff]
      %v2180 = vld [vmem:[#allocation2 + $0x95] sm:$0xff]
      %v2181 = vld [vmem:[#allocation2 + $0x9d] sm:$0xff]
      %v2182 = vld [vmem:[#allocation2 + $0xa5] sm:$0xff]
      %v2183 = vld [vmem:[#allocation2 + $0xad] sm:$0xff]
      %v2184 = vld [vmem:[#allocation2 + $0xb5] sm:$0xff]
      %v2185 = vld [vmem:[#allocation2 + $0xbd] sm:$0xff]
      %v2186 = vld [vmem:[#allocation2 + $0xc5] sm:$0xff]
      %v2187 = vld [vmem:[#allocation2 + $0xcd] sm:$0xff]
      %v2188 = vld [vmem:[#allocation2 + $0xd5] sm:$0xff]
      %v2189 = vld [vmem:[#allocation2 + $0xdd] sm:$0xff]
      %v2190 = vld [vmem:[#allocation2 + $0xe5] sm:$0xff]
      %v2191 = vld [vmem:[#allocation2 + $0xed] sm:$0xff]
      %v2192 = vld [vmem:[#allocation2 + $0xf5] sm:$0xff]
      %v2193 = vld [vmem:[#allocation2 + $0xfd] sm:$0xff]
      %v2194 = vld [vmem:[#allocation2 + $0x105] sm:$0xff]
      %v2195 = vld [vmem:[#allocation2 + $0x10d] sm:$0xff]
      %v2196 = vld [vmem:[#allocation2 + $0x115] sm:$0xff]
      %v2197 = vld [vmem:[#allocation2 + $0x11d] sm:$0xff]
      %v2198 = vld [vmem:[#allocation2 + $0x125] sm:$0xff]
      %v2199 = vld [vmem:[#allocation2 + $0x12d] sm:$0xff]
      %v2200 = vld [vmem:[#allocation2 + $0x135] sm:$0xff]
      %v2201 = vld [vmem:[#allocation2 + $0x13d] sm:$0xff]
      %v2202 = vld [vmem:[#allocation2 + $0x145] sm:$0xff]
      %v2203 = vld [vmem:[#allocation2 + $0x14d] sm:$0xff]
      %v2204 = vpack.c.bf16 %v2169, %v2168
      %v2205 = vpack.c.bf16 %v2171, %v2170
      %v2206 = vpack.c.bf16 %v2173, %v2172
      %v2207 = vpack.c.bf16 %v2175, %v2174
      %v2208 = vpack.c.bf16 %v2177, %v2176
      %v2209 = vpack.c.bf16 %v2179, %v2178
      %v2210 = vpack.c.bf16 %v2181, %v2180
      %v2211 = vpack.c.bf16 %v2183, %v2182
      %v2212 = vpack.c.bf16 %v2185, %v2184
      %v2213 = vpack.c.bf16 %v2187, %v2186
      %v2214 = vpack.c.bf16 %v2189, %v2188
      %v2215 = vpack.c.bf16 %v2191, %v2190
      %v2216 = vpack.c.bf16 %v2193, %v2192
      %v2217 = vpack.c.bf16 %v2195, %v2194
      %v2218 = vpack.c.bf16 %v2197, %v2196
      %v2219 = vpack.c.bf16 %v2199, %v2198
      %v2220 = vpack.c.bf16 %v2201, %v2200
      %v2221 = vpack.c.bf16 %v2203, %v2202
      %s2222 = scalar_lea.vmem %s1, 24
      %v2223 = vld [vmem:[%s2222] sm:$0xf]
      %v2225 = vsel %vm704, %v2204, 0
      %v2228 = vsel %vm704, %v2205, 0
      %v2231 = vsel %vm704, %v2206, 0
      %v2234 = vsel %vm704, %v2207, 0
      %v2237 = vsel %vm704, %v2208, 0
      %v2240 = vsel %vm704, %v2209, 0
      %v2243 = vsel %vm704, %v2210, 0
      %v2246 = vsel %vm704, %v2211, 0
      %v2249 = vsel %vm704, %v2212, 0
      %v2252 = vsel %vm704, %v2213, 0
      %v2255 = vsel %vm704, %v2214, 0
      %v2258 = vsel %vm704, %v2215, 0
      %v2261 = vsel %vm704, %v2216, 0
      %v2264 = vsel %vm704, %v2217, 0
      %v2267 = vsel %vm704, %v2218, 0
      %v2270 = vsel %vm704, %v2219, 0
      %v2273 = vsel %vm704, %v2220, 0
      %v2276 = vsel %vm704, %v2221, 0
      %v2279 = vsel %vm917, %v2223, 0
      %2281 = vmatpush.bf16.msra.mxu0 0
      %2282 = vmatpush.bf16.msra.mxu0 0
      %2283 = vmatpush.bf16.msra.mxu0 0
      %2284 = vmatpush.bf16.msra.mxu0 0
      %2285 = vmatpush.bf16.msra.mxu0 0
      %2286 = vmatpush.bf16.msra.mxu0 0
      %2287 = vmatpush.bf16.msra.mxu0 0
      %2288 = vmatpush.bf16.msra.mxu0 %v2279
      %2289 = vmatmul.bf16.gmra.mxu0 %v2225
      %v2290 = vpop.f32.mrf.mxu0
      %v2291 = vadd.f32 0.0, %v2290
      %v2292 = vpop.f32.mrf.mxu0
      %v2293 = vadd.f32 0.0, %v2292
      %2294 = vmatmul.bf16.gmra.mxu0 %v2228
      %v2295 = vpop.f32.mrf.mxu0
      %v2296 = vadd.f32 0.0, %v2295
      %v2297 = vpop.f32.mrf.mxu0
      %v2298 = vadd.f32 0.0, %v2297
      %2299 = vmatmul.bf16.gmra.mxu0 %v2231
      %v2300 = vpop.f32.mrf.mxu0
      %v2301 = vadd.f32 0.0, %v2300
      %v2302 = vpop.f32.mrf.mxu0
      %v2303 = vadd.f32 0.0, %v2302
      %2304 = vmatmul.bf16.gmra.mxu0 %v2234
      %v2305 = vpop.f32.mrf.mxu0
      %v2306 = vadd.f32 0.0, %v2305
      %v2307 = vpop.f32.mrf.mxu0
      %v2308 = vadd.f32 0.0, %v2307
      %2309 = vmatmul.bf16.gmra.mxu0 %v2237
      %v2310 = vpop.f32.mrf.mxu0
      %v2311 = vadd.f32 0.0, %v2310
      %v2312 = vpop.f32.mrf.mxu0
      %v2313 = vadd.f32 0.0, %v2312
      %2314 = vmatmul.bf16.gmra.mxu0 %v2240
      %v2315 = vpop.f32.mrf.mxu0
      %v2316 = vadd.f32 0.0, %v2315
      %v2317 = vpop.f32.mrf.mxu0
      %v2318 = vadd.f32 0.0, %v2317
      %2319 = vmatmul.bf16.gmra.mxu0 %v2243
      %v2320 = vpop.f32.mrf.mxu0
      %v2321 = vadd.f32 0.0, %v2320
      %v2322 = vpop.f32.mrf.mxu0
      %v2323 = vadd.f32 0.0, %v2322
      %2324 = vmatmul.bf16.gmra.mxu0 %v2246
      %v2325 = vpop.f32.mrf.mxu0
      %v2326 = vadd.f32 0.0, %v2325
      %v2327 = vpop.f32.mrf.mxu0
      %v2328 = vadd.f32 0.0, %v2327
      %2329 = vmatmul.bf16.gmra.mxu0 %v2249
      %v2330 = vpop.f32.mrf.mxu0
      %v2331 = vadd.f32 0.0, %v2330
      %v2332 = vpop.f32.mrf.mxu0
      %v2333 = vadd.f32 0.0, %v2332
      %2334 = vmatmul.bf16.gmra.mxu0 %v2252
      %v2335 = vpop.f32.mrf.mxu0
      %v2336 = vadd.f32 0.0, %v2335
      %v2337 = vpop.f32.mrf.mxu0
      %v2338 = vadd.f32 0.0, %v2337
      %2339 = vmatmul.bf16.gmra.mxu0 %v2255
      %v2340 = vpop.f32.mrf.mxu0
      %v2341 = vadd.f32 0.0, %v2340
      %v2342 = vpop.f32.mrf.mxu0
      %v2343 = vadd.f32 0.0, %v2342
      %2344 = vmatmul.bf16.gmra.mxu0 %v2258
      %v2345 = vpop.f32.mrf.mxu0
      %v2346 = vadd.f32 0.0, %v2345
      %v2347 = vpop.f32.mrf.mxu0
      %v2348 = vadd.f32 0.0, %v2347
      %2349 = vmatmul.bf16.gmra.mxu0 %v2261
      %v2350 = vpop.f32.mrf.mxu0
      %v2351 = vadd.f32 0.0, %v2350
      %v2352 = vpop.f32.mrf.mxu0
      %v2353 = vadd.f32 0.0, %v2352
      %2354 = vmatmul.bf16.gmra.mxu0 %v2264
      %v2355 = vpop.f32.mrf.mxu0
      %v2356 = vadd.f32 0.0, %v2355
      %v2357 = vpop.f32.mrf.mxu0
      %v2358 = vadd.f32 0.0, %v2357
      %2359 = vmatmul.bf16.gmra.mxu0 %v2267
      %v2360 = vpop.f32.mrf.mxu0
      %v2361 = vadd.f32 0.0, %v2360
      %v2362 = vpop.f32.mrf.mxu0
      %v2363 = vadd.f32 0.0, %v2362
      %2364 = vmatmul.bf16.gmra.mxu0 %v2270
      %v2365 = vpop.f32.mrf.mxu0
      %v2366 = vadd.f32 0.0, %v2365
      %v2367 = vpop.f32.mrf.mxu0
      %v2368 = vadd.f32 0.0, %v2367
      %2369 = vmatmul.bf16.gmra.mxu0 %v2273
      %v2370 = vpop.f32.mrf.mxu0
      %v2371 = vadd.f32 0.0, %v2370
      %v2372 = vpop.f32.mrf.mxu0
      %v2373 = vadd.f32 0.0, %v2372
      %2374 = vmatmul.bf16.gmra.mxu0 %v2276
      %v2375 = vpop.f32.mrf.mxu0
      %v2376 = vadd.f32 0.0, %v2375
      %v2377 = vpop.f32.mrf.mxu0
      %v2378 = vadd.f32 0.0, %v2377
      %2379 = vdwg.mxu0
      %v2380 = vadd.f32 %v2132, %v2291
      %v2381 = vadd.f32 %v2133, %v2293
      %v2382 = vadd.f32 %v2134, %v2296
      %v2383 = vadd.f32 %v2135, %v2298
      %v2384 = vadd.f32 %v2136, %v2301
      %v2385 = vadd.f32 %v2137, %v2303
      %v2386 = vadd.f32 %v2138, %v2306
      %v2387 = vadd.f32 %v2139, %v2308
      %v2388 = vadd.f32 %v2140, %v2311
      %v2389 = vadd.f32 %v2141, %v2313
      %v2390 = vadd.f32 %v2142, %v2316
      %v2391 = vadd.f32 %v2143, %v2318
      %v2392 = vadd.f32 %v2144, %v2321
      %v2393 = vadd.f32 %v2145, %v2323
      %v2394 = vadd.f32 %v2146, %v2326
      %v2395 = vadd.f32 %v2147, %v2328
      %v2396 = vadd.f32 %v2148, %v2331
      %v2397 = vadd.f32 %v2149, %v2333
      %v2398 = vadd.f32 %v2150, %v2336
      %v2399 = vadd.f32 %v2151, %v2338
      %v2400 = vadd.f32 %v2152, %v2341
      %v2401 = vadd.f32 %v2153, %v2343
      %v2402 = vadd.f32 %v2154, %v2346
      %v2403 = vadd.f32 %v2155, %v2348
      %v2404 = vadd.f32 %v2156, %v2351
      %v2405 = vadd.f32 %v2157, %v2353
      %v2406 = vadd.f32 %v2158, %v2356
      %v2407 = vadd.f32 %v2159, %v2358
      %v2408 = vadd.f32 %v2160, %v2361
      %v2409 = vadd.f32 %v2161, %v2363
      %v2410 = vadd.f32 %v2162, %v2366
      %v2411 = vadd.f32 %v2163, %v2368
      %v2412 = vadd.f32 %v2164, %v2371
      %v2413 = vadd.f32 %v2165, %v2373
      %v2414 = vadd.f32 %v2166, %v2376
      %v2415 = vadd.f32 %v2167, %v2378
      %v2416 = vld [vmem:[#allocation2 + $0x36] sm:$0xff]
      %v2417 = vld [vmem:[#allocation2 + $0x3e] sm:$0xff]
      %v2418 = vld [vmem:[#allocation2 + $0x46] sm:$0xff]
      %v2419 = vld [vmem:[#allocation2 + $0x4e] sm:$0xff]
      %v2420 = vld [vmem:[#allocation2 + $0x56] sm:$0xff]
      %v2421 = vld [vmem:[#allocation2 + $0x5e] sm:$0xff]
      %v2422 = vld [vmem:[#allocation2 + $0x66] sm:$0xff]
      %v2423 = vld [vmem:[#allocation2 + $0x6e] sm:$0xff]
      %v2424 = vld [vmem:[#allocation2 + $0x76] sm:$0xff]
      %v2425 = vld [vmem:[#allocation2 + $0x7e] sm:$0xff]
      %v2426 = vld [vmem:[#allocation2 + $0x86] sm:$0xff]
      %v2427 = vld [vmem:[#allocation2 + $0x8e] sm:$0xff]
      %v2428 = vld [vmem:[#allocation2 + $0x96] sm:$0xff]
      %v2429 = vld [vmem:[#allocation2 + $0x9e] sm:$0xff]
      %v2430 = vld [vmem:[#allocation2 + $0xa6] sm:$0xff]
      %v2431 = vld [vmem:[#allocation2 + $0xae] sm:$0xff]
      %v2432 = vld [vmem:[#allocation2 + $0xb6] sm:$0xff]
      %v2433 = vld [vmem:[#allocation2 + $0xbe] sm:$0xff]
      %v2434 = vld [vmem:[#allocation2 + $0xc6] sm:$0xff]
      %v2435 = vld [vmem:[#allocation2 + $0xce] sm:$0xff]
      %v2436 = vld [vmem:[#allocation2 + $0xd6] sm:$0xff]
      %v2437 = vld [vmem:[#allocation2 + $0xde] sm:$0xff]
      %v2438 = vld [vmem:[#allocation2 + $0xe6] sm:$0xff]
      %v2439 = vld [vmem:[#allocation2 + $0xee] sm:$0xff]
      %v2440 = vld [vmem:[#allocation2 + $0xf6] sm:$0xff]
      %v2441 = vld [vmem:[#allocation2 + $0xfe] sm:$0xff]
      %v2442 = vld [vmem:[#allocation2 + $0x106] sm:$0xff]
      %v2443 = vld [vmem:[#allocation2 + $0x10e] sm:$0xff]
      %v2444 = vld [vmem:[#allocation2 + $0x116] sm:$0xff]
      %v2445 = vld [vmem:[#allocation2 + $0x11e] sm:$0xff]
      %v2446 = vld [vmem:[#allocation2 + $0x126] sm:$0xff]
      %v2447 = vld [vmem:[#allocation2 + $0x12e] sm:$0xff]
      %v2448 = vld [vmem:[#allocation2 + $0x136] sm:$0xff]
      %v2449 = vld [vmem:[#allocation2 + $0x13e] sm:$0xff]
      %v2450 = vld [vmem:[#allocation2 + $0x146] sm:$0xff]
      %v2451 = vld [vmem:[#allocation2 + $0x14e] sm:$0xff]
      %v2452 = vpack.c.bf16 %v2417, %v2416
      %v2453 = vpack.c.bf16 %v2419, %v2418
      %v2454 = vpack.c.bf16 %v2421, %v2420
      %v2455 = vpack.c.bf16 %v2423, %v2422
      %v2456 = vpack.c.bf16 %v2425, %v2424
      %v2457 = vpack.c.bf16 %v2427, %v2426
      %v2458 = vpack.c.bf16 %v2429, %v2428
      %v2459 = vpack.c.bf16 %v2431, %v2430
      %v2460 = vpack.c.bf16 %v2433, %v2432
      %v2461 = vpack.c.bf16 %v2435, %v2434
      %v2462 = vpack.c.bf16 %v2437, %v2436
      %v2463 = vpack.c.bf16 %v2439, %v2438
      %v2464 = vpack.c.bf16 %v2441, %v2440
      %v2465 = vpack.c.bf16 %v2443, %v2442
      %v2466 = vpack.c.bf16 %v2445, %v2444
      %v2467 = vpack.c.bf16 %v2447, %v2446
      %v2468 = vpack.c.bf16 %v2449, %v2448
      %v2469 = vpack.c.bf16 %v2451, %v2450
      %s2470 = scalar_lea.vmem %s1, 28
      %v2471 = vld [vmem:[%s2470] sm:$0xf]
      %v2473 = vsel %vm704, %v2452, 0
      %v2476 = vsel %vm704, %v2453, 0
      %v2479 = vsel %vm704, %v2454, 0
      %v2482 = vsel %vm704, %v2455, 0
      %v2485 = vsel %vm704, %v2456, 0
      %v2488 = vsel %vm704, %v2457, 0
      %v2491 = vsel %vm704, %v2458, 0
      %v2494 = vsel %vm704, %v2459, 0
      %v2497 = vsel %vm704, %v2460, 0
      %v2500 = vsel %vm704, %v2461, 0
      %v2503 = vsel %vm704, %v2462, 0
      %v2506 = vsel %vm704, %v2463, 0
      %v2509 = vsel %vm704, %v2464, 0
      %v2512 = vsel %vm704, %v2465, 0
      %v2515 = vsel %vm704, %v2466, 0
      %v2518 = vsel %vm704, %v2467, 0
      %v2521 = vsel %vm704, %v2468, 0
      %v2524 = vsel %vm704, %v2469, 0
      %v2527 = vsel %vm917, %v2471, 0
      %2529 = vmatpush.bf16.msra.mxu0 0
      %2530 = vmatpush.bf16.msra.mxu0 0
      %2531 = vmatpush.bf16.msra.mxu0 0
      %2532 = vmatpush.bf16.msra.mxu0 0
      %2533 = vmatpush.bf16.msra.mxu0 0
      %2534 = vmatpush.bf16.msra.mxu0 0
      %2535 = vmatpush.bf16.msra.mxu0 0
      %2536 = vmatpush.bf16.msra.mxu0 %v2527
      %2537 = vmatmul.bf16.gmra.mxu0 %v2473
      %v2538 = vpop.f32.mrf.mxu0
      %v2539 = vadd.f32 0.0, %v2538
      %v2540 = vpop.f32.mrf.mxu0
      %v2541 = vadd.f32 0.0, %v2540
      %2542 = vmatmul.bf16.gmra.mxu0 %v2476
      %v2543 = vpop.f32.mrf.mxu0
      %v2544 = vadd.f32 0.0, %v2543
      %v2545 = vpop.f32.mrf.mxu0
      %v2546 = vadd.f32 0.0, %v2545
      %2547 = vmatmul.bf16.gmra.mxu0 %v2479
      %v2548 = vpop.f32.mrf.mxu0
      %v2549 = vadd.f32 0.0, %v2548
      %v2550 = vpop.f32.mrf.mxu0
      %v2551 = vadd.f32 0.0, %v2550
      %2552 = vmatmul.bf16.gmra.mxu0 %v2482
      %v2553 = vpop.f32.mrf.mxu0
      %v2554 = vadd.f32 0.0, %v2553
      %v2555 = vpop.f32.mrf.mxu0
      %v2556 = vadd.f32 0.0, %v2555
      %2557 = vmatmul.bf16.gmra.mxu0 %v2485
      %v2558 = vpop.f32.mrf.mxu0
      %v2559 = vadd.f32 0.0, %v2558
      %v2560 = vpop.f32.mrf.mxu0
      %v2561 = vadd.f32 0.0, %v2560
      %2562 = vmatmul.bf16.gmra.mxu0 %v2488
      %v2563 = vpop.f32.mrf.mxu0
      %v2564 = vadd.f32 0.0, %v2563
      %v2565 = vpop.f32.mrf.mxu0
      %v2566 = vadd.f32 0.0, %v2565
      %2567 = vmatmul.bf16.gmra.mxu0 %v2491
      %v2568 = vpop.f32.mrf.mxu0
      %v2569 = vadd.f32 0.0, %v2568
      %v2570 = vpop.f32.mrf.mxu0
      %v2571 = vadd.f32 0.0, %v2570
      %2572 = vmatmul.bf16.gmra.mxu0 %v2494
      %v2573 = vpop.f32.mrf.mxu0
      %v2574 = vadd.f32 0.0, %v2573
      %v2575 = vpop.f32.mrf.mxu0
      %v2576 = vadd.f32 0.0, %v2575
      %2577 = vmatmul.bf16.gmra.mxu0 %v2497
      %v2578 = vpop.f32.mrf.mxu0
      %v2579 = vadd.f32 0.0, %v2578
      %v2580 = vpop.f32.mrf.mxu0
      %v2581 = vadd.f32 0.0, %v2580
      %2582 = vmatmul.bf16.gmra.mxu0 %v2500
      %v2583 = vpop.f32.mrf.mxu0
      %v2584 = vadd.f32 0.0, %v2583
      %v2585 = vpop.f32.mrf.mxu0
      %v2586 = vadd.f32 0.0, %v2585
      %2587 = vmatmul.bf16.gmra.mxu0 %v2503
      %v2588 = vpop.f32.mrf.mxu0
      %v2589 = vadd.f32 0.0, %v2588
      %v2590 = vpop.f32.mrf.mxu0
      %v2591 = vadd.f32 0.0, %v2590
      %2592 = vmatmul.bf16.gmra.mxu0 %v2506
      %v2593 = vpop.f32.mrf.mxu0
      %v2594 = vadd.f32 0.0, %v2593
      %v2595 = vpop.f32.mrf.mxu0
      %v2596 = vadd.f32 0.0, %v2595
      %2597 = vmatmul.bf16.gmra.mxu0 %v2509
      %v2598 = vpop.f32.mrf.mxu0
      %v2599 = vadd.f32 0.0, %v2598
      %v2600 = vpop.f32.mrf.mxu0
      %v2601 = vadd.f32 0.0, %v2600
      %2602 = vmatmul.bf16.gmra.mxu0 %v2512
      %v2603 = vpop.f32.mrf.mxu0
      %v2604 = vadd.f32 0.0, %v2603
      %v2605 = vpop.f32.mrf.mxu0
      %v2606 = vadd.f32 0.0, %v2605
      %2607 = vmatmul.bf16.gmra.mxu0 %v2515
      %v2608 = vpop.f32.mrf.mxu0
      %v2609 = vadd.f32 0.0, %v2608
      %v2610 = vpop.f32.mrf.mxu0
      %v2611 = vadd.f32 0.0, %v2610
      %2612 = vmatmul.bf16.gmra.mxu0 %v2518
      %v2613 = vpop.f32.mrf.mxu0
      %v2614 = vadd.f32 0.0, %v2613
      %v2615 = vpop.f32.mrf.mxu0
      %v2616 = vadd.f32 0.0, %v2615
      %2617 = vmatmul.bf16.gmra.mxu0 %v2521
      %v2618 = vpop.f32.mrf.mxu0
      %v2619 = vadd.f32 0.0, %v2618
      %v2620 = vpop.f32.mrf.mxu0
      %v2621 = vadd.f32 0.0, %v2620
      %2622 = vmatmul.bf16.gmra.mxu0 %v2524
      %v2623 = vpop.f32.mrf.mxu0
      %v2624 = vadd.f32 0.0, %v2623
      %v2625 = vpop.f32.mrf.mxu0
      %v2626 = vadd.f32 0.0, %v2625
      %2627 = vdwg.mxu0
      %v2628 = vadd.f32 %v2380, %v2539
      %v2629 = vadd.f32 %v2381, %v2541
      %v2630 = vadd.f32 %v2382, %v2544
      %v2631 = vadd.f32 %v2383, %v2546
      %v2632 = vadd.f32 %v2384, %v2549
      %v2633 = vadd.f32 %v2385, %v2551
      %v2634 = vadd.f32 %v2386, %v2554
      %v2635 = vadd.f32 %v2387, %v2556
      %v2636 = vadd.f32 %v2388, %v2559
      %v2637 = vadd.f32 %v2389, %v2561
      %v2638 = vadd.f32 %v2390, %v2564
      %v2639 = vadd.f32 %v2391, %v2566
      %v2640 = vadd.f32 %v2392, %v2569
      %v2641 = vadd.f32 %v2393, %v2571
      %v2642 = vadd.f32 %v2394, %v2574
      %v2643 = vadd.f32 %v2395, %v2576
      %v2644 = vadd.f32 %v2396, %v2579
      %v2645 = vadd.f32 %v2397, %v2581
      %v2646 = vadd.f32 %v2398, %v2584
      %v2647 = vadd.f32 %v2399, %v2586
      %v2648 = vadd.f32 %v2400, %v2589
      %v2649 = vadd.f32 %v2401, %v2591
      %v2650 = vadd.f32 %v2402, %v2594
      %v2651 = vadd.f32 %v2403, %v2596
      %v2652 = vadd.f32 %v2404, %v2599
      %v2653 = vadd.f32 %v2405, %v2601
      %v2654 = vadd.f32 %v2406, %v2604
      %v2655 = vadd.f32 %v2407, %v2606
      %v2656 = vadd.f32 %v2408, %v2609
      %v2657 = vadd.f32 %v2409, %v2611
      %v2658 = vadd.f32 %v2410, %v2614
      %v2659 = vadd.f32 %v2411, %v2616
      %v2660 = vadd.f32 %v2412, %v2619
      %v2661 = vadd.f32 %v2413, %v2621
      %v2662 = vadd.f32 %v2414, %v2624
      %v2663 = vadd.f32 %v2415, %v2626
      %v2664 = vld [vmem:[#allocation2 + $0x37] sm:$0xff]
      %v2665 = vld [vmem:[#allocation2 + $0x3f] sm:$0xff]
      %v2666 = vld [vmem:[#allocation2 + $0x47] sm:$0xff]
      %v2667 = vld [vmem:[#allocation2 + $0x4f] sm:$0xff]
      %v2668 = vld [vmem:[#allocation2 + $0x57] sm:$0xff]
      %v2669 = vld [vmem:[#allocation2 + $0x5f] sm:$0xff]
      %v2670 = vld [vmem:[#allocation2 + $0x67] sm:$0xff]
      %v2671 = vld [vmem:[#allocation2 + $0x6f] sm:$0xff]
      %v2672 = vld [vmem:[#allocation2 + $0x77] sm:$0xff]
      %v2673 = vld [vmem:[#allocation2 + $0x7f] sm:$0xff]
      %v2674 = vld [vmem:[#allocation2 + $0x87] sm:$0xff]
      %v2675 = vld [vmem:[#allocation2 + $0x8f] sm:$0xff]
      %v2676 = vld [vmem:[#allocation2 + $0x97] sm:$0xff]
      %v2677 = vld [vmem:[#allocation2 + $0x9f] sm:$0xff]
      %v2678 = vld [vmem:[#allocation2 + $0xa7] sm:$0xff]
      %v2679 = vld [vmem:[#allocation2 + $0xaf] sm:$0xff]
      %v2680 = vld [vmem:[#allocation2 + $0xb7] sm:$0xff]
      %v2681 = vld [vmem:[#allocation2 + $0xbf] sm:$0xff]
      %v2682 = vld [vmem:[#allocation2 + $0xc7] sm:$0xff]
      %v2683 = vld [vmem:[#allocation2 + $0xcf] sm:$0xff]
      %v2684 = vld [vmem:[#allocation2 + $0xd7] sm:$0xff]
      %v2685 = vld [vmem:[#allocation2 + $0xdf] sm:$0xff]
      %v2686 = vld [vmem:[#allocation2 + $0xe7] sm:$0xff]
      %v2687 = vld [vmem:[#allocation2 + $0xef] sm:$0xff]
      %v2688 = vld [vmem:[#allocation2 + $0xf7] sm:$0xff]
      %v2689 = vld [vmem:[#allocation2 + $0xff] sm:$0xff]
      %v2690 = vld [vmem:[#allocation2 + $0x107] sm:$0xff]
      %v2691 = vld [vmem:[#allocation2 + $0x10f] sm:$0xff]
      %v2692 = vld [vmem:[#allocation2 + $0x117] sm:$0xff]
      %v2693 = vld [vmem:[#allocation2 + $0x11f] sm:$0xff]
      %v2694 = vld [vmem:[#allocation2 + $0x127] sm:$0xff]
      %v2695 = vld [vmem:[#allocation2 + $0x12f] sm:$0xff]
      %v2696 = vld [vmem:[#allocation2 + $0x137] sm:$0xff]
      %v2697 = vld [vmem:[#allocation2 + $0x13f] sm:$0xff]
      %v2698 = vld [vmem:[#allocation2 + $0x147] sm:$0xff]
      %v2699 = vld [vmem:[#allocation2 + $0x14f] sm:$0xff]
      %v2700 = vpack.c.bf16 %v2665, %v2664
      %v2701 = vpack.c.bf16 %v2667, %v2666
      %v2702 = vpack.c.bf16 %v2669, %v2668
      %v2703 = vpack.c.bf16 %v2671, %v2670
      %v2704 = vpack.c.bf16 %v2673, %v2672
      %v2705 = vpack.c.bf16 %v2675, %v2674
      %v2706 = vpack.c.bf16 %v2677, %v2676
      %v2707 = vpack.c.bf16 %v2679, %v2678
      %v2708 = vpack.c.bf16 %v2681, %v2680
      %v2709 = vpack.c.bf16 %v2683, %v2682
      %v2710 = vpack.c.bf16 %v2685, %v2684
      %v2711 = vpack.c.bf16 %v2687, %v2686
      %v2712 = vpack.c.bf16 %v2689, %v2688
      %v2713 = vpack.c.bf16 %v2691, %v2690
      %v2714 = vpack.c.bf16 %v2693, %v2692
      %v2715 = vpack.c.bf16 %v2695, %v2694
      %v2716 = vpack.c.bf16 %v2697, %v2696
      %v2717 = vpack.c.bf16 %v2699, %v2698
      %s2718 = scalar_lea.vmem %s1, 32
      %v2719 = vld [vmem:[%s2718] sm:$0xf]
      %v2721 = vsel %vm704, %v2700, 0
      %v2724 = vsel %vm704, %v2701, 0
      %v2727 = vsel %vm704, %v2702, 0
      %v2730 = vsel %vm704, %v2703, 0
      %v2733 = vsel %vm704, %v2704, 0
      %v2736 = vsel %vm704, %v2705, 0
      %v2739 = vsel %vm704, %v2706, 0
      %v2742 = vsel %vm704, %v2707, 0
      %v2745 = vsel %vm704, %v2708, 0
      %v2748 = vsel %vm704, %v2709, 0
      %v2751 = vsel %vm704, %v2710, 0
      %v2754 = vsel %vm704, %v2711, 0
      %v2757 = vsel %vm704, %v2712, 0
      %v2760 = vsel %vm704, %v2713, 0
      %v2763 = vsel %vm704, %v2714, 0
      %v2766 = vsel %vm704, %v2715, 0
      %v2769 = vsel %vm704, %v2716, 0
      %v2772 = vsel %vm704, %v2717, 0
      %v2775 = vsel %vm917, %v2719, 0
      %2777 = vmatpush.bf16.msra.mxu0 0
      %2778 = vmatpush.bf16.msra.mxu0 0
      %2779 = vmatpush.bf16.msra.mxu0 0
      %2780 = vmatpush.bf16.msra.mxu0 0
      %2781 = vmatpush.bf16.msra.mxu0 0
      %2782 = vmatpush.bf16.msra.mxu0 0
      %2783 = vmatpush.bf16.msra.mxu0 0
      %2784 = vmatpush.bf16.msra.mxu0 %v2775
      %2785 = vmatmul.bf16.gmra.mxu0 %v2721
      %v2786 = vpop.f32.mrf.mxu0
      %v2787 = vadd.f32 0.0, %v2786
      %v2788 = vpop.f32.mrf.mxu0
      %v2789 = vadd.f32 0.0, %v2788
      %2790 = vmatmul.bf16.gmra.mxu0 %v2724
      %v2791 = vpop.f32.mrf.mxu0
      %v2792 = vadd.f32 0.0, %v2791
      %v2793 = vpop.f32.mrf.mxu0
      %v2794 = vadd.f32 0.0, %v2793
      %2795 = vmatmul.bf16.gmra.mxu0 %v2727
      %v2796 = vpop.f32.mrf.mxu0
      %v2797 = vadd.f32 0.0, %v2796
      %v2798 = vpop.f32.mrf.mxu0
      %v2799 = vadd.f32 0.0, %v2798
      %2800 = vmatmul.bf16.gmra.mxu0 %v2730
      %v2801 = vpop.f32.mrf.mxu0
      %v2802 = vadd.f32 0.0, %v2801
      %v2803 = vpop.f32.mrf.mxu0
      %v2804 = vadd.f32 0.0, %v2803
      %2805 = vmatmul.bf16.gmra.mxu0 %v2733
      %v2806 = vpop.f32.mrf.mxu0
      %v2807 = vadd.f32 0.0, %v2806
      %v2808 = vpop.f32.mrf.mxu0
      %v2809 = vadd.f32 0.0, %v2808
      %2810 = vmatmul.bf16.gmra.mxu0 %v2736
      %v2811 = vpop.f32.mrf.mxu0
      %v2812 = vadd.f32 0.0, %v2811
      %v2813 = vpop.f32.mrf.mxu0
      %v2814 = vadd.f32 0.0, %v2813
      %2815 = vmatmul.bf16.gmra.mxu0 %v2739
      %v2816 = vpop.f32.mrf.mxu0
      %v2817 = vadd.f32 0.0, %v2816
      %v2818 = vpop.f32.mrf.mxu0
      %v2819 = vadd.f32 0.0, %v2818
      %2820 = vmatmul.bf16.gmra.mxu0 %v2742
      %v2821 = vpop.f32.mrf.mxu0
      %v2822 = vadd.f32 0.0, %v2821
      %v2823 = vpop.f32.mrf.mxu0
      %v2824 = vadd.f32 0.0, %v2823
      %2825 = vmatmul.bf16.gmra.mxu0 %v2745
      %v2826 = vpop.f32.mrf.mxu0
      %v2827 = vadd.f32 0.0, %v2826
      %v2828 = vpop.f32.mrf.mxu0
      %v2829 = vadd.f32 0.0, %v2828
      %2830 = vmatmul.bf16.gmra.mxu0 %v2748
      %v2831 = vpop.f32.mrf.mxu0
      %v2832 = vadd.f32 0.0, %v2831
      %v2833 = vpop.f32.mrf.mxu0
      %v2834 = vadd.f32 0.0, %v2833
      %2835 = vmatmul.bf16.gmra.mxu0 %v2751
      %v2836 = vpop.f32.mrf.mxu0
      %v2837 = vadd.f32 0.0, %v2836
      %v2838 = vpop.f32.mrf.mxu0
      %v2839 = vadd.f32 0.0, %v2838
      %2840 = vmatmul.bf16.gmra.mxu0 %v2754
      %v2841 = vpop.f32.mrf.mxu0
      %v2842 = vadd.f32 0.0, %v2841
      %v2843 = vpop.f32.mrf.mxu0
      %v2844 = vadd.f32 0.0, %v2843
      %2845 = vmatmul.bf16.gmra.mxu0 %v2757
      %v2846 = vpop.f32.mrf.mxu0
      %v2847 = vadd.f32 0.0, %v2846
      %v2848 = vpop.f32.mrf.mxu0
      %v2849 = vadd.f32 0.0, %v2848
      %2850 = vmatmul.bf16.gmra.mxu0 %v2760
      %v2851 = vpop.f32.mrf.mxu0
      %v2852 = vadd.f32 0.0, %v2851
      %v2853 = vpop.f32.mrf.mxu0
      %v2854 = vadd.f32 0.0, %v2853
      %2855 = vmatmul.bf16.gmra.mxu0 %v2763
      %v2856 = vpop.f32.mrf.mxu0
      %v2857 = vadd.f32 0.0, %v2856
      %v2858 = vpop.f32.mrf.mxu0
      %v2859 = vadd.f32 0.0, %v2858
      %2860 = vmatmul.bf16.gmra.mxu0 %v2766
      %v2861 = vpop.f32.mrf.mxu0
      %v2862 = vadd.f32 0.0, %v2861
      %v2863 = vpop.f32.mrf.mxu0
      %v2864 = vadd.f32 0.0, %v2863
      %2865 = vmatmul.bf16.gmra.mxu0 %v2769
      %v2866 = vpop.f32.mrf.mxu0
      %v2867 = vadd.f32 0.0, %v2866
      %v2868 = vpop.f32.mrf.mxu0
      %v2869 = vadd.f32 0.0, %v2868
      %2870 = vmatmul.bf16.gmra.mxu0 %v2772
      %v2871 = vpop.f32.mrf.mxu0
      %v2872 = vadd.f32 0.0, %v2871
      %v2873 = vpop.f32.mrf.mxu0
      %v2874 = vadd.f32 0.0, %v2873
      %2875 = vdwg.mxu0
      %v2876 = vadd.f32 %v2628, %v2787
      %v2877 = vadd.f32 %v2629, %v2789
      %v2878 = vadd.f32 %v2630, %v2792
      %v2879 = vadd.f32 %v2631, %v2794
      %v2880 = vadd.f32 %v2632, %v2797
      %v2881 = vadd.f32 %v2633, %v2799
      %v2882 = vadd.f32 %v2634, %v2802
      %v2883 = vadd.f32 %v2635, %v2804
      %v2884 = vadd.f32 %v2636, %v2807
      %v2885 = vadd.f32 %v2637, %v2809
      %v2886 = vadd.f32 %v2638, %v2812
      %v2887 = vadd.f32 %v2639, %v2814
      %v2888 = vadd.f32 %v2640, %v2817
      %v2889 = vadd.f32 %v2641, %v2819
      %v2890 = vadd.f32 %v2642, %v2822
      %v2891 = vadd.f32 %v2643, %v2824
      %v2892 = vadd.f32 %v2644, %v2827
      %v2893 = vadd.f32 %v2645, %v2829
      %v2894 = vadd.f32 %v2646, %v2832
      %v2895 = vadd.f32 %v2647, %v2834
      %v2896 = vadd.f32 %v2648, %v2837
      %v2897 = vadd.f32 %v2649, %v2839
      %v2898 = vadd.f32 %v2650, %v2842
      %v2899 = vadd.f32 %v2651, %v2844
      %v2900 = vadd.f32 %v2652, %v2847
      %v2901 = vadd.f32 %v2653, %v2849
      %v2902 = vadd.f32 %v2654, %v2852
      %v2903 = vadd.f32 %v2655, %v2854
      %v2904 = vadd.f32 %v2656, %v2857
      %v2905 = vadd.f32 %v2657, %v2859
      %v2906 = vadd.f32 %v2658, %v2862
      %v2907 = vadd.f32 %v2659, %v2864
      %v2908 = vadd.f32 %v2660, %v2867
      %v2909 = vadd.f32 %v2661, %v2869
      %v2910 = vadd.f32 %v2662, %v2872
      %v2911 = vadd.f32 %v2663, %v2874
      %v2912 = vmul.f32 %v2876, %v491
      %v2913 = vmul.f32 %v2877, %v496
      %v2914 = vmul.f32 %v2878, %v501
      %v2915 = vmul.f32 %v2879, %v506
      %v2916 = vmul.f32 %v2880, %v511
      %v2917 = vmul.f32 %v2881, %v516
      %v2918 = vmul.f32 %v2882, %v521
      %v2919 = vmul.f32 %v2883, %v526
      %v2920 = vmul.f32 %v2884, %v531
      %v2921 = vmul.f32 %v2885, %v536
      %v2922 = vmul.f32 %v2886, %v541
      %v2923 = vmul.f32 %v2887, %v546
      %v2924 = vmul.f32 %v2888, %v551
      %v2925 = vmul.f32 %v2889, %v556
      %v2926 = vmul.f32 %v2890, %v561
      %v2927 = vmul.f32 %v2891, %v566
      %v2928 = vmul.f32 %v2892, %v571
      %v2929 = vmul.f32 %v2893, %v576
      %v2930 = vmul.f32 %v2894, %v581
      %v2931 = vmul.f32 %v2895, %v586
      %v2932 = vmul.f32 %v2896, %v591
      %v2933 = vmul.f32 %v2897, %v596
      %v2934 = vmul.f32 %v2898, %v601
      %v2935 = vmul.f32 %v2899, %v606
      %v2936 = vmul.f32 %v2900, %v611
      %v2937 = vmul.f32 %v2901, %v616
      %v2938 = vmul.f32 %v2902, %v621
      %v2939 = vmul.f32 %v2903, %v626
      %v2940 = vmul.f32 %v2904, %v631
      %v2941 = vmul.f32 %v2905, %v636
      %v2942 = vmul.f32 %v2906, %v641
      %v2943 = vmul.f32 %v2907, %v646
      %v2944 = vmul.f32 %v2908, %v651
      %v2945 = vmul.f32 %v2909, %v656
      %v2946 = vmul.f32 %v2910, %v661
      %v2947 = vmul.f32 %v2911, %v666
      %v2948 = vsel %vm704, %v2912, 0.0
      %v2949 = vsel %vm704, %v2913, 0.0
      %v2950 = vadd.f32 %v2948, %v2949
      %v2951 = vsel %vm704, %v2914, 0.0
      %v2952 = vadd.f32 %v2950, %v2951
      %v2953 = vsel %vm704, %v2915, 0.0
      %v2954 = vadd.f32 %v2952, %v2953
      %v2955 = vsel %vm704, %v2916, 0.0
      %v2956 = vadd.f32 %v2954, %v2955
      %v2957 = vsel %vm704, %v2917, 0.0
      %v2958 = vadd.f32 %v2956, %v2957
      %v2959 = vsel %vm704, %v2918, 0.0
      %v2960 = vadd.f32 %v2958, %v2959
      %v2961 = vsel %vm704, %v2919, 0.0
      %v2962 = vadd.f32 %v2960, %v2961
      %v2963 = vsel %vm704, %v2920, 0.0
      %v2964 = vadd.f32 %v2962, %v2963
      %v2965 = vsel %vm704, %v2921, 0.0
      %v2966 = vadd.f32 %v2964, %v2965
      %v2967 = vsel %vm704, %v2922, 0.0
      %v2968 = vadd.f32 %v2966, %v2967
      %v2969 = vsel %vm704, %v2923, 0.0
      %v2970 = vadd.f32 %v2968, %v2969
      %v2971 = vsel %vm704, %v2924, 0.0
      %v2972 = vadd.f32 %v2970, %v2971
      %v2973 = vsel %vm704, %v2925, 0.0
      %v2974 = vadd.f32 %v2972, %v2973
      %v2975 = vsel %vm704, %v2926, 0.0
      %v2976 = vadd.f32 %v2974, %v2975
      %v2977 = vsel %vm704, %v2927, 0.0
      %v2978 = vadd.f32 %v2976, %v2977
      %v2979 = vsel %vm704, %v2928, 0.0
      %v2980 = vadd.f32 %v2978, %v2979
      %v2981 = vsel %vm704, %v2929, 0.0
      %v2982 = vadd.f32 %v2980, %v2981
      %v2983 = vsel %vm704, %v2930, 0.0
      %v2984 = vadd.f32 %v2982, %v2983
      %v2985 = vsel %vm704, %v2931, 0.0
      %v2986 = vadd.f32 %v2984, %v2985
      %v2987 = vsel %vm704, %v2932, 0.0
      %v2988 = vadd.f32 %v2986, %v2987
      %v2989 = vsel %vm704, %v2933, 0.0
      %v2990 = vadd.f32 %v2988, %v2989
      %v2991 = vsel %vm704, %v2934, 0.0
      %v2992 = vadd.f32 %v2990, %v2991
      %v2993 = vsel %vm704, %v2935, 0.0
      %v2994 = vadd.f32 %v2992, %v2993
      %v2995 = vsel %vm704, %v2936, 0.0
      %v2996 = vadd.f32 %v2994, %v2995
      %v2997 = vsel %vm704, %v2937, 0.0
      %v2998 = vadd.f32 %v2996, %v2997
      %v2999 = vsel %vm704, %v2938, 0.0
      %v3000 = vadd.f32 %v2998, %v2999
      %v3001 = vsel %vm704, %v2939, 0.0
      %v3002 = vadd.f32 %v3000, %v3001
      %v3003 = vsel %vm704, %v2940, 0.0
      %v3004 = vadd.f32 %v3002, %v3003
      %v3005 = vsel %vm704, %v2941, 0.0
      %v3006 = vadd.f32 %v3004, %v3005
      %v3007 = vsel %vm704, %v2942, 0.0
      %v3008 = vadd.f32 %v3006, %v3007
      %v3009 = vsel %vm704, %v2943, 0.0
      %v3010 = vadd.f32 %v3008, %v3009
      %v3011 = vsel %vm704, %v2944, 0.0
      %v3012 = vadd.f32 %v3010, %v3011
      %v3013 = vsel %vm704, %v2945, 0.0
      %v3014 = vadd.f32 %v3012, %v3013
      %v3015 = vsel %vm704, %v2946, 0.0
      %v3016 = vadd.f32 %v3014, %v3015
      %v3017 = vsel %vm704, %v2947, 0.0
      %v3018 = vadd.f32 %v3016, %v3017
      %v3019 = vrot.slane %v3018, 4
      %v3020 = vadd.f32 %v3018, %v3019
      %v3021 = vrot.slane %v3020, 2
      %v3022 = vadd.f32 %v3020, %v3021
      %v3023 = vrot.slane %v3022, 1
      %v3024 = vadd.f32 %v3022, %v3023
      %vm3025 = vcmask 57344
      %3026 = vst.msk [vmem:[%s262] sm:$0x1] %vm3025, %v3024
      %v3027 = vmul.f32 %v2912, %v2876
      %v3028 = vmul.f32 %v2913, %v2877
      %v3029 = vmul.f32 %v2914, %v2878
      %v3030 = vmul.f32 %v2915, %v2879
      %v3031 = vmul.f32 %v2916, %v2880
      %v3032 = vmul.f32 %v2917, %v2881
      %v3033 = vmul.f32 %v2918, %v2882
      %v3034 = vmul.f32 %v2919, %v2883
      %v3035 = vmul.f32 %v2920, %v2884
      %v3036 = vmul.f32 %v2921, %v2885
      %v3037 = vmul.f32 %v2922, %v2886
      %v3038 = vmul.f32 %v2923, %v2887
      %v3039 = vmul.f32 %v2924, %v2888
      %v3040 = vmul.f32 %v2925, %v2889
      %v3041 = vmul.f32 %v2926, %v2890
      %v3042 = vmul.f32 %v2927, %v2891
      %v3043 = vmul.f32 %v2928, %v2892
      %v3044 = vmul.f32 %v2929, %v2893
      %v3045 = vmul.f32 %v2930, %v2894
      %v3046 = vmul.f32 %v2931, %v2895
      %v3047 = vmul.f32 %v2932, %v2896
      %v3048 = vmul.f32 %v2933, %v2897
      %v3049 = vmul.f32 %v2934, %v2898
      %v3050 = vmul.f32 %v2935, %v2899
      %v3051 = vmul.f32 %v2936, %v2900
      %v3052 = vmul.f32 %v2937, %v2901
      %v3053 = vmul.f32 %v2938, %v2902
      %v3054 = vmul.f32 %v2939, %v2903
      %v3055 = vmul.f32 %v2940, %v2904
      %v3056 = vmul.f32 %v2941, %v2905
      %v3057 = vmul.f32 %v2942, %v2906
      %v3058 = vmul.f32 %v2943, %v2907
      %v3059 = vmul.f32 %v2944, %v2908
      %v3060 = vmul.f32 %v2945, %v2909
      %v3061 = vmul.f32 %v2946, %v2910
      %v3062 = vmul.f32 %v2947, %v2911
      %v3063 = vsel %vm704, %v3027, 0.0
      %v3064 = vsel %vm704, %v3028, 0.0
      %v3065 = vadd.f32 %v3063, %v3064
      %v3066 = vsel %vm704, %v3029, 0.0
      %v3067 = vadd.f32 %v3065, %v3066
      %v3068 = vsel %vm704, %v3030, 0.0
      %v3069 = vadd.f32 %v3067, %v3068
      %v3070 = vsel %vm704, %v3031, 0.0
      %v3071 = vadd.f32 %v3069, %v3070
      %v3072 = vsel %vm704, %v3032, 0.0
      %v3073 = vadd.f32 %v3071, %v3072
      %v3074 = vsel %vm704, %v3033, 0.0
      %v3075 = vadd.f32 %v3073, %v3074
      %v3076 = vsel %vm704, %v3034, 0.0
      %v3077 = vadd.f32 %v3075, %v3076
      %v3078 = vsel %vm704, %v3035, 0.0
      %v3079 = vadd.f32 %v3077, %v3078
      %v3080 = vsel %vm704, %v3036, 0.0
      %v3081 = vadd.f32 %v3079, %v3080
      %v3082 = vsel %vm704, %v3037, 0.0
      %v3083 = vadd.f32 %v3081, %v3082
      %v3084 = vsel %vm704, %v3038, 0.0
      %v3085 = vadd.f32 %v3083, %v3084
      %v3086 = vsel %vm704, %v3039, 0.0
      %v3087 = vadd.f32 %v3085, %v3086
      %v3088 = vsel %vm704, %v3040, 0.0
      %v3089 = vadd.f32 %v3087, %v3088
      %v3090 = vsel %vm704, %v3041, 0.0
      %v3091 = vadd.f32 %v3089, %v3090
      %v3092 = vsel %vm704, %v3042, 0.0
      %v3093 = vadd.f32 %v3091, %v3092
      %v3094 = vsel %vm704, %v3043, 0.0
      %v3095 = vadd.f32 %v3093, %v3094
      %v3096 = vsel %vm704, %v3044, 0.0
      %v3097 = vadd.f32 %v3095, %v3096
      %v3098 = vsel %vm704, %v3045, 0.0
      %v3099 = vadd.f32 %v3097, %v3098
      %v3100 = vsel %vm704, %v3046, 0.0
      %v3101 = vadd.f32 %v3099, %v3100
      %v3102 = vsel %vm704, %v3047, 0.0
      %v3103 = vadd.f32 %v3101, %v3102
      %v3104 = vsel %vm704, %v3048, 0.0
      %v3105 = vadd.f32 %v3103, %v3104
      %v3106 = vsel %vm704, %v3049, 0.0
      %v3107 = vadd.f32 %v3105, %v3106
      %v3108 = vsel %vm704, %v3050, 0.0
      %v3109 = vadd.f32 %v3107, %v3108
      %v3110 = vsel %vm704, %v3051, 0.0
      %v3111 = vadd.f32 %v3109, %v3110
      %v3112 = vsel %vm704, %v3052, 0.0
      %v3113 = vadd.f32 %v3111, %v3112
      %v3114 = vsel %vm704, %v3053, 0.0
      %v3115 = vadd.f32 %v3113, %v3114
      %v3116 = vsel %vm704, %v3054, 0.0
      %v3117 = vadd.f32 %v3115, %v3116
      %v3118 = vsel %vm704, %v3055, 0.0
      %v3119 = vadd.f32 %v3117, %v3118
      %v3120 = vsel %vm704, %v3056, 0.0
      %v3121 = vadd.f32 %v3119, %v3120
      %v3122 = vsel %vm704, %v3057, 0.0
      %v3123 = vadd.f32 %v3121, %v3122
      %v3124 = vsel %vm704, %v3058, 0.0
      %v3125 = vadd.f32 %v3123, %v3124
      %v3126 = vsel %vm704, %v3059, 0.0
      %v3127 = vadd.f32 %v3125, %v3126
      %v3128 = vsel %vm704, %v3060, 0.0
      %v3129 = vadd.f32 %v3127, %v3128
      %v3130 = vsel %vm704, %v3061, 0.0
      %v3131 = vadd.f32 %v3129, %v3130
      %v3132 = vsel %vm704, %v3062, 0.0
      %v3133 = vadd.f32 %v3131, %v3132
      %v3134 = vrot.slane %v3133, 4
      %v3135 = vadd.f32 %v3133, %v3134
      %v3136 = vrot.slane %v3135, 2
      %v3137 = vadd.f32 %v3135, %v3136
      %v3138 = vrot.slane %v3137, 1
      %v3139 = vadd.f32 %v3137, %v3138
      %3140 = vst.msk [vmem:[%s262 + $0x1] sm:$0x1] %vm3025, %v3139
      %v3141 = vpack.c.bf16 %v2876, %v2876
      %v3142 = vpack.c.bf16 %v2877, %v2877
      %v3143 = vpack.c.bf16 %v2878, %v2878
      %v3144 = vpack.c.bf16 %v2879, %v2879
      %v3145 = vpack.c.bf16 %v2880, %v2880
      %v3146 = vpack.c.bf16 %v2881, %v2881
      %v3147 = vpack.c.bf16 %v2882, %v2882
      %v3148 = vpack.c.bf16 %v2883, %v2883
      %v3149 = vpack.c.bf16 %v2884, %v2884
      %v3150 = vpack.c.bf16 %v2885, %v2885
      %v3151 = vpack.c.bf16 %v2886, %v2886
      %v3152 = vpack.c.bf16 %v2887, %v2887
      %v3153 = vpack.c.bf16 %v2888, %v2888
      %v3154 = vpack.c.bf16 %v2889, %v2889
      %v3155 = vpack.c.bf16 %v2890, %v2890
      %v3156 = vpack.c.bf16 %v2891, %v2891
      %v3157 = vpack.c.bf16 %v2892, %v2892
      %v3158 = vpack.c.bf16 %v2893, %v2893
      %v3159 = vpack.c.bf16 %v2894, %v2894
      %v3160 = vpack.c.bf16 %v2895, %v2895
      %v3161 = vpack.c.bf16 %v2896, %v2896
      %v3162 = vpack.c.bf16 %v2897, %v2897
      %v3163 = vpack.c.bf16 %v2898, %v2898
      %v3164 = vpack.c.bf16 %v2899, %v2899
      %v3165 = vpack.c.bf16 %v2900, %v2900
      %v3166 = vpack.c.bf16 %v2901, %v2901
      %v3167 = vpack.c.bf16 %v2902, %v2902
      %v3168 = vpack.c.bf16 %v2903, %v2903
      %v3169 = vpack.c.bf16 %v2904, %v2904
      %v3170 = vpack.c.bf16 %v2905, %v2905
      %v3171 = vpack.c.bf16 %v2906, %v2906
      %v3172 = vpack.c.bf16 %v2907, %v2907
      %v3173 = vpack.c.bf16 %v2908, %v2908
      %v3174 = vpack.c.bf16 %v2909, %v2909
      %v3175 = vpack.c.bf16 %v2910, %v2910
      %v3176 = vpack.c.bf16 %v2911, %v2911
      %3177 = vst.msk [vmem:[%s258] sm:$0xf] %vm709, %v3141
      %3178 = vst.msk [vmem:[%s258 + $0x4] sm:$0xf] %vm709, %v3142
      %3179 = vst.msk [vmem:[%s258 + $0x8] sm:$0xf] %vm709, %v3143
      %3180 = vst.msk [vmem:[%s258 + $0xc] sm:$0xf] %vm709, %v3144
      %3181 = vst.msk [vmem:[%s258 + $0x10] sm:$0xf] %vm709, %v3145
      %3182 = vst.msk [vmem:[%s258 + $0x14] sm:$0xf] %vm709, %v3146
      %3183 = vst.msk [vmem:[%s258 + $0x18] sm:$0xf] %vm709, %v3147
      %3184 = vst.msk [vmem:[%s258 + $0x1c] sm:$0xf] %vm709, %v3148
      %3185 = vst.msk [vmem:[%s258 + $0x20] sm:$0xf] %vm709, %v3149
      %3186 = vst.msk [vmem:[%s258 + $0x24] sm:$0xf] %vm709, %v3150
      %3187 = vst.msk [vmem:[%s258 + $0x28] sm:$0xf] %vm709, %v3151
      %3188 = vst.msk [vmem:[%s258 + $0x2c] sm:$0xf] %vm709, %v3152
      %3189 = vst.msk [vmem:[%s258 + $0x30] sm:$0xf] %vm709, %v3153
      %3190 = vst.msk [vmem:[%s258 + $0x34] sm:$0xf] %vm709, %v3154
      %3191 = vst.msk [vmem:[%s258 + $0x38] sm:$0xf] %vm709, %v3155
      %3192 = vst.msk [vmem:[%s258 + $0x3c] sm:$0xf] %vm709, %v3156
      %3193 = vst.msk [vmem:[%s258 + $0x40] sm:$0xf] %vm709, %v3157
      %3194 = vst.msk [vmem:[%s258 + $0x44] sm:$0xf] %vm709, %v3158
      %3195 = vst.msk [vmem:[%s258 + $0x48] sm:$0xf] %vm709, %v3159
      %3196 = vst.msk [vmem:[%s258 + $0x4c] sm:$0xf] %vm709, %v3160
      %3197 = vst.msk [vmem:[%s258 + $0x50] sm:$0xf] %vm709, %v3161
      %3198 = vst.msk [vmem:[%s258 + $0x54] sm:$0xf] %vm709, %v3162
      %3199 = vst.msk [vmem:[%s258 + $0x58] sm:$0xf] %vm709, %v3163
      %3200 = vst.msk [vmem:[%s258 + $0x5c] sm:$0xf] %vm709, %v3164
      %3201 = vst.msk [vmem:[%s258 + $0x60] sm:$0xf] %vm709, %v3165
      %3202 = vst.msk [vmem:[%s258 + $0x64] sm:$0xf] %vm709, %v3166
      %3203 = vst.msk [vmem:[%s258 + $0x68] sm:$0xf] %vm709, %v3167
      %3204 = vst.msk [vmem:[%s258 + $0x6c] sm:$0xf] %vm709, %v3168
      %3205 = vst.msk [vmem:[%s258 + $0x70] sm:$0xf] %vm709, %v3169
      %3206 = vst.msk [vmem:[%s258 + $0x74] sm:$0xf] %vm709, %v3170
      %3207 = vst.msk [vmem:[%s258 + $0x78] sm:$0xf] %vm709, %v3171
      %3208 = vst.msk [vmem:[%s258 + $0x7c] sm:$0xf] %vm709, %v3172
      %3209 = vst.msk [vmem:[%s258 + $0x80] sm:$0xf] %vm709, %v3173
      %3210 = vst.msk [vmem:[%s258 + $0x84] sm:$0xf] %vm709, %v3174
      %3211 = vst.msk [vmem:[%s258 + $0x88] sm:$0xf] %vm709, %v3175
      %3212 = vst.msk [vmem:[%s258 + $0x8c] sm:$0xf] %vm709, %v3176
      %p3213 = scmp.lt.s32.totalorder %s18, 1
      %s3214 = scalar_select %p3213, %s18, 1
      %s3215 = smul.addr %s3214, 36
      %s3216 = smul.addr %s3215, 4
      %s3217 = scalar_lea.vmem %s5, %s3216
      %p3218 = scmp.lt.s32.totalorder %s18, 1
      %s3219 = scalar_select %p3218, %s18, 1
      %s3220 = smul.addr %s3219, 2
      %s3221 = scalar_lea.vmem %s6, %s3220
      // Predicated region
      $region41: #{resblock_forward.4} parent=39 // pred_check
        %p3222 = pneg %p146
      $region42: #{resblock_forward.4} parent=39 // pred_check_branch
        %3224 = sbr.rel (%p3222) target = $region44
      $region43: #{resblock_forward.4} parent=39 // pred_region
        _
      $region44: #{resblock_forward.4} parent=39 // pred_fallthru
        _
      // Predicated region
      $region45: #{resblock_forward.4} parent=39 // pred_check
        %p3225 = pneg %p172
      $region46: #{resblock_forward.4} parent=39 // pred_check_branch
        %3227 = sbr.rel (%p3225) target = $region48
      $region47: #{resblock_forward.4} parent=39 // pred_region
        _
      $region48: #{resblock_forward.4} parent=39 // pred_fallthru
        _
    $region40: #{resblock_forward.4} parent=5 // pred_fallthru
      _
    %p3228 = scmp.le.s32.totalorder 2, %s13
    // Predicated region
    $region49: #{resblock_forward.4} parent=5 // pred_check
      %p3229 = pneg %p3228
    $region50: #{resblock_forward.4} parent=5 // pred_check_branch
      %3231 = sbr.rel (%p3229) target = $region52
    $region51: #{resblock_forward.4} parent=5 // pred_region
      %s3232 = ssub.s32 %s13, 2
      // Predicated region
      $region53: #{resblock_forward.4} parent=51 // pred_check
        %p3233 = pneg %p152
      $region54: #{resblock_forward.4} parent=51 // pred_check_branch
        %3235 = sbr.rel (%p3233) target = $region56
      $region55: #{resblock_forward.4} parent=51 // pred_region
        %p3236 = scmp.lt.s32.totalorder %s19, 1
        %s3237 = scalar_select %p3236, %s19, 1
        %s3238 = smul.addr %s3237, 36
        %s3239 = smul.addr %s3238, 4
        %s3240 = scalar_lea.vmem %s5, %s3239
      $region56: #{resblock_forward.4} parent=51 // pred_fallthru
        _
      // Predicated region
      $region57: #{resblock_forward.4} parent=51 // pred_check
        %p3241 = pneg %p178
      $region58: #{resblock_forward.4} parent=51 // pred_check_branch
        %3243 = sbr.rel (%p3241) target = $region60
      $region59: #{resblock_forward.4} parent=51 // pred_region
        %p3244 = scmp.lt.s32.totalorder %s19, 1
        %s3245 = scalar_select %p3244, %s19, 1
        %s3246 = smul.addr %s3245, 2
        %s3247 = scalar_lea.vmem %s6, %s3246
      $region60: #{resblock_forward.4} parent=51 // pred_fallthru
        _
    $region52: #{resblock_forward.4} parent=5 // pred_fallthru
      _
  $region6: #{resblock_forward.4} parent=0 // loop_footer
    %s17 = sadd.s32 1, %s13
  $region7: #{resblock_forward.4} parent=0 // loop_footer_branch
    %12 = sbr.rel target = $region3
  $region8: #{resblock_forward.4} parent=0 // loop_exit
    _

</llo_original>
